<compile_context>
chip_gen: v7x
topology: tpu7x:2x2x1
jax: 0.10.0
libtpu: 0.0.40
codegen_flags: <defaults>
</compile_context>

<pallas_src>
import functools
import math

import jax
import jax.numpy as jnp
from jax.experimental import pallas as pl
from jax.experimental.pallas import tpu as pltpu


def _round_up(v, m):
    return (v + m - 1) // m * m


def _vmem_capacity_bytes():
    """Physical per-core VMEM; conservative (v7x-sized) default if unknown."""
    try:
        cap = int(getattr(pltpu.get_tpu_info(), "vmem_capacity_bytes", 0))
        if cap > 0:
            return cap
    except Exception:  # narrow probe only -- never wraps kernel execution
        pass
    return 64 * 1024 * 1024


def _default_num_partials():
    """One output partial per TensorCore (2 on v7x/megacore, 1 on v5e/v6e)."""
    try:
        return max(1, int(getattr(jax.devices()[0], "num_cores", 1)))
    except Exception:
        return 1


def _pick_tn(n, h, w, wf, hp, in_bytes, cd_bytes, budget_bytes, max_tn):
    """Slabs per grid step: as many as fit the VMEM budget, dividing n."""
    per_slab = (
        4 * h * w * in_bytes                  # x & y input blocks (double-buffered)
        + 2 * h * (2 * wf) * (4 + cd_bytes)   # stage-1 f32 result + compute-dtype cast
        + 4 * wf * h * cd_bytes               # transposed r/i intermediates
        + 4 * wf * (2 * hp) * 4               # stage-2 f32 results (x & y)
        + 8 * wf * hp * 4                     # re/im/mag/diff f32 epilogue
    )
    fixed = wf * hp * 4 + 2 * (w * 2 * wf + h * 2 * hp) * cd_bytes
    avail = max(budget_bytes - fixed, per_slab)
    desired = int(max(1, min(avail // per_slab, max_tn, n, 64)))
    for cand in range(desired, 0, -1):        # divisor of n -> no pad, no OOB tail
        if n % cand == 0:
            return cand
    return 1


def _amp_loss_kernel(x_ref, y_ref, bw_ref, cs_ref, out_ref, *,
                     tn, wf, hp, compute_dtype):
    """One grid step: tn slabs of x and y -> partial sums of | |X|-|Y| |.

    x_ref / y_ref : (tn, H, W)     input dtype
    bw_ref        : (W, 2*wf)      [cos | -sin] W-basis (cols >= Wf zeroed)
    cs_ref        : (H, 2*hp)      [cos |  sin] H-basis (cols >= H  zeroed)
    out_ref       : (1, wf, hp)    resident f32 partial-sum accumulator
    """
    h = x_ref.shape[1]
    w = x_ref.shape[2]

    @pl.when(pl.program_id(1) == 0)
    def _init():
        out_ref[...] = jnp.zeros_like(out_ref)

    bw = bw_ref[...]
    cs = cs_ref[...]

    def spectrum_mag(ref):
        a = ref[...].reshape(tn * h, w).astype(compute_dtype)
        # Stage 1: rDFT over W; one fused matmul -> [r1 | i1] in the lanes.
        s1 = jnp.dot(a, bw, preferred_element_type=jnp.float32)       # (tn*h, 2wf)
        s1 = s1.astype(compute_dtype)                                 # cast BEFORE transpose
        # Single batched minor-dim transpose (XLU) per half; lane-aligned slices.
        r1t = s1[:, :wf].reshape(tn, h, wf).transpose(0, 2, 1).reshape(tn * wf, h)
        i1t = s1[:, wf:].reshape(tn, h, wf).transpose(0, 2, 1).reshape(tn * wf, h)
        # Stage 2: full DFT over H against the fused [cos | sin] basis.
        rcs = jnp.dot(r1t, cs, preferred_element_type=jnp.float32)    # (tn*wf, 2hp)
        ics = jnp.dot(i1t, cs, preferred_element_type=jnp.float32)
        re = rcs[:, :hp] + ics[:, hp:]                                # free lane-tile slices
        im = ics[:, :hp] - rcs[:, hp:]
        return jnp.sqrt(re * re + im * im)                            # (tn*wf, hp) f32

    diff = jnp.abs(spectrum_mag(x_ref) - spectrum_mag(y_ref))         # (tn*wf, hp)
    # Partial in-kernel reduction over the tn slabs keeps the resident
    # accumulator (and its per-step load/add/store traffic) at (wf, hp).
    out_ref[0] += diff.reshape(tn, wf, hp).sum(axis=0)


def amp_loss(x, y, *, compute_dtype=jnp.bfloat16, num_partials=None):
    """Mean L1 difference of rfft2 amplitude spectra (PyTorch AMPLoss).

    For very large H/W prefer compute_dtype=jnp.float32: bf16 DFT bases lose
    accuracy as the transform size grows.
    """
    assert x.shape == y.shape and x.ndim == 4, "expected NCHW inputs"
    B, C, H, W = x.shape
    Wf = W // 2 + 1
    N = B * C

    WF = _round_up(Wf, 128)       # lane-aligned rDFT width
    Hp = _round_up(H, 128)        # lane-aligned H-DFT width
    cd_bytes = jnp.dtype(compute_dtype).itemsize
    in_bytes = jnp.dtype(x.dtype).itemsize

    if num_partials is None:
        num_partials = _default_num_partials()

    vmem_cap = _vmem_capacity_bytes()
    vmem_limit = min(int(vmem_cap * 0.55), 100 * 1024 * 1024)
    tn = _pick_tn(N, H, W, WF, Hp, in_bytes, cd_bytes,
                  budget_bytes=int(vmem_limit * 0.7),
                  max_tn=max(1, N // max(num_partials, 1)))
    G = N // tn
    P = max(1, min(num_partials, G))
    while G % P:
        P -= 1
    Gp = G // P

    # DFT bases (built in f32, stored in the compute dtype).  Columns beyond
    # the valid frequency range are zeroed so padded bins have zero magnitude
    # for both inputs and contribute exactly 0 to the sum.
    wi = jnp.arange(W, dtype=jnp.float32)
    kw = jnp.arange(WF, dtype=jnp.float32)
    th_w = (2.0 * math.pi / W) * jnp.outer(wi, kw)
    wmask = (kw < Wf).astype(jnp.float32)[None, :]
    bw = jnp.concatenate([jnp.cos(th_w) * wmask, -jnp.sin(th_w) * wmask],
                         axis=1).astype(compute_dtype)                # (W, 2*WF)

    hi = jnp.arange(H, dtype=jnp.float32)
    kh = jnp.arange(Hp, dtype=jnp.float32)
    th_h = (2.0 * math.pi / H) * jnp.outer(hi, kh)
    hmask = (kh < H).astype(jnp.float32)[None, :]
    cs = jnp.concatenate([jnp.cos(th_h) * hmask, jnp.sin(th_h) * hmask],
                         axis=1).astype(compute_dtype)                # (H, 2*Hp)

    # No host-side dtype cast / padding of the inputs: cast happens in-kernel.
    xr = x.reshape(N, H, W)
    yr = y.reshape(N, H, W)

    kernel = functools.partial(_amp_loss_kernel, tn=tn, wf=WF, hp=Hp,
                               compute_dtype=compute_dtype)

    cost = pl.CostEstimate(
        flops=int(8 * N * H * W * WF + 16 * N * H * WF * Hp),
        transcendentals=int(2 * N * WF * Hp),
        bytes_accessed=int(2 * N * H * W * in_bytes + P * WF * Hp * 4
                           + (W * 2 * WF + H * 2 * Hp) * cd_bytes))

    data_map = lambda p, i: (p * Gp + i, 0, 0)
    out = pl.pallas_call(
        kernel,
        out_shape=jax.ShapeDtypeStruct((P, WF, Hp), jnp.float32),
        grid_spec=pltpu.PrefetchScalarGridSpec(
            num_scalar_prefetch=0,
            grid=(P, Gp),
            in_specs=[
                pl.BlockSpec((tn, H, W), data_map),                    # x slabs
                pl.BlockSpec((tn, H, W), data_map),                    # y slabs
                pl.BlockSpec((W, 2 * WF), lambda p, i: (0, 0)),        # W basis
                pl.BlockSpec((H, 2 * Hp), lambda p, i: (0, 0)),        # H basis
            ],
            out_specs=pl.BlockSpec((1, WF, Hp), lambda p, i: (p, 0, 0)),
        ),
        compiler_params=pltpu.CompilerParams(
            dimension_semantics=("parallel", "arbitrary"),
            vmem_limit_bytes=int(vmem_limit)),
        cost_estimate=cost,
    )(xr, yr, bw, cs)

    return jnp.sum(out) * (1.0 / float(N * H * Wf))


def amp_loss_ref(x, y):
    xm = jnp.abs(jnp.fft.rfft2(x.astype(jnp.float32), norm="backward"))
    ym = jnp.abs(jnp.fft.rfft2(y.astype(jnp.float32), norm="backward"))
    return jnp.mean(jnp.abs(xm - ym))


if __name__ == "__main__":
    key = jax.random.PRNGKey(0)
    kx, ky = jax.random.split(key)
    B, C, H, W = 2, 4, 16, 16
    x = jax.random.normal(kx, (B, C, H, W), dtype=jnp.float32)
    y = jax.random.normal(ky, (B, C, H, W), dtype=jnp.float32)

    ref = jax.block_until_ready(amp_loss_ref(x, y))

    loss_f32 = jax.block_until_ready(amp_loss(x, y, compute_dtype=jnp.float32))
    loss_bf16 = jax.block_until_ready(amp_loss(x, y, compute_dtype=jnp.bfloat16))

    r = abs(float(ref))
    assert jnp.isfinite(loss_f32) and jnp.isfinite(loss_bf16)
    assert abs(float(loss_f32) - float(ref)) <= 5e-3 * max(1.0, r), (
        float(loss_f32), float(ref))
    assert abs(float(loss_bf16) - float(ref)) <= 2e-2 * max(1.0, r), (
        float(loss_bf16), float(ref))
    print("KERNEL_OK")
</pallas_src>

<mosaic_0001>
module attributes {stable_mosaic.version = 11 : i64} {
  func.func @_amp_loss_kernel(%arg0: i32, %arg1: i32, %arg2: memref<8x16x16xf32, #tpu.memory_space<vmem>>, %arg3: memref<8x16x16xf32, #tpu.memory_space<vmem>>, %arg4: memref<16x256xf32, #tpu.memory_space<vmem>>, %arg5: memref<16x256xf32, #tpu.memory_space<vmem>>, %arg6: memref<1x128x128xf32, #tpu.memory_space<vmem>>) attributes {dimension_semantics = [#tpu.dimension_semantics<parallel>, #tpu.dimension_semantics<arbitrary>], iteration_bounds = array<i64: 1, 1>, scalar_prefetch = 0 : i64, scratch_operands = 0 : i64, tpu.core_type = #tpu.core_type<tc>, window_params = [{transform_indices = @transform_0, window_bounds = array<i64: 8, 16, 16>}, {transform_indices = @transform_1, window_bounds = array<i64: 8, 16, 16>}, {pipeline_mode = #tpu.pipeline_mode<synchronous>, transform_indices = @transform_2, window_bounds = array<i64: 16, 256>}, {pipeline_mode = #tpu.pipeline_mode<synchronous>, transform_indices = @transform_3, window_bounds = array<i64: 16, 256>}, {transform_indices = @transform_4, window_bounds = array<i64: 1, 128, 128>}]} {
    %c0_i32 = arith.constant 0 : i32
    %0 = arith.cmpi eq, %arg1, %c0_i32 : i32
    %1 = arith.extui %0 : i1 to i32
    %c0_i32_0 = arith.constant 0 : i32
    %2 = arith.cmpi ne, %1, %c0_i32_0 : i32
    scf.if %2 {
      %cst_22 = arith.constant 0.000000e+00 : f32
      %61 = vector.broadcast %cst_22 : f32 to vector<1x128x128xf32>
      %c0_23 = arith.constant 0 : index
      %c0_24 = arith.constant 0 : index
      %c0_25 = arith.constant 0 : index
      %62 = vector.load %arg6[%c0_23, %c0_24, %c0_25] : memref<1x128x128xf32, #tpu.memory_space<vmem>>, vector<1x128x128xf32>
      tpu.vector_store %arg6[%c0_23, %c0_24, %c0_25], %61 {strides = array<i32>} : memref<1x128x128xf32, #tpu.memory_space<vmem>>, vector<1x128x128xf32>,
    } else {
    }
    %c0 = arith.constant 0 : index
    %c0_1 = arith.constant 0 : index
    %3 = vector.load %arg4[%c0, %c0_1] : memref<16x256xf32, #tpu.memory_space<vmem>>, vector<16x256xf32>
    %c0_2 = arith.constant 0 : index
    %c0_3 = arith.constant 0 : index
    %4 = vector.load %arg5[%c0_2, %c0_3] : memref<16x256xf32, #tpu.memory_space<vmem>>, vector<16x256xf32>
    %c0_4 = arith.constant 0 : index
    %c0_5 = arith.constant 0 : index
    %c0_6 = arith.constant 0 : index
    %5 = vector.load %arg2[%c0_4, %c0_5, %c0_6] : memref<8x16x16xf32, #tpu.memory_space<vmem>>, vector<8x16x16xf32>
    %6 = vector.shape_cast %5 : vector<8x16x16xf32> to vector<128x16xf32>
    %cst = arith.constant dense<0.000000e+00> : vector<128x256xf32>
    %7 = tpu.matmul %6, %3, %cst {dimension_numbers = #tpu.dot_dimension_numbers<[1], [0], [0], [1], [0, 0, 1, 1], [], []>} : vector<128x16xf32>, vector<16x256xf32>, vector<128x256xf32> -> vector<128x256xf32>
    %8 = vector.extract_strided_slice %7 {offsets = [0, 0], sizes = [128, 128], strides = [1, 1]} : vector<128x256xf32> to vector<128x128xf32>
    %9 = vector.shape_cast %8 : vector<128x128xf32> to vector<8x16x128xf32>
    %10 = tpu.transpose %9, [0, 2, 1] : vector<8x16x128xf32> -> vector<8x128x16xf32>
    %11 = vector.shape_cast %10 : vector<8x128x16xf32> to vector<1024x16xf32>
    %12 = vector.extract_strided_slice %7 {offsets = [0, 128], sizes = [128, 128], strides = [1, 1]} : vector<128x256xf32> to vector<128x128xf32>
    %13 = vector.shape_cast %12 : vector<128x128xf32> to vector<8x16x128xf32>
    %14 = tpu.transpose %13, [0, 2, 1] : vector<8x16x128xf32> -> vector<8x128x16xf32>
    %15 = vector.shape_cast %14 : vector<8x128x16xf32> to vector<1024x16xf32>
    %cst_7 = arith.constant dense<0.000000e+00> : vector<1024x256xf32>
    %16 = tpu.matmul %11, %4, %cst_7 {dimension_numbers = #tpu.dot_dimension_numbers<[1], [0], [0], [1], [0, 0, 1, 1], [], []>} : vector<1024x16xf32>, vector<16x256xf32>, vector<1024x256xf32> -> vector<1024x256xf32>
    %cst_8 = arith.constant dense<0.000000e+00> : vector<1024x256xf32>
    %17 = tpu.matmul %15, %4, %cst_8 {dimension_numbers = #tpu.dot_dimension_numbers<[1], [0], [0], [1], [0, 0, 1, 1], [], []>} : vector<1024x16xf32>, vector<16x256xf32>, vector<1024x256xf32> -> vector<1024x256xf32>
    %18 = vector.extract_strided_slice %16 {offsets = [0, 0], sizes = [1024, 128], strides = [1, 1]} : vector<1024x256xf32> to vector<1024x128xf32>
    %19 = vector.extract_strided_slice %17 {offsets = [0, 128], sizes = [1024, 128], strides = [1, 1]} : vector<1024x256xf32> to vector<1024x128xf32>
    %20 = arith.addf %18, %19 : vector<1024x128xf32>
    %21 = vector.extract_strided_slice %17 {offsets = [0, 0], sizes = [1024, 128], strides = [1, 1]} : vector<1024x256xf32> to vector<1024x128xf32>
    %22 = vector.extract_strided_slice %16 {offsets = [0, 128], sizes = [1024, 128], strides = [1, 1]} : vector<1024x256xf32> to vector<1024x128xf32>
    %23 = arith.subf %21, %22 : vector<1024x128xf32>
    %24 = arith.mulf %20, %20 : vector<1024x128xf32>
    %25 = arith.mulf %23, %23 : vector<1024x128xf32>
    %26 = arith.addf %24, %25 : vector<1024x128xf32>
    %27 = math.sqrt %26 : vector<1024x128xf32>
    %c0_9 = arith.constant 0 : index
    %c0_10 = arith.constant 0 : index
    %c0_11 = arith.constant 0 : index
    %28 = vector.load %arg3[%c0_9, %c0_10, %c0_11] : memref<8x16x16xf32, #tpu.memory_space<vmem>>, vector<8x16x16xf32>
    %29 = vector.shape_cast %28 : vector<8x16x16xf32> to vector<128x16xf32>
    %cst_12 = arith.constant dense<0.000000e+00> : vector<128x256xf32>
    %30 = tpu.matmul %29, %3, %cst_12 {dimension_numbers = #tpu.dot_dimension_numbers<[1], [0], [0], [1], [0, 0, 1, 1], [], []>} : vector<128x16xf32>, vector<16x256xf32>, vector<128x256xf32> -> vector<128x256xf32>
    %31 = vector.extract_strided_slice %30 {offsets = [0, 0], sizes = [128, 128], strides = [1, 1]} : vector<128x256xf32> to vector<128x128xf32>
    %32 = vector.shape_cast %31 : vector<128x128xf32> to vector<8x16x128xf32>
    %33 = tpu.transpose %32, [0, 2, 1] : vector<8x16x128xf32> -> vector<8x128x16xf32>
    %34 = vector.shape_cast %33 : vector<8x128x16xf32> to vector<1024x16xf32>
    %35 = vector.extract_strided_slice %30 {offsets = [0, 128], sizes = [128, 128], strides = [1, 1]} : vector<128x256xf32> to vector<128x128xf32>
    %36 = vector.shape_cast %35 : vector<128x128xf32> to vector<8x16x128xf32>
    %37 = tpu.transpose %36, [0, 2, 1] : vector<8x16x128xf32> -> vector<8x128x16xf32>
    %38 = vector.shape_cast %37 : vector<8x128x16xf32> to vector<1024x16xf32>
    %cst_13 = arith.constant dense<0.000000e+00> : vector<1024x256xf32>
    %39 = tpu.matmul %34, %4, %cst_13 {dimension_numbers = #tpu.dot_dimension_numbers<[1], [0], [0], [1], [0, 0, 1, 1], [], []>} : vector<1024x16xf32>, vector<16x256xf32>, vector<1024x256xf32> -> vector<1024x256xf32>
    %cst_14 = arith.constant dense<0.000000e+00> : vector<1024x256xf32>
    %40 = tpu.matmul %38, %4, %cst_14 {dimension_numbers = #tpu.dot_dimension_numbers<[1], [0], [0], [1], [0, 0, 1, 1], [], []>} : vector<1024x16xf32>, vector<16x256xf32>, vector<1024x256xf32> -> vector<1024x256xf32>
    %41 = vector.extract_strided_slice %39 {offsets = [0, 0], sizes = [1024, 128], strides = [1, 1]} : vector<1024x256xf32> to vector<1024x128xf32>
    %42 = vector.extract_strided_slice %40 {offsets = [0, 128], sizes = [1024, 128], strides = [1, 1]} : vector<1024x256xf32> to vector<1024x128xf32>
    %43 = arith.addf %41, %42 : vector<1024x128xf32>
    %44 = vector.extract_strided_slice %40 {offsets = [0, 0], sizes = [1024, 128], strides = [1, 1]} : vector<1024x256xf32> to vector<1024x128xf32>
    %45 = vector.extract_strided_slice %39 {offsets = [0, 128], sizes = [1024, 128], strides = [1, 1]} : vector<1024x256xf32> to vector<1024x128xf32>
    %46 = arith.subf %44, %45 : vector<1024x128xf32>
    %47 = arith.mulf %43, %43 : vector<1024x128xf32>
    %48 = arith.mulf %46, %46 : vector<1024x128xf32>
    %49 = arith.addf %47, %48 : vector<1024x128xf32>
    %50 = math.sqrt %49 : vector<1024x128xf32>
    %51 = arith.subf %27, %50 : vector<1024x128xf32>
    %52 = math.absf %51 : vector<1024x128xf32>
    %c0_15 = arith.constant 0 : index
    %c0_16 = arith.constant 0 : index
    %c0_17 = arith.constant 0 : index
    %53 = vector.load %arg6[%c0_15, %c0_16, %c0_17] : memref<1x128x128xf32, #tpu.memory_space<vmem>>, vector<1x128x128xf32>
    %54 = vector.shape_cast %53 : vector<1x128x128xf32> to vector<128x128xf32>
    %55 = vector.shape_cast %52 : vector<1024x128xf32> to vector<8x128x128xf32>
    %cst_18 = arith.constant dense<0.000000e+00> : vector<128x128xf32>
    %56 = vector.multi_reduction <add>, %55, %cst_18 [0] : vector<8x128x128xf32> to vector<128x128xf32>
    %57 = arith.addf %54, %56 : vector<128x128xf32>
    %c0_19 = arith.constant 0 : index
    %c0_20 = arith.constant 0 : index
    %c0_21 = arith.constant 0 : index
    %58 = vector.load %arg6[%c0_19, %c0_20, %c0_21] : memref<1x128x128xf32, #tpu.memory_space<vmem>>, vector<1x128x128xf32>
    %59 = vector.shape_cast %58 : vector<1x128x128xf32> to vector<128x128xf32>
    %60 = vector.shape_cast %57 : vector<128x128xf32> to vector<1x128x128xf32>
    tpu.vector_store %arg6[%c0_19, %c0_20, %c0_21], %60 {strides = array<i32>} : memref<1x128x128xf32, #tpu.memory_space<vmem>>, vector<1x128x128xf32>,
    return
  }
  func.func @transform_0(%arg0: i32, %arg1: i32) -> (i32, i32, i32) {
    %c1_i32 = arith.constant 1 : i32
    %0 = arith.muli %arg0, %c1_i32 : i32
    %1 = arith.addi %0, %arg1 : i32
    %c0_i32 = arith.constant 0 : i32
    %c0_i32_0 = arith.constant 0 : i32
    %c0_i32_1 = arith.constant 0 : i32
    return %1, %c0_i32, %c0_i32_0 : i32, i32, i32
  }
  func.func @transform_1(%arg0: i32, %arg1: i32) -> (i32, i32, i32) {
    %c1_i32 = arith.constant 1 : i32
    %0 = arith.muli %arg0, %c1_i32 : i32
    %1 = arith.addi %0, %arg1 : i32
    %c0_i32 = arith.constant 0 : i32
    %c0_i32_0 = arith.constant 0 : i32
    %c0_i32_1 = arith.constant 0 : i32
    return %1, %c0_i32, %c0_i32_0 : i32, i32, i32
  }
  func.func @transform_2(%arg0: i32, %arg1: i32) -> (i32, i32) {
    %c0_i32 = arith.constant 0 : i32
    %c0_i32_0 = arith.constant 0 : i32
    %c0_i32_1 = arith.constant 0 : i32
    return %c0_i32, %c0_i32_0 : i32, i32
  }
  func.func @transform_3(%arg0: i32, %arg1: i32) -> (i32, i32) {
    %c0_i32 = arith.constant 0 : i32
    %c0_i32_0 = arith.constant 0 : i32
    %c0_i32_1 = arith.constant 0 : i32
    return %c0_i32, %c0_i32_0 : i32, i32
  }
  func.func @transform_4(%arg0: i32, %arg1: i32) -> (i32, i32, i32) {
    %c0_i32 = arith.constant 0 : i32
    %c0_i32_0 = arith.constant 0 : i32
    %c0_i32_1 = arith.constant 0 : i32
    return %arg0, %c0_i32, %c0_i32_0 : i32, i32, i32
  }
}

</mosaic_0001>

<llo_original>
// kernel: tpu_custom_call.1
$region0: #{tpu_custom_call.1}
  #allocation0 [shape = 'u32[]', space=smem, size = 0x4, offset = 0x4, fixed_abs, tag = 'smem constant byte address 0x4 - core index']
  #allocation1 [shape = 'u32[144,128]{1,0:T(1,128)}', space=vmem, size = 0x12000, scoped, tag = 'internal scratch']
  %s0 = inlined_call_operand.hbm [shape: f32[8,16,16], index: 0, kind: input, shape index: {}]
  %s1 = inlined_call_operand.hbm [shape: f32[8,16,16], index: 1, kind: input, shape index: {}]
  %s2 = inlined_call_operand.hbm [shape: f32[16,256], index: 2, kind: input, shape index: {}]
  %s3 = inlined_call_operand.hbm [shape: f32[16,256], index: 3, kind: input, shape index: {}]
  %s4 = inlined_call_operand.hbm [shape: f32[1,128,128], index: 4, kind: output, shape index: {}]
  %s5 = sld [smem:[#allocation0]]
  $region46: #{tpu_custom_call.1} parent=0
    _
  %s7 = ssub.s32 1, %s5
  %s8 = scalar_select 0, %s7, %s5
  $region1: #{tpu_custom_call.1} parent=0
    #allocation2 [shape = 'u8[65536]{0}', space=vmem, size = 0x10000, scoped, tag = 'input window, operand 0, single buffered']
    #allocation3 [shape = 's32[1]{0}', space=sflag, size = 0x4, scoped, tag = 'scoped memory for tpu_custom_call.1']
    #allocation4 [shape = 's32[1]{0}', space=sflag, size = 0x4, scoped, tag = 'scoped memory for tpu_custom_call.1']
    #allocation5 [shape = 'u8[65536]{0}', space=vmem, size = 0x10000, scoped, tag = 'input window, operand 1, single buffered']
    #allocation6 [shape = 's32[1]{0}', space=sflag, size = 0x4, scoped, tag = 'scoped memory for tpu_custom_call.1']
    #allocation7 [shape = 'u8[16384]{0}', space=vmem, size = 0x4000, scoped, tag = 'input window, operand 2, single buffered']
    #allocation8 [shape = 'u8[16384]{0}', space=vmem, size = 0x4000, scoped, tag = 'input window, operand 3, single buffered']
    #allocation9 [shape = 's32[1]{0}', space=sflag, size = 0x4, scoped, tag = 'scoped memory for tpu_custom_call.1']
    #allocation10 [shape = 'u8[65536]{0}', space=vmem, size = 0x10000, scoped, tag = 'output window, operand 0, single buffered']
    %9 = vsyncpa [#allocation3], 0
    %10 = vsyncpa [#allocation6], 0
    %11 = vsyncpa [#allocation9], 0
    %12 = vsyncpa [#allocation4], 0
    // Predicated region
    $region2: #{tpu_custom_call.1} parent=1 // pred_check
      _
    $region3: #{tpu_custom_call.1} parent=1 // pred_check_branch
      %14 = sbr.rel (0) target = $region5
    $region4: #{tpu_custom_call.1} parent=1 // pred_region
      %s15 = sadd.s32 0, 0
      %s16 = smul.u32 8, %s15
      %s18 = ssub.s32 2048, 2048
      %19 = vsyncadd [#allocation3], %s18
      %s20 = smul.addr %s16, 2
      %s21 = smul.addr %s20, 128
      %s22 = scalar_lea.hbm %s0, %s21
      %s23 = sshll.u32 [#allocation2], 4
      %s24 = int_to_ptr.vmem [resolvable:$true] %s23
      %29 = dma.hbm_to_vmem [thread:$0]  %s22, 2048, %s24, [#allocation3], 128, 128, 8
    $region5: #{tpu_custom_call.1} parent=1 // pred_fallthru
      _
    // Predicated region
    $region6: #{tpu_custom_call.1} parent=1 // pred_check
      _
    $region7: #{tpu_custom_call.1} parent=1 // pred_check_branch
      %31 = sbr.rel (0) target = $region9
    $region8: #{tpu_custom_call.1} parent=1 // pred_region
      %s32 = sadd.s32 0, 0
      %s33 = smul.u32 8, %s32
      %s35 = ssub.s32 2048, 2048
      %36 = vsyncadd [#allocation6], %s35
      %s37 = smul.addr %s33, 2
      %s38 = smul.addr %s37, 128
      %s39 = scalar_lea.hbm %s1, %s38
      %s40 = sshll.u32 [#allocation5], 4
      %s41 = int_to_ptr.vmem [resolvable:$true] %s40
      %46 = dma.hbm_to_vmem [thread:$0]  %s39, 2048, %s41, [#allocation6], 128, 128, 8
    $region9: #{tpu_custom_call.1} parent=1 // pred_fallthru
      _
    // Predicated region
    $region10: #{tpu_custom_call.1} parent=1 // pred_check
      _
    $region11: #{tpu_custom_call.1} parent=1 // pred_check_branch
      %48 = sbr.rel (0) target = $region13
    $region12: #{tpu_custom_call.1} parent=1 // pred_region
      %s50 = ssub.s32 512, 512
      %51 = vsyncadd [#allocation6], %s50
      %s52 = sshll.u32 [#allocation7], 4
      %s53 = int_to_ptr.vmem [resolvable:$true] %s52
      %58 = dma.hbm_to_vmem [thread:$0]  %s2, 512, %s53, [#allocation6], 256, 256, 16
    $region13: #{tpu_custom_call.1} parent=1 // pred_fallthru
      _
    // Predicated region
    $region14: #{tpu_custom_call.1} parent=1 // pred_check
      _
    $region15: #{tpu_custom_call.1} parent=1 // pred_check_branch
      %60 = sbr.rel (0) target = $region17
    $region16: #{tpu_custom_call.1} parent=1 // pred_region
      %s62 = ssub.s32 512, 512
      %63 = vsyncadd [#allocation9], %s62
      %s64 = sshll.u32 [#allocation8], 4
      %s65 = int_to_ptr.vmem [resolvable:$true] %s64
      %70 = dma.hbm_to_vmem [thread:$0]  %s3, 512, %s65, [#allocation9], 256, 256, 16
    $region17: #{tpu_custom_call.1} parent=1 // pred_fallthru
      _
    // Predicated region
    $region18: #{tpu_custom_call.1} parent=1 // pred_check
      _
    $region19: #{tpu_custom_call.1} parent=1 // pred_check_branch
      %72 = sbr.rel (0) target = $region21
    $region20: #{tpu_custom_call.1} parent=1 // pred_region
      %73 = dma.done [#allocation3], 2048
    $region21: #{tpu_custom_call.1} parent=1 // pred_fallthru
      _
    // Predicated region
    $region22: #{tpu_custom_call.1} parent=1 // pred_check
      _
    $region23: #{tpu_custom_call.1} parent=1 // pred_check_branch
      %75 = sbr.rel (0) target = $region25
    $region24: #{tpu_custom_call.1} parent=1 // pred_region
      %76 = dma.done [#allocation6], 2048
    $region25: #{tpu_custom_call.1} parent=1 // pred_fallthru
      _
    // Predicated region
    $region26: #{tpu_custom_call.1} parent=1 // pred_check
      _
    $region27: #{tpu_custom_call.1} parent=1 // pred_check_branch
      %78 = sbr.rel (0) target = $region29
    $region28: #{tpu_custom_call.1} parent=1 // pred_region
      %79 = dma.done [#allocation6], 512
    $region29: #{tpu_custom_call.1} parent=1 // pred_fallthru
      _
    // Predicated region
    $region30: #{tpu_custom_call.1} parent=1 // pred_check
      _
    $region31: #{tpu_custom_call.1} parent=1 // pred_check_branch
      %81 = sbr.rel (0) target = $region33
    $region32: #{tpu_custom_call.1} parent=1 // pred_region
      %82 = dma.done [#allocation9], 512
    $region33: #{tpu_custom_call.1} parent=1 // pred_fallthru
      _
    %s83 = sadd.s32 0, 0
    %s84 = smul.u32 8, %s83
    %s85 = sadd.s32 0, 0
    %s86 = smul.u32 8, %s85
    %p87 = scmp.eq.s32.totalorder 0, 0
    // Predicated region
    $region34: #{tpu_custom_call.1} parent=1 // pred_check
      %p88 = pneg %p87
    $region35: #{tpu_custom_call.1} parent=1 // pred_check_branch
      %90 = sbr.rel (%p88) target = $region37
    $region36: #{tpu_custom_call.1} parent=1 // pred_region
      %91 = vst [vmem:[#allocation10] sm:$0xff] 0.0
      %92 = vst [vmem:[#allocation10 + $0x8] sm:$0xff] 0.0
      %93 = vst [vmem:[#allocation10 + $0x10] sm:$0xff] 0.0
      %94 = vst [vmem:[#allocation10 + $0x18] sm:$0xff] 0.0
      %95 = vst [vmem:[#allocation10 + $0x20] sm:$0xff] 0.0
      %96 = vst [vmem:[#allocation10 + $0x28] sm:$0xff] 0.0
      %97 = vst [vmem:[#allocation10 + $0x30] sm:$0xff] 0.0
      %98 = vst [vmem:[#allocation10 + $0x38] sm:$0xff] 0.0
      %99 = vst [vmem:[#allocation10 + $0x40] sm:$0xff] 0.0
      %100 = vst [vmem:[#allocation10 + $0x48] sm:$0xff] 0.0
      %101 = vst [vmem:[#allocation10 + $0x50] sm:$0xff] 0.0
      %102 = vst [vmem:[#allocation10 + $0x58] sm:$0xff] 0.0
      %103 = vst [vmem:[#allocation10 + $0x60] sm:$0xff] 0.0
      %104 = vst [vmem:[#allocation10 + $0x68] sm:$0xff] 0.0
      %105 = vst [vmem:[#allocation10 + $0x70] sm:$0xff] 0.0
      %106 = vst [vmem:[#allocation10 + $0x78] sm:$0xff] 0.0
    $region37: #{tpu_custom_call.1} parent=1 // pred_fallthru
      _
    %v107 = vld [vmem:[#allocation7] sm:$0xff]
    %v108 = vld [vmem:[#allocation7 + $0x8] sm:$0xff]
    %v109 = vld [vmem:[#allocation7 + $0x10] sm:$0xff]
    %v110 = vld [vmem:[#allocation7 + $0x18] sm:$0xff]
    %v111 = vld [vmem:[#allocation8] sm:$0xff]
    %v112 = vld [vmem:[#allocation8 + $0x8] sm:$0xff]
    %v113 = vld [vmem:[#allocation8 + $0x10] sm:$0xff]
    %v114 = vld [vmem:[#allocation8 + $0x18] sm:$0xff]
    %v115 = vld [vmem:[#allocation2] sm:$0xff]
    %v116 = vld [vmem:[#allocation2 + $0x8] sm:$0xff]
    %v117 = vld [vmem:[#allocation2 + $0x10] sm:$0xff]
    %v118 = vld [vmem:[#allocation2 + $0x18] sm:$0xff]
    %v119 = vld [vmem:[#allocation2 + $0x20] sm:$0xff]
    %v120 = vld [vmem:[#allocation2 + $0x28] sm:$0xff]
    %v121 = vld [vmem:[#allocation2 + $0x30] sm:$0xff]
    %v122 = vld [vmem:[#allocation2 + $0x38] sm:$0xff]
    %v123 = vld [vmem:[#allocation2 + $0x40] sm:$0xff]
    %v124 = vld [vmem:[#allocation2 + $0x48] sm:$0xff]
    %v125 = vld [vmem:[#allocation2 + $0x50] sm:$0xff]
    %v126 = vld [vmem:[#allocation2 + $0x58] sm:$0xff]
    %v127 = vld [vmem:[#allocation2 + $0x60] sm:$0xff]
    %v128 = vld [vmem:[#allocation2 + $0x68] sm:$0xff]
    %v129 = vld [vmem:[#allocation2 + $0x70] sm:$0xff]
    %v130 = vld [vmem:[#allocation2 + $0x78] sm:$0xff]
    %vm131 = vcmask 130048
    %v133 = vsel %vm131, %v115, 0
    %v136 = vsel %vm131, %v116, 0
    %v139 = vsel %vm131, %v117, 0
    %v142 = vsel %vm131, %v118, 0
    %v145 = vsel %vm131, %v119, 0
    %v148 = vsel %vm131, %v120, 0
    %v151 = vsel %vm131, %v121, 0
    %v154 = vsel %vm131, %v122, 0
    %v157 = vsel %vm131, %v123, 0
    %v160 = vsel %vm131, %v124, 0
    %v163 = vsel %vm131, %v125, 0
    %v166 = vsel %vm131, %v126, 0
    %v169 = vsel %vm131, %v127, 0
    %v172 = vsel %vm131, %v128, 0
    %v175 = vsel %vm131, %v129, 0
    %v178 = vsel %vm131, %v130, 0
    %180 = vmatprep.subr.mxu0 %v108
    %181 = vmatpush1.msra.mxu0 %v107
    %182 = vmatprep.subr.mxu0 %v110
    %183 = vmatpush1.msra.mxu0 %v109
    %184 = vmatprep.subr.mxu0 0.0
    %185 = vmatpush1.msra.mxu0 0.0
    %186 = vmatprep.subr.mxu0 0.0
    %187 = vmatpush1.msra.mxu0 0.0
    %188 = vmatprep.subr.mxu0 0.0
    %189 = vmatpush1.msra.mxu0 0.0
    %190 = vmatprep.subr.mxu0 0.0
    %191 = vmatpush1.msra.mxu0 0.0
    %192 = vmatprep.subr.mxu0 0.0
    %193 = vmatpush1.msra.mxu0 0.0
    %194 = vmatprep.subr.mxu0 0.0
    %195 = vmatpush1.msra.mxu0 0.0
    %196 = vmatprep.subr.mxu0 0.0
    %197 = vmatpush1.msra.mxu0 0.0
    %198 = vmatprep.subr.mxu0 0.0
    %199 = vmatpush1.msra.mxu0 0.0
    %200 = vmatprep.subr.mxu0 0.0
    %201 = vmatpush1.msra.mxu0 0.0
    %202 = vmatprep.subr.mxu0 0.0
    %203 = vmatpush1.msra.mxu0 0.0
    %204 = vmatprep.subr.mxu0 0.0
    %205 = vmatpush1.msra.mxu0 0.0
    %206 = vmatprep.subr.mxu0 0.0
    %207 = vmatpush1.msra.mxu0 0.0
    %208 = vmatprep.subr.mxu0 0.0
    %209 = vmatpush1.msra.mxu0 0.0
    %210 = vmatprep.subr.mxu0 0.0
    %211 = vmatpush1.msra.mxu0 0.0
    %212 = vmatprep.subr.mxu0 0.0
    %213 = vmatpush1.msra.mxu0 0.0
    %214 = vmatprep.subr.mxu0 0.0
    %215 = vmatpush1.msra.mxu0 0.0
    %216 = vmatprep.subr.mxu0 0.0
    %217 = vmatpush1.msra.mxu0 0.0
    %218 = vmatprep.subr.mxu0 0.0
    %219 = vmatpush1.msra.mxu0 0.0
    %220 = vmatprep.subr.mxu0 0.0
    %221 = vmatpush1.msra.mxu0 0.0
    %222 = vmatprep.subr.mxu0 0.0
    %223 = vmatpush1.msra.mxu0 0.0
    %224 = vmatprep.subr.mxu0 0.0
    %225 = vmatpush1.msra.mxu0 0.0
    %226 = vmatprep.subr.mxu0 0.0
    %227 = vmatpush1.msra.mxu0 0.0
    %228 = vmatprep.subr.mxu0 0.0
    %229 = vmatpush1.msra.mxu0 0.0
    %230 = vmatprep.subr.mxu0 0.0
    %231 = vmatpush1.msra.mxu0 0.0
    %232 = vmatprep.subr.mxu0 0.0
    %233 = vmatpush1.msra.mxu0 0.0
    %234 = vmatprep.subr.mxu0 0.0
    %235 = vmatpush1.msra.mxu0 0.0
    %236 = vmatprep.subr.mxu0 0.0
    %237 = vmatpush1.msra.mxu0 0.0
    %238 = vmatprep.subr.mxu0 0.0
    %239 = vmatpush1.msra.mxu0 0.0
    %240 = vmatprep.subr.mxu0 0.0
    %241 = vmatpush1.msra.mxu0 0.0
    %242 = vmatprep.subr.mxu0 0.0
    %243 = vmatpush1.msra.mxu0 0.0
    %244 = vmatprep.mubr.f32.mxu0 0.0
    %245 = vmatmul.mubr.f32.gmra.mrb[0].mxu0 %v133
    %v246 = vpop.f32.mrb[0].mxu0
    %v247 = vadd.f32 0.0, %v246
    %v248 = vpop.f32.mrb[0].mxu0
    %v249 = vadd.f32 0.0, %v248
    %250 = vmatprep.mubr.f32.mxu0 0.0
    %251 = vmatmul.mubr.f32.gmra.mrb[0].mxu0 %v136
    %v252 = vpop.f32.mrb[0].mxu0
    %v253 = vadd.f32 0.0, %v252
    %v254 = vpop.f32.mrb[0].mxu0
    %v255 = vadd.f32 0.0, %v254
    %256 = vmatprep.mubr.f32.mxu0 0.0
    %257 = vmatmul.mubr.f32.gmra.mrb[0].mxu0 %v139
    %v258 = vpop.f32.mrb[0].mxu0
    %v259 = vadd.f32 0.0, %v258
    %v260 = vpop.f32.mrb[0].mxu0
    %v261 = vadd.f32 0.0, %v260
    %262 = vmatprep.mubr.f32.mxu0 0.0
    %263 = vmatmul.mubr.f32.gmra.mrb[0].mxu0 %v142
    %v264 = vpop.f32.mrb[0].mxu0
    %v265 = vadd.f32 0.0, %v264
    %v266 = vpop.f32.mrb[0].mxu0
    %v267 = vadd.f32 0.0, %v266
    %268 = vmatprep.mubr.f32.mxu0 0.0
    %269 = vmatmul.mubr.f32.gmra.mrb[0].mxu0 %v145
    %v270 = vpop.f32.mrb[0].mxu0
    %v271 = vadd.f32 0.0, %v270
    %v272 = vpop.f32.mrb[0].mxu0
    %v273 = vadd.f32 0.0, %v272
    %274 = vmatprep.mubr.f32.mxu0 0.0
    %275 = vmatmul.mubr.f32.gmra.mrb[0].mxu0 %v148
    %v276 = vpop.f32.mrb[0].mxu0
    %v277 = vadd.f32 0.0, %v276
    %v278 = vpop.f32.mrb[0].mxu0
    %v279 = vadd.f32 0.0, %v278
    %280 = vmatprep.mubr.f32.mxu0 0.0
    %281 = vmatmul.mubr.f32.gmra.mrb[0].mxu0 %v151
    %v282 = vpop.f32.mrb[0].mxu0
    %v283 = vadd.f32 0.0, %v282
    %v284 = vpop.f32.mrb[0].mxu0
    %v285 = vadd.f32 0.0, %v284
    %286 = vmatprep.mubr.f32.mxu0 0.0
    %287 = vmatmul.mubr.f32.gmra.mrb[0].mxu0 %v154
    %v288 = vpop.f32.mrb[0].mxu0
    %v289 = vadd.f32 0.0, %v288
    %v290 = vpop.f32.mrb[0].mxu0
    %v291 = vadd.f32 0.0, %v290
    %292 = vmatprep.mubr.f32.mxu0 0.0
    %293 = vmatmul.mubr.f32.gmra.mrb[0].mxu0 %v157
    %v294 = vpop.f32.mrb[0].mxu0
    %v295 = vadd.f32 0.0, %v294
    %v296 = vpop.f32.mrb[0].mxu0
    %v297 = vadd.f32 0.0, %v296
    %298 = vmatprep.mubr.f32.mxu0 0.0
    %299 = vmatmul.mubr.f32.gmra.mrb[0].mxu0 %v160
    %v300 = vpop.f32.mrb[0].mxu0
    %v301 = vadd.f32 0.0, %v300
    %v302 = vpop.f32.mrb[0].mxu0
    %v303 = vadd.f32 0.0, %v302
    %304 = vmatprep.mubr.f32.mxu0 0.0
    %305 = vmatmul.mubr.f32.gmra.mrb[0].mxu0 %v163
    %v306 = vpop.f32.mrb[0].mxu0
    %v307 = vadd.f32 0.0, %v306
    %v308 = vpop.f32.mrb[0].mxu0
    %v309 = vadd.f32 0.0, %v308
    %310 = vmatprep.mubr.f32.mxu0 0.0
    %311 = vmatmul.mubr.f32.gmra.mrb[0].mxu0 %v166
    %v312 = vpop.f32.mrb[0].mxu0
    %v313 = vadd.f32 0.0, %v312
    %v314 = vpop.f32.mrb[0].mxu0
    %v315 = vadd.f32 0.0, %v314
    %316 = vmatprep.mubr.f32.mxu0 0.0
    %317 = vmatmul.mubr.f32.gmra.mrb[0].mxu0 %v169
    %v318 = vpop.f32.mrb[0].mxu0
    %v319 = vadd.f32 0.0, %v318
    %v320 = vpop.f32.mrb[0].mxu0
    %v321 = vadd.f32 0.0, %v320
    %322 = vmatprep.mubr.f32.mxu0 0.0
    %323 = vmatmul.mubr.f32.gmra.mrb[0].mxu0 %v172
    %v324 = vpop.f32.mrb[0].mxu0
    %v325 = vadd.f32 0.0, %v324
    %v326 = vpop.f32.mrb[0].mxu0
    %v327 = vadd.f32 0.0, %v326
    %328 = vmatprep.mubr.f32.mxu0 0.0
    %329 = vmatmul.mubr.f32.gmra.mrb[0].mxu0 %v175
    %v330 = vpop.f32.mrb[0].mxu0
    %v331 = vadd.f32 0.0, %v330
    %v332 = vpop.f32.mrb[0].mxu0
    %v333 = vadd.f32 0.0, %v332
    %334 = vmatprep.mubr.f32.mxu0 0.0
    %335 = vmatmul.mubr.f32.gmra.mrb[0].mxu0 %v178
    %v336 = vpop.f32.mrb[0].mxu0
    %v337 = vadd.f32 0.0, %v336
    %v338 = vpop.f32.mrb[0].mxu0
    %v339 = vadd.f32 0.0, %v338
    %340 = vdwg.mxu0
    %341 = vxpose.xlu0.b32.start [1/16] %v247, 128
    %342 = vxpose.xlu0.b32.cont [2/16] %v253, 128
    %343 = vxpose.xlu0.b32.cont [3/16] 0.0, 128
    %344 = vxpose.xlu0.b32.cont [4/16] 0.0, 128
    %345 = vxpose.xlu0.b32.cont [5/16] 0.0, 128
    %346 = vxpose.xlu0.b32.cont [6/16] 0.0, 128
    %347 = vxpose.xlu0.b32.cont [7/16] 0.0, 128
    %348 = vxpose.xlu0.b32.cont [8/16] 0.0, 128
    %349 = vxpose.xlu0.b32.cont [9/16] 0.0, 128
    %350 = vxpose.xlu0.b32.cont [10/16] 0.0, 128
    %351 = vxpose.xlu0.b32.cont [11/16] 0.0, 128
    %352 = vxpose.xlu0.b32.cont [12/16] 0.0, 128
    %353 = vxpose.xlu0.b32.cont [13/16] 0.0, 128
    %354 = vxpose.xlu0.b32.cont [14/16] 0.0, 128
    %355 = vxpose.xlu0.b32.cont [15/16] 0.0, 128
    %356 = vxpose.xlu0.b32.end [16/16] 0.0, 128
    %v357 = vpop.trf.xlu0
    %v358 = vpop.trf.xlu0
    %v359 = vpop.trf.xlu0
    %v360 = vpop.trf.xlu0
    %v361 = vpop.trf.xlu0
    %v362 = vpop.trf.xlu0
    %v363 = vpop.trf.xlu0
    %v364 = vpop.trf.xlu0
    %v365 = vpop.trf.xlu0
    %v366 = vpop.trf.xlu0
    %v367 = vpop.trf.xlu0
    %v368 = vpop.trf.xlu0
    %v369 = vpop.trf.xlu0
    %v370 = vpop.trf.xlu0
    %v371 = vpop.trf.xlu0
    %v372 = vpop.trf.xlu0
    %373 = vxpose.xlu0.b32.start [1/16] %v259, 128
    %374 = vxpose.xlu0.b32.cont [2/16] %v265, 128
    %375 = vxpose.xlu0.b32.cont [3/16] 0.0, 128
    %376 = vxpose.xlu0.b32.cont [4/16] 0.0, 128
    %377 = vxpose.xlu0.b32.cont [5/16] 0.0, 128
    %378 = vxpose.xlu0.b32.cont [6/16] 0.0, 128
    %379 = vxpose.xlu0.b32.cont [7/16] 0.0, 128
    %380 = vxpose.xlu0.b32.cont [8/16] 0.0, 128
    %381 = vxpose.xlu0.b32.cont [9/16] 0.0, 128
    %382 = vxpose.xlu0.b32.cont [10/16] 0.0, 128
    %383 = vxpose.xlu0.b32.cont [11/16] 0.0, 128
    %384 = vxpose.xlu0.b32.cont [12/16] 0.0, 128
    %385 = vxpose.xlu0.b32.cont [13/16] 0.0, 128
    %386 = vxpose.xlu0.b32.cont [14/16] 0.0, 128
    %387 = vxpose.xlu0.b32.cont [15/16] 0.0, 128
    %388 = vxpose.xlu0.b32.end [16/16] 0.0, 128
    %v389 = vpop.trf.xlu0
    %v390 = vpop.trf.xlu0
    %v391 = vpop.trf.xlu0
    %v392 = vpop.trf.xlu0
    %v393 = vpop.trf.xlu0
    %v394 = vpop.trf.xlu0
    %v395 = vpop.trf.xlu0
    %v396 = vpop.trf.xlu0
    %v397 = vpop.trf.xlu0
    %v398 = vpop.trf.xlu0
    %v399 = vpop.trf.xlu0
    %v400 = vpop.trf.xlu0
    %v401 = vpop.trf.xlu0
    %v402 = vpop.trf.xlu0
    %v403 = vpop.trf.xlu0
    %v404 = vpop.trf.xlu0
    %405 = vxpose.xlu0.b32.start [1/16] %v271, 128
    %406 = vxpose.xlu0.b32.cont [2/16] %v277, 128
    %407 = vxpose.xlu0.b32.cont [3/16] 0.0, 128
    %408 = vxpose.xlu0.b32.cont [4/16] 0.0, 128
    %409 = vxpose.xlu0.b32.cont [5/16] 0.0, 128
    %410 = vxpose.xlu0.b32.cont [6/16] 0.0, 128
    %411 = vxpose.xlu0.b32.cont [7/16] 0.0, 128
    %412 = vxpose.xlu0.b32.cont [8/16] 0.0, 128
    %413 = vxpose.xlu0.b32.cont [9/16] 0.0, 128
    %414 = vxpose.xlu0.b32.cont [10/16] 0.0, 128
    %415 = vxpose.xlu0.b32.cont [11/16] 0.0, 128
    %416 = vxpose.xlu0.b32.cont [12/16] 0.0, 128
    %417 = vxpose.xlu0.b32.cont [13/16] 0.0, 128
    %418 = vxpose.xlu0.b32.cont [14/16] 0.0, 128
    %419 = vxpose.xlu0.b32.cont [15/16] 0.0, 128
    %420 = vxpose.xlu0.b32.end [16/16] 0.0, 128
    %v421 = vpop.trf.xlu0
    %v422 = vpop.trf.xlu0
    %v423 = vpop.trf.xlu0
    %v424 = vpop.trf.xlu0
    %v425 = vpop.trf.xlu0
    %v426 = vpop.trf.xlu0
    %v427 = vpop.trf.xlu0
    %v428 = vpop.trf.xlu0
    %v429 = vpop.trf.xlu0
    %v430 = vpop.trf.xlu0
    %v431 = vpop.trf.xlu0
    %v432 = vpop.trf.xlu0
    %v433 = vpop.trf.xlu0
    %v434 = vpop.trf.xlu0
    %v435 = vpop.trf.xlu0
    %v436 = vpop.trf.xlu0
    %437 = vxpose.xlu0.b32.start [1/16] %v283, 128
    %438 = vxpose.xlu0.b32.cont [2/16] %v289, 128
    %439 = vxpose.xlu0.b32.cont [3/16] 0.0, 128
    %440 = vxpose.xlu0.b32.cont [4/16] 0.0, 128
    %441 = vxpose.xlu0.b32.cont [5/16] 0.0, 128
    %442 = vxpose.xlu0.b32.cont [6/16] 0.0, 128
    %443 = vxpose.xlu0.b32.cont [7/16] 0.0, 128
    %444 = vxpose.xlu0.b32.cont [8/16] 0.0, 128
    %445 = vxpose.xlu0.b32.cont [9/16] 0.0, 128
    %446 = vxpose.xlu0.b32.cont [10/16] 0.0, 128
    %447 = vxpose.xlu0.b32.cont [11/16] 0.0, 128
    %448 = vxpose.xlu0.b32.cont [12/16] 0.0, 128
    %449 = vxpose.xlu0.b32.cont [13/16] 0.0, 128
    %450 = vxpose.xlu0.b32.cont [14/16] 0.0, 128
    %451 = vxpose.xlu0.b32.cont [15/16] 0.0, 128
    %452 = vxpose.xlu0.b32.end [16/16] 0.0, 128
    %v453 = vpop.trf.xlu0
    %v454 = vpop.trf.xlu0
    %v455 = vpop.trf.xlu0
    %v456 = vpop.trf.xlu0
    %v457 = vpop.trf.xlu0
    %v458 = vpop.trf.xlu0
    %v459 = vpop.trf.xlu0
    %v460 = vpop.trf.xlu0
    %v461 = vpop.trf.xlu0
    %v462 = vpop.trf.xlu0
    %v463 = vpop.trf.xlu0
    %v464 = vpop.trf.xlu0
    %v465 = vpop.trf.xlu0
    %v466 = vpop.trf.xlu0
    %v467 = vpop.trf.xlu0
    %v468 = vpop.trf.xlu0
    %469 = vxpose.xlu0.b32.start [1/16] %v295, 128
    %470 = vxpose.xlu0.b32.cont [2/16] %v301, 128
    %471 = vxpose.xlu0.b32.cont [3/16] 0.0, 128
    %472 = vxpose.xlu0.b32.cont [4/16] 0.0, 128
    %473 = vxpose.xlu0.b32.cont [5/16] 0.0, 128
    %474 = vxpose.xlu0.b32.cont [6/16] 0.0, 128
    %475 = vxpose.xlu0.b32.cont [7/16] 0.0, 128
    %476 = vxpose.xlu0.b32.cont [8/16] 0.0, 128
    %477 = vxpose.xlu0.b32.cont [9/16] 0.0, 128
    %478 = vxpose.xlu0.b32.cont [10/16] 0.0, 128
    %479 = vxpose.xlu0.b32.cont [11/16] 0.0, 128
    %480 = vxpose.xlu0.b32.cont [12/16] 0.0, 128
    %481 = vxpose.xlu0.b32.cont [13/16] 0.0, 128
    %482 = vxpose.xlu0.b32.cont [14/16] 0.0, 128
    %483 = vxpose.xlu0.b32.cont [15/16] 0.0, 128
    %484 = vxpose.xlu0.b32.end [16/16] 0.0, 128
    %v485 = vpop.trf.xlu0
    %v486 = vpop.trf.xlu0
    %v487 = vpop.trf.xlu0
    %v488 = vpop.trf.xlu0
    %v489 = vpop.trf.xlu0
    %v490 = vpop.trf.xlu0
    %v491 = vpop.trf.xlu0
    %v492 = vpop.trf.xlu0
    %v493 = vpop.trf.xlu0
    %v494 = vpop.trf.xlu0
    %v495 = vpop.trf.xlu0
    %v496 = vpop.trf.xlu0
    %v497 = vpop.trf.xlu0
    %v498 = vpop.trf.xlu0
    %v499 = vpop.trf.xlu0
    %v500 = vpop.trf.xlu0
    %501 = vxpose.xlu0.b32.start [1/16] %v307, 128
    %502 = vxpose.xlu0.b32.cont [2/16] %v313, 128
    %503 = vxpose.xlu0.b32.cont [3/16] 0.0, 128
    %504 = vxpose.xlu0.b32.cont [4/16] 0.0, 128
    %505 = vxpose.xlu0.b32.cont [5/16] 0.0, 128
    %506 = vxpose.xlu0.b32.cont [6/16] 0.0, 128
    %507 = vxpose.xlu0.b32.cont [7/16] 0.0, 128
    %508 = vxpose.xlu0.b32.cont [8/16] 0.0, 128
    %509 = vxpose.xlu0.b32.cont [9/16] 0.0, 128
    %510 = vxpose.xlu0.b32.cont [10/16] 0.0, 128
    %511 = vxpose.xlu0.b32.cont [11/16] 0.0, 128
    %512 = vxpose.xlu0.b32.cont [12/16] 0.0, 128
    %513 = vxpose.xlu0.b32.cont [13/16] 0.0, 128
    %514 = vxpose.xlu0.b32.cont [14/16] 0.0, 128
    %515 = vxpose.xlu0.b32.cont [15/16] 0.0, 128
    %516 = vxpose.xlu0.b32.end [16/16] 0.0, 128
    %v517 = vpop.trf.xlu0
    %v518 = vpop.trf.xlu0
    %v519 = vpop.trf.xlu0
    %v520 = vpop.trf.xlu0
    %v521 = vpop.trf.xlu0
    %v522 = vpop.trf.xlu0
    %v523 = vpop.trf.xlu0
    %v524 = vpop.trf.xlu0
    %v525 = vpop.trf.xlu0
    %v526 = vpop.trf.xlu0
    %v527 = vpop.trf.xlu0
    %v528 = vpop.trf.xlu0
    %v529 = vpop.trf.xlu0
    %v530 = vpop.trf.xlu0
    %v531 = vpop.trf.xlu0
    %v532 = vpop.trf.xlu0
    %533 = vxpose.xlu0.b32.start [1/16] %v319, 128
    %534 = vxpose.xlu0.b32.cont [2/16] %v325, 128
    %535 = vxpose.xlu0.b32.cont [3/16] 0.0, 128
    %536 = vxpose.xlu0.b32.cont [4/16] 0.0, 128
    %537 = vxpose.xlu0.b32.cont [5/16] 0.0, 128
    %538 = vxpose.xlu0.b32.cont [6/16] 0.0, 128
    %539 = vxpose.xlu0.b32.cont [7/16] 0.0, 128
    %540 = vxpose.xlu0.b32.cont [8/16] 0.0, 128
    %541 = vxpose.xlu0.b32.cont [9/16] 0.0, 128
    %542 = vxpose.xlu0.b32.cont [10/16] 0.0, 128
    %543 = vxpose.xlu0.b32.cont [11/16] 0.0, 128
    %544 = vxpose.xlu0.b32.cont [12/16] 0.0, 128
    %545 = vxpose.xlu0.b32.cont [13/16] 0.0, 128
    %546 = vxpose.xlu0.b32.cont [14/16] 0.0, 128
    %547 = vxpose.xlu0.b32.cont [15/16] 0.0, 128
    %548 = vxpose.xlu0.b32.end [16/16] 0.0, 128
    %v549 = vpop.trf.xlu0
    %v550 = vpop.trf.xlu0
    %v551 = vpop.trf.xlu0
    %v552 = vpop.trf.xlu0
    %v553 = vpop.trf.xlu0
    %v554 = vpop.trf.xlu0
    %v555 = vpop.trf.xlu0
    %v556 = vpop.trf.xlu0
    %v557 = vpop.trf.xlu0
    %v558 = vpop.trf.xlu0
    %v559 = vpop.trf.xlu0
    %v560 = vpop.trf.xlu0
    %v561 = vpop.trf.xlu0
    %v562 = vpop.trf.xlu0
    %v563 = vpop.trf.xlu0
    %v564 = vpop.trf.xlu0
    %565 = vxpose.xlu0.b32.start [1/16] %v331, 128
    %566 = vxpose.xlu0.b32.cont [2/16] %v337, 128
    %567 = vxpose.xlu0.b32.cont [3/16] 0.0, 128
    %568 = vxpose.xlu0.b32.cont [4/16] 0.0, 128
    %569 = vxpose.xlu0.b32.cont [5/16] 0.0, 128
    %570 = vxpose.xlu0.b32.cont [6/16] 0.0, 128
    %571 = vxpose.xlu0.b32.cont [7/16] 0.0, 128
    %572 = vxpose.xlu0.b32.cont [8/16] 0.0, 128
    %573 = vxpose.xlu0.b32.cont [9/16] 0.0, 128
    %574 = vxpose.xlu0.b32.cont [10/16] 0.0, 128
    %575 = vxpose.xlu0.b32.cont [11/16] 0.0, 128
    %576 = vxpose.xlu0.b32.cont [12/16] 0.0, 128
    %577 = vxpose.xlu0.b32.cont [13/16] 0.0, 128
    %578 = vxpose.xlu0.b32.cont [14/16] 0.0, 128
    %579 = vxpose.xlu0.b32.cont [15/16] 0.0, 128
    %580 = vxpose.xlu0.b32.end [16/16] 0.0, 128
    %v581 = vpop.trf.xlu0
    %v582 = vpop.trf.xlu0
    %v583 = vpop.trf.xlu0
    %v584 = vpop.trf.xlu0
    %v585 = vpop.trf.xlu0
    %v586 = vpop.trf.xlu0
    %v587 = vpop.trf.xlu0
    %v588 = vpop.trf.xlu0
    %v589 = vpop.trf.xlu0
    %v590 = vpop.trf.xlu0
    %v591 = vpop.trf.xlu0
    %v592 = vpop.trf.xlu0
    %v593 = vpop.trf.xlu0
    %v594 = vpop.trf.xlu0
    %v595 = vpop.trf.xlu0
    %v596 = vpop.trf.xlu0
    %597 = vxpose.xlu0.b32.start [1/16] %v249, 128
    %598 = vxpose.xlu0.b32.cont [2/16] %v255, 128
    %599 = vxpose.xlu0.b32.cont [3/16] 0.0, 128
    %600 = vxpose.xlu0.b32.cont [4/16] 0.0, 128
    %601 = vxpose.xlu0.b32.cont [5/16] 0.0, 128
    %602 = vxpose.xlu0.b32.cont [6/16] 0.0, 128
    %603 = vxpose.xlu0.b32.cont [7/16] 0.0, 128
    %604 = vxpose.xlu0.b32.cont [8/16] 0.0, 128
    %605 = vxpose.xlu0.b32.cont [9/16] 0.0, 128
    %606 = vxpose.xlu0.b32.cont [10/16] 0.0, 128
    %607 = vxpose.xlu0.b32.cont [11/16] 0.0, 128
    %608 = vxpose.xlu0.b32.cont [12/16] 0.0, 128
    %609 = vxpose.xlu0.b32.cont [13/16] 0.0, 128
    %610 = vxpose.xlu0.b32.cont [14/16] 0.0, 128
    %611 = vxpose.xlu0.b32.cont [15/16] 0.0, 128
    %612 = vxpose.xlu0.b32.end [16/16] 0.0, 128
    %v613 = vpop.trf.xlu0
    %v614 = vpop.trf.xlu0
    %v615 = vpop.trf.xlu0
    %v616 = vpop.trf.xlu0
    %v617 = vpop.trf.xlu0
    %v618 = vpop.trf.xlu0
    %v619 = vpop.trf.xlu0
    %v620 = vpop.trf.xlu0
    %v621 = vpop.trf.xlu0
    %v622 = vpop.trf.xlu0
    %v623 = vpop.trf.xlu0
    %v624 = vpop.trf.xlu0
    %v625 = vpop.trf.xlu0
    %v626 = vpop.trf.xlu0
    %v627 = vpop.trf.xlu0
    %v628 = vpop.trf.xlu0
    %629 = vxpose.xlu0.b32.start [1/16] %v261, 128
    %630 = vxpose.xlu0.b32.cont [2/16] %v267, 128
    %631 = vxpose.xlu0.b32.cont [3/16] 0.0, 128
    %632 = vxpose.xlu0.b32.cont [4/16] 0.0, 128
    %633 = vxpose.xlu0.b32.cont [5/16] 0.0, 128
    %634 = vxpose.xlu0.b32.cont [6/16] 0.0, 128
    %635 = vxpose.xlu0.b32.cont [7/16] 0.0, 128
    %636 = vxpose.xlu0.b32.cont [8/16] 0.0, 128
    %637 = vxpose.xlu0.b32.cont [9/16] 0.0, 128
    %638 = vxpose.xlu0.b32.cont [10/16] 0.0, 128
    %639 = vxpose.xlu0.b32.cont [11/16] 0.0, 128
    %640 = vxpose.xlu0.b32.cont [12/16] 0.0, 128
    %641 = vxpose.xlu0.b32.cont [13/16] 0.0, 128
    %642 = vxpose.xlu0.b32.cont [14/16] 0.0, 128
    %643 = vxpose.xlu0.b32.cont [15/16] 0.0, 128
    %644 = vxpose.xlu0.b32.end [16/16] 0.0, 128
    %v645 = vpop.trf.xlu0
    %v646 = vpop.trf.xlu0
    %v647 = vpop.trf.xlu0
    %v648 = vpop.trf.xlu0
    %v649 = vpop.trf.xlu0
    %v650 = vpop.trf.xlu0
    %v651 = vpop.trf.xlu0
    %v652 = vpop.trf.xlu0
    %v653 = vpop.trf.xlu0
    %v654 = vpop.trf.xlu0
    %v655 = vpop.trf.xlu0
    %v656 = vpop.trf.xlu0
    %v657 = vpop.trf.xlu0
    %v658 = vpop.trf.xlu0
    %v659 = vpop.trf.xlu0
    %v660 = vpop.trf.xlu0
    %661 = vxpose.xlu0.b32.start [1/16] %v273, 128
    %662 = vxpose.xlu0.b32.cont [2/16] %v279, 128
    %663 = vxpose.xlu0.b32.cont [3/16] 0.0, 128
    %664 = vxpose.xlu0.b32.cont [4/16] 0.0, 128
    %665 = vxpose.xlu0.b32.cont [5/16] 0.0, 128
    %666 = vxpose.xlu0.b32.cont [6/16] 0.0, 128
    %667 = vxpose.xlu0.b32.cont [7/16] 0.0, 128
    %668 = vxpose.xlu0.b32.cont [8/16] 0.0, 128
    %669 = vxpose.xlu0.b32.cont [9/16] 0.0, 128
    %670 = vxpose.xlu0.b32.cont [10/16] 0.0, 128
    %671 = vxpose.xlu0.b32.cont [11/16] 0.0, 128
    %672 = vxpose.xlu0.b32.cont [12/16] 0.0, 128
    %673 = vxpose.xlu0.b32.cont [13/16] 0.0, 128
    %674 = vxpose.xlu0.b32.cont [14/16] 0.0, 128
    %675 = vxpose.xlu0.b32.cont [15/16] 0.0, 128
    %676 = vxpose.xlu0.b32.end [16/16] 0.0, 128
    %v677 = vpop.trf.xlu0
    %v678 = vpop.trf.xlu0
    %v679 = vpop.trf.xlu0
    %v680 = vpop.trf.xlu0
    %v681 = vpop.trf.xlu0
    %v682 = vpop.trf.xlu0
    %v683 = vpop.trf.xlu0
    %v684 = vpop.trf.xlu0
    %v685 = vpop.trf.xlu0
    %v686 = vpop.trf.xlu0
    %v687 = vpop.trf.xlu0
    %v688 = vpop.trf.xlu0
    %v689 = vpop.trf.xlu0
    %v690 = vpop.trf.xlu0
    %v691 = vpop.trf.xlu0
    %v692 = vpop.trf.xlu0
    %693 = vxpose.xlu0.b32.start [1/16] %v285, 128
    %694 = vxpose.xlu0.b32.cont [2/16] %v291, 128
    %695 = vxpose.xlu0.b32.cont [3/16] 0.0, 128
    %696 = vxpose.xlu0.b32.cont [4/16] 0.0, 128
    %697 = vxpose.xlu0.b32.cont [5/16] 0.0, 128
    %698 = vxpose.xlu0.b32.cont [6/16] 0.0, 128
    %699 = vxpose.xlu0.b32.cont [7/16] 0.0, 128
    %700 = vxpose.xlu0.b32.cont [8/16] 0.0, 128
    %701 = vxpose.xlu0.b32.cont [9/16] 0.0, 128
    %702 = vxpose.xlu0.b32.cont [10/16] 0.0, 128
    %703 = vxpose.xlu0.b32.cont [11/16] 0.0, 128
    %704 = vxpose.xlu0.b32.cont [12/16] 0.0, 128
    %705 = vxpose.xlu0.b32.cont [13/16] 0.0, 128
    %706 = vxpose.xlu0.b32.cont [14/16] 0.0, 128
    %707 = vxpose.xlu0.b32.cont [15/16] 0.0, 128
    %708 = vxpose.xlu0.b32.end [16/16] 0.0, 128
    %v709 = vpop.trf.xlu0
    %v710 = vpop.trf.xlu0
    %v711 = vpop.trf.xlu0
    %v712 = vpop.trf.xlu0
    %v713 = vpop.trf.xlu0
    %v714 = vpop.trf.xlu0
    %v715 = vpop.trf.xlu0
    %v716 = vpop.trf.xlu0
    %v717 = vpop.trf.xlu0
    %v718 = vpop.trf.xlu0
    %v719 = vpop.trf.xlu0
    %v720 = vpop.trf.xlu0
    %v721 = vpop.trf.xlu0
    %v722 = vpop.trf.xlu0
    %v723 = vpop.trf.xlu0
    %v724 = vpop.trf.xlu0
    %725 = vxpose.xlu0.b32.start [1/16] %v297, 128
    %726 = vxpose.xlu0.b32.cont [2/16] %v303, 128
    %727 = vxpose.xlu0.b32.cont [3/16] 0.0, 128
    %728 = vxpose.xlu0.b32.cont [4/16] 0.0, 128
    %729 = vxpose.xlu0.b32.cont [5/16] 0.0, 128
    %730 = vxpose.xlu0.b32.cont [6/16] 0.0, 128
    %731 = vxpose.xlu0.b32.cont [7/16] 0.0, 128
    %732 = vxpose.xlu0.b32.cont [8/16] 0.0, 128
    %733 = vxpose.xlu0.b32.cont [9/16] 0.0, 128
    %734 = vxpose.xlu0.b32.cont [10/16] 0.0, 128
    %735 = vxpose.xlu0.b32.cont [11/16] 0.0, 128
    %736 = vxpose.xlu0.b32.cont [12/16] 0.0, 128
    %737 = vxpose.xlu0.b32.cont [13/16] 0.0, 128
    %738 = vxpose.xlu0.b32.cont [14/16] 0.0, 128
    %739 = vxpose.xlu0.b32.cont [15/16] 0.0, 128
    %740 = vxpose.xlu0.b32.end [16/16] 0.0, 128
    %v741 = vpop.trf.xlu0
    %v742 = vpop.trf.xlu0
    %v743 = vpop.trf.xlu0
    %v744 = vpop.trf.xlu0
    %v745 = vpop.trf.xlu0
    %v746 = vpop.trf.xlu0
    %v747 = vpop.trf.xlu0
    %v748 = vpop.trf.xlu0
    %v749 = vpop.trf.xlu0
    %v750 = vpop.trf.xlu0
    %v751 = vpop.trf.xlu0
    %v752 = vpop.trf.xlu0
    %v753 = vpop.trf.xlu0
    %v754 = vpop.trf.xlu0
    %v755 = vpop.trf.xlu0
    %v756 = vpop.trf.xlu0
    %757 = vxpose.xlu0.b32.start [1/16] %v309, 128
    %758 = vxpose.xlu0.b32.cont [2/16] %v315, 128
    %759 = vxpose.xlu0.b32.cont [3/16] 0.0, 128
    %760 = vxpose.xlu0.b32.cont [4/16] 0.0, 128
    %761 = vxpose.xlu0.b32.cont [5/16] 0.0, 128
    %762 = vxpose.xlu0.b32.cont [6/16] 0.0, 128
    %763 = vxpose.xlu0.b32.cont [7/16] 0.0, 128
    %764 = vxpose.xlu0.b32.cont [8/16] 0.0, 128
    %765 = vxpose.xlu0.b32.cont [9/16] 0.0, 128
    %766 = vxpose.xlu0.b32.cont [10/16] 0.0, 128
    %767 = vxpose.xlu0.b32.cont [11/16] 0.0, 128
    %768 = vxpose.xlu0.b32.cont [12/16] 0.0, 128
    %769 = vxpose.xlu0.b32.cont [13/16] 0.0, 128
    %770 = vxpose.xlu0.b32.cont [14/16] 0.0, 128
    %771 = vxpose.xlu0.b32.cont [15/16] 0.0, 128
    %772 = vxpose.xlu0.b32.end [16/16] 0.0, 128
    %v773 = vpop.trf.xlu0
    %v774 = vpop.trf.xlu0
    %v775 = vpop.trf.xlu0
    %v776 = vpop.trf.xlu0
    %v777 = vpop.trf.xlu0
    %v778 = vpop.trf.xlu0
    %v779 = vpop.trf.xlu0
    %v780 = vpop.trf.xlu0
    %v781 = vpop.trf.xlu0
    %v782 = vpop.trf.xlu0
    %v783 = vpop.trf.xlu0
    %v784 = vpop.trf.xlu0
    %v785 = vpop.trf.xlu0
    %v786 = vpop.trf.xlu0
    %v787 = vpop.trf.xlu0
    %v788 = vpop.trf.xlu0
    %789 = vxpose.xlu0.b32.start [1/16] %v321, 128
    %790 = vxpose.xlu0.b32.cont [2/16] %v327, 128
    %791 = vxpose.xlu0.b32.cont [3/16] 0.0, 128
    %792 = vxpose.xlu0.b32.cont [4/16] 0.0, 128
    %793 = vxpose.xlu0.b32.cont [5/16] 0.0, 128
    %794 = vxpose.xlu0.b32.cont [6/16] 0.0, 128
    %795 = vxpose.xlu0.b32.cont [7/16] 0.0, 128
    %796 = vxpose.xlu0.b32.cont [8/16] 0.0, 128
    %797 = vxpose.xlu0.b32.cont [9/16] 0.0, 128
    %798 = vxpose.xlu0.b32.cont [10/16] 0.0, 128
    %799 = vxpose.xlu0.b32.cont [11/16] 0.0, 128
    %800 = vxpose.xlu0.b32.cont [12/16] 0.0, 128
    %801 = vxpose.xlu0.b32.cont [13/16] 0.0, 128
    %802 = vxpose.xlu0.b32.cont [14/16] 0.0, 128
    %803 = vxpose.xlu0.b32.cont [15/16] 0.0, 128
    %804 = vxpose.xlu0.b32.end [16/16] 0.0, 128
    %v805 = vpop.trf.xlu0
    %v806 = vpop.trf.xlu0
    %v807 = vpop.trf.xlu0
    %v808 = vpop.trf.xlu0
    %v809 = vpop.trf.xlu0
    %v810 = vpop.trf.xlu0
    %v811 = vpop.trf.xlu0
    %v812 = vpop.trf.xlu0
    %v813 = vpop.trf.xlu0
    %v814 = vpop.trf.xlu0
    %v815 = vpop.trf.xlu0
    %v816 = vpop.trf.xlu0
    %v817 = vpop.trf.xlu0
    %v818 = vpop.trf.xlu0
    %v819 = vpop.trf.xlu0
    %v820 = vpop.trf.xlu0
    %821 = vxpose.xlu0.b32.start [1/16] %v333, 128
    %822 = vxpose.xlu0.b32.cont [2/16] %v339, 128
    %823 = vxpose.xlu0.b32.cont [3/16] 0.0, 128
    %824 = vxpose.xlu0.b32.cont [4/16] 0.0, 128
    %825 = vxpose.xlu0.b32.cont [5/16] 0.0, 128
    %826 = vxpose.xlu0.b32.cont [6/16] 0.0, 128
    %827 = vxpose.xlu0.b32.cont [7/16] 0.0, 128
    %828 = vxpose.xlu0.b32.cont [8/16] 0.0, 128
    %829 = vxpose.xlu0.b32.cont [9/16] 0.0, 128
    %830 = vxpose.xlu0.b32.cont [10/16] 0.0, 128
    %831 = vxpose.xlu0.b32.cont [11/16] 0.0, 128
    %832 = vxpose.xlu0.b32.cont [12/16] 0.0, 128
    %833 = vxpose.xlu0.b32.cont [13/16] 0.0, 128
    %834 = vxpose.xlu0.b32.cont [14/16] 0.0, 128
    %835 = vxpose.xlu0.b32.cont [15/16] 0.0, 128
    %836 = vxpose.xlu0.b32.end [16/16] 0.0, 128
    %v837 = vpop.trf.xlu0
    %v838 = vpop.trf.xlu0
    %v839 = vpop.trf.xlu0
    %v840 = vpop.trf.xlu0
    %v841 = vpop.trf.xlu0
    %v842 = vpop.trf.xlu0
    %v843 = vpop.trf.xlu0
    %v844 = vpop.trf.xlu0
    %v845 = vpop.trf.xlu0
    %v846 = vpop.trf.xlu0
    %v847 = vpop.trf.xlu0
    %v848 = vpop.trf.xlu0
    %v849 = vpop.trf.xlu0
    %v850 = vpop.trf.xlu0
    %v851 = vpop.trf.xlu0
    %v852 = vpop.trf.xlu0
    %v854 = vsel %vm131, %v357, 0
    %v857 = vsel %vm131, %v358, 0
    %v860 = vsel %vm131, %v359, 0
    %v863 = vsel %vm131, %v360, 0
    %v866 = vsel %vm131, %v361, 0
    %v869 = vsel %vm131, %v362, 0
    %v872 = vsel %vm131, %v363, 0
    %v875 = vsel %vm131, %v364, 0
    %v878 = vsel %vm131, %v365, 0
    %v881 = vsel %vm131, %v366, 0
    %v884 = vsel %vm131, %v367, 0
    %v887 = vsel %vm131, %v368, 0
    %v890 = vsel %vm131, %v369, 0
    %v893 = vsel %vm131, %v370, 0
    %v896 = vsel %vm131, %v371, 0
    %v899 = vsel %vm131, %v372, 0
    %v902 = vsel %vm131, %v389, 0
    %v905 = vsel %vm131, %v390, 0
    %v908 = vsel %vm131, %v391, 0
    %v911 = vsel %vm131, %v392, 0
    %v914 = vsel %vm131, %v393, 0
    %v917 = vsel %vm131, %v394, 0
    %v920 = vsel %vm131, %v395, 0
    %v923 = vsel %vm131, %v396, 0
    %v926 = vsel %vm131, %v397, 0
    %v929 = vsel %vm131, %v398, 0
    %v932 = vsel %vm131, %v399, 0
    %v935 = vsel %vm131, %v400, 0
    %v938 = vsel %vm131, %v401, 0
    %v941 = vsel %vm131, %v402, 0
    %v944 = vsel %vm131, %v403, 0
    %v947 = vsel %vm131, %v404, 0
    %v950 = vsel %vm131, %v421, 0
    %v953 = vsel %vm131, %v422, 0
    %v956 = vsel %vm131, %v423, 0
    %v959 = vsel %vm131, %v424, 0
    %v962 = vsel %vm131, %v425, 0
    %v965 = vsel %vm131, %v426, 0
    %v968 = vsel %vm131, %v427, 0
    %v971 = vsel %vm131, %v428, 0
    %v974 = vsel %vm131, %v429, 0
    %v977 = vsel %vm131, %v430, 0
    %v980 = vsel %vm131, %v431, 0
    %v983 = vsel %vm131, %v432, 0
    %v986 = vsel %vm131, %v433, 0
    %v989 = vsel %vm131, %v434, 0
    %v992 = vsel %vm131, %v435, 0
    %v995 = vsel %vm131, %v436, 0
    %v998 = vsel %vm131, %v453, 0
    %v1001 = vsel %vm131, %v454, 0
    %v1004 = vsel %vm131, %v455, 0
    %v1007 = vsel %vm131, %v456, 0
    %v1010 = vsel %vm131, %v457, 0
    %v1013 = vsel %vm131, %v458, 0
    %v1016 = vsel %vm131, %v459, 0
    %v1019 = vsel %vm131, %v460, 0
    %v1022 = vsel %vm131, %v461, 0
    %v1025 = vsel %vm131, %v462, 0
    %v1028 = vsel %vm131, %v463, 0
    %v1031 = vsel %vm131, %v464, 0
    %v1034 = vsel %vm131, %v465, 0
    %v1037 = vsel %vm131, %v466, 0
    %v1040 = vsel %vm131, %v467, 0
    %v1043 = vsel %vm131, %v468, 0
    %v1046 = vsel %vm131, %v485, 0
    %v1049 = vsel %vm131, %v486, 0
    %v1052 = vsel %vm131, %v487, 0
    %v1055 = vsel %vm131, %v488, 0
    %v1058 = vsel %vm131, %v489, 0
    %v1061 = vsel %vm131, %v490, 0
    %v1064 = vsel %vm131, %v491, 0
    %v1067 = vsel %vm131, %v492, 0
    %v1070 = vsel %vm131, %v493, 0
    %v1073 = vsel %vm131, %v494, 0
    %v1076 = vsel %vm131, %v495, 0
    %v1079 = vsel %vm131, %v496, 0
    %v1082 = vsel %vm131, %v497, 0
    %v1085 = vsel %vm131, %v498, 0
    %v1088 = vsel %vm131, %v499, 0
    %v1091 = vsel %vm131, %v500, 0
    %v1094 = vsel %vm131, %v517, 0
    %v1097 = vsel %vm131, %v518, 0
    %v1100 = vsel %vm131, %v519, 0
    %v1103 = vsel %vm131, %v520, 0
    %v1106 = vsel %vm131, %v521, 0
    %v1109 = vsel %vm131, %v522, 0
    %v1112 = vsel %vm131, %v523, 0
    %v1115 = vsel %vm131, %v524, 0
    %v1118 = vsel %vm131, %v525, 0
    %v1121 = vsel %vm131, %v526, 0
    %v1124 = vsel %vm131, %v527, 0
    %v1127 = vsel %vm131, %v528, 0
    %v1130 = vsel %vm131, %v529, 0
    %v1133 = vsel %vm131, %v530, 0
    %v1136 = vsel %vm131, %v531, 0
    %v1139 = vsel %vm131, %v532, 0
    %v1142 = vsel %vm131, %v549, 0
    %v1145 = vsel %vm131, %v550, 0
    %v1148 = vsel %vm131, %v551, 0
    %v1151 = vsel %vm131, %v552, 0
    %v1154 = vsel %vm131, %v553, 0
    %v1157 = vsel %vm131, %v554, 0
    %v1160 = vsel %vm131, %v555, 0
    %v1163 = vsel %vm131, %v556, 0
    %v1166 = vsel %vm131, %v557, 0
    %v1169 = vsel %vm131, %v558, 0
    %v1172 = vsel %vm131, %v559, 0
    %v1175 = vsel %vm131, %v560, 0
    %v1178 = vsel %vm131, %v561, 0
    %v1181 = vsel %vm131, %v562, 0
    %v1184 = vsel %vm131, %v563, 0
    %v1187 = vsel %vm131, %v564, 0
    %v1190 = vsel %vm131, %v581, 0
    %v1193 = vsel %vm131, %v582, 0
    %v1196 = vsel %vm131, %v583, 0
    %v1199 = vsel %vm131, %v584, 0
    %v1202 = vsel %vm131, %v585, 0
    %v1205 = vsel %vm131, %v586, 0
    %v1208 = vsel %vm131, %v587, 0
    %v1211 = vsel %vm131, %v588, 0
    %v1214 = vsel %vm131, %v589, 0
    %v1217 = vsel %vm131, %v590, 0
    %v1220 = vsel %vm131, %v591, 0
    %v1223 = vsel %vm131, %v592, 0
    %v1226 = vsel %vm131, %v593, 0
    %v1229 = vsel %vm131, %v594, 0
    %v1232 = vsel %vm131, %v595, 0
    %v1235 = vsel %vm131, %v596, 0
    %1237 = vmatprep.subr.mxu0 %v112
    %1238 = vmatpush1.msra.mxu0 %v111
    %1239 = vmatprep.subr.mxu0 %v114
    %1240 = vmatpush1.msra.mxu0 %v113
    %1241 = vmatprep.subr.mxu0 0.0
    %1242 = vmatpush1.msra.mxu0 0.0
    %1243 = vmatprep.subr.mxu0 0.0
    %1244 = vmatpush1.msra.mxu0 0.0
    %1245 = vmatprep.subr.mxu0 0.0
    %1246 = vmatpush1.msra.mxu0 0.0
    %1247 = vmatprep.subr.mxu0 0.0
    %1248 = vmatpush1.msra.mxu0 0.0
    %1249 = vmatprep.subr.mxu0 0.0
    %1250 = vmatpush1.msra.mxu0 0.0
    %1251 = vmatprep.subr.mxu0 0.0
    %1252 = vmatpush1.msra.mxu0 0.0
    %1253 = vmatprep.subr.mxu0 0.0
    %1254 = vmatpush1.msra.mxu0 0.0
    %1255 = vmatprep.subr.mxu0 0.0
    %1256 = vmatpush1.msra.mxu0 0.0
    %1257 = vmatprep.subr.mxu0 0.0
    %1258 = vmatpush1.msra.mxu0 0.0
    %1259 = vmatprep.subr.mxu0 0.0
    %1260 = vmatpush1.msra.mxu0 0.0
    %1261 = vmatprep.subr.mxu0 0.0
    %1262 = vmatpush1.msra.mxu0 0.0
    %1263 = vmatprep.subr.mxu0 0.0
    %1264 = vmatpush1.msra.mxu0 0.0
    %1265 = vmatprep.subr.mxu0 0.0
    %1266 = vmatpush1.msra.mxu0 0.0
    %1267 = vmatprep.subr.mxu0 0.0
    %1268 = vmatpush1.msra.mxu0 0.0
    %1269 = vmatprep.subr.mxu0 0.0
    %1270 = vmatpush1.msra.mxu0 0.0
    %1271 = vmatprep.subr.mxu0 0.0
    %1272 = vmatpush1.msra.mxu0 0.0
    %1273 = vmatprep.subr.mxu0 0.0
    %1274 = vmatpush1.msra.mxu0 0.0
    %1275 = vmatprep.subr.mxu0 0.0
    %1276 = vmatpush1.msra.mxu0 0.0
    %1277 = vmatprep.subr.mxu0 0.0
    %1278 = vmatpush1.msra.mxu0 0.0
    %1279 = vmatprep.subr.mxu0 0.0
    %1280 = vmatpush1.msra.mxu0 0.0
    %1281 = vmatprep.subr.mxu0 0.0
    %1282 = vmatpush1.msra.mxu0 0.0
    %1283 = vmatprep.subr.mxu0 0.0
    %1284 = vmatpush1.msra.mxu0 0.0
    %1285 = vmatprep.subr.mxu0 0.0
    %1286 = vmatpush1.msra.mxu0 0.0
    %1287 = vmatprep.subr.mxu0 0.0
    %1288 = vmatpush1.msra.mxu0 0.0
    %1289 = vmatprep.subr.mxu0 0.0
    %1290 = vmatpush1.msra.mxu0 0.0
    %1291 = vmatprep.subr.mxu0 0.0
    %1292 = vmatpush1.msra.mxu0 0.0
    %1293 = vmatprep.subr.mxu0 0.0
    %1294 = vmatpush1.msra.mxu0 0.0
    %1295 = vmatprep.subr.mxu0 0.0
    %1296 = vmatpush1.msra.mxu0 0.0
    %1297 = vmatprep.subr.mxu0 0.0
    %1298 = vmatpush1.msra.mxu0 0.0
    %1299 = vmatprep.subr.mxu0 0.0
    %1300 = vmatpush1.msra.mxu0 0.0
    %1301 = vmatprep.mubr.f32.mxu0 0.0
    %1302 = vmatmul.mubr.f32.gmra.mrb[0].mxu0 %v854
    %v1303 = vpop.f32.mrb[0].mxu0
    %v1304 = vadd.f32 0.0, %v1303
    %v1305 = vpop.f32.mrb[0].mxu0
    %v1306 = vadd.f32 0.0, %v1305
    %1307 = vmatprep.mubr.f32.mxu0 0.0
    %1308 = vmatmul.mubr.f32.gmra.mrb[0].mxu0 %v857
    %v1309 = vpop.f32.mrb[0].mxu0
    %v1310 = vadd.f32 0.0, %v1309
    %v1311 = vpop.f32.mrb[0].mxu0
    %v1312 = vadd.f32 0.0, %v1311
    %1313 = vmatprep.mubr.f32.mxu0 0.0
    %1314 = vmatmul.mubr.f32.gmra.mrb[0].mxu0 %v860
    %v1315 = vpop.f32.mrb[0].mxu0
    %v1316 = vadd.f32 0.0, %v1315
    %v1317 = vpop.f32.mrb[0].mxu0
    %v1318 = vadd.f32 0.0, %v1317
    %1319 = vmatprep.mubr.f32.mxu0 0.0
    %1320 = vmatmul.mubr.f32.gmra.mrb[0].mxu0 %v863
    %v1321 = vpop.f32.mrb[0].mxu0
    %v1322 = vadd.f32 0.0, %v1321
    %v1323 = vpop.f32.mrb[0].mxu0
    %v1324 = vadd.f32 0.0, %v1323
    %1325 = vmatprep.mubr.f32.mxu0 0.0
    %1326 = vmatmul.mubr.f32.gmra.mrb[0].mxu0 %v866
    %v1327 = vpop.f32.mrb[0].mxu0
    %v1328 = vadd.f32 0.0, %v1327
    %v1329 = vpop.f32.mrb[0].mxu0
    %v1330 = vadd.f32 0.0, %v1329
    %1331 = vmatprep.mubr.f32.mxu0 0.0
    %1332 = vmatmul.mubr.f32.gmra.mrb[0].mxu0 %v869
    %v1333 = vpop.f32.mrb[0].mxu0
    %v1334 = vadd.f32 0.0, %v1333
    %v1335 = vpop.f32.mrb[0].mxu0
    %v1336 = vadd.f32 0.0, %v1335
    %1337 = vmatprep.mubr.f32.mxu0 0.0
    %1338 = vmatmul.mubr.f32.gmra.mrb[0].mxu0 %v872
    %v1339 = vpop.f32.mrb[0].mxu0
    %v1340 = vadd.f32 0.0, %v1339
    %v1341 = vpop.f32.mrb[0].mxu0
    %v1342 = vadd.f32 0.0, %v1341
    %1343 = vmatprep.mubr.f32.mxu0 0.0
    %1344 = vmatmul.mubr.f32.gmra.mrb[0].mxu0 %v875
    %v1345 = vpop.f32.mrb[0].mxu0
    %v1346 = vadd.f32 0.0, %v1345
    %v1347 = vpop.f32.mrb[0].mxu0
    %v1348 = vadd.f32 0.0, %v1347
    %1349 = vmatprep.mubr.f32.mxu0 0.0
    %1350 = vmatmul.mubr.f32.gmra.mrb[0].mxu0 %v878
    %v1351 = vpop.f32.mrb[0].mxu0
    %v1352 = vadd.f32 0.0, %v1351
    %v1353 = vpop.f32.mrb[0].mxu0
    %v1354 = vadd.f32 0.0, %v1353
    %1355 = vmatprep.mubr.f32.mxu0 0.0
    %1356 = vmatmul.mubr.f32.gmra.mrb[0].mxu0 %v881
    %v1357 = vpop.f32.mrb[0].mxu0
    %v1358 = vadd.f32 0.0, %v1357
    %v1359 = vpop.f32.mrb[0].mxu0
    %v1360 = vadd.f32 0.0, %v1359
    %1361 = vmatprep.mubr.f32.mxu0 0.0
    %1362 = vmatmul.mubr.f32.gmra.mrb[0].mxu0 %v884
    %v1363 = vpop.f32.mrb[0].mxu0
    %v1364 = vadd.f32 0.0, %v1363
    %v1365 = vpop.f32.mrb[0].mxu0
    %v1366 = vadd.f32 0.0, %v1365
    %1367 = vmatprep.mubr.f32.mxu0 0.0
    %1368 = vmatmul.mubr.f32.gmra.mrb[0].mxu0 %v887
    %v1369 = vpop.f32.mrb[0].mxu0
    %v1370 = vadd.f32 0.0, %v1369
    %v1371 = vpop.f32.mrb[0].mxu0
    %v1372 = vadd.f32 0.0, %v1371
    %1373 = vmatprep.mubr.f32.mxu0 0.0
    %1374 = vmatmul.mubr.f32.gmra.mrb[0].mxu0 %v890
    %v1375 = vpop.f32.mrb[0].mxu0
    %v1376 = vadd.f32 0.0, %v1375
    %v1377 = vpop.f32.mrb[0].mxu0
    %v1378 = vadd.f32 0.0, %v1377
    %1379 = vmatprep.mubr.f32.mxu0 0.0
    %1380 = vmatmul.mubr.f32.gmra.mrb[0].mxu0 %v893
    %v1381 = vpop.f32.mrb[0].mxu0
    %v1382 = vadd.f32 0.0, %v1381
    %v1383 = vpop.f32.mrb[0].mxu0
    %v1384 = vadd.f32 0.0, %v1383
    %1385 = vmatprep.mubr.f32.mxu0 0.0
    %1386 = vmatmul.mubr.f32.gmra.mrb[0].mxu0 %v896
    %v1387 = vpop.f32.mrb[0].mxu0
    %v1388 = vadd.f32 0.0, %v1387
    %v1389 = vpop.f32.mrb[0].mxu0
    %v1390 = vadd.f32 0.0, %v1389
    %1391 = vmatprep.mubr.f32.mxu0 0.0
    %1392 = vmatmul.mubr.f32.gmra.mrb[0].mxu0 %v899
    %v1393 = vpop.f32.mrb[0].mxu0
    %v1394 = vadd.f32 0.0, %v1393
    %v1395 = vpop.f32.mrb[0].mxu0
    %v1396 = vadd.f32 0.0, %v1395
    %1397 = vmatprep.mubr.f32.mxu0 0.0
    %1398 = vmatmul.mubr.f32.gmra.mrb[0].mxu0 %v902
    %v1399 = vpop.f32.mrb[0].mxu0
    %v1400 = vadd.f32 0.0, %v1399
    %v1401 = vpop.f32.mrb[0].mxu0
    %v1402 = vadd.f32 0.0, %v1401
    %1403 = vmatprep.mubr.f32.mxu0 0.0
    %1404 = vmatmul.mubr.f32.gmra.mrb[0].mxu0 %v905
    %v1405 = vpop.f32.mrb[0].mxu0
    %v1406 = vadd.f32 0.0, %v1405
    %v1407 = vpop.f32.mrb[0].mxu0
    %v1408 = vadd.f32 0.0, %v1407
    %1409 = vmatprep.mubr.f32.mxu0 0.0
    %1410 = vmatmul.mubr.f32.gmra.mrb[0].mxu0 %v908
    %v1411 = vpop.f32.mrb[0].mxu0
    %v1412 = vadd.f32 0.0, %v1411
    %v1413 = vpop.f32.mrb[0].mxu0
    %v1414 = vadd.f32 0.0, %v1413
    %1415 = vmatprep.mubr.f32.mxu0 0.0
    %1416 = vmatmul.mubr.f32.gmra.mrb[0].mxu0 %v911
    %v1417 = vpop.f32.mrb[0].mxu0
    %v1418 = vadd.f32 0.0, %v1417
    %v1419 = vpop.f32.mrb[0].mxu0
    %v1420 = vadd.f32 0.0, %v1419
    %1421 = vmatprep.mubr.f32.mxu0 0.0
    %1422 = vmatmul.mubr.f32.gmra.mrb[0].mxu0 %v914
    %v1423 = vpop.f32.mrb[0].mxu0
    %v1424 = vadd.f32 0.0, %v1423
    %v1425 = vpop.f32.mrb[0].mxu0
    %v1426 = vadd.f32 0.0, %v1425
    %1427 = vmatprep.mubr.f32.mxu0 0.0
    %1428 = vmatmul.mubr.f32.gmra.mrb[0].mxu0 %v917
    %v1429 = vpop.f32.mrb[0].mxu0
    %v1430 = vadd.f32 0.0, %v1429
    %v1431 = vpop.f32.mrb[0].mxu0
    %v1432 = vadd.f32 0.0, %v1431
    %1433 = vmatprep.mubr.f32.mxu0 0.0
    %1434 = vmatmul.mubr.f32.gmra.mrb[0].mxu0 %v920
    %v1435 = vpop.f32.mrb[0].mxu0
    %v1436 = vadd.f32 0.0, %v1435
    %v1437 = vpop.f32.mrb[0].mxu0
    %v1438 = vadd.f32 0.0, %v1437
    %1439 = vmatprep.mubr.f32.mxu0 0.0
    %1440 = vmatmul.mubr.f32.gmra.mrb[0].mxu0 %v923
    %v1441 = vpop.f32.mrb[0].mxu0
    %v1442 = vadd.f32 0.0, %v1441
    %v1443 = vpop.f32.mrb[0].mxu0
    %v1444 = vadd.f32 0.0, %v1443
    %1445 = vmatprep.mubr.f32.mxu0 0.0
    %1446 = vmatmul.mubr.f32.gmra.mrb[0].mxu0 %v926
    %v1447 = vpop.f32.mrb[0].mxu0
    %v1448 = vadd.f32 0.0, %v1447
    %v1449 = vpop.f32.mrb[0].mxu0
    %v1450 = vadd.f32 0.0, %v1449
    %1451 = vmatprep.mubr.f32.mxu0 0.0
    %1452 = vmatmul.mubr.f32.gmra.mrb[0].mxu0 %v929
    %v1453 = vpop.f32.mrb[0].mxu0
    %v1454 = vadd.f32 0.0, %v1453
    %v1455 = vpop.f32.mrb[0].mxu0
    %v1456 = vadd.f32 0.0, %v1455
    %1457 = vmatprep.mubr.f32.mxu0 0.0
    %1458 = vmatmul.mubr.f32.gmra.mrb[0].mxu0 %v932
    %v1459 = vpop.f32.mrb[0].mxu0
    %v1460 = vadd.f32 0.0, %v1459
    %v1461 = vpop.f32.mrb[0].mxu0
    %v1462 = vadd.f32 0.0, %v1461
    %1463 = vmatprep.mubr.f32.mxu0 0.0
    %1464 = vmatmul.mubr.f32.gmra.mrb[0].mxu0 %v935
    %v1465 = vpop.f32.mrb[0].mxu0
    %v1466 = vadd.f32 0.0, %v1465
    %v1467 = vpop.f32.mrb[0].mxu0
    %v1468 = vadd.f32 0.0, %v1467
    %1469 = vmatprep.mubr.f32.mxu0 0.0
    %1470 = vmatmul.mubr.f32.gmra.mrb[0].mxu0 %v938
    %v1471 = vpop.f32.mrb[0].mxu0
    %v1472 = vadd.f32 0.0, %v1471
    %v1473 = vpop.f32.mrb[0].mxu0
    %v1474 = vadd.f32 0.0, %v1473
    %1475 = vmatprep.mubr.f32.mxu0 0.0
    %1476 = vmatmul.mubr.f32.gmra.mrb[0].mxu0 %v941
    %v1477 = vpop.f32.mrb[0].mxu0
    %v1478 = vadd.f32 0.0, %v1477
    %v1479 = vpop.f32.mrb[0].mxu0
    %v1480 = vadd.f32 0.0, %v1479
    %1481 = vmatprep.mubr.f32.mxu0 0.0
    %1482 = vmatmul.mubr.f32.gmra.mrb[0].mxu0 %v944
    %v1483 = vpop.f32.mrb[0].mxu0
    %v1484 = vadd.f32 0.0, %v1483
    %v1485 = vpop.f32.mrb[0].mxu0
    %v1486 = vadd.f32 0.0, %v1485
    %1487 = vmatprep.mubr.f32.mxu0 0.0
    %1488 = vmatmul.mubr.f32.gmra.mrb[0].mxu0 %v947
    %v1489 = vpop.f32.mrb[0].mxu0
    %v1490 = vadd.f32 0.0, %v1489
    %v1491 = vpop.f32.mrb[0].mxu0
    %v1492 = vadd.f32 0.0, %v1491
    %1493 = vmatprep.mubr.f32.mxu0 0.0
    %1494 = vmatmul.mubr.f32.gmra.mrb[0].mxu0 %v950
    %v1495 = vpop.f32.mrb[0].mxu0
    %v1496 = vadd.f32 0.0, %v1495
    %v1497 = vpop.f32.mrb[0].mxu0
    %v1498 = vadd.f32 0.0, %v1497
    %1499 = vmatprep.mubr.f32.mxu0 0.0
    %1500 = vmatmul.mubr.f32.gmra.mrb[0].mxu0 %v953
    %v1501 = vpop.f32.mrb[0].mxu0
    %v1502 = vadd.f32 0.0, %v1501
    %v1503 = vpop.f32.mrb[0].mxu0
    %v1504 = vadd.f32 0.0, %v1503
    %1505 = vmatprep.mubr.f32.mxu0 0.0
    %1506 = vmatmul.mubr.f32.gmra.mrb[0].mxu0 %v956
    %v1507 = vpop.f32.mrb[0].mxu0
    %v1508 = vadd.f32 0.0, %v1507
    %v1509 = vpop.f32.mrb[0].mxu0
    %v1510 = vadd.f32 0.0, %v1509
    %1511 = vmatprep.mubr.f32.mxu0 0.0
    %1512 = vmatmul.mubr.f32.gmra.mrb[0].mxu0 %v959
    %v1513 = vpop.f32.mrb[0].mxu0
    %v1514 = vadd.f32 0.0, %v1513
    %v1515 = vpop.f32.mrb[0].mxu0
    %v1516 = vadd.f32 0.0, %v1515
    %1517 = vmatprep.mubr.f32.mxu0 0.0
    %1518 = vmatmul.mubr.f32.gmra.mrb[0].mxu0 %v962
    %v1519 = vpop.f32.mrb[0].mxu0
    %v1520 = vadd.f32 0.0, %v1519
    %v1521 = vpop.f32.mrb[0].mxu0
    %v1522 = vadd.f32 0.0, %v1521
    %1523 = vmatprep.mubr.f32.mxu0 0.0
    %1524 = vmatmul.mubr.f32.gmra.mrb[0].mxu0 %v965
    %v1525 = vpop.f32.mrb[0].mxu0
    %v1526 = vadd.f32 0.0, %v1525
    %v1527 = vpop.f32.mrb[0].mxu0
    %v1528 = vadd.f32 0.0, %v1527
    %1529 = vmatprep.mubr.f32.mxu0 0.0
    %1530 = vmatmul.mubr.f32.gmra.mrb[0].mxu0 %v968
    %v1531 = vpop.f32.mrb[0].mxu0
    %v1532 = vadd.f32 0.0, %v1531
    %v1533 = vpop.f32.mrb[0].mxu0
    %v1534 = vadd.f32 0.0, %v1533
    %1535 = vmatprep.mubr.f32.mxu0 0.0
    %1536 = vmatmul.mubr.f32.gmra.mrb[0].mxu0 %v971
    %v1537 = vpop.f32.mrb[0].mxu0
    %v1538 = vadd.f32 0.0, %v1537
    %v1539 = vpop.f32.mrb[0].mxu0
    %v1540 = vadd.f32 0.0, %v1539
    %1541 = vmatprep.mubr.f32.mxu0 0.0
    %1542 = vmatmul.mubr.f32.gmra.mrb[0].mxu0 %v974
    %v1543 = vpop.f32.mrb[0].mxu0
    %v1544 = vadd.f32 0.0, %v1543
    %v1545 = vpop.f32.mrb[0].mxu0
    %v1546 = vadd.f32 0.0, %v1545
    %1547 = vmatprep.mubr.f32.mxu0 0.0
    %1548 = vmatmul.mubr.f32.gmra.mrb[0].mxu0 %v977
    %v1549 = vpop.f32.mrb[0].mxu0
    %v1550 = vadd.f32 0.0, %v1549
    %v1551 = vpop.f32.mrb[0].mxu0
    %v1552 = vadd.f32 0.0, %v1551
    %1553 = vmatprep.mubr.f32.mxu0 0.0
    %1554 = vmatmul.mubr.f32.gmra.mrb[0].mxu0 %v980
    %v1555 = vpop.f32.mrb[0].mxu0
    %v1556 = vadd.f32 0.0, %v1555
    %v1557 = vpop.f32.mrb[0].mxu0
    %v1558 = vadd.f32 0.0, %v1557
    %1559 = vmatprep.mubr.f32.mxu0 0.0
    %1560 = vmatmul.mubr.f32.gmra.mrb[0].mxu0 %v983
    %v1561 = vpop.f32.mrb[0].mxu0
    %v1562 = vadd.f32 0.0, %v1561
    %v1563 = vpop.f32.mrb[0].mxu0
    %v1564 = vadd.f32 0.0, %v1563
    %1565 = vmatprep.mubr.f32.mxu0 0.0
    %1566 = vmatmul.mubr.f32.gmra.mrb[0].mxu0 %v986
    %v1567 = vpop.f32.mrb[0].mxu0
    %v1568 = vadd.f32 0.0, %v1567
    %v1569 = vpop.f32.mrb[0].mxu0
    %v1570 = vadd.f32 0.0, %v1569
    %1571 = vmatprep.mubr.f32.mxu0 0.0
    %1572 = vmatmul.mubr.f32.gmra.mrb[0].mxu0 %v989
    %v1573 = vpop.f32.mrb[0].mxu0
    %v1574 = vadd.f32 0.0, %v1573
    %v1575 = vpop.f32.mrb[0].mxu0
    %v1576 = vadd.f32 0.0, %v1575
    %1577 = vmatprep.mubr.f32.mxu0 0.0
    %1578 = vmatmul.mubr.f32.gmra.mrb[0].mxu0 %v992
    %v1579 = vpop.f32.mrb[0].mxu0
    %v1580 = vadd.f32 0.0, %v1579
    %v1581 = vpop.f32.mrb[0].mxu0
    %v1582 = vadd.f32 0.0, %v1581
    %1583 = vmatprep.mubr.f32.mxu0 0.0
    %1584 = vmatmul.mubr.f32.gmra.mrb[0].mxu0 %v995
    %v1585 = vpop.f32.mrb[0].mxu0
    %v1586 = vadd.f32 0.0, %v1585
    %v1587 = vpop.f32.mrb[0].mxu0
    %v1588 = vadd.f32 0.0, %v1587
    %1589 = vmatprep.mubr.f32.mxu0 0.0
    %1590 = vmatmul.mubr.f32.gmra.mrb[0].mxu0 %v998
    %v1591 = vpop.f32.mrb[0].mxu0
    %v1592 = vadd.f32 0.0, %v1591
    %v1593 = vpop.f32.mrb[0].mxu0
    %v1594 = vadd.f32 0.0, %v1593
    %1595 = vmatprep.mubr.f32.mxu0 0.0
    %1596 = vmatmul.mubr.f32.gmra.mrb[0].mxu0 %v1001
    %v1597 = vpop.f32.mrb[0].mxu0
    %v1598 = vadd.f32 0.0, %v1597
    %v1599 = vpop.f32.mrb[0].mxu0
    %v1600 = vadd.f32 0.0, %v1599
    %1601 = vmatprep.mubr.f32.mxu0 0.0
    %1602 = vmatmul.mubr.f32.gmra.mrb[0].mxu0 %v1004
    %v1603 = vpop.f32.mrb[0].mxu0
    %v1604 = vadd.f32 0.0, %v1603
    %v1605 = vpop.f32.mrb[0].mxu0
    %v1606 = vadd.f32 0.0, %v1605
    %1607 = vmatprep.mubr.f32.mxu0 0.0
    %1608 = vmatmul.mubr.f32.gmra.mrb[0].mxu0 %v1007
    %v1609 = vpop.f32.mrb[0].mxu0
    %v1610 = vadd.f32 0.0, %v1609
    %v1611 = vpop.f32.mrb[0].mxu0
    %v1612 = vadd.f32 0.0, %v1611
    %1613 = vmatprep.mubr.f32.mxu0 0.0
    %1614 = vmatmul.mubr.f32.gmra.mrb[0].mxu0 %v1010
    %v1615 = vpop.f32.mrb[0].mxu0
    %v1616 = vadd.f32 0.0, %v1615
    %v1617 = vpop.f32.mrb[0].mxu0
    %v1618 = vadd.f32 0.0, %v1617
    %1619 = vmatprep.mubr.f32.mxu0 0.0
    %1620 = vmatmul.mubr.f32.gmra.mrb[0].mxu0 %v1013
    %v1621 = vpop.f32.mrb[0].mxu0
    %v1622 = vadd.f32 0.0, %v1621
    %v1623 = vpop.f32.mrb[0].mxu0
    %v1624 = vadd.f32 0.0, %v1623
    %1625 = vmatprep.mubr.f32.mxu0 0.0
    %1626 = vmatmul.mubr.f32.gmra.mrb[0].mxu0 %v1016
    %v1627 = vpop.f32.mrb[0].mxu0
    %v1628 = vadd.f32 0.0, %v1627
    %v1629 = vpop.f32.mrb[0].mxu0
    %v1630 = vadd.f32 0.0, %v1629
    %1631 = vmatprep.mubr.f32.mxu0 0.0
    %1632 = vmatmul.mubr.f32.gmra.mrb[0].mxu0 %v1019
    %v1633 = vpop.f32.mrb[0].mxu0
    %v1634 = vadd.f32 0.0, %v1633
    %v1635 = vpop.f32.mrb[0].mxu0
    %v1636 = vadd.f32 0.0, %v1635
    %1637 = vmatprep.mubr.f32.mxu0 0.0
    %1638 = vmatmul.mubr.f32.gmra.mrb[0].mxu0 %v1022
    %v1639 = vpop.f32.mrb[0].mxu0
    %v1640 = vadd.f32 0.0, %v1639
    %v1641 = vpop.f32.mrb[0].mxu0
    %v1642 = vadd.f32 0.0, %v1641
    %1643 = vmatprep.mubr.f32.mxu0 0.0
    %1644 = vmatmul.mubr.f32.gmra.mrb[0].mxu0 %v1025
    %v1645 = vpop.f32.mrb[0].mxu0
    %v1646 = vadd.f32 0.0, %v1645
    %v1647 = vpop.f32.mrb[0].mxu0
    %v1648 = vadd.f32 0.0, %v1647
    %1649 = vmatprep.mubr.f32.mxu0 0.0
    %1650 = vmatmul.mubr.f32.gmra.mrb[0].mxu0 %v1028
    %v1651 = vpop.f32.mrb[0].mxu0
    %v1652 = vadd.f32 0.0, %v1651
    %v1653 = vpop.f32.mrb[0].mxu0
    %v1654 = vadd.f32 0.0, %v1653
    %1655 = vmatprep.mubr.f32.mxu0 0.0
    %1656 = vmatmul.mubr.f32.gmra.mrb[0].mxu0 %v1031
    %v1657 = vpop.f32.mrb[0].mxu0
    %v1658 = vadd.f32 0.0, %v1657
    %v1659 = vpop.f32.mrb[0].mxu0
    %v1660 = vadd.f32 0.0, %v1659
    %1661 = vmatprep.mubr.f32.mxu0 0.0
    %1662 = vmatmul.mubr.f32.gmra.mrb[0].mxu0 %v1034
    %v1663 = vpop.f32.mrb[0].mxu0
    %v1664 = vadd.f32 0.0, %v1663
    %v1665 = vpop.f32.mrb[0].mxu0
    %v1666 = vadd.f32 0.0, %v1665
    %1667 = vmatprep.mubr.f32.mxu0 0.0
    %1668 = vmatmul.mubr.f32.gmra.mrb[0].mxu0 %v1037
    %v1669 = vpop.f32.mrb[0].mxu0
    %v1670 = vadd.f32 0.0, %v1669
    %v1671 = vpop.f32.mrb[0].mxu0
    %v1672 = vadd.f32 0.0, %v1671
    %1673 = vmatprep.mubr.f32.mxu0 0.0
    %1674 = vmatmul.mubr.f32.gmra.mrb[0].mxu0 %v1040
    %v1675 = vpop.f32.mrb[0].mxu0
    %v1676 = vadd.f32 0.0, %v1675
    %v1677 = vpop.f32.mrb[0].mxu0
    %v1678 = vadd.f32 0.0, %v1677
    %1679 = vmatprep.mubr.f32.mxu0 0.0
    %1680 = vmatmul.mubr.f32.gmra.mrb[0].mxu0 %v1043
    %v1681 = vpop.f32.mrb[0].mxu0
    %v1682 = vadd.f32 0.0, %v1681
    %v1683 = vpop.f32.mrb[0].mxu0
    %v1684 = vadd.f32 0.0, %v1683
    %1685 = vmatprep.mubr.f32.mxu0 0.0
    %1686 = vmatmul.mubr.f32.gmra.mrb[0].mxu0 %v1046
    %v1687 = vpop.f32.mrb[0].mxu0
    %v1688 = vadd.f32 0.0, %v1687
    %v1689 = vpop.f32.mrb[0].mxu0
    %v1690 = vadd.f32 0.0, %v1689
    %1691 = vmatprep.mubr.f32.mxu0 0.0
    %1692 = vmatmul.mubr.f32.gmra.mrb[0].mxu0 %v1049
    %v1693 = vpop.f32.mrb[0].mxu0
    %v1694 = vadd.f32 0.0, %v1693
    %v1695 = vpop.f32.mrb[0].mxu0
    %v1696 = vadd.f32 0.0, %v1695
    %1697 = vmatprep.mubr.f32.mxu0 0.0
    %1698 = vmatmul.mubr.f32.gmra.mrb[0].mxu0 %v1052
    %v1699 = vpop.f32.mrb[0].mxu0
    %v1700 = vadd.f32 0.0, %v1699
    %v1701 = vpop.f32.mrb[0].mxu0
    %v1702 = vadd.f32 0.0, %v1701
    %1703 = vmatprep.mubr.f32.mxu0 0.0
    %1704 = vmatmul.mubr.f32.gmra.mrb[0].mxu0 %v1055
    %v1705 = vpop.f32.mrb[0].mxu0
    %v1706 = vadd.f32 0.0, %v1705
    %v1707 = vpop.f32.mrb[0].mxu0
    %v1708 = vadd.f32 0.0, %v1707
    %1709 = vmatprep.mubr.f32.mxu0 0.0
    %1710 = vmatmul.mubr.f32.gmra.mrb[0].mxu0 %v1058
    %v1711 = vpop.f32.mrb[0].mxu0
    %v1712 = vadd.f32 0.0, %v1711
    %v1713 = vpop.f32.mrb[0].mxu0
    %v1714 = vadd.f32 0.0, %v1713
    %1715 = vmatprep.mubr.f32.mxu0 0.0
    %1716 = vmatmul.mubr.f32.gmra.mrb[0].mxu0 %v1061
    %v1717 = vpop.f32.mrb[0].mxu0
    %v1718 = vadd.f32 0.0, %v1717
    %v1719 = vpop.f32.mrb[0].mxu0
    %v1720 = vadd.f32 0.0, %v1719
    %1721 = vmatprep.mubr.f32.mxu0 0.0
    %1722 = vmatmul.mubr.f32.gmra.mrb[0].mxu0 %v1064
    %v1723 = vpop.f32.mrb[0].mxu0
    %v1724 = vadd.f32 0.0, %v1723
    %v1725 = vpop.f32.mrb[0].mxu0
    %v1726 = vadd.f32 0.0, %v1725
    %1727 = vmatprep.mubr.f32.mxu0 0.0
    %1728 = vmatmul.mubr.f32.gmra.mrb[0].mxu0 %v1067
    %v1729 = vpop.f32.mrb[0].mxu0
    %v1730 = vadd.f32 0.0, %v1729
    %v1731 = vpop.f32.mrb[0].mxu0
    %v1732 = vadd.f32 0.0, %v1731
    %1733 = vmatprep.mubr.f32.mxu0 0.0
    %1734 = vmatmul.mubr.f32.gmra.mrb[0].mxu0 %v1070
    %v1735 = vpop.f32.mrb[0].mxu0
    %v1736 = vadd.f32 0.0, %v1735
    %v1737 = vpop.f32.mrb[0].mxu0
    %v1738 = vadd.f32 0.0, %v1737
    %1739 = vmatprep.mubr.f32.mxu0 0.0
    %1740 = vmatmul.mubr.f32.gmra.mrb[0].mxu0 %v1073
    %v1741 = vpop.f32.mrb[0].mxu0
    %v1742 = vadd.f32 0.0, %v1741
    %v1743 = vpop.f32.mrb[0].mxu0
    %v1744 = vadd.f32 0.0, %v1743
    %1745 = vmatprep.mubr.f32.mxu0 0.0
    %1746 = vmatmul.mubr.f32.gmra.mrb[0].mxu0 %v1076
    %v1747 = vpop.f32.mrb[0].mxu0
    %v1748 = vadd.f32 0.0, %v1747
    %v1749 = vpop.f32.mrb[0].mxu0
    %v1750 = vadd.f32 0.0, %v1749
    %1751 = vmatprep.mubr.f32.mxu0 0.0
    %1752 = vmatmul.mubr.f32.gmra.mrb[0].mxu0 %v1079
    %v1753 = vpop.f32.mrb[0].mxu0
    %v1754 = vadd.f32 0.0, %v1753
    %v1755 = vpop.f32.mrb[0].mxu0
    %v1756 = vadd.f32 0.0, %v1755
    %1757 = vmatprep.mubr.f32.mxu0 0.0
    %1758 = vmatmul.mubr.f32.gmra.mrb[0].mxu0 %v1082
    %v1759 = vpop.f32.mrb[0].mxu0
    %v1760 = vadd.f32 0.0, %v1759
    %v1761 = vpop.f32.mrb[0].mxu0
    %v1762 = vadd.f32 0.0, %v1761
    %1763 = vmatprep.mubr.f32.mxu0 0.0
    %1764 = vmatmul.mubr.f32.gmra.mrb[0].mxu0 %v1085
    %v1765 = vpop.f32.mrb[0].mxu0
    %v1766 = vadd.f32 0.0, %v1765
    %v1767 = vpop.f32.mrb[0].mxu0
    %v1768 = vadd.f32 0.0, %v1767
    %1769 = vmatprep.mubr.f32.mxu0 0.0
    %1770 = vmatmul.mubr.f32.gmra.mrb[0].mxu0 %v1088
    %v1771 = vpop.f32.mrb[0].mxu0
    %v1772 = vadd.f32 0.0, %v1771
    %v1773 = vpop.f32.mrb[0].mxu0
    %v1774 = vadd.f32 0.0, %v1773
    %1775 = vmatprep.mubr.f32.mxu0 0.0
    %1776 = vmatmul.mubr.f32.gmra.mrb[0].mxu0 %v1091
    %v1777 = vpop.f32.mrb[0].mxu0
    %v1778 = vadd.f32 0.0, %v1777
    %v1779 = vpop.f32.mrb[0].mxu0
    %v1780 = vadd.f32 0.0, %v1779
    %1781 = vmatprep.mubr.f32.mxu0 0.0
    %1782 = vmatmul.mubr.f32.gmra.mrb[0].mxu0 %v1094
    %v1783 = vpop.f32.mrb[0].mxu0
    %v1784 = vadd.f32 0.0, %v1783
    %v1785 = vpop.f32.mrb[0].mxu0
    %v1786 = vadd.f32 0.0, %v1785
    %1787 = vmatprep.mubr.f32.mxu0 0.0
    %1788 = vmatmul.mubr.f32.gmra.mrb[0].mxu0 %v1097
    %v1789 = vpop.f32.mrb[0].mxu0
    %v1790 = vadd.f32 0.0, %v1789
    %v1791 = vpop.f32.mrb[0].mxu0
    %v1792 = vadd.f32 0.0, %v1791
    %1793 = vmatprep.mubr.f32.mxu0 0.0
    %1794 = vmatmul.mubr.f32.gmra.mrb[0].mxu0 %v1100
    %v1795 = vpop.f32.mrb[0].mxu0
    %v1796 = vadd.f32 0.0, %v1795
    %v1797 = vpop.f32.mrb[0].mxu0
    %v1798 = vadd.f32 0.0, %v1797
    %1799 = vmatprep.mubr.f32.mxu0 0.0
    %1800 = vmatmul.mubr.f32.gmra.mrb[0].mxu0 %v1103
    %v1801 = vpop.f32.mrb[0].mxu0
    %v1802 = vadd.f32 0.0, %v1801
    %v1803 = vpop.f32.mrb[0].mxu0
    %v1804 = vadd.f32 0.0, %v1803
    %1805 = vmatprep.mubr.f32.mxu0 0.0
    %1806 = vmatmul.mubr.f32.gmra.mrb[0].mxu0 %v1106
    %v1807 = vpop.f32.mrb[0].mxu0
    %v1808 = vadd.f32 0.0, %v1807
    %v1809 = vpop.f32.mrb[0].mxu0
    %v1810 = vadd.f32 0.0, %v1809
    %1811 = vmatprep.mubr.f32.mxu0 0.0
    %1812 = vmatmul.mubr.f32.gmra.mrb[0].mxu0 %v1109
    %v1813 = vpop.f32.mrb[0].mxu0
    %v1814 = vadd.f32 0.0, %v1813
    %v1815 = vpop.f32.mrb[0].mxu0
    %v1816 = vadd.f32 0.0, %v1815
    %1817 = vmatprep.mubr.f32.mxu0 0.0
    %1818 = vmatmul.mubr.f32.gmra.mrb[0].mxu0 %v1112
    %v1819 = vpop.f32.mrb[0].mxu0
    %v1820 = vadd.f32 0.0, %v1819
    %v1821 = vpop.f32.mrb[0].mxu0
    %v1822 = vadd.f32 0.0, %v1821
    %1823 = vmatprep.mubr.f32.mxu0 0.0
    %1824 = vmatmul.mubr.f32.gmra.mrb[0].mxu0 %v1115
    %v1825 = vpop.f32.mrb[0].mxu0
    %v1826 = vadd.f32 0.0, %v1825
    %v1827 = vpop.f32.mrb[0].mxu0
    %v1828 = vadd.f32 0.0, %v1827
    %1829 = vmatprep.mubr.f32.mxu0 0.0
    %1830 = vmatmul.mubr.f32.gmra.mrb[0].mxu0 %v1118
    %v1831 = vpop.f32.mrb[0].mxu0
    %v1832 = vadd.f32 0.0, %v1831
    %v1833 = vpop.f32.mrb[0].mxu0
    %v1834 = vadd.f32 0.0, %v1833
    %1835 = vmatprep.mubr.f32.mxu0 0.0
    %1836 = vmatmul.mubr.f32.gmra.mrb[0].mxu0 %v1121
    %v1837 = vpop.f32.mrb[0].mxu0
    %v1838 = vadd.f32 0.0, %v1837
    %v1839 = vpop.f32.mrb[0].mxu0
    %v1840 = vadd.f32 0.0, %v1839
    %1841 = vmatprep.mubr.f32.mxu0 0.0
    %1842 = vmatmul.mubr.f32.gmra.mrb[0].mxu0 %v1124
    %v1843 = vpop.f32.mrb[0].mxu0
    %v1844 = vadd.f32 0.0, %v1843
    %v1845 = vpop.f32.mrb[0].mxu0
    %v1846 = vadd.f32 0.0, %v1845
    %1847 = vmatprep.mubr.f32.mxu0 0.0
    %1848 = vmatmul.mubr.f32.gmra.mrb[0].mxu0 %v1127
    %v1849 = vpop.f32.mrb[0].mxu0
    %v1850 = vadd.f32 0.0, %v1849
    %v1851 = vpop.f32.mrb[0].mxu0
    %v1852 = vadd.f32 0.0, %v1851
    %1853 = vmatprep.mubr.f32.mxu0 0.0
    %1854 = vmatmul.mubr.f32.gmra.mrb[0].mxu0 %v1130
    %v1855 = vpop.f32.mrb[0].mxu0
    %v1856 = vadd.f32 0.0, %v1855
    %v1857 = vpop.f32.mrb[0].mxu0
    %v1858 = vadd.f32 0.0, %v1857
    %1859 = vmatprep.mubr.f32.mxu0 0.0
    %1860 = vmatmul.mubr.f32.gmra.mrb[0].mxu0 %v1133
    %v1861 = vpop.f32.mrb[0].mxu0
    %v1862 = vadd.f32 0.0, %v1861
    %v1863 = vpop.f32.mrb[0].mxu0
    %v1864 = vadd.f32 0.0, %v1863
    %1865 = vmatprep.mubr.f32.mxu0 0.0
    %1866 = vmatmul.mubr.f32.gmra.mrb[0].mxu0 %v1136
    %v1867 = vpop.f32.mrb[0].mxu0
    %v1868 = vadd.f32 0.0, %v1867
    %v1869 = vpop.f32.mrb[0].mxu0
    %v1870 = vadd.f32 0.0, %v1869
    %1871 = vmatprep.mubr.f32.mxu0 0.0
    %1872 = vmatmul.mubr.f32.gmra.mrb[0].mxu0 %v1139
    %v1873 = vpop.f32.mrb[0].mxu0
    %v1874 = vadd.f32 0.0, %v1873
    %v1875 = vpop.f32.mrb[0].mxu0
    %v1876 = vadd.f32 0.0, %v1875
    %1877 = vmatprep.mubr.f32.mxu0 0.0
    %1878 = vmatmul.mubr.f32.gmra.mrb[0].mxu0 %v1142
    %v1879 = vpop.f32.mrb[0].mxu0
    %v1880 = vadd.f32 0.0, %v1879
    %v1881 = vpop.f32.mrb[0].mxu0
    %v1882 = vadd.f32 0.0, %v1881
    %1883 = vmatprep.mubr.f32.mxu0 0.0
    %1884 = vmatmul.mubr.f32.gmra.mrb[0].mxu0 %v1145
    %v1885 = vpop.f32.mrb[0].mxu0
    %v1886 = vadd.f32 0.0, %v1885
    %v1887 = vpop.f32.mrb[0].mxu0
    %v1888 = vadd.f32 0.0, %v1887
    %1889 = vmatprep.mubr.f32.mxu0 0.0
    %1890 = vmatmul.mubr.f32.gmra.mrb[0].mxu0 %v1148
    %v1891 = vpop.f32.mrb[0].mxu0
    %v1892 = vadd.f32 0.0, %v1891
    %v1893 = vpop.f32.mrb[0].mxu0
    %v1894 = vadd.f32 0.0, %v1893
    %1895 = vmatprep.mubr.f32.mxu0 0.0
    %1896 = vmatmul.mubr.f32.gmra.mrb[0].mxu0 %v1151
    %v1897 = vpop.f32.mrb[0].mxu0
    %v1898 = vadd.f32 0.0, %v1897
    %v1899 = vpop.f32.mrb[0].mxu0
    %v1900 = vadd.f32 0.0, %v1899
    %1901 = vmatprep.mubr.f32.mxu0 0.0
    %1902 = vmatmul.mubr.f32.gmra.mrb[0].mxu0 %v1154
    %v1903 = vpop.f32.mrb[0].mxu0
    %v1904 = vadd.f32 0.0, %v1903
    %v1905 = vpop.f32.mrb[0].mxu0
    %v1906 = vadd.f32 0.0, %v1905
    %1907 = vmatprep.mubr.f32.mxu0 0.0
    %1908 = vmatmul.mubr.f32.gmra.mrb[0].mxu0 %v1157
    %v1909 = vpop.f32.mrb[0].mxu0
    %v1910 = vadd.f32 0.0, %v1909
    %v1911 = vpop.f32.mrb[0].mxu0
    %v1912 = vadd.f32 0.0, %v1911
    %1913 = vmatprep.mubr.f32.mxu0 0.0
    %1914 = vmatmul.mubr.f32.gmra.mrb[0].mxu0 %v1160
    %v1915 = vpop.f32.mrb[0].mxu0
    %v1916 = vadd.f32 0.0, %v1915
    %v1917 = vpop.f32.mrb[0].mxu0
    %v1918 = vadd.f32 0.0, %v1917
    %1919 = vmatprep.mubr.f32.mxu0 0.0
    %1920 = vmatmul.mubr.f32.gmra.mrb[0].mxu0 %v1163
    %v1921 = vpop.f32.mrb[0].mxu0
    %v1922 = vadd.f32 0.0, %v1921
    %v1923 = vpop.f32.mrb[0].mxu0
    %v1924 = vadd.f32 0.0, %v1923
    %1925 = vmatprep.mubr.f32.mxu0 0.0
    %1926 = vmatmul.mubr.f32.gmra.mrb[0].mxu0 %v1166
    %v1927 = vpop.f32.mrb[0].mxu0
    %v1928 = vadd.f32 0.0, %v1927
    %v1929 = vpop.f32.mrb[0].mxu0
    %v1930 = vadd.f32 0.0, %v1929
    %1931 = vmatprep.mubr.f32.mxu0 0.0
    %1932 = vmatmul.mubr.f32.gmra.mrb[0].mxu0 %v1169
    %v1933 = vpop.f32.mrb[0].mxu0
    %v1934 = vadd.f32 0.0, %v1933
    %v1935 = vpop.f32.mrb[0].mxu0
    %v1936 = vadd.f32 0.0, %v1935
    %1937 = vmatprep.mubr.f32.mxu0 0.0
    %1938 = vmatmul.mubr.f32.gmra.mrb[0].mxu0 %v1172
    %v1939 = vpop.f32.mrb[0].mxu0
    %v1940 = vadd.f32 0.0, %v1939
    %v1941 = vpop.f32.mrb[0].mxu0
    %v1942 = vadd.f32 0.0, %v1941
    %1943 = vmatprep.mubr.f32.mxu0 0.0
    %1944 = vmatmul.mubr.f32.gmra.mrb[0].mxu0 %v1175
    %v1945 = vpop.f32.mrb[0].mxu0
    %v1946 = vadd.f32 0.0, %v1945
    %v1947 = vpop.f32.mrb[0].mxu0
    %v1948 = vadd.f32 0.0, %v1947
    %1949 = vmatprep.mubr.f32.mxu0 0.0
    %1950 = vmatmul.mubr.f32.gmra.mrb[0].mxu0 %v1178
    %v1951 = vpop.f32.mrb[0].mxu0
    %v1952 = vadd.f32 0.0, %v1951
    %v1953 = vpop.f32.mrb[0].mxu0
    %v1954 = vadd.f32 0.0, %v1953
    %1955 = vmatprep.mubr.f32.mxu0 0.0
    %1956 = vmatmul.mubr.f32.gmra.mrb[0].mxu0 %v1181
    %v1957 = vpop.f32.mrb[0].mxu0
    %v1958 = vadd.f32 0.0, %v1957
    %v1959 = vpop.f32.mrb[0].mxu0
    %v1960 = vadd.f32 0.0, %v1959
    %1961 = vmatprep.mubr.f32.mxu0 0.0
    %1962 = vmatmul.mubr.f32.gmra.mrb[0].mxu0 %v1184
    %v1963 = vpop.f32.mrb[0].mxu0
    %v1964 = vadd.f32 0.0, %v1963
    %v1965 = vpop.f32.mrb[0].mxu0
    %v1966 = vadd.f32 0.0, %v1965
    %1967 = vmatprep.mubr.f32.mxu0 0.0
    %1968 = vmatmul.mubr.f32.gmra.mrb[0].mxu0 %v1187
    %v1969 = vpop.f32.mrb[0].mxu0
    %v1970 = vadd.f32 0.0, %v1969
    %v1971 = vpop.f32.mrb[0].mxu0
    %v1972 = vadd.f32 0.0, %v1971
    %1973 = vmatprep.mubr.f32.mxu0 0.0
    %1974 = vmatmul.mubr.f32.gmra.mrb[0].mxu0 %v1190
    %v1975 = vpop.f32.mrb[0].mxu0
    %v1976 = vadd.f32 0.0, %v1975
    %v1977 = vpop.f32.mrb[0].mxu0
    %v1978 = vadd.f32 0.0, %v1977
    %1979 = vmatprep.mubr.f32.mxu0 0.0
    %1980 = vmatmul.mubr.f32.gmra.mrb[0].mxu0 %v1193
    %v1981 = vpop.f32.mrb[0].mxu0
    %v1982 = vadd.f32 0.0, %v1981
    %v1983 = vpop.f32.mrb[0].mxu0
    %v1984 = vadd.f32 0.0, %v1983
    %1985 = vmatprep.mubr.f32.mxu0 0.0
    %1986 = vmatmul.mubr.f32.gmra.mrb[0].mxu0 %v1196
    %v1987 = vpop.f32.mrb[0].mxu0
    %v1988 = vadd.f32 0.0, %v1987
    %v1989 = vpop.f32.mrb[0].mxu0
    %v1990 = vadd.f32 0.0, %v1989
    %1991 = vmatprep.mubr.f32.mxu0 0.0
    %1992 = vmatmul.mubr.f32.gmra.mrb[0].mxu0 %v1199
    %v1993 = vpop.f32.mrb[0].mxu0
    %v1994 = vadd.f32 0.0, %v1993
    %v1995 = vpop.f32.mrb[0].mxu0
    %v1996 = vadd.f32 0.0, %v1995
    %1997 = vmatprep.mubr.f32.mxu0 0.0
    %1998 = vmatmul.mubr.f32.gmra.mrb[0].mxu0 %v1202
    %v1999 = vpop.f32.mrb[0].mxu0
    %v2000 = vadd.f32 0.0, %v1999
    %v2001 = vpop.f32.mrb[0].mxu0
    %v2002 = vadd.f32 0.0, %v2001
    %2003 = vmatprep.mubr.f32.mxu0 0.0
    %2004 = vmatmul.mubr.f32.gmra.mrb[0].mxu0 %v1205
    %v2005 = vpop.f32.mrb[0].mxu0
    %v2006 = vadd.f32 0.0, %v2005
    %v2007 = vpop.f32.mrb[0].mxu0
    %v2008 = vadd.f32 0.0, %v2007
    %2009 = vmatprep.mubr.f32.mxu0 0.0
    %2010 = vmatmul.mubr.f32.gmra.mrb[0].mxu0 %v1208
    %v2011 = vpop.f32.mrb[0].mxu0
    %v2012 = vadd.f32 0.0, %v2011
    %v2013 = vpop.f32.mrb[0].mxu0
    %v2014 = vadd.f32 0.0, %v2013
    %2015 = vmatprep.mubr.f32.mxu0 0.0
    %2016 = vmatmul.mubr.f32.gmra.mrb[0].mxu0 %v1211
    %v2017 = vpop.f32.mrb[0].mxu0
    %v2018 = vadd.f32 0.0, %v2017
    %v2019 = vpop.f32.mrb[0].mxu0
    %v2020 = vadd.f32 0.0, %v2019
    %2021 = vmatprep.mubr.f32.mxu0 0.0
    %2022 = vmatmul.mubr.f32.gmra.mrb[0].mxu0 %v1214
    %v2023 = vpop.f32.mrb[0].mxu0
    %v2024 = vadd.f32 0.0, %v2023
    %v2025 = vpop.f32.mrb[0].mxu0
    %v2026 = vadd.f32 0.0, %v2025
    %2027 = vmatprep.mubr.f32.mxu0 0.0
    %2028 = vmatmul.mubr.f32.gmra.mrb[0].mxu0 %v1217
    %v2029 = vpop.f32.mrb[0].mxu0
    %v2030 = vadd.f32 0.0, %v2029
    %v2031 = vpop.f32.mrb[0].mxu0
    %v2032 = vadd.f32 0.0, %v2031
    %2033 = vmatprep.mubr.f32.mxu0 0.0
    %2034 = vmatmul.mubr.f32.gmra.mrb[0].mxu0 %v1220
    %v2035 = vpop.f32.mrb[0].mxu0
    %v2036 = vadd.f32 0.0, %v2035
    %v2037 = vpop.f32.mrb[0].mxu0
    %v2038 = vadd.f32 0.0, %v2037
    %2039 = vmatprep.mubr.f32.mxu0 0.0
    %2040 = vmatmul.mubr.f32.gmra.mrb[0].mxu0 %v1223
    %v2041 = vpop.f32.mrb[0].mxu0
    %v2042 = vadd.f32 0.0, %v2041
    %v2043 = vpop.f32.mrb[0].mxu0
    %v2044 = vadd.f32 0.0, %v2043
    %2045 = vmatprep.mubr.f32.mxu0 0.0
    %2046 = vmatmul.mubr.f32.gmra.mrb[0].mxu0 %v1226
    %v2047 = vpop.f32.mrb[0].mxu0
    %v2048 = vadd.f32 0.0, %v2047
    %v2049 = vpop.f32.mrb[0].mxu0
    %v2050 = vadd.f32 0.0, %v2049
    %2051 = vmatprep.mubr.f32.mxu0 0.0
    %2052 = vmatmul.mubr.f32.gmra.mrb[0].mxu0 %v1229
    %v2053 = vpop.f32.mrb[0].mxu0
    %v2054 = vadd.f32 0.0, %v2053
    %v2055 = vpop.f32.mrb[0].mxu0
    %v2056 = vadd.f32 0.0, %v2055
    %2057 = vmatprep.mubr.f32.mxu0 0.0
    %2058 = vmatmul.mubr.f32.gmra.mrb[0].mxu0 %v1232
    %v2059 = vpop.f32.mrb[0].mxu0
    %v2060 = vadd.f32 0.0, %v2059
    %v2061 = vpop.f32.mrb[0].mxu0
    %v2062 = vadd.f32 0.0, %v2061
    %2063 = vmatprep.mubr.f32.mxu0 0.0
    %2064 = vmatmul.mubr.f32.gmra.mrb[0].mxu0 %v1235
    %v2065 = vpop.f32.mrb[0].mxu0
    %v2066 = vadd.f32 0.0, %v2065
    %v2067 = vpop.f32.mrb[0].mxu0
    %v2068 = vadd.f32 0.0, %v2067
    %2069 = vdwg.mxu0
    %v2071 = vsel %vm131, %v613, 0
    %v2074 = vsel %vm131, %v614, 0
    %v2077 = vsel %vm131, %v615, 0
    %v2080 = vsel %vm131, %v616, 0
    %v2083 = vsel %vm131, %v617, 0
    %v2086 = vsel %vm131, %v618, 0
    %v2089 = vsel %vm131, %v619, 0
    %v2092 = vsel %vm131, %v620, 0
    %v2095 = vsel %vm131, %v621, 0
    %v2098 = vsel %vm131, %v622, 0
    %v2101 = vsel %vm131, %v623, 0
    %v2104 = vsel %vm131, %v624, 0
    %v2107 = vsel %vm131, %v625, 0
    %v2110 = vsel %vm131, %v626, 0
    %v2113 = vsel %vm131, %v627, 0
    %v2116 = vsel %vm131, %v628, 0
    %v2119 = vsel %vm131, %v645, 0
    %v2122 = vsel %vm131, %v646, 0
    %v2125 = vsel %vm131, %v647, 0
    %v2128 = vsel %vm131, %v648, 0
    %v2131 = vsel %vm131, %v649, 0
    %v2134 = vsel %vm131, %v650, 0
    %v2137 = vsel %vm131, %v651, 0
    %v2140 = vsel %vm131, %v652, 0
    %v2143 = vsel %vm131, %v653, 0
    %v2146 = vsel %vm131, %v654, 0
    %v2149 = vsel %vm131, %v655, 0
    %v2152 = vsel %vm131, %v656, 0
    %v2155 = vsel %vm131, %v657, 0
    %v2158 = vsel %vm131, %v658, 0
    %v2161 = vsel %vm131, %v659, 0
    %v2164 = vsel %vm131, %v660, 0
    %v2167 = vsel %vm131, %v677, 0
    %v2170 = vsel %vm131, %v678, 0
    %v2173 = vsel %vm131, %v679, 0
    %v2176 = vsel %vm131, %v680, 0
    %v2179 = vsel %vm131, %v681, 0
    %v2182 = vsel %vm131, %v682, 0
    %v2185 = vsel %vm131, %v683, 0
    %v2188 = vsel %vm131, %v684, 0
    %v2191 = vsel %vm131, %v685, 0
    %v2194 = vsel %vm131, %v686, 0
    %v2197 = vsel %vm131, %v687, 0
    %v2200 = vsel %vm131, %v688, 0
    %v2203 = vsel %vm131, %v689, 0
    %v2206 = vsel %vm131, %v690, 0
    %v2209 = vsel %vm131, %v691, 0
    %v2212 = vsel %vm131, %v692, 0
    %v2215 = vsel %vm131, %v709, 0
    %v2218 = vsel %vm131, %v710, 0
    %v2221 = vsel %vm131, %v711, 0
    %v2224 = vsel %vm131, %v712, 0
    %v2227 = vsel %vm131, %v713, 0
    %v2230 = vsel %vm131, %v714, 0
    %v2233 = vsel %vm131, %v715, 0
    %v2236 = vsel %vm131, %v716, 0
    %v2239 = vsel %vm131, %v717, 0
    %v2242 = vsel %vm131, %v718, 0
    %v2245 = vsel %vm131, %v719, 0
    %v2248 = vsel %vm131, %v720, 0
    %v2251 = vsel %vm131, %v721, 0
    %v2254 = vsel %vm131, %v722, 0
    %v2257 = vsel %vm131, %v723, 0
    %v2260 = vsel %vm131, %v724, 0
    %v2263 = vsel %vm131, %v741, 0
    %v2266 = vsel %vm131, %v742, 0
    %v2269 = vsel %vm131, %v743, 0
    %v2272 = vsel %vm131, %v744, 0
    %v2275 = vsel %vm131, %v745, 0
    %v2278 = vsel %vm131, %v746, 0
    %v2281 = vsel %vm131, %v747, 0
    %v2284 = vsel %vm131, %v748, 0
    %v2287 = vsel %vm131, %v749, 0
    %v2290 = vsel %vm131, %v750, 0
    %v2293 = vsel %vm131, %v751, 0
    %v2296 = vsel %vm131, %v752, 0
    %v2299 = vsel %vm131, %v753, 0
    %v2302 = vsel %vm131, %v754, 0
    %v2305 = vsel %vm131, %v755, 0
    %v2308 = vsel %vm131, %v756, 0
    %v2311 = vsel %vm131, %v773, 0
    %v2314 = vsel %vm131, %v774, 0
    %v2317 = vsel %vm131, %v775, 0
    %v2320 = vsel %vm131, %v776, 0
    %v2323 = vsel %vm131, %v777, 0
    %v2326 = vsel %vm131, %v778, 0
    %v2329 = vsel %vm131, %v779, 0
    %v2332 = vsel %vm131, %v780, 0
    %v2335 = vsel %vm131, %v781, 0
    %v2338 = vsel %vm131, %v782, 0
    %v2341 = vsel %vm131, %v783, 0
    %v2344 = vsel %vm131, %v784, 0
    %v2347 = vsel %vm131, %v785, 0
    %v2350 = vsel %vm131, %v786, 0
    %v2353 = vsel %vm131, %v787, 0
    %v2356 = vsel %vm131, %v788, 0
    %v2359 = vsel %vm131, %v805, 0
    %v2362 = vsel %vm131, %v806, 0
    %v2365 = vsel %vm131, %v807, 0
    %v2368 = vsel %vm131, %v808, 0
    %v2371 = vsel %vm131, %v809, 0
    %v2374 = vsel %vm131, %v810, 0
    %v2377 = vsel %vm131, %v811, 0
    %v2380 = vsel %vm131, %v812, 0
    %v2383 = vsel %vm131, %v813, 0
    %v2386 = vsel %vm131, %v814, 0
    %v2389 = vsel %vm131, %v815, 0
    %v2392 = vsel %vm131, %v816, 0
    %v2395 = vsel %vm131, %v817, 0
    %v2398 = vsel %vm131, %v818, 0
    %v2401 = vsel %vm131, %v819, 0
    %v2404 = vsel %vm131, %v820, 0
    %v2407 = vsel %vm131, %v837, 0
    %v2410 = vsel %vm131, %v838, 0
    %v2413 = vsel %vm131, %v839, 0
    %v2416 = vsel %vm131, %v840, 0
    %v2419 = vsel %vm131, %v841, 0
    %v2422 = vsel %vm131, %v842, 0
    %v2425 = vsel %vm131, %v843, 0
    %v2428 = vsel %vm131, %v844, 0
    %v2431 = vsel %vm131, %v845, 0
    %v2434 = vsel %vm131, %v846, 0
    %v2437 = vsel %vm131, %v847, 0
    %v2440 = vsel %vm131, %v848, 0
    %v2443 = vsel %vm131, %v849, 0
    %v2446 = vsel %vm131, %v850, 0
    %v2449 = vsel %vm131, %v851, 0
    %v2452 = vsel %vm131, %v852, 0
    %2454 = vmatprep.subr.mxu0 %v112
    %2455 = vmatpush1.msra.mxu0 %v111
    %2456 = vmatprep.subr.mxu0 %v114
    %2457 = vmatpush1.msra.mxu0 %v113
    %2458 = vmatprep.subr.mxu0 0.0
    %2459 = vmatpush1.msra.mxu0 0.0
    %2460 = vmatprep.subr.mxu0 0.0
    %2461 = vmatpush1.msra.mxu0 0.0
    %2462 = vmatprep.subr.mxu0 0.0
    %2463 = vmatpush1.msra.mxu0 0.0
    %2464 = vmatprep.subr.mxu0 0.0
    %2465 = vmatpush1.msra.mxu0 0.0
    %2466 = vmatprep.subr.mxu0 0.0
    %2467 = vmatpush1.msra.mxu0 0.0
    %2468 = vmatprep.subr.mxu0 0.0
    %2469 = vmatpush1.msra.mxu0 0.0
    %2470 = vmatprep.subr.mxu0 0.0
    %2471 = vmatpush1.msra.mxu0 0.0
    %2472 = vmatprep.subr.mxu0 0.0
    %2473 = vmatpush1.msra.mxu0 0.0
    %2474 = vmatprep.subr.mxu0 0.0
    %2475 = vmatpush1.msra.mxu0 0.0
    %2476 = vmatprep.subr.mxu0 0.0
    %2477 = vmatpush1.msra.mxu0 0.0
    %2478 = vmatprep.subr.mxu0 0.0
    %2479 = vmatpush1.msra.mxu0 0.0
    %2480 = vmatprep.subr.mxu0 0.0
    %2481 = vmatpush1.msra.mxu0 0.0
    %2482 = vmatprep.subr.mxu0 0.0
    %2483 = vmatpush1.msra.mxu0 0.0
    %2484 = vmatprep.subr.mxu0 0.0
    %2485 = vmatpush1.msra.mxu0 0.0
    %2486 = vmatprep.subr.mxu0 0.0
    %2487 = vmatpush1.msra.mxu0 0.0
    %2488 = vmatprep.subr.mxu0 0.0
    %2489 = vmatpush1.msra.mxu0 0.0
    %2490 = vmatprep.subr.mxu0 0.0
    %2491 = vmatpush1.msra.mxu0 0.0
    %2492 = vmatprep.subr.mxu0 0.0
    %2493 = vmatpush1.msra.mxu0 0.0
    %2494 = vmatprep.subr.mxu0 0.0
    %2495 = vmatpush1.msra.mxu0 0.0
    %2496 = vmatprep.subr.mxu0 0.0
    %2497 = vmatpush1.msra.mxu0 0.0
    %2498 = vmatprep.subr.mxu0 0.0
    %2499 = vmatpush1.msra.mxu0 0.0
    %2500 = vmatprep.subr.mxu0 0.0
    %2501 = vmatpush1.msra.mxu0 0.0
    %2502 = vmatprep.subr.mxu0 0.0
    %2503 = vmatpush1.msra.mxu0 0.0
    %2504 = vmatprep.subr.mxu0 0.0
    %2505 = vmatpush1.msra.mxu0 0.0
    %2506 = vmatprep.subr.mxu0 0.0
    %2507 = vmatpush1.msra.mxu0 0.0
    %2508 = vmatprep.subr.mxu0 0.0
    %2509 = vmatpush1.msra.mxu0 0.0
    %2510 = vmatprep.subr.mxu0 0.0
    %2511 = vmatpush1.msra.mxu0 0.0
    %2512 = vmatprep.subr.mxu0 0.0
    %2513 = vmatpush1.msra.mxu0 0.0
    %2514 = vmatprep.subr.mxu0 0.0
    %2515 = vmatpush1.msra.mxu0 0.0
    %2516 = vmatprep.subr.mxu0 0.0
    %2517 = vmatpush1.msra.mxu0 0.0
    %2518 = vmatprep.mubr.f32.mxu0 0.0
    %2519 = vmatmul.mubr.f32.gmra.mrb[0].mxu0 %v2071
    %v2520 = vpop.f32.mrb[0].mxu0
    %v2521 = vadd.f32 0.0, %v2520
    %v2522 = vpop.f32.mrb[0].mxu0
    %v2523 = vadd.f32 0.0, %v2522
    %2524 = vmatprep.mubr.f32.mxu0 0.0
    %2525 = vmatmul.mubr.f32.gmra.mrb[0].mxu0 %v2074
    %v2526 = vpop.f32.mrb[0].mxu0
    %v2527 = vadd.f32 0.0, %v2526
    %v2528 = vpop.f32.mrb[0].mxu0
    %v2529 = vadd.f32 0.0, %v2528
    %2530 = vmatprep.mubr.f32.mxu0 0.0
    %2531 = vmatmul.mubr.f32.gmra.mrb[0].mxu0 %v2077
    %v2532 = vpop.f32.mrb[0].mxu0
    %v2533 = vadd.f32 0.0, %v2532
    %v2534 = vpop.f32.mrb[0].mxu0
    %v2535 = vadd.f32 0.0, %v2534
    %2536 = vmatprep.mubr.f32.mxu0 0.0
    %2537 = vmatmul.mubr.f32.gmra.mrb[0].mxu0 %v2080
    %v2538 = vpop.f32.mrb[0].mxu0
    %v2539 = vadd.f32 0.0, %v2538
    %v2540 = vpop.f32.mrb[0].mxu0
    %v2541 = vadd.f32 0.0, %v2540
    %2542 = vmatprep.mubr.f32.mxu0 0.0
    %2543 = vmatmul.mubr.f32.gmra.mrb[0].mxu0 %v2083
    %v2544 = vpop.f32.mrb[0].mxu0
    %v2545 = vadd.f32 0.0, %v2544
    %v2546 = vpop.f32.mrb[0].mxu0
    %v2547 = vadd.f32 0.0, %v2546
    %2548 = vmatprep.mubr.f32.mxu0 0.0
    %2549 = vmatmul.mubr.f32.gmra.mrb[0].mxu0 %v2086
    %v2550 = vpop.f32.mrb[0].mxu0
    %v2551 = vadd.f32 0.0, %v2550
    %v2552 = vpop.f32.mrb[0].mxu0
    %v2553 = vadd.f32 0.0, %v2552
    %2554 = vmatprep.mubr.f32.mxu0 0.0
    %2555 = vmatmul.mubr.f32.gmra.mrb[0].mxu0 %v2089
    %v2556 = vpop.f32.mrb[0].mxu0
    %v2557 = vadd.f32 0.0, %v2556
    %v2558 = vpop.f32.mrb[0].mxu0
    %v2559 = vadd.f32 0.0, %v2558
    %2560 = vmatprep.mubr.f32.mxu0 0.0
    %2561 = vmatmul.mubr.f32.gmra.mrb[0].mxu0 %v2092
    %v2562 = vpop.f32.mrb[0].mxu0
    %v2563 = vadd.f32 0.0, %v2562
    %v2564 = vpop.f32.mrb[0].mxu0
    %v2565 = vadd.f32 0.0, %v2564
    %2566 = vmatprep.mubr.f32.mxu0 0.0
    %2567 = vmatmul.mubr.f32.gmra.mrb[0].mxu0 %v2095
    %v2568 = vpop.f32.mrb[0].mxu0
    %v2569 = vadd.f32 0.0, %v2568
    %v2570 = vpop.f32.mrb[0].mxu0
    %v2571 = vadd.f32 0.0, %v2570
    %2572 = vmatprep.mubr.f32.mxu0 0.0
    %2573 = vmatmul.mubr.f32.gmra.mrb[0].mxu0 %v2098
    %v2574 = vpop.f32.mrb[0].mxu0
    %v2575 = vadd.f32 0.0, %v2574
    %v2576 = vpop.f32.mrb[0].mxu0
    %v2577 = vadd.f32 0.0, %v2576
    %2578 = vmatprep.mubr.f32.mxu0 0.0
    %2579 = vmatmul.mubr.f32.gmra.mrb[0].mxu0 %v2101
    %v2580 = vpop.f32.mrb[0].mxu0
    %v2581 = vadd.f32 0.0, %v2580
    %v2582 = vpop.f32.mrb[0].mxu0
    %v2583 = vadd.f32 0.0, %v2582
    %2584 = vmatprep.mubr.f32.mxu0 0.0
    %2585 = vmatmul.mubr.f32.gmra.mrb[0].mxu0 %v2104
    %v2586 = vpop.f32.mrb[0].mxu0
    %v2587 = vadd.f32 0.0, %v2586
    %v2588 = vpop.f32.mrb[0].mxu0
    %v2589 = vadd.f32 0.0, %v2588
    %2590 = vmatprep.mubr.f32.mxu0 0.0
    %2591 = vmatmul.mubr.f32.gmra.mrb[0].mxu0 %v2107
    %v2592 = vpop.f32.mrb[0].mxu0
    %v2593 = vadd.f32 0.0, %v2592
    %v2594 = vpop.f32.mrb[0].mxu0
    %v2595 = vadd.f32 0.0, %v2594
    %2596 = vmatprep.mubr.f32.mxu0 0.0
    %2597 = vmatmul.mubr.f32.gmra.mrb[0].mxu0 %v2110
    %v2598 = vpop.f32.mrb[0].mxu0
    %v2599 = vadd.f32 0.0, %v2598
    %v2600 = vpop.f32.mrb[0].mxu0
    %v2601 = vadd.f32 0.0, %v2600
    %2602 = vmatprep.mubr.f32.mxu0 0.0
    %2603 = vmatmul.mubr.f32.gmra.mrb[0].mxu0 %v2113
    %v2604 = vpop.f32.mrb[0].mxu0
    %v2605 = vadd.f32 0.0, %v2604
    %v2606 = vpop.f32.mrb[0].mxu0
    %v2607 = vadd.f32 0.0, %v2606
    %2608 = vmatprep.mubr.f32.mxu0 0.0
    %2609 = vmatmul.mubr.f32.gmra.mrb[0].mxu0 %v2116
    %v2610 = vpop.f32.mrb[0].mxu0
    %v2611 = vadd.f32 0.0, %v2610
    %v2612 = vpop.f32.mrb[0].mxu0
    %v2613 = vadd.f32 0.0, %v2612
    %2614 = vmatprep.mubr.f32.mxu0 0.0
    %2615 = vmatmul.mubr.f32.gmra.mrb[0].mxu0 %v2119
    %v2616 = vpop.f32.mrb[0].mxu0
    %v2617 = vadd.f32 0.0, %v2616
    %v2618 = vpop.f32.mrb[0].mxu0
    %v2619 = vadd.f32 0.0, %v2618
    %2620 = vmatprep.mubr.f32.mxu0 0.0
    %2621 = vmatmul.mubr.f32.gmra.mrb[0].mxu0 %v2122
    %v2622 = vpop.f32.mrb[0].mxu0
    %v2623 = vadd.f32 0.0, %v2622
    %v2624 = vpop.f32.mrb[0].mxu0
    %v2625 = vadd.f32 0.0, %v2624
    %2626 = vmatprep.mubr.f32.mxu0 0.0
    %2627 = vmatmul.mubr.f32.gmra.mrb[0].mxu0 %v2125
    %v2628 = vpop.f32.mrb[0].mxu0
    %v2629 = vadd.f32 0.0, %v2628
    %v2630 = vpop.f32.mrb[0].mxu0
    %v2631 = vadd.f32 0.0, %v2630
    %2632 = vmatprep.mubr.f32.mxu0 0.0
    %2633 = vmatmul.mubr.f32.gmra.mrb[0].mxu0 %v2128
    %v2634 = vpop.f32.mrb[0].mxu0
    %v2635 = vadd.f32 0.0, %v2634
    %v2636 = vpop.f32.mrb[0].mxu0
    %v2637 = vadd.f32 0.0, %v2636
    %2638 = vmatprep.mubr.f32.mxu0 0.0
    %2639 = vmatmul.mubr.f32.gmra.mrb[0].mxu0 %v2131
    %v2640 = vpop.f32.mrb[0].mxu0
    %v2641 = vadd.f32 0.0, %v2640
    %v2642 = vpop.f32.mrb[0].mxu0
    %v2643 = vadd.f32 0.0, %v2642
    %2644 = vmatprep.mubr.f32.mxu0 0.0
    %2645 = vmatmul.mubr.f32.gmra.mrb[0].mxu0 %v2134
    %v2646 = vpop.f32.mrb[0].mxu0
    %v2647 = vadd.f32 0.0, %v2646
    %v2648 = vpop.f32.mrb[0].mxu0
    %v2649 = vadd.f32 0.0, %v2648
    %2650 = vmatprep.mubr.f32.mxu0 0.0
    %2651 = vmatmul.mubr.f32.gmra.mrb[0].mxu0 %v2137
    %v2652 = vpop.f32.mrb[0].mxu0
    %v2653 = vadd.f32 0.0, %v2652
    %v2654 = vpop.f32.mrb[0].mxu0
    %v2655 = vadd.f32 0.0, %v2654
    %2656 = vmatprep.mubr.f32.mxu0 0.0
    %2657 = vmatmul.mubr.f32.gmra.mrb[0].mxu0 %v2140
    %v2658 = vpop.f32.mrb[0].mxu0
    %v2659 = vadd.f32 0.0, %v2658
    %v2660 = vpop.f32.mrb[0].mxu0
    %v2661 = vadd.f32 0.0, %v2660
    %2662 = vmatprep.mubr.f32.mxu0 0.0
    %2663 = vmatmul.mubr.f32.gmra.mrb[0].mxu0 %v2143
    %v2664 = vpop.f32.mrb[0].mxu0
    %v2665 = vadd.f32 0.0, %v2664
    %v2666 = vpop.f32.mrb[0].mxu0
    %v2667 = vadd.f32 0.0, %v2666
    %2668 = vmatprep.mubr.f32.mxu0 0.0
    %2669 = vmatmul.mubr.f32.gmra.mrb[0].mxu0 %v2146
    %v2670 = vpop.f32.mrb[0].mxu0
    %v2671 = vadd.f32 0.0, %v2670
    %v2672 = vpop.f32.mrb[0].mxu0
    %v2673 = vadd.f32 0.0, %v2672
    %2674 = vmatprep.mubr.f32.mxu0 0.0
    %2675 = vmatmul.mubr.f32.gmra.mrb[0].mxu0 %v2149
    %v2676 = vpop.f32.mrb[0].mxu0
    %v2677 = vadd.f32 0.0, %v2676
    %v2678 = vpop.f32.mrb[0].mxu0
    %v2679 = vadd.f32 0.0, %v2678
    %2680 = vmatprep.mubr.f32.mxu0 0.0
    %2681 = vmatmul.mubr.f32.gmra.mrb[0].mxu0 %v2152
    %v2682 = vpop.f32.mrb[0].mxu0
    %v2683 = vadd.f32 0.0, %v2682
    %v2684 = vpop.f32.mrb[0].mxu0
    %v2685 = vadd.f32 0.0, %v2684
    %2686 = vmatprep.mubr.f32.mxu0 0.0
    %2687 = vmatmul.mubr.f32.gmra.mrb[0].mxu0 %v2155
    %v2688 = vpop.f32.mrb[0].mxu0
    %v2689 = vadd.f32 0.0, %v2688
    %v2690 = vpop.f32.mrb[0].mxu0
    %v2691 = vadd.f32 0.0, %v2690
    %2692 = vmatprep.mubr.f32.mxu0 0.0
    %2693 = vmatmul.mubr.f32.gmra.mrb[0].mxu0 %v2158
    %v2694 = vpop.f32.mrb[0].mxu0
    %v2695 = vadd.f32 0.0, %v2694
    %v2696 = vpop.f32.mrb[0].mxu0
    %v2697 = vadd.f32 0.0, %v2696
    %2698 = vmatprep.mubr.f32.mxu0 0.0
    %2699 = vmatmul.mubr.f32.gmra.mrb[0].mxu0 %v2161
    %v2700 = vpop.f32.mrb[0].mxu0
    %v2701 = vadd.f32 0.0, %v2700
    %v2702 = vpop.f32.mrb[0].mxu0
    %v2703 = vadd.f32 0.0, %v2702
    %2704 = vmatprep.mubr.f32.mxu0 0.0
    %2705 = vmatmul.mubr.f32.gmra.mrb[0].mxu0 %v2164
    %v2706 = vpop.f32.mrb[0].mxu0
    %v2707 = vadd.f32 0.0, %v2706
    %v2708 = vpop.f32.mrb[0].mxu0
    %v2709 = vadd.f32 0.0, %v2708
    %2710 = vmatprep.mubr.f32.mxu0 0.0
    %2711 = vmatmul.mubr.f32.gmra.mrb[0].mxu0 %v2167
    %v2712 = vpop.f32.mrb[0].mxu0
    %v2713 = vadd.f32 0.0, %v2712
    %v2714 = vpop.f32.mrb[0].mxu0
    %v2715 = vadd.f32 0.0, %v2714
    %2716 = vmatprep.mubr.f32.mxu0 0.0
    %2717 = vmatmul.mubr.f32.gmra.mrb[0].mxu0 %v2170
    %v2718 = vpop.f32.mrb[0].mxu0
    %v2719 = vadd.f32 0.0, %v2718
    %v2720 = vpop.f32.mrb[0].mxu0
    %v2721 = vadd.f32 0.0, %v2720
    %2722 = vmatprep.mubr.f32.mxu0 0.0
    %2723 = vmatmul.mubr.f32.gmra.mrb[0].mxu0 %v2173
    %v2724 = vpop.f32.mrb[0].mxu0
    %v2725 = vadd.f32 0.0, %v2724
    %v2726 = vpop.f32.mrb[0].mxu0
    %v2727 = vadd.f32 0.0, %v2726
    %2728 = vmatprep.mubr.f32.mxu0 0.0
    %2729 = vmatmul.mubr.f32.gmra.mrb[0].mxu0 %v2176
    %v2730 = vpop.f32.mrb[0].mxu0
    %v2731 = vadd.f32 0.0, %v2730
    %v2732 = vpop.f32.mrb[0].mxu0
    %v2733 = vadd.f32 0.0, %v2732
    %2734 = vmatprep.mubr.f32.mxu0 0.0
    %2735 = vmatmul.mubr.f32.gmra.mrb[0].mxu0 %v2179
    %v2736 = vpop.f32.mrb[0].mxu0
    %v2737 = vadd.f32 0.0, %v2736
    %v2738 = vpop.f32.mrb[0].mxu0
    %v2739 = vadd.f32 0.0, %v2738
    %2740 = vmatprep.mubr.f32.mxu0 0.0
    %2741 = vmatmul.mubr.f32.gmra.mrb[0].mxu0 %v2182
    %v2742 = vpop.f32.mrb[0].mxu0
    %v2743 = vadd.f32 0.0, %v2742
    %v2744 = vpop.f32.mrb[0].mxu0
    %v2745 = vadd.f32 0.0, %v2744
    %2746 = vmatprep.mubr.f32.mxu0 0.0
    %2747 = vmatmul.mubr.f32.gmra.mrb[0].mxu0 %v2185
    %v2748 = vpop.f32.mrb[0].mxu0
    %v2749 = vadd.f32 0.0, %v2748
    %v2750 = vpop.f32.mrb[0].mxu0
    %v2751 = vadd.f32 0.0, %v2750
    %2752 = vmatprep.mubr.f32.mxu0 0.0
    %2753 = vmatmul.mubr.f32.gmra.mrb[0].mxu0 %v2188
    %v2754 = vpop.f32.mrb[0].mxu0
    %v2755 = vadd.f32 0.0, %v2754
    %v2756 = vpop.f32.mrb[0].mxu0
    %v2757 = vadd.f32 0.0, %v2756
    %2758 = vmatprep.mubr.f32.mxu0 0.0
    %2759 = vmatmul.mubr.f32.gmra.mrb[0].mxu0 %v2191
    %v2760 = vpop.f32.mrb[0].mxu0
    %v2761 = vadd.f32 0.0, %v2760
    %v2762 = vpop.f32.mrb[0].mxu0
    %v2763 = vadd.f32 0.0, %v2762
    %2764 = vmatprep.mubr.f32.mxu0 0.0
    %2765 = vmatmul.mubr.f32.gmra.mrb[0].mxu0 %v2194
    %v2766 = vpop.f32.mrb[0].mxu0
    %v2767 = vadd.f32 0.0, %v2766
    %v2768 = vpop.f32.mrb[0].mxu0
    %v2769 = vadd.f32 0.0, %v2768
    %2770 = vmatprep.mubr.f32.mxu0 0.0
    %2771 = vmatmul.mubr.f32.gmra.mrb[0].mxu0 %v2197
    %v2772 = vpop.f32.mrb[0].mxu0
    %v2773 = vadd.f32 0.0, %v2772
    %v2774 = vpop.f32.mrb[0].mxu0
    %v2775 = vadd.f32 0.0, %v2774
    %2776 = vmatprep.mubr.f32.mxu0 0.0
    %2777 = vmatmul.mubr.f32.gmra.mrb[0].mxu0 %v2200
    %v2778 = vpop.f32.mrb[0].mxu0
    %v2779 = vadd.f32 0.0, %v2778
    %v2780 = vpop.f32.mrb[0].mxu0
    %v2781 = vadd.f32 0.0, %v2780
    %2782 = vmatprep.mubr.f32.mxu0 0.0
    %2783 = vmatmul.mubr.f32.gmra.mrb[0].mxu0 %v2203
    %v2784 = vpop.f32.mrb[0].mxu0
    %v2785 = vadd.f32 0.0, %v2784
    %v2786 = vpop.f32.mrb[0].mxu0
    %v2787 = vadd.f32 0.0, %v2786
    %2788 = vmatprep.mubr.f32.mxu0 0.0
    %2789 = vmatmul.mubr.f32.gmra.mrb[0].mxu0 %v2206
    %v2790 = vpop.f32.mrb[0].mxu0
    %v2791 = vadd.f32 0.0, %v2790
    %v2792 = vpop.f32.mrb[0].mxu0
    %v2793 = vadd.f32 0.0, %v2792
    %2794 = vmatprep.mubr.f32.mxu0 0.0
    %2795 = vmatmul.mubr.f32.gmra.mrb[0].mxu0 %v2209
    %v2796 = vpop.f32.mrb[0].mxu0
    %v2797 = vadd.f32 0.0, %v2796
    %v2798 = vpop.f32.mrb[0].mxu0
    %v2799 = vadd.f32 0.0, %v2798
    %2800 = vmatprep.mubr.f32.mxu0 0.0
    %2801 = vmatmul.mubr.f32.gmra.mrb[0].mxu0 %v2212
    %v2802 = vpop.f32.mrb[0].mxu0
    %v2803 = vadd.f32 0.0, %v2802
    %v2804 = vpop.f32.mrb[0].mxu0
    %v2805 = vadd.f32 0.0, %v2804
    %2806 = vmatprep.mubr.f32.mxu0 0.0
    %2807 = vmatmul.mubr.f32.gmra.mrb[0].mxu0 %v2215
    %v2808 = vpop.f32.mrb[0].mxu0
    %v2809 = vadd.f32 0.0, %v2808
    %v2810 = vpop.f32.mrb[0].mxu0
    %v2811 = vadd.f32 0.0, %v2810
    %2812 = vmatprep.mubr.f32.mxu0 0.0
    %2813 = vmatmul.mubr.f32.gmra.mrb[0].mxu0 %v2218
    %v2814 = vpop.f32.mrb[0].mxu0
    %v2815 = vadd.f32 0.0, %v2814
    %v2816 = vpop.f32.mrb[0].mxu0
    %v2817 = vadd.f32 0.0, %v2816
    %2818 = vmatprep.mubr.f32.mxu0 0.0
    %2819 = vmatmul.mubr.f32.gmra.mrb[0].mxu0 %v2221
    %v2820 = vpop.f32.mrb[0].mxu0
    %v2821 = vadd.f32 0.0, %v2820
    %v2822 = vpop.f32.mrb[0].mxu0
    %v2823 = vadd.f32 0.0, %v2822
    %2824 = vmatprep.mubr.f32.mxu0 0.0
    %2825 = vmatmul.mubr.f32.gmra.mrb[0].mxu0 %v2224
    %v2826 = vpop.f32.mrb[0].mxu0
    %v2827 = vadd.f32 0.0, %v2826
    %v2828 = vpop.f32.mrb[0].mxu0
    %v2829 = vadd.f32 0.0, %v2828
    %2830 = vmatprep.mubr.f32.mxu0 0.0
    %2831 = vmatmul.mubr.f32.gmra.mrb[0].mxu0 %v2227
    %v2832 = vpop.f32.mrb[0].mxu0
    %v2833 = vadd.f32 0.0, %v2832
    %v2834 = vpop.f32.mrb[0].mxu0
    %v2835 = vadd.f32 0.0, %v2834
    %2836 = vmatprep.mubr.f32.mxu0 0.0
    %2837 = vmatmul.mubr.f32.gmra.mrb[0].mxu0 %v2230
    %v2838 = vpop.f32.mrb[0].mxu0
    %v2839 = vadd.f32 0.0, %v2838
    %v2840 = vpop.f32.mrb[0].mxu0
    %v2841 = vadd.f32 0.0, %v2840
    %2842 = vmatprep.mubr.f32.mxu0 0.0
    %2843 = vmatmul.mubr.f32.gmra.mrb[0].mxu0 %v2233
    %v2844 = vpop.f32.mrb[0].mxu0
    %v2845 = vadd.f32 0.0, %v2844
    %v2846 = vpop.f32.mrb[0].mxu0
    %v2847 = vadd.f32 0.0, %v2846
    %2848 = vmatprep.mubr.f32.mxu0 0.0
    %2849 = vmatmul.mubr.f32.gmra.mrb[0].mxu0 %v2236
    %v2850 = vpop.f32.mrb[0].mxu0
    %v2851 = vadd.f32 0.0, %v2850
    %v2852 = vpop.f32.mrb[0].mxu0
    %v2853 = vadd.f32 0.0, %v2852
    %2854 = vmatprep.mubr.f32.mxu0 0.0
    %2855 = vmatmul.mubr.f32.gmra.mrb[0].mxu0 %v2239
    %v2856 = vpop.f32.mrb[0].mxu0
    %v2857 = vadd.f32 0.0, %v2856
    %v2858 = vpop.f32.mrb[0].mxu0
    %v2859 = vadd.f32 0.0, %v2858
    %2860 = vmatprep.mubr.f32.mxu0 0.0
    %2861 = vmatmul.mubr.f32.gmra.mrb[0].mxu0 %v2242
    %v2862 = vpop.f32.mrb[0].mxu0
    %v2863 = vadd.f32 0.0, %v2862
    %v2864 = vpop.f32.mrb[0].mxu0
    %v2865 = vadd.f32 0.0, %v2864
    %2866 = vmatprep.mubr.f32.mxu0 0.0
    %2867 = vmatmul.mubr.f32.gmra.mrb[0].mxu0 %v2245
    %v2868 = vpop.f32.mrb[0].mxu0
    %v2869 = vadd.f32 0.0, %v2868
    %v2870 = vpop.f32.mrb[0].mxu0
    %v2871 = vadd.f32 0.0, %v2870
    %2872 = vmatprep.mubr.f32.mxu0 0.0
    %2873 = vmatmul.mubr.f32.gmra.mrb[0].mxu0 %v2248
    %v2874 = vpop.f32.mrb[0].mxu0
    %v2875 = vadd.f32 0.0, %v2874
    %v2876 = vpop.f32.mrb[0].mxu0
    %v2877 = vadd.f32 0.0, %v2876
    %2878 = vmatprep.mubr.f32.mxu0 0.0
    %2879 = vmatmul.mubr.f32.gmra.mrb[0].mxu0 %v2251
    %v2880 = vpop.f32.mrb[0].mxu0
    %v2881 = vadd.f32 0.0, %v2880
    %v2882 = vpop.f32.mrb[0].mxu0
    %v2883 = vadd.f32 0.0, %v2882
    %2884 = vmatprep.mubr.f32.mxu0 0.0
    %2885 = vmatmul.mubr.f32.gmra.mrb[0].mxu0 %v2254
    %v2886 = vpop.f32.mrb[0].mxu0
    %v2887 = vadd.f32 0.0, %v2886
    %v2888 = vpop.f32.mrb[0].mxu0
    %v2889 = vadd.f32 0.0, %v2888
    %2890 = vmatprep.mubr.f32.mxu0 0.0
    %2891 = vmatmul.mubr.f32.gmra.mrb[0].mxu0 %v2257
    %v2892 = vpop.f32.mrb[0].mxu0
    %v2893 = vadd.f32 0.0, %v2892
    %v2894 = vpop.f32.mrb[0].mxu0
    %v2895 = vadd.f32 0.0, %v2894
    %2896 = vmatprep.mubr.f32.mxu0 0.0
    %2897 = vmatmul.mubr.f32.gmra.mrb[0].mxu0 %v2260
    %v2898 = vpop.f32.mrb[0].mxu0
    %v2899 = vadd.f32 0.0, %v2898
    %v2900 = vpop.f32.mrb[0].mxu0
    %v2901 = vadd.f32 0.0, %v2900
    %2902 = vmatprep.mubr.f32.mxu0 0.0
    %2903 = vmatmul.mubr.f32.gmra.mrb[0].mxu0 %v2263
    %v2904 = vpop.f32.mrb[0].mxu0
    %v2905 = vadd.f32 0.0, %v2904
    %v2906 = vpop.f32.mrb[0].mxu0
    %v2907 = vadd.f32 0.0, %v2906
    %2908 = vmatprep.mubr.f32.mxu0 0.0
    %2909 = vmatmul.mubr.f32.gmra.mrb[0].mxu0 %v2266
    %v2910 = vpop.f32.mrb[0].mxu0
    %v2911 = vadd.f32 0.0, %v2910
    %v2912 = vpop.f32.mrb[0].mxu0
    %v2913 = vadd.f32 0.0, %v2912
    %2914 = vmatprep.mubr.f32.mxu0 0.0
    %2915 = vmatmul.mubr.f32.gmra.mrb[0].mxu0 %v2269
    %v2916 = vpop.f32.mrb[0].mxu0
    %v2917 = vadd.f32 0.0, %v2916
    %v2918 = vpop.f32.mrb[0].mxu0
    %v2919 = vadd.f32 0.0, %v2918
    %2920 = vmatprep.mubr.f32.mxu0 0.0
    %2921 = vmatmul.mubr.f32.gmra.mrb[0].mxu0 %v2272
    %v2922 = vpop.f32.mrb[0].mxu0
    %v2923 = vadd.f32 0.0, %v2922
    %v2924 = vpop.f32.mrb[0].mxu0
    %v2925 = vadd.f32 0.0, %v2924
    %2926 = vmatprep.mubr.f32.mxu0 0.0
    %2927 = vmatmul.mubr.f32.gmra.mrb[0].mxu0 %v2275
    %v2928 = vpop.f32.mrb[0].mxu0
    %v2929 = vadd.f32 0.0, %v2928
    %v2930 = vpop.f32.mrb[0].mxu0
    %v2931 = vadd.f32 0.0, %v2930
    %2932 = vmatprep.mubr.f32.mxu0 0.0
    %2933 = vmatmul.mubr.f32.gmra.mrb[0].mxu0 %v2278
    %v2934 = vpop.f32.mrb[0].mxu0
    %v2935 = vadd.f32 0.0, %v2934
    %v2936 = vpop.f32.mrb[0].mxu0
    %v2937 = vadd.f32 0.0, %v2936
    %2938 = vmatprep.mubr.f32.mxu0 0.0
    %2939 = vmatmul.mubr.f32.gmra.mrb[0].mxu0 %v2281
    %v2940 = vpop.f32.mrb[0].mxu0
    %v2941 = vadd.f32 0.0, %v2940
    %v2942 = vpop.f32.mrb[0].mxu0
    %v2943 = vadd.f32 0.0, %v2942
    %2944 = vmatprep.mubr.f32.mxu0 0.0
    %2945 = vmatmul.mubr.f32.gmra.mrb[0].mxu0 %v2284
    %v2946 = vpop.f32.mrb[0].mxu0
    %v2947 = vadd.f32 0.0, %v2946
    %v2948 = vpop.f32.mrb[0].mxu0
    %v2949 = vadd.f32 0.0, %v2948
    %2950 = vmatprep.mubr.f32.mxu0 0.0
    %2951 = vmatmul.mubr.f32.gmra.mrb[0].mxu0 %v2287
    %v2952 = vpop.f32.mrb[0].mxu0
    %v2953 = vadd.f32 0.0, %v2952
    %v2954 = vpop.f32.mrb[0].mxu0
    %v2955 = vadd.f32 0.0, %v2954
    %2956 = vmatprep.mubr.f32.mxu0 0.0
    %2957 = vmatmul.mubr.f32.gmra.mrb[0].mxu0 %v2290
    %v2958 = vpop.f32.mrb[0].mxu0
    %v2959 = vadd.f32 0.0, %v2958
    %v2960 = vpop.f32.mrb[0].mxu0
    %v2961 = vadd.f32 0.0, %v2960
    %2962 = vmatprep.mubr.f32.mxu0 0.0
    %2963 = vmatmul.mubr.f32.gmra.mrb[0].mxu0 %v2293
    %v2964 = vpop.f32.mrb[0].mxu0
    %v2965 = vadd.f32 0.0, %v2964
    %v2966 = vpop.f32.mrb[0].mxu0
    %v2967 = vadd.f32 0.0, %v2966
    %2968 = vmatprep.mubr.f32.mxu0 0.0
    %2969 = vmatmul.mubr.f32.gmra.mrb[0].mxu0 %v2296
    %v2970 = vpop.f32.mrb[0].mxu0
    %v2971 = vadd.f32 0.0, %v2970
    %v2972 = vpop.f32.mrb[0].mxu0
    %v2973 = vadd.f32 0.0, %v2972
    %2974 = vmatprep.mubr.f32.mxu0 0.0
    %2975 = vmatmul.mubr.f32.gmra.mrb[0].mxu0 %v2299
    %v2976 = vpop.f32.mrb[0].mxu0
    %v2977 = vadd.f32 0.0, %v2976
    %v2978 = vpop.f32.mrb[0].mxu0
    %v2979 = vadd.f32 0.0, %v2978
    %2980 = vmatprep.mubr.f32.mxu0 0.0
    %2981 = vmatmul.mubr.f32.gmra.mrb[0].mxu0 %v2302
    %v2982 = vpop.f32.mrb[0].mxu0
    %v2983 = vadd.f32 0.0, %v2982
    %v2984 = vpop.f32.mrb[0].mxu0
    %v2985 = vadd.f32 0.0, %v2984
    %2986 = vmatprep.mubr.f32.mxu0 0.0
    %2987 = vmatmul.mubr.f32.gmra.mrb[0].mxu0 %v2305
    %v2988 = vpop.f32.mrb[0].mxu0
    %v2989 = vadd.f32 0.0, %v2988
    %v2990 = vpop.f32.mrb[0].mxu0
    %v2991 = vadd.f32 0.0, %v2990
    %2992 = vmatprep.mubr.f32.mxu0 0.0
    %2993 = vmatmul.mubr.f32.gmra.mrb[0].mxu0 %v2308
    %v2994 = vpop.f32.mrb[0].mxu0
    %v2995 = vadd.f32 0.0, %v2994
    %v2996 = vpop.f32.mrb[0].mxu0
    %v2997 = vadd.f32 0.0, %v2996
    %2998 = vmatprep.mubr.f32.mxu0 0.0
    %2999 = vmatmul.mubr.f32.gmra.mrb[0].mxu0 %v2311
    %v3000 = vpop.f32.mrb[0].mxu0
    %v3001 = vadd.f32 0.0, %v3000
    %v3002 = vpop.f32.mrb[0].mxu0
    %v3003 = vadd.f32 0.0, %v3002
    %3004 = vmatprep.mubr.f32.mxu0 0.0
    %3005 = vmatmul.mubr.f32.gmra.mrb[0].mxu0 %v2314
    %v3006 = vpop.f32.mrb[0].mxu0
    %v3007 = vadd.f32 0.0, %v3006
    %v3008 = vpop.f32.mrb[0].mxu0
    %v3009 = vadd.f32 0.0, %v3008
    %3010 = vmatprep.mubr.f32.mxu0 0.0
    %3011 = vmatmul.mubr.f32.gmra.mrb[0].mxu0 %v2317
    %v3012 = vpop.f32.mrb[0].mxu0
    %v3013 = vadd.f32 0.0, %v3012
    %v3014 = vpop.f32.mrb[0].mxu0
    %v3015 = vadd.f32 0.0, %v3014
    %3016 = vmatprep.mubr.f32.mxu0 0.0
    %3017 = vmatmul.mubr.f32.gmra.mrb[0].mxu0 %v2320
    %v3018 = vpop.f32.mrb[0].mxu0
    %v3019 = vadd.f32 0.0, %v3018
    %v3020 = vpop.f32.mrb[0].mxu0
    %v3021 = vadd.f32 0.0, %v3020
    %3022 = vmatprep.mubr.f32.mxu0 0.0
    %3023 = vmatmul.mubr.f32.gmra.mrb[0].mxu0 %v2323
    %v3024 = vpop.f32.mrb[0].mxu0
    %v3025 = vadd.f32 0.0, %v3024
    %v3026 = vpop.f32.mrb[0].mxu0
    %v3027 = vadd.f32 0.0, %v3026
    %3028 = vmatprep.mubr.f32.mxu0 0.0
    %3029 = vmatmul.mubr.f32.gmra.mrb[0].mxu0 %v2326
    %v3030 = vpop.f32.mrb[0].mxu0
    %v3031 = vadd.f32 0.0, %v3030
    %v3032 = vpop.f32.mrb[0].mxu0
    %v3033 = vadd.f32 0.0, %v3032
    %3034 = vmatprep.mubr.f32.mxu0 0.0
    %3035 = vmatmul.mubr.f32.gmra.mrb[0].mxu0 %v2329
    %v3036 = vpop.f32.mrb[0].mxu0
    %v3037 = vadd.f32 0.0, %v3036
    %v3038 = vpop.f32.mrb[0].mxu0
    %v3039 = vadd.f32 0.0, %v3038
    %3040 = vmatprep.mubr.f32.mxu0 0.0
    %3041 = vmatmul.mubr.f32.gmra.mrb[0].mxu0 %v2332
    %v3042 = vpop.f32.mrb[0].mxu0
    %v3043 = vadd.f32 0.0, %v3042
    %v3044 = vpop.f32.mrb[0].mxu0
    %v3045 = vadd.f32 0.0, %v3044
    %3046 = vmatprep.mubr.f32.mxu0 0.0
    %3047 = vmatmul.mubr.f32.gmra.mrb[0].mxu0 %v2335
    %v3048 = vpop.f32.mrb[0].mxu0
    %v3049 = vadd.f32 0.0, %v3048
    %v3050 = vpop.f32.mrb[0].mxu0
    %v3051 = vadd.f32 0.0, %v3050
    %3052 = vmatprep.mubr.f32.mxu0 0.0
    %3053 = vmatmul.mubr.f32.gmra.mrb[0].mxu0 %v2338
    %v3054 = vpop.f32.mrb[0].mxu0
    %v3055 = vadd.f32 0.0, %v3054
    %v3056 = vpop.f32.mrb[0].mxu0
    %v3057 = vadd.f32 0.0, %v3056
    %3058 = vmatprep.mubr.f32.mxu0 0.0
    %3059 = vmatmul.mubr.f32.gmra.mrb[0].mxu0 %v2341
    %v3060 = vpop.f32.mrb[0].mxu0
    %v3061 = vadd.f32 0.0, %v3060
    %v3062 = vpop.f32.mrb[0].mxu0
    %v3063 = vadd.f32 0.0, %v3062
    %3064 = vmatprep.mubr.f32.mxu0 0.0
    %3065 = vmatmul.mubr.f32.gmra.mrb[0].mxu0 %v2344
    %v3066 = vpop.f32.mrb[0].mxu0
    %v3067 = vadd.f32 0.0, %v3066
    %v3068 = vpop.f32.mrb[0].mxu0
    %v3069 = vadd.f32 0.0, %v3068
    %3070 = vmatprep.mubr.f32.mxu0 0.0
    %3071 = vmatmul.mubr.f32.gmra.mrb[0].mxu0 %v2347
    %v3072 = vpop.f32.mrb[0].mxu0
    %v3073 = vadd.f32 0.0, %v3072
    %v3074 = vpop.f32.mrb[0].mxu0
    %v3075 = vadd.f32 0.0, %v3074
    %3076 = vmatprep.mubr.f32.mxu0 0.0
    %3077 = vmatmul.mubr.f32.gmra.mrb[0].mxu0 %v2350
    %v3078 = vpop.f32.mrb[0].mxu0
    %v3079 = vadd.f32 0.0, %v3078
    %v3080 = vpop.f32.mrb[0].mxu0
    %v3081 = vadd.f32 0.0, %v3080
    %3082 = vmatprep.mubr.f32.mxu0 0.0
    %3083 = vmatmul.mubr.f32.gmra.mrb[0].mxu0 %v2353
    %v3084 = vpop.f32.mrb[0].mxu0
    %v3085 = vadd.f32 0.0, %v3084
    %v3086 = vpop.f32.mrb[0].mxu0
    %v3087 = vadd.f32 0.0, %v3086
    %3088 = vmatprep.mubr.f32.mxu0 0.0
    %3089 = vmatmul.mubr.f32.gmra.mrb[0].mxu0 %v2356
    %v3090 = vpop.f32.mrb[0].mxu0
    %v3091 = vadd.f32 0.0, %v3090
    %v3092 = vpop.f32.mrb[0].mxu0
    %v3093 = vadd.f32 0.0, %v3092
    %3094 = vmatprep.mubr.f32.mxu0 0.0
    %3095 = vmatmul.mubr.f32.gmra.mrb[0].mxu0 %v2359
    %v3096 = vpop.f32.mrb[0].mxu0
    %v3097 = vadd.f32 0.0, %v3096
    %v3098 = vpop.f32.mrb[0].mxu0
    %v3099 = vadd.f32 0.0, %v3098
    %3100 = vmatprep.mubr.f32.mxu0 0.0
    %3101 = vmatmul.mubr.f32.gmra.mrb[0].mxu0 %v2362
    %v3102 = vpop.f32.mrb[0].mxu0
    %v3103 = vadd.f32 0.0, %v3102
    %v3104 = vpop.f32.mrb[0].mxu0
    %v3105 = vadd.f32 0.0, %v3104
    %3106 = vmatprep.mubr.f32.mxu0 0.0
    %3107 = vmatmul.mubr.f32.gmra.mrb[0].mxu0 %v2365
    %v3108 = vpop.f32.mrb[0].mxu0
    %v3109 = vadd.f32 0.0, %v3108
    %v3110 = vpop.f32.mrb[0].mxu0
    %v3111 = vadd.f32 0.0, %v3110
    %3112 = vmatprep.mubr.f32.mxu0 0.0
    %3113 = vmatmul.mubr.f32.gmra.mrb[0].mxu0 %v2368
    %v3114 = vpop.f32.mrb[0].mxu0
    %v3115 = vadd.f32 0.0, %v3114
    %v3116 = vpop.f32.mrb[0].mxu0
    %v3117 = vadd.f32 0.0, %v3116
    %3118 = vmatprep.mubr.f32.mxu0 0.0
    %3119 = vmatmul.mubr.f32.gmra.mrb[0].mxu0 %v2371
    %v3120 = vpop.f32.mrb[0].mxu0
    %v3121 = vadd.f32 0.0, %v3120
    %v3122 = vpop.f32.mrb[0].mxu0
    %v3123 = vadd.f32 0.0, %v3122
    %3124 = vmatprep.mubr.f32.mxu0 0.0
    %3125 = vmatmul.mubr.f32.gmra.mrb[0].mxu0 %v2374
    %v3126 = vpop.f32.mrb[0].mxu0
    %v3127 = vadd.f32 0.0, %v3126
    %v3128 = vpop.f32.mrb[0].mxu0
    %v3129 = vadd.f32 0.0, %v3128
    %3130 = vmatprep.mubr.f32.mxu0 0.0
    %3131 = vmatmul.mubr.f32.gmra.mrb[0].mxu0 %v2377
    %v3132 = vpop.f32.mrb[0].mxu0
    %v3133 = vadd.f32 0.0, %v3132
    %v3134 = vpop.f32.mrb[0].mxu0
    %v3135 = vadd.f32 0.0, %v3134
    %3136 = vmatprep.mubr.f32.mxu0 0.0
    %3137 = vmatmul.mubr.f32.gmra.mrb[0].mxu0 %v2380
    %v3138 = vpop.f32.mrb[0].mxu0
    %v3139 = vadd.f32 0.0, %v3138
    %v3140 = vpop.f32.mrb[0].mxu0
    %v3141 = vadd.f32 0.0, %v3140
    %3142 = vmatprep.mubr.f32.mxu0 0.0
    %3143 = vmatmul.mubr.f32.gmra.mrb[0].mxu0 %v2383
    %v3144 = vpop.f32.mrb[0].mxu0
    %v3145 = vadd.f32 0.0, %v3144
    %v3146 = vpop.f32.mrb[0].mxu0
    %v3147 = vadd.f32 0.0, %v3146
    %3148 = vmatprep.mubr.f32.mxu0 0.0
    %3149 = vmatmul.mubr.f32.gmra.mrb[0].mxu0 %v2386
    %v3150 = vpop.f32.mrb[0].mxu0
    %v3151 = vadd.f32 0.0, %v3150
    %v3152 = vpop.f32.mrb[0].mxu0
    %v3153 = vadd.f32 0.0, %v3152
    %3154 = vmatprep.mubr.f32.mxu0 0.0
    %3155 = vmatmul.mubr.f32.gmra.mrb[0].mxu0 %v2389
    %v3156 = vpop.f32.mrb[0].mxu0
    %v3157 = vadd.f32 0.0, %v3156
    %v3158 = vpop.f32.mrb[0].mxu0
    %v3159 = vadd.f32 0.0, %v3158
    %3160 = vmatprep.mubr.f32.mxu0 0.0
    %3161 = vmatmul.mubr.f32.gmra.mrb[0].mxu0 %v2392
    %v3162 = vpop.f32.mrb[0].mxu0
    %v3163 = vadd.f32 0.0, %v3162
    %v3164 = vpop.f32.mrb[0].mxu0
    %v3165 = vadd.f32 0.0, %v3164
    %3166 = vmatprep.mubr.f32.mxu0 0.0
    %3167 = vmatmul.mubr.f32.gmra.mrb[0].mxu0 %v2395
    %v3168 = vpop.f32.mrb[0].mxu0
    %v3169 = vadd.f32 0.0, %v3168
    %v3170 = vpop.f32.mrb[0].mxu0
    %v3171 = vadd.f32 0.0, %v3170
    %3172 = vmatprep.mubr.f32.mxu0 0.0
    %3173 = vmatmul.mubr.f32.gmra.mrb[0].mxu0 %v2398
    %v3174 = vpop.f32.mrb[0].mxu0
    %v3175 = vadd.f32 0.0, %v3174
    %v3176 = vpop.f32.mrb[0].mxu0
    %v3177 = vadd.f32 0.0, %v3176
    %3178 = vmatprep.mubr.f32.mxu0 0.0
    %3179 = vmatmul.mubr.f32.gmra.mrb[0].mxu0 %v2401
    %v3180 = vpop.f32.mrb[0].mxu0
    %v3181 = vadd.f32 0.0, %v3180
    %v3182 = vpop.f32.mrb[0].mxu0
    %v3183 = vadd.f32 0.0, %v3182
    %3184 = vmatprep.mubr.f32.mxu0 0.0
    %3185 = vmatmul.mubr.f32.gmra.mrb[0].mxu0 %v2404
    %v3186 = vpop.f32.mrb[0].mxu0
    %v3187 = vadd.f32 0.0, %v3186
    %v3188 = vpop.f32.mrb[0].mxu0
    %v3189 = vadd.f32 0.0, %v3188
    %3190 = vmatprep.mubr.f32.mxu0 0.0
    %3191 = vmatmul.mubr.f32.gmra.mrb[0].mxu0 %v2407
    %v3192 = vpop.f32.mrb[0].mxu0
    %v3193 = vadd.f32 0.0, %v3192
    %v3194 = vpop.f32.mrb[0].mxu0
    %v3195 = vadd.f32 0.0, %v3194
    %3196 = vmatprep.mubr.f32.mxu0 0.0
    %3197 = vmatmul.mubr.f32.gmra.mrb[0].mxu0 %v2410
    %v3198 = vpop.f32.mrb[0].mxu0
    %v3199 = vadd.f32 0.0, %v3198
    %v3200 = vpop.f32.mrb[0].mxu0
    %v3201 = vadd.f32 0.0, %v3200
    %3202 = vmatprep.mubr.f32.mxu0 0.0
    %3203 = vmatmul.mubr.f32.gmra.mrb[0].mxu0 %v2413
    %v3204 = vpop.f32.mrb[0].mxu0
    %v3205 = vadd.f32 0.0, %v3204
    %v3206 = vpop.f32.mrb[0].mxu0
    %v3207 = vadd.f32 0.0, %v3206
    %3208 = vmatprep.mubr.f32.mxu0 0.0
    %3209 = vmatmul.mubr.f32.gmra.mrb[0].mxu0 %v2416
    %v3210 = vpop.f32.mrb[0].mxu0
    %v3211 = vadd.f32 0.0, %v3210
    %v3212 = vpop.f32.mrb[0].mxu0
    %v3213 = vadd.f32 0.0, %v3212
    %3214 = vmatprep.mubr.f32.mxu0 0.0
    %3215 = vmatmul.mubr.f32.gmra.mrb[0].mxu0 %v2419
    %v3216 = vpop.f32.mrb[0].mxu0
    %v3217 = vadd.f32 0.0, %v3216
    %v3218 = vpop.f32.mrb[0].mxu0
    %v3219 = vadd.f32 0.0, %v3218
    %3220 = vmatprep.mubr.f32.mxu0 0.0
    %3221 = vmatmul.mubr.f32.gmra.mrb[0].mxu0 %v2422
    %v3222 = vpop.f32.mrb[0].mxu0
    %v3223 = vadd.f32 0.0, %v3222
    %v3224 = vpop.f32.mrb[0].mxu0
    %v3225 = vadd.f32 0.0, %v3224
    %3226 = vmatprep.mubr.f32.mxu0 0.0
    %3227 = vmatmul.mubr.f32.gmra.mrb[0].mxu0 %v2425
    %v3228 = vpop.f32.mrb[0].mxu0
    %v3229 = vadd.f32 0.0, %v3228
    %v3230 = vpop.f32.mrb[0].mxu0
    %v3231 = vadd.f32 0.0, %v3230
    %3232 = vmatprep.mubr.f32.mxu0 0.0
    %3233 = vmatmul.mubr.f32.gmra.mrb[0].mxu0 %v2428
    %v3234 = vpop.f32.mrb[0].mxu0
    %v3235 = vadd.f32 0.0, %v3234
    %v3236 = vpop.f32.mrb[0].mxu0
    %v3237 = vadd.f32 0.0, %v3236
    %3238 = vmatprep.mubr.f32.mxu0 0.0
    %3239 = vmatmul.mubr.f32.gmra.mrb[0].mxu0 %v2431
    %v3240 = vpop.f32.mrb[0].mxu0
    %v3241 = vadd.f32 0.0, %v3240
    %v3242 = vpop.f32.mrb[0].mxu0
    %v3243 = vadd.f32 0.0, %v3242
    %3244 = vmatprep.mubr.f32.mxu0 0.0
    %3245 = vmatmul.mubr.f32.gmra.mrb[0].mxu0 %v2434
    %v3246 = vpop.f32.mrb[0].mxu0
    %v3247 = vadd.f32 0.0, %v3246
    %v3248 = vpop.f32.mrb[0].mxu0
    %v3249 = vadd.f32 0.0, %v3248
    %3250 = vmatprep.mubr.f32.mxu0 0.0
    %3251 = vmatmul.mubr.f32.gmra.mrb[0].mxu0 %v2437
    %v3252 = vpop.f32.mrb[0].mxu0
    %v3253 = vadd.f32 0.0, %v3252
    %v3254 = vpop.f32.mrb[0].mxu0
    %v3255 = vadd.f32 0.0, %v3254
    %3256 = vmatprep.mubr.f32.mxu0 0.0
    %3257 = vmatmul.mubr.f32.gmra.mrb[0].mxu0 %v2440
    %v3258 = vpop.f32.mrb[0].mxu0
    %v3259 = vadd.f32 0.0, %v3258
    %v3260 = vpop.f32.mrb[0].mxu0
    %v3261 = vadd.f32 0.0, %v3260
    %3262 = vmatprep.mubr.f32.mxu0 0.0
    %3263 = vmatmul.mubr.f32.gmra.mrb[0].mxu0 %v2443
    %v3264 = vpop.f32.mrb[0].mxu0
    %v3265 = vadd.f32 0.0, %v3264
    %v3266 = vpop.f32.mrb[0].mxu0
    %v3267 = vadd.f32 0.0, %v3266
    %3268 = vmatprep.mubr.f32.mxu0 0.0
    %3269 = vmatmul.mubr.f32.gmra.mrb[0].mxu0 %v2446
    %v3270 = vpop.f32.mrb[0].mxu0
    %v3271 = vadd.f32 0.0, %v3270
    %v3272 = vpop.f32.mrb[0].mxu0
    %v3273 = vadd.f32 0.0, %v3272
    %3274 = vmatprep.mubr.f32.mxu0 0.0
    %3275 = vmatmul.mubr.f32.gmra.mrb[0].mxu0 %v2449
    %v3276 = vpop.f32.mrb[0].mxu0
    %v3277 = vadd.f32 0.0, %v3276
    %v3278 = vpop.f32.mrb[0].mxu0
    %v3279 = vadd.f32 0.0, %v3278
    %3280 = vmatprep.mubr.f32.mxu0 0.0
    %3281 = vmatmul.mubr.f32.gmra.mrb[0].mxu0 %v2452
    %v3282 = vpop.f32.mrb[0].mxu0
    %v3283 = vadd.f32 0.0, %v3282
    %v3284 = vpop.f32.mrb[0].mxu0
    %v3285 = vadd.f32 0.0, %v3284
    %3286 = vdwg.mxu0
    %v3287 = vadd.f32 %v1304, %v2523
    %v3288 = vadd.f32 %v1310, %v2529
    %v3289 = vadd.f32 %v1316, %v2535
    %v3290 = vadd.f32 %v1322, %v2541
    %v3291 = vadd.f32 %v1328, %v2547
    %v3292 = vadd.f32 %v1334, %v2553
    %v3293 = vadd.f32 %v1340, %v2559
    %v3294 = vadd.f32 %v1346, %v2565
    %v3295 = vadd.f32 %v1352, %v2571
    %v3296 = vadd.f32 %v1358, %v2577
    %v3297 = vadd.f32 %v1364, %v2583
    %v3298 = vadd.f32 %v1370, %v2589
    %v3299 = vadd.f32 %v1376, %v2595
    %v3300 = vadd.f32 %v1382, %v2601
    %v3301 = vadd.f32 %v1388, %v2607
    %v3302 = vadd.f32 %v1394, %v2613
    %v3303 = vadd.f32 %v1400, %v2619
    %v3304 = vadd.f32 %v1406, %v2625
    %v3305 = vadd.f32 %v1412, %v2631
    %v3306 = vadd.f32 %v1418, %v2637
    %v3307 = vadd.f32 %v1424, %v2643
    %v3308 = vadd.f32 %v1430, %v2649
    %v3309 = vadd.f32 %v1436, %v2655
    %v3310 = vadd.f32 %v1442, %v2661
    %v3311 = vadd.f32 %v1448, %v2667
    %v3312 = vadd.f32 %v1454, %v2673
    %v3313 = vadd.f32 %v1460, %v2679
    %v3314 = vadd.f32 %v1466, %v2685
    %v3315 = vadd.f32 %v1472, %v2691
    %v3316 = vadd.f32 %v1478, %v2697
    %v3317 = vadd.f32 %v1484, %v2703
    %v3318 = vadd.f32 %v1490, %v2709
    %v3319 = vadd.f32 %v1496, %v2715
    %v3320 = vadd.f32 %v1502, %v2721
    %v3321 = vadd.f32 %v1508, %v2727
    %v3322 = vadd.f32 %v1514, %v2733
    %v3323 = vadd.f32 %v1520, %v2739
    %v3324 = vadd.f32 %v1526, %v2745
    %v3325 = vadd.f32 %v1532, %v2751
    %v3326 = vadd.f32 %v1538, %v2757
    %v3327 = vadd.f32 %v1544, %v2763
    %v3328 = vadd.f32 %v1550, %v2769
    %v3329 = vadd.f32 %v1556, %v2775
    %v3330 = vadd.f32 %v1562, %v2781
    %v3331 = vadd.f32 %v1568, %v2787
    %v3332 = vadd.f32 %v1574, %v2793
    %v3333 = vadd.f32 %v1580, %v2799
    %v3334 = vadd.f32 %v1586, %v2805
    %v3335 = vadd.f32 %v1592, %v2811
    %v3336 = vadd.f32 %v1598, %v2817
    %v3337 = vadd.f32 %v1604, %v2823
    %v3338 = vadd.f32 %v1610, %v2829
    %v3339 = vadd.f32 %v1616, %v2835
    %v3340 = vadd.f32 %v1622, %v2841
    %v3341 = vadd.f32 %v1628, %v2847
    %v3342 = vadd.f32 %v1634, %v2853
    %v3343 = vadd.f32 %v1640, %v2859
    %v3344 = vadd.f32 %v1646, %v2865
    %v3345 = vadd.f32 %v1652, %v2871
    %v3346 = vadd.f32 %v1658, %v2877
    %v3347 = vadd.f32 %v1664, %v2883
    %v3348 = vadd.f32 %v1670, %v2889
    %v3349 = vadd.f32 %v1676, %v2895
    %v3350 = vadd.f32 %v1682, %v2901
    %v3351 = vadd.f32 %v1688, %v2907
    %v3352 = vadd.f32 %v1694, %v2913
    %v3353 = vadd.f32 %v1700, %v2919
    %v3354 = vadd.f32 %v1706, %v2925
    %v3355 = vadd.f32 %v1712, %v2931
    %v3356 = vadd.f32 %v1718, %v2937
    %v3357 = vadd.f32 %v1724, %v2943
    %v3358 = vadd.f32 %v1730, %v2949
    %v3359 = vadd.f32 %v1736, %v2955
    %v3360 = vadd.f32 %v1742, %v2961
    %v3361 = vadd.f32 %v1748, %v2967
    %v3362 = vadd.f32 %v1754, %v2973
    %v3363 = vadd.f32 %v1760, %v2979
    %v3364 = vadd.f32 %v1766, %v2985
    %v3365 = vadd.f32 %v1772, %v2991
    %v3366 = vadd.f32 %v1778, %v2997
    %v3367 = vadd.f32 %v1784, %v3003
    %v3368 = vadd.f32 %v1790, %v3009
    %v3369 = vadd.f32 %v1796, %v3015
    %v3370 = vadd.f32 %v1802, %v3021
    %v3371 = vadd.f32 %v1808, %v3027
    %v3372 = vadd.f32 %v1814, %v3033
    %v3373 = vadd.f32 %v1820, %v3039
    %v3374 = vadd.f32 %v1826, %v3045
    %v3375 = vadd.f32 %v1832, %v3051
    %v3376 = vadd.f32 %v1838, %v3057
    %v3377 = vadd.f32 %v1844, %v3063
    %v3378 = vadd.f32 %v1850, %v3069
    %v3379 = vadd.f32 %v1856, %v3075
    %v3380 = vadd.f32 %v1862, %v3081
    %v3381 = vadd.f32 %v1868, %v3087
    %v3382 = vadd.f32 %v1874, %v3093
    %v3383 = vadd.f32 %v1880, %v3099
    %v3384 = vadd.f32 %v1886, %v3105
    %v3385 = vadd.f32 %v1892, %v3111
    %v3386 = vadd.f32 %v1898, %v3117
    %v3387 = vadd.f32 %v1904, %v3123
    %v3388 = vadd.f32 %v1910, %v3129
    %v3389 = vadd.f32 %v1916, %v3135
    %v3390 = vadd.f32 %v1922, %v3141
    %v3391 = vadd.f32 %v1928, %v3147
    %v3392 = vadd.f32 %v1934, %v3153
    %v3393 = vadd.f32 %v1940, %v3159
    %v3394 = vadd.f32 %v1946, %v3165
    %v3395 = vadd.f32 %v1952, %v3171
    %v3396 = vadd.f32 %v1958, %v3177
    %v3397 = vadd.f32 %v1964, %v3183
    %v3398 = vadd.f32 %v1970, %v3189
    %v3399 = vadd.f32 %v1976, %v3195
    %v3400 = vadd.f32 %v1982, %v3201
    %v3401 = vadd.f32 %v1988, %v3207
    %v3402 = vadd.f32 %v1994, %v3213
    %v3403 = vadd.f32 %v2000, %v3219
    %v3404 = vadd.f32 %v2006, %v3225
    %v3405 = vadd.f32 %v2012, %v3231
    %v3406 = vadd.f32 %v2018, %v3237
    %v3407 = vadd.f32 %v2024, %v3243
    %v3408 = vadd.f32 %v2030, %v3249
    %v3409 = vadd.f32 %v2036, %v3255
    %v3410 = vadd.f32 %v2042, %v3261
    %v3411 = vadd.f32 %v2048, %v3267
    %v3412 = vadd.f32 %v2054, %v3273
    %v3413 = vadd.f32 %v2060, %v3279
    %v3414 = vadd.f32 %v2066, %v3285
    %v3415 = vsub.f32 %v2521, %v1306
    %v3416 = vsub.f32 %v2527, %v1312
    %v3417 = vsub.f32 %v2533, %v1318
    %v3418 = vsub.f32 %v2539, %v1324
    %v3419 = vsub.f32 %v2545, %v1330
    %v3420 = vsub.f32 %v2551, %v1336
    %v3421 = vsub.f32 %v2557, %v1342
    %v3422 = vsub.f32 %v2563, %v1348
    %v3423 = vsub.f32 %v2569, %v1354
    %v3424 = vsub.f32 %v2575, %v1360
    %v3425 = vsub.f32 %v2581, %v1366
    %v3426 = vsub.f32 %v2587, %v1372
    %v3427 = vsub.f32 %v2593, %v1378
    %v3428 = vsub.f32 %v2599, %v1384
    %v3429 = vsub.f32 %v2605, %v1390
    %v3430 = vsub.f32 %v2611, %v1396
    %v3431 = vsub.f32 %v2617, %v1402
    %v3432 = vsub.f32 %v2623, %v1408
    %v3433 = vsub.f32 %v2629, %v1414
    %v3434 = vsub.f32 %v2635, %v1420
    %v3435 = vsub.f32 %v2641, %v1426
    %v3436 = vsub.f32 %v2647, %v1432
    %v3437 = vsub.f32 %v2653, %v1438
    %v3438 = vsub.f32 %v2659, %v1444
    %v3439 = vsub.f32 %v2665, %v1450
    %v3440 = vsub.f32 %v2671, %v1456
    %v3441 = vsub.f32 %v2677, %v1462
    %v3442 = vsub.f32 %v2683, %v1468
    %v3443 = vsub.f32 %v2689, %v1474
    %v3444 = vsub.f32 %v2695, %v1480
    %v3445 = vsub.f32 %v2701, %v1486
    %v3446 = vsub.f32 %v2707, %v1492
    %v3447 = vsub.f32 %v2713, %v1498
    %v3448 = vsub.f32 %v2719, %v1504
    %v3449 = vsub.f32 %v2725, %v1510
    %v3450 = vsub.f32 %v2731, %v1516
    %v3451 = vsub.f32 %v2737, %v1522
    %v3452 = vsub.f32 %v2743, %v1528
    %v3453 = vsub.f32 %v2749, %v1534
    %v3454 = vsub.f32 %v2755, %v1540
    %v3455 = vsub.f32 %v2761, %v1546
    %v3456 = vsub.f32 %v2767, %v1552
    %v3457 = vsub.f32 %v2773, %v1558
    %v3458 = vsub.f32 %v2779, %v1564
    %v3459 = vsub.f32 %v2785, %v1570
    %v3460 = vsub.f32 %v2791, %v1576
    %v3461 = vsub.f32 %v2797, %v1582
    %v3462 = vsub.f32 %v2803, %v1588
    %v3463 = vsub.f32 %v2809, %v1594
    %v3464 = vsub.f32 %v2815, %v1600
    %v3465 = vsub.f32 %v2821, %v1606
    %v3466 = vsub.f32 %v2827, %v1612
    %v3467 = vsub.f32 %v2833, %v1618
    %v3468 = vsub.f32 %v2839, %v1624
    %v3469 = vsub.f32 %v2845, %v1630
    %v3470 = vsub.f32 %v2851, %v1636
    %v3471 = vsub.f32 %v2857, %v1642
    %v3472 = vsub.f32 %v2863, %v1648
    %v3473 = vsub.f32 %v2869, %v1654
    %v3474 = vsub.f32 %v2875, %v1660
    %v3475 = vsub.f32 %v2881, %v1666
    %v3476 = vsub.f32 %v2887, %v1672
    %v3477 = vsub.f32 %v2893, %v1678
    %v3478 = vsub.f32 %v2899, %v1684
    %v3479 = vsub.f32 %v2905, %v1690
    %v3480 = vsub.f32 %v2911, %v1696
    %v3481 = vsub.f32 %v2917, %v1702
    %v3482 = vsub.f32 %v2923, %v1708
    %v3483 = vsub.f32 %v2929, %v1714
    %v3484 = vsub.f32 %v2935, %v1720
    %v3485 = vsub.f32 %v2941, %v1726
    %v3486 = vsub.f32 %v2947, %v1732
    %v3487 = vsub.f32 %v2953, %v1738
    %v3488 = vsub.f32 %v2959, %v1744
    %v3489 = vsub.f32 %v2965, %v1750
    %v3490 = vsub.f32 %v2971, %v1756
    %v3491 = vsub.f32 %v2977, %v1762
    %v3492 = vsub.f32 %v2983, %v1768
    %v3493 = vsub.f32 %v2989, %v1774
    %v3494 = vsub.f32 %v2995, %v1780
    %v3495 = vsub.f32 %v3001, %v1786
    %v3496 = vsub.f32 %v3007, %v1792
    %v3497 = vsub.f32 %v3013, %v1798
    %v3498 = vsub.f32 %v3019, %v1804
    %v3499 = vsub.f32 %v3025, %v1810
    %v3500 = vsub.f32 %v3031, %v1816
    %v3501 = vsub.f32 %v3037, %v1822
    %v3502 = vsub.f32 %v3043, %v1828
    %v3503 = vsub.f32 %v3049, %v1834
    %v3504 = vsub.f32 %v3055, %v1840
    %v3505 = vsub.f32 %v3061, %v1846
    %v3506 = vsub.f32 %v3067, %v1852
    %v3507 = vsub.f32 %v3073, %v1858
    %v3508 = vsub.f32 %v3079, %v1864
    %v3509 = vsub.f32 %v3085, %v1870
    %v3510 = vsub.f32 %v3091, %v1876
    %v3511 = vsub.f32 %v3097, %v1882
    %v3512 = vsub.f32 %v3103, %v1888
    %v3513 = vsub.f32 %v3109, %v1894
    %v3514 = vsub.f32 %v3115, %v1900
    %v3515 = vsub.f32 %v3121, %v1906
    %v3516 = vsub.f32 %v3127, %v1912
    %v3517 = vsub.f32 %v3133, %v1918
    %v3518 = vsub.f32 %v3139, %v1924
    %v3519 = vsub.f32 %v3145, %v1930
    %v3520 = vsub.f32 %v3151, %v1936
    %v3521 = vsub.f32 %v3157, %v1942
    %v3522 = vsub.f32 %v3163, %v1948
    %v3523 = vsub.f32 %v3169, %v1954
    %v3524 = vsub.f32 %v3175, %v1960
    %v3525 = vsub.f32 %v3181, %v1966
    %v3526 = vsub.f32 %v3187, %v1972
    %v3527 = vsub.f32 %v3193, %v1978
    %v3528 = vsub.f32 %v3199, %v1984
    %v3529 = vsub.f32 %v3205, %v1990
    %v3530 = vsub.f32 %v3211, %v1996
    %v3531 = vsub.f32 %v3217, %v2002
    %v3532 = vsub.f32 %v3223, %v2008
    %v3533 = vsub.f32 %v3229, %v2014
    %v3534 = vsub.f32 %v3235, %v2020
    %v3535 = vsub.f32 %v3241, %v2026
    %v3536 = vsub.f32 %v3247, %v2032
    %v3537 = vsub.f32 %v3253, %v2038
    %v3538 = vsub.f32 %v3259, %v2044
    %v3539 = vsub.f32 %v3265, %v2050
    %v3540 = vsub.f32 %v3271, %v2056
    %v3541 = vsub.f32 %v3277, %v2062
    %v3542 = vsub.f32 %v3283, %v2068
    %v3543 = vmul.f32 %v3287, %v3287
    %v3544 = vmul.f32 %v3288, %v3288
    %v3545 = vmul.f32 %v3289, %v3289
    %v3546 = vmul.f32 %v3290, %v3290
    %v3547 = vmul.f32 %v3291, %v3291
    %v3548 = vmul.f32 %v3292, %v3292
    %v3549 = vmul.f32 %v3293, %v3293
    %v3550 = vmul.f32 %v3294, %v3294
    %v3551 = vmul.f32 %v3295, %v3295
    %v3552 = vmul.f32 %v3296, %v3296
    %v3553 = vmul.f32 %v3297, %v3297
    %v3554 = vmul.f32 %v3298, %v3298
    %v3555 = vmul.f32 %v3299, %v3299
    %v3556 = vmul.f32 %v3300, %v3300
    %v3557 = vmul.f32 %v3301, %v3301
    %v3558 = vmul.f32 %v3302, %v3302
    %v3559 = vmul.f32 %v3303, %v3303
    %v3560 = vmul.f32 %v3304, %v3304
    %v3561 = vmul.f32 %v3305, %v3305
    %v3562 = vmul.f32 %v3306, %v3306
    %v3563 = vmul.f32 %v3307, %v3307
    %v3564 = vmul.f32 %v3308, %v3308
    %v3565 = vmul.f32 %v3309, %v3309
    %v3566 = vmul.f32 %v3310, %v3310
    %v3567 = vmul.f32 %v3311, %v3311
    %v3568 = vmul.f32 %v3312, %v3312
    %v3569 = vmul.f32 %v3313, %v3313
    %v3570 = vmul.f32 %v3314, %v3314
    %v3571 = vmul.f32 %v3315, %v3315
    %v3572 = vmul.f32 %v3316, %v3316
    %v3573 = vmul.f32 %v3317, %v3317
    %v3574 = vmul.f32 %v3318, %v3318
    %v3575 = vmul.f32 %v3319, %v3319
    %v3576 = vmul.f32 %v3320, %v3320
    %v3577 = vmul.f32 %v3321, %v3321
    %v3578 = vmul.f32 %v3322, %v3322
    %v3579 = vmul.f32 %v3323, %v3323
    %v3580 = vmul.f32 %v3324, %v3324
    %v3581 = vmul.f32 %v3325, %v3325
    %v3582 = vmul.f32 %v3326, %v3326
    %v3583 = vmul.f32 %v3327, %v3327
    %v3584 = vmul.f32 %v3328, %v3328
    %v3585 = vmul.f32 %v3329, %v3329
    %v3586 = vmul.f32 %v3330, %v3330
    %v3587 = vmul.f32 %v3331, %v3331
    %v3588 = vmul.f32 %v3332, %v3332
    %v3589 = vmul.f32 %v3333, %v3333
    %v3590 = vmul.f32 %v3334, %v3334
    %v3591 = vmul.f32 %v3335, %v3335
    %v3592 = vmul.f32 %v3336, %v3336
    %v3593 = vmul.f32 %v3337, %v3337
    %v3594 = vmul.f32 %v3338, %v3338
    %v3595 = vmul.f32 %v3339, %v3339
    %v3596 = vmul.f32 %v3340, %v3340
    %v3597 = vmul.f32 %v3341, %v3341
    %v3598 = vmul.f32 %v3342, %v3342
    %v3599 = vmul.f32 %v3343, %v3343
    %v3600 = vmul.f32 %v3344, %v3344
    %v3601 = vmul.f32 %v3345, %v3345
    %v3602 = vmul.f32 %v3346, %v3346
    %v3603 = vmul.f32 %v3347, %v3347
    %v3604 = vmul.f32 %v3348, %v3348
    %v3605 = vmul.f32 %v3349, %v3349
    %v3606 = vmul.f32 %v3350, %v3350
    %v3607 = vmul.f32 %v3351, %v3351
    %v3608 = vmul.f32 %v3352, %v3352
    %v3609 = vmul.f32 %v3353, %v3353
    %v3610 = vmul.f32 %v3354, %v3354
    %v3611 = vmul.f32 %v3355, %v3355
    %v3612 = vmul.f32 %v3356, %v3356
    %v3613 = vmul.f32 %v3357, %v3357
    %v3614 = vmul.f32 %v3358, %v3358
    %v3615 = vmul.f32 %v3359, %v3359
    %v3616 = vmul.f32 %v3360, %v3360
    %v3617 = vmul.f32 %v3361, %v3361
    %v3618 = vmul.f32 %v3362, %v3362
    %v3619 = vmul.f32 %v3363, %v3363
    %v3620 = vmul.f32 %v3364, %v3364
    %v3621 = vmul.f32 %v3365, %v3365
    %v3622 = vmul.f32 %v3366, %v3366
    %v3623 = vmul.f32 %v3367, %v3367
    %v3624 = vmul.f32 %v3368, %v3368
    %v3625 = vmul.f32 %v3369, %v3369
    %v3626 = vmul.f32 %v3370, %v3370
    %v3627 = vmul.f32 %v3371, %v3371
    %v3628 = vmul.f32 %v3372, %v3372
    %v3629 = vmul.f32 %v3373, %v3373
    %v3630 = vmul.f32 %v3374, %v3374
    %v3631 = vmul.f32 %v3375, %v3375
    %v3632 = vmul.f32 %v3376, %v3376
    %v3633 = vmul.f32 %v3377, %v3377
    %v3634 = vmul.f32 %v3378, %v3378
    %v3635 = vmul.f32 %v3379, %v3379
    %v3636 = vmul.f32 %v3380, %v3380
    %v3637 = vmul.f32 %v3381, %v3381
    %v3638 = vmul.f32 %v3382, %v3382
    %v3639 = vmul.f32 %v3383, %v3383
    %v3640 = vmul.f32 %v3384, %v3384
    %v3641 = vmul.f32 %v3385, %v3385
    %v3642 = vmul.f32 %v3386, %v3386
    %v3643 = vmul.f32 %v3387, %v3387
    %v3644 = vmul.f32 %v3388, %v3388
    %v3645 = vmul.f32 %v3389, %v3389
    %v3646 = vmul.f32 %v3390, %v3390
    %v3647 = vmul.f32 %v3391, %v3391
    %v3648 = vmul.f32 %v3392, %v3392
    %v3649 = vmul.f32 %v3393, %v3393
    %v3650 = vmul.f32 %v3394, %v3394
    %v3651 = vmul.f32 %v3395, %v3395
    %v3652 = vmul.f32 %v3396, %v3396
    %v3653 = vmul.f32 %v3397, %v3397
    %v3654 = vmul.f32 %v3398, %v3398
    %v3655 = vmul.f32 %v3399, %v3399
    %v3656 = vmul.f32 %v3400, %v3400
    %v3657 = vmul.f32 %v3401, %v3401
    %v3658 = vmul.f32 %v3402, %v3402
    %v3659 = vmul.f32 %v3403, %v3403
    %v3660 = vmul.f32 %v3404, %v3404
    %v3661 = vmul.f32 %v3405, %v3405
    %v3662 = vmul.f32 %v3406, %v3406
    %v3663 = vmul.f32 %v3407, %v3407
    %v3664 = vmul.f32 %v3408, %v3408
    %v3665 = vmul.f32 %v3409, %v3409
    %v3666 = vmul.f32 %v3410, %v3410
    %v3667 = vmul.f32 %v3411, %v3411
    %v3668 = vmul.f32 %v3412, %v3412
    %v3669 = vmul.f32 %v3413, %v3413
    %v3670 = vmul.f32 %v3414, %v3414
    %v3671 = vmul.f32 %v3415, %v3415
    %v3672 = vmul.f32 %v3416, %v3416
    %v3673 = vmul.f32 %v3417, %v3417
    %v3674 = vmul.f32 %v3418, %v3418
    %v3675 = vmul.f32 %v3419, %v3419
    %v3676 = vmul.f32 %v3420, %v3420
    %v3677 = vmul.f32 %v3421, %v3421
    %v3678 = vmul.f32 %v3422, %v3422
    %v3679 = vmul.f32 %v3423, %v3423
    %v3680 = vmul.f32 %v3424, %v3424
    %v3681 = vmul.f32 %v3425, %v3425
    %v3682 = vmul.f32 %v3426, %v3426
    %v3683 = vmul.f32 %v3427, %v3427
    %v3684 = vmul.f32 %v3428, %v3428
    %v3685 = vmul.f32 %v3429, %v3429
    %v3686 = vmul.f32 %v3430, %v3430
    %v3687 = vmul.f32 %v3431, %v3431
    %v3688 = vmul.f32 %v3432, %v3432
    %v3689 = vmul.f32 %v3433, %v3433
    %v3690 = vmul.f32 %v3434, %v3434
    %v3691 = vmul.f32 %v3435, %v3435
    %v3692 = vmul.f32 %v3436, %v3436
    %v3693 = vmul.f32 %v3437, %v3437
    %v3694 = vmul.f32 %v3438, %v3438
    %v3695 = vmul.f32 %v3439, %v3439
    %v3696 = vmul.f32 %v3440, %v3440
    %v3697 = vmul.f32 %v3441, %v3441
    %v3698 = vmul.f32 %v3442, %v3442
    %v3699 = vmul.f32 %v3443, %v3443
    %v3700 = vmul.f32 %v3444, %v3444
    %v3701 = vmul.f32 %v3445, %v3445
    %v3702 = vmul.f32 %v3446, %v3446
    %v3703 = vmul.f32 %v3447, %v3447
    %v3704 = vmul.f32 %v3448, %v3448
    %v3705 = vmul.f32 %v3449, %v3449
    %v3706 = vmul.f32 %v3450, %v3450
    %v3707 = vmul.f32 %v3451, %v3451
    %v3708 = vmul.f32 %v3452, %v3452
    %v3709 = vmul.f32 %v3453, %v3453
    %v3710 = vmul.f32 %v3454, %v3454
    %v3711 = vmul.f32 %v3455, %v3455
    %v3712 = vmul.f32 %v3456, %v3456
    %v3713 = vmul.f32 %v3457, %v3457
    %v3714 = vmul.f32 %v3458, %v3458
    %v3715 = vmul.f32 %v3459, %v3459
    %v3716 = vmul.f32 %v3460, %v3460
    %v3717 = vmul.f32 %v3461, %v3461
    %v3718 = vmul.f32 %v3462, %v3462
    %v3719 = vmul.f32 %v3463, %v3463
    %v3720 = vmul.f32 %v3464, %v3464
    %v3721 = vmul.f32 %v3465, %v3465
    %v3722 = vmul.f32 %v3466, %v3466
    %v3723 = vmul.f32 %v3467, %v3467
    %v3724 = vmul.f32 %v3468, %v3468
    %v3725 = vmul.f32 %v3469, %v3469
    %v3726 = vmul.f32 %v3470, %v3470
    %v3727 = vmul.f32 %v3471, %v3471
    %v3728 = vmul.f32 %v3472, %v3472
    %v3729 = vmul.f32 %v3473, %v3473
    %v3730 = vmul.f32 %v3474, %v3474
    %v3731 = vmul.f32 %v3475, %v3475
    %v3732 = vmul.f32 %v3476, %v3476
    %v3733 = vmul.f32 %v3477, %v3477
    %v3734 = vmul.f32 %v3478, %v3478
    %v3735 = vmul.f32 %v3479, %v3479
    %v3736 = vmul.f32 %v3480, %v3480
    %v3737 = vmul.f32 %v3481, %v3481
    %v3738 = vmul.f32 %v3482, %v3482
    %v3739 = vmul.f32 %v3483, %v3483
    %v3740 = vmul.f32 %v3484, %v3484
    %v3741 = vmul.f32 %v3485, %v3485
    %v3742 = vmul.f32 %v3486, %v3486
    %v3743 = vmul.f32 %v3487, %v3487
    %v3744 = vmul.f32 %v3488, %v3488
    %v3745 = vmul.f32 %v3489, %v3489
    %v3746 = vmul.f32 %v3490, %v3490
    %v3747 = vmul.f32 %v3491, %v3491
    %v3748 = vmul.f32 %v3492, %v3492
    %v3749 = vmul.f32 %v3493, %v3493
    %v3750 = vmul.f32 %v3494, %v3494
    %v3751 = vmul.f32 %v3495, %v3495
    %v3752 = vmul.f32 %v3496, %v3496
    %v3753 = vmul.f32 %v3497, %v3497
    %v3754 = vmul.f32 %v3498, %v3498
    %v3755 = vmul.f32 %v3499, %v3499
    %v3756 = vmul.f32 %v3500, %v3500
    %v3757 = vmul.f32 %v3501, %v3501
    %v3758 = vmul.f32 %v3502, %v3502
    %v3759 = vmul.f32 %v3503, %v3503
    %v3760 = vmul.f32 %v3504, %v3504
    %v3761 = vmul.f32 %v3505, %v3505
    %v3762 = vmul.f32 %v3506, %v3506
    %v3763 = vmul.f32 %v3507, %v3507
    %v3764 = vmul.f32 %v3508, %v3508
    %v3765 = vmul.f32 %v3509, %v3509
    %v3766 = vmul.f32 %v3510, %v3510
    %v3767 = vmul.f32 %v3511, %v3511
    %v3768 = vmul.f32 %v3512, %v3512
    %v3769 = vmul.f32 %v3513, %v3513
    %v3770 = vmul.f32 %v3514, %v3514
    %v3771 = vmul.f32 %v3515, %v3515
    %v3772 = vmul.f32 %v3516, %v3516
    %v3773 = vmul.f32 %v3517, %v3517
    %v3774 = vmul.f32 %v3518, %v3518
    %v3775 = vmul.f32 %v3519, %v3519
    %v3776 = vmul.f32 %v3520, %v3520
    %v3777 = vmul.f32 %v3521, %v3521
    %v3778 = vmul.f32 %v3522, %v3522
    %v3779 = vmul.f32 %v3523, %v3523
    %v3780 = vmul.f32 %v3524, %v3524
    %v3781 = vmul.f32 %v3525, %v3525
    %v3782 = vmul.f32 %v3526, %v3526
    %v3783 = vmul.f32 %v3527, %v3527
    %v3784 = vmul.f32 %v3528, %v3528
    %v3785 = vmul.f32 %v3529, %v3529
    %v3786 = vmul.f32 %v3530, %v3530
    %v3787 = vmul.f32 %v3531, %v3531
    %v3788 = vmul.f32 %v3532, %v3532
    %v3789 = vmul.f32 %v3533, %v3533
    %v3790 = vmul.f32 %v3534, %v3534
    %v3791 = vmul.f32 %v3535, %v3535
    %v3792 = vmul.f32 %v3536, %v3536
    %v3793 = vmul.f32 %v3537, %v3537
    %v3794 = vmul.f32 %v3538, %v3538
    %v3795 = vmul.f32 %v3539, %v3539
    %v3796 = vmul.f32 %v3540, %v3540
    %v3797 = vmul.f32 %v3541, %v3541
    %v3798 = vmul.f32 %v3542, %v3542
    %v3799 = vadd.f32 %v3543, %v3671
    %v3800 = vadd.f32 %v3544, %v3672
    %v3801 = vadd.f32 %v3545, %v3673
    %v3802 = vadd.f32 %v3546, %v3674
    %v3803 = vadd.f32 %v3547, %v3675
    %v3804 = vadd.f32 %v3548, %v3676
    %v3805 = vadd.f32 %v3549, %v3677
    %v3806 = vadd.f32 %v3550, %v3678
    %v3807 = vadd.f32 %v3551, %v3679
    %v3808 = vadd.f32 %v3552, %v3680
    %v3809 = vadd.f32 %v3553, %v3681
    %v3810 = vadd.f32 %v3554, %v3682
    %v3811 = vadd.f32 %v3555, %v3683
    %v3812 = vadd.f32 %v3556, %v3684
    %v3813 = vadd.f32 %v3557, %v3685
    %v3814 = vadd.f32 %v3558, %v3686
    %v3815 = vadd.f32 %v3559, %v3687
    %v3816 = vadd.f32 %v3560, %v3688
    %v3817 = vadd.f32 %v3561, %v3689
    %v3818 = vadd.f32 %v3562, %v3690
    %v3819 = vadd.f32 %v3563, %v3691
    %v3820 = vadd.f32 %v3564, %v3692
    %v3821 = vadd.f32 %v3565, %v3693
    %v3822 = vadd.f32 %v3566, %v3694
    %v3823 = vadd.f32 %v3567, %v3695
    %v3824 = vadd.f32 %v3568, %v3696
    %v3825 = vadd.f32 %v3569, %v3697
    %v3826 = vadd.f32 %v3570, %v3698
    %v3827 = vadd.f32 %v3571, %v3699
    %v3828 = vadd.f32 %v3572, %v3700
    %v3829 = vadd.f32 %v3573, %v3701
    %v3830 = vadd.f32 %v3574, %v3702
    %v3831 = vadd.f32 %v3575, %v3703
    %v3832 = vadd.f32 %v3576, %v3704
    %v3833 = vadd.f32 %v3577, %v3705
    %v3834 = vadd.f32 %v3578, %v3706
    %v3835 = vadd.f32 %v3579, %v3707
    %v3836 = vadd.f32 %v3580, %v3708
    %v3837 = vadd.f32 %v3581, %v3709
    %v3838 = vadd.f32 %v3582, %v3710
    %v3839 = vadd.f32 %v3583, %v3711
    %v3840 = vadd.f32 %v3584, %v3712
    %v3841 = vadd.f32 %v3585, %v3713
    %v3842 = vadd.f32 %v3586, %v3714
    %v3843 = vadd.f32 %v3587, %v3715
    %v3844 = vadd.f32 %v3588, %v3716
    %v3845 = vadd.f32 %v3589, %v3717
    %v3846 = vadd.f32 %v3590, %v3718
    %v3847 = vadd.f32 %v3591, %v3719
    %v3848 = vadd.f32 %v3592, %v3720
    %v3849 = vadd.f32 %v3593, %v3721
    %v3850 = vadd.f32 %v3594, %v3722
    %v3851 = vadd.f32 %v3595, %v3723
    %v3852 = vadd.f32 %v3596, %v3724
    %v3853 = vadd.f32 %v3597, %v3725
    %v3854 = vadd.f32 %v3598, %v3726
    %v3855 = vadd.f32 %v3599, %v3727
    %v3856 = vadd.f32 %v3600, %v3728
    %v3857 = vadd.f32 %v3601, %v3729
    %v3858 = vadd.f32 %v3602, %v3730
    %v3859 = vadd.f32 %v3603, %v3731
    %v3860 = vadd.f32 %v3604, %v3732
    %v3861 = vadd.f32 %v3605, %v3733
    %v3862 = vadd.f32 %v3606, %v3734
    %v3863 = vadd.f32 %v3607, %v3735
    %v3864 = vadd.f32 %v3608, %v3736
    %v3865 = vadd.f32 %v3609, %v3737
    %v3866 = vadd.f32 %v3610, %v3738
    %v3867 = vadd.f32 %v3611, %v3739
    %v3868 = vadd.f32 %v3612, %v3740
    %v3869 = vadd.f32 %v3613, %v3741
    %v3870 = vadd.f32 %v3614, %v3742
    %v3871 = vadd.f32 %v3615, %v3743
    %v3872 = vadd.f32 %v3616, %v3744
    %v3873 = vadd.f32 %v3617, %v3745
    %v3874 = vadd.f32 %v3618, %v3746
    %v3875 = vadd.f32 %v3619, %v3747
    %v3876 = vadd.f32 %v3620, %v3748
    %v3877 = vadd.f32 %v3621, %v3749
    %v3878 = vadd.f32 %v3622, %v3750
    %v3879 = vadd.f32 %v3623, %v3751
    %v3880 = vadd.f32 %v3624, %v3752
    %v3881 = vadd.f32 %v3625, %v3753
    %v3882 = vadd.f32 %v3626, %v3754
    %v3883 = vadd.f32 %v3627, %v3755
    %v3884 = vadd.f32 %v3628, %v3756
    %v3885 = vadd.f32 %v3629, %v3757
    %v3886 = vadd.f32 %v3630, %v3758
    %v3887 = vadd.f32 %v3631, %v3759
    %v3888 = vadd.f32 %v3632, %v3760
    %v3889 = vadd.f32 %v3633, %v3761
    %v3890 = vadd.f32 %v3634, %v3762
    %v3891 = vadd.f32 %v3635, %v3763
    %v3892 = vadd.f32 %v3636, %v3764
    %v3893 = vadd.f32 %v3637, %v3765
    %v3894 = vadd.f32 %v3638, %v3766
    %v3895 = vadd.f32 %v3639, %v3767
    %v3896 = vadd.f32 %v3640, %v3768
    %v3897 = vadd.f32 %v3641, %v3769
    %v3898 = vadd.f32 %v3642, %v3770
    %v3899 = vadd.f32 %v3643, %v3771
    %v3900 = vadd.f32 %v3644, %v3772
    %v3901 = vadd.f32 %v3645, %v3773
    %v3902 = vadd.f32 %v3646, %v3774
    %v3903 = vadd.f32 %v3647, %v3775
    %v3904 = vadd.f32 %v3648, %v3776
    %v3905 = vadd.f32 %v3649, %v3777
    %v3906 = vadd.f32 %v3650, %v3778
    %v3907 = vadd.f32 %v3651, %v3779
    %v3908 = vadd.f32 %v3652, %v3780
    %v3909 = vadd.f32 %v3653, %v3781
    %v3910 = vadd.f32 %v3654, %v3782
    %v3911 = vadd.f32 %v3655, %v3783
    %v3912 = vadd.f32 %v3656, %v3784
    %v3913 = vadd.f32 %v3657, %v3785
    %v3914 = vadd.f32 %v3658, %v3786
    %v3915 = vadd.f32 %v3659, %v3787
    %v3916 = vadd.f32 %v3660, %v3788
    %v3917 = vadd.f32 %v3661, %v3789
    %v3918 = vadd.f32 %v3662, %v3790
    %v3919 = vadd.f32 %v3663, %v3791
    %v3920 = vadd.f32 %v3664, %v3792
    %v3921 = vadd.f32 %v3665, %v3793
    %v3922 = vadd.f32 %v3666, %v3794
    %v3923 = vadd.f32 %v3667, %v3795
    %v3924 = vadd.f32 %v3668, %v3796
    %v3925 = vadd.f32 %v3669, %v3797
    %v3926 = vadd.f32 %v3670, %v3798
    %v3927 = vrsqrt.pop %v3799
    %v3928 = vmul.f32 %v3799, %v3927
    %vm3929 = vcmp.eq.f32.partialorder %v3799, inf
    %v3930 = vsel %vm3929, %v3799, %v3928
    %vm3931 = vcmp.eq.f32.partialorder %v3799, 0.0
    %v3932 = vand.u32 %v3799, 2147483648
    %v3933 = vsel %vm3931, %v3932, %v3930
    %v3934 = vrsqrt.pop %v3800
    %v3935 = vmul.f32 %v3800, %v3934
    %vm3936 = vcmp.eq.f32.partialorder %v3800, inf
    %v3937 = vsel %vm3936, %v3800, %v3935
    %vm3938 = vcmp.eq.f32.partialorder %v3800, 0.0
    %v3939 = vand.u32 %v3800, 2147483648
    %v3940 = vsel %vm3938, %v3939, %v3937
    %v3941 = vrsqrt.pop %v3801
    %v3942 = vmul.f32 %v3801, %v3941
    %vm3943 = vcmp.eq.f32.partialorder %v3801, inf
    %v3944 = vsel %vm3943, %v3801, %v3942
    %vm3945 = vcmp.eq.f32.partialorder %v3801, 0.0
    %v3946 = vand.u32 %v3801, 2147483648
    %v3947 = vsel %vm3945, %v3946, %v3944
    %v3948 = vrsqrt.pop %v3802
    %v3949 = vmul.f32 %v3802, %v3948
    %vm3950 = vcmp.eq.f32.partialorder %v3802, inf
    %v3951 = vsel %vm3950, %v3802, %v3949
    %vm3952 = vcmp.eq.f32.partialorder %v3802, 0.0
    %v3953 = vand.u32 %v3802, 2147483648
    %v3954 = vsel %vm3952, %v3953, %v3951
    %v3955 = vrsqrt.pop %v3803
    %v3956 = vmul.f32 %v3803, %v3955
    %vm3957 = vcmp.eq.f32.partialorder %v3803, inf
    %v3958 = vsel %vm3957, %v3803, %v3956
    %vm3959 = vcmp.eq.f32.partialorder %v3803, 0.0
    %v3960 = vand.u32 %v3803, 2147483648
    %v3961 = vsel %vm3959, %v3960, %v3958
    %v3962 = vrsqrt.pop %v3804
    %v3963 = vmul.f32 %v3804, %v3962
    %vm3964 = vcmp.eq.f32.partialorder %v3804, inf
    %v3965 = vsel %vm3964, %v3804, %v3963
    %vm3966 = vcmp.eq.f32.partialorder %v3804, 0.0
    %v3967 = vand.u32 %v3804, 2147483648
    %v3968 = vsel %vm3966, %v3967, %v3965
    %v3969 = vrsqrt.pop %v3805
    %v3970 = vmul.f32 %v3805, %v3969
    %vm3971 = vcmp.eq.f32.partialorder %v3805, inf
    %v3972 = vsel %vm3971, %v3805, %v3970
    %vm3973 = vcmp.eq.f32.partialorder %v3805, 0.0
    %v3974 = vand.u32 %v3805, 2147483648
    %v3975 = vsel %vm3973, %v3974, %v3972
    %v3976 = vrsqrt.pop %v3806
    %v3977 = vmul.f32 %v3806, %v3976
    %vm3978 = vcmp.eq.f32.partialorder %v3806, inf
    %v3979 = vsel %vm3978, %v3806, %v3977
    %vm3980 = vcmp.eq.f32.partialorder %v3806, 0.0
    %v3981 = vand.u32 %v3806, 2147483648
    %v3982 = vsel %vm3980, %v3981, %v3979
    %v3983 = vrsqrt.pop %v3807
    %v3984 = vmul.f32 %v3807, %v3983
    %vm3985 = vcmp.eq.f32.partialorder %v3807, inf
    %v3986 = vsel %vm3985, %v3807, %v3984
    %vm3987 = vcmp.eq.f32.partialorder %v3807, 0.0
    %v3988 = vand.u32 %v3807, 2147483648
    %v3989 = vsel %vm3987, %v3988, %v3986
    %v3990 = vrsqrt.pop %v3808
    %v3991 = vmul.f32 %v3808, %v3990
    %vm3992 = vcmp.eq.f32.partialorder %v3808, inf
    %v3993 = vsel %vm3992, %v3808, %v3991
    %vm3994 = vcmp.eq.f32.partialorder %v3808, 0.0
    %v3995 = vand.u32 %v3808, 2147483648
    %v3996 = vsel %vm3994, %v3995, %v3993
    %v3997 = vrsqrt.pop %v3809
    %v3998 = vmul.f32 %v3809, %v3997
    %vm3999 = vcmp.eq.f32.partialorder %v3809, inf
    %v4000 = vsel %vm3999, %v3809, %v3998
    %vm4001 = vcmp.eq.f32.partialorder %v3809, 0.0
    %v4002 = vand.u32 %v3809, 2147483648
    %v4003 = vsel %vm4001, %v4002, %v4000
    %v4004 = vrsqrt.pop %v3810
    %v4005 = vmul.f32 %v3810, %v4004
    %vm4006 = vcmp.eq.f32.partialorder %v3810, inf
    %v4007 = vsel %vm4006, %v3810, %v4005
    %vm4008 = vcmp.eq.f32.partialorder %v3810, 0.0
    %v4009 = vand.u32 %v3810, 2147483648
    %v4010 = vsel %vm4008, %v4009, %v4007
    %v4011 = vrsqrt.pop %v3811
    %v4012 = vmul.f32 %v3811, %v4011
    %vm4013 = vcmp.eq.f32.partialorder %v3811, inf
    %v4014 = vsel %vm4013, %v3811, %v4012
    %vm4015 = vcmp.eq.f32.partialorder %v3811, 0.0
    %v4016 = vand.u32 %v3811, 2147483648
    %v4017 = vsel %vm4015, %v4016, %v4014
    %v4018 = vrsqrt.pop %v3812
    %v4019 = vmul.f32 %v3812, %v4018
    %vm4020 = vcmp.eq.f32.partialorder %v3812, inf
    %v4021 = vsel %vm4020, %v3812, %v4019
    %vm4022 = vcmp.eq.f32.partialorder %v3812, 0.0
    %v4023 = vand.u32 %v3812, 2147483648
    %v4024 = vsel %vm4022, %v4023, %v4021
    %v4025 = vrsqrt.pop %v3813
    %v4026 = vmul.f32 %v3813, %v4025
    %vm4027 = vcmp.eq.f32.partialorder %v3813, inf
    %v4028 = vsel %vm4027, %v3813, %v4026
    %vm4029 = vcmp.eq.f32.partialorder %v3813, 0.0
    %v4030 = vand.u32 %v3813, 2147483648
    %v4031 = vsel %vm4029, %v4030, %v4028
    %v4032 = vrsqrt.pop %v3814
    %v4033 = vmul.f32 %v3814, %v4032
    %vm4034 = vcmp.eq.f32.partialorder %v3814, inf
    %v4035 = vsel %vm4034, %v3814, %v4033
    %vm4036 = vcmp.eq.f32.partialorder %v3814, 0.0
    %v4037 = vand.u32 %v3814, 2147483648
    %v4038 = vsel %vm4036, %v4037, %v4035
    %v4039 = vrsqrt.pop %v3815
    %v4040 = vmul.f32 %v3815, %v4039
    %vm4041 = vcmp.eq.f32.partialorder %v3815, inf
    %v4042 = vsel %vm4041, %v3815, %v4040
    %vm4043 = vcmp.eq.f32.partialorder %v3815, 0.0
    %v4044 = vand.u32 %v3815, 2147483648
    %v4045 = vsel %vm4043, %v4044, %v4042
    %v4046 = vrsqrt.pop %v3816
    %v4047 = vmul.f32 %v3816, %v4046
    %vm4048 = vcmp.eq.f32.partialorder %v3816, inf
    %v4049 = vsel %vm4048, %v3816, %v4047
    %vm4050 = vcmp.eq.f32.partialorder %v3816, 0.0
    %v4051 = vand.u32 %v3816, 2147483648
    %v4052 = vsel %vm4050, %v4051, %v4049
    %v4053 = vrsqrt.pop %v3817
    %v4054 = vmul.f32 %v3817, %v4053
    %vm4055 = vcmp.eq.f32.partialorder %v3817, inf
    %v4056 = vsel %vm4055, %v3817, %v4054
    %vm4057 = vcmp.eq.f32.partialorder %v3817, 0.0
    %v4058 = vand.u32 %v3817, 2147483648
    %v4059 = vsel %vm4057, %v4058, %v4056
    %v4060 = vrsqrt.pop %v3818
    %v4061 = vmul.f32 %v3818, %v4060
    %vm4062 = vcmp.eq.f32.partialorder %v3818, inf
    %v4063 = vsel %vm4062, %v3818, %v4061
    %vm4064 = vcmp.eq.f32.partialorder %v3818, 0.0
    %v4065 = vand.u32 %v3818, 2147483648
    %v4066 = vsel %vm4064, %v4065, %v4063
    %v4067 = vrsqrt.pop %v3819
    %v4068 = vmul.f32 %v3819, %v4067
    %vm4069 = vcmp.eq.f32.partialorder %v3819, inf
    %v4070 = vsel %vm4069, %v3819, %v4068
    %vm4071 = vcmp.eq.f32.partialorder %v3819, 0.0
    %v4072 = vand.u32 %v3819, 2147483648
    %v4073 = vsel %vm4071, %v4072, %v4070
    %v4074 = vrsqrt.pop %v3820
    %v4075 = vmul.f32 %v3820, %v4074
    %vm4076 = vcmp.eq.f32.partialorder %v3820, inf
    %v4077 = vsel %vm4076, %v3820, %v4075
    %vm4078 = vcmp.eq.f32.partialorder %v3820, 0.0
    %v4079 = vand.u32 %v3820, 2147483648
    %v4080 = vsel %vm4078, %v4079, %v4077
    %v4081 = vrsqrt.pop %v3821
    %v4082 = vmul.f32 %v3821, %v4081
    %vm4083 = vcmp.eq.f32.partialorder %v3821, inf
    %v4084 = vsel %vm4083, %v3821, %v4082
    %vm4085 = vcmp.eq.f32.partialorder %v3821, 0.0
    %v4086 = vand.u32 %v3821, 2147483648
    %v4087 = vsel %vm4085, %v4086, %v4084
    %v4088 = vrsqrt.pop %v3822
    %v4089 = vmul.f32 %v3822, %v4088
    %vm4090 = vcmp.eq.f32.partialorder %v3822, inf
    %v4091 = vsel %vm4090, %v3822, %v4089
    %vm4092 = vcmp.eq.f32.partialorder %v3822, 0.0
    %v4093 = vand.u32 %v3822, 2147483648
    %v4094 = vsel %vm4092, %v4093, %v4091
    %v4095 = vrsqrt.pop %v3823
    %v4096 = vmul.f32 %v3823, %v4095
    %vm4097 = vcmp.eq.f32.partialorder %v3823, inf
    %v4098 = vsel %vm4097, %v3823, %v4096
    %vm4099 = vcmp.eq.f32.partialorder %v3823, 0.0
    %v4100 = vand.u32 %v3823, 2147483648
    %v4101 = vsel %vm4099, %v4100, %v4098
    %v4102 = vrsqrt.pop %v3824
    %v4103 = vmul.f32 %v3824, %v4102
    %vm4104 = vcmp.eq.f32.partialorder %v3824, inf
    %v4105 = vsel %vm4104, %v3824, %v4103
    %vm4106 = vcmp.eq.f32.partialorder %v3824, 0.0
    %v4107 = vand.u32 %v3824, 2147483648
    %v4108 = vsel %vm4106, %v4107, %v4105
    %v4109 = vrsqrt.pop %v3825
    %v4110 = vmul.f32 %v3825, %v4109
    %vm4111 = vcmp.eq.f32.partialorder %v3825, inf
    %v4112 = vsel %vm4111, %v3825, %v4110
    %vm4113 = vcmp.eq.f32.partialorder %v3825, 0.0
    %v4114 = vand.u32 %v3825, 2147483648
    %v4115 = vsel %vm4113, %v4114, %v4112
    %v4116 = vrsqrt.pop %v3826
    %v4117 = vmul.f32 %v3826, %v4116
    %vm4118 = vcmp.eq.f32.partialorder %v3826, inf
    %v4119 = vsel %vm4118, %v3826, %v4117
    %vm4120 = vcmp.eq.f32.partialorder %v3826, 0.0
    %v4121 = vand.u32 %v3826, 2147483648
    %v4122 = vsel %vm4120, %v4121, %v4119
    %v4123 = vrsqrt.pop %v3827
    %v4124 = vmul.f32 %v3827, %v4123
    %vm4125 = vcmp.eq.f32.partialorder %v3827, inf
    %v4126 = vsel %vm4125, %v3827, %v4124
    %vm4127 = vcmp.eq.f32.partialorder %v3827, 0.0
    %v4128 = vand.u32 %v3827, 2147483648
    %v4129 = vsel %vm4127, %v4128, %v4126
    %v4130 = vrsqrt.pop %v3828
    %v4131 = vmul.f32 %v3828, %v4130
    %vm4132 = vcmp.eq.f32.partialorder %v3828, inf
    %v4133 = vsel %vm4132, %v3828, %v4131
    %vm4134 = vcmp.eq.f32.partialorder %v3828, 0.0
    %v4135 = vand.u32 %v3828, 2147483648
    %v4136 = vsel %vm4134, %v4135, %v4133
    %v4137 = vrsqrt.pop %v3829
    %v4138 = vmul.f32 %v3829, %v4137
    %vm4139 = vcmp.eq.f32.partialorder %v3829, inf
    %v4140 = vsel %vm4139, %v3829, %v4138
    %vm4141 = vcmp.eq.f32.partialorder %v3829, 0.0
    %v4142 = vand.u32 %v3829, 2147483648
    %v4143 = vsel %vm4141, %v4142, %v4140
    %v4144 = vrsqrt.pop %v3830
    %v4145 = vmul.f32 %v3830, %v4144
    %vm4146 = vcmp.eq.f32.partialorder %v3830, inf
    %v4147 = vsel %vm4146, %v3830, %v4145
    %vm4148 = vcmp.eq.f32.partialorder %v3830, 0.0
    %v4149 = vand.u32 %v3830, 2147483648
    %v4150 = vsel %vm4148, %v4149, %v4147
    %v4151 = vrsqrt.pop %v3831
    %v4152 = vmul.f32 %v3831, %v4151
    %vm4153 = vcmp.eq.f32.partialorder %v3831, inf
    %v4154 = vsel %vm4153, %v3831, %v4152
    %vm4155 = vcmp.eq.f32.partialorder %v3831, 0.0
    %v4156 = vand.u32 %v3831, 2147483648
    %v4157 = vsel %vm4155, %v4156, %v4154
    %v4158 = vrsqrt.pop %v3832
    %v4159 = vmul.f32 %v3832, %v4158
    %vm4160 = vcmp.eq.f32.partialorder %v3832, inf
    %v4161 = vsel %vm4160, %v3832, %v4159
    %vm4162 = vcmp.eq.f32.partialorder %v3832, 0.0
    %v4163 = vand.u32 %v3832, 2147483648
    %v4164 = vsel %vm4162, %v4163, %v4161
    %v4165 = vrsqrt.pop %v3833
    %v4166 = vmul.f32 %v3833, %v4165
    %vm4167 = vcmp.eq.f32.partialorder %v3833, inf
    %v4168 = vsel %vm4167, %v3833, %v4166
    %vm4169 = vcmp.eq.f32.partialorder %v3833, 0.0
    %v4170 = vand.u32 %v3833, 2147483648
    %v4171 = vsel %vm4169, %v4170, %v4168
    %v4172 = vrsqrt.pop %v3834
    %v4173 = vmul.f32 %v3834, %v4172
    %vm4174 = vcmp.eq.f32.partialorder %v3834, inf
    %v4175 = vsel %vm4174, %v3834, %v4173
    %vm4176 = vcmp.eq.f32.partialorder %v3834, 0.0
    %v4177 = vand.u32 %v3834, 2147483648
    %v4178 = vsel %vm4176, %v4177, %v4175
    %v4179 = vrsqrt.pop %v3835
    %v4180 = vmul.f32 %v3835, %v4179
    %vm4181 = vcmp.eq.f32.partialorder %v3835, inf
    %v4182 = vsel %vm4181, %v3835, %v4180
    %vm4183 = vcmp.eq.f32.partialorder %v3835, 0.0
    %v4184 = vand.u32 %v3835, 2147483648
    %v4185 = vsel %vm4183, %v4184, %v4182
    %v4186 = vrsqrt.pop %v3836
    %v4187 = vmul.f32 %v3836, %v4186
    %vm4188 = vcmp.eq.f32.partialorder %v3836, inf
    %v4189 = vsel %vm4188, %v3836, %v4187
    %vm4190 = vcmp.eq.f32.partialorder %v3836, 0.0
    %v4191 = vand.u32 %v3836, 2147483648
    %v4192 = vsel %vm4190, %v4191, %v4189
    %v4193 = vrsqrt.pop %v3837
    %v4194 = vmul.f32 %v3837, %v4193
    %vm4195 = vcmp.eq.f32.partialorder %v3837, inf
    %v4196 = vsel %vm4195, %v3837, %v4194
    %vm4197 = vcmp.eq.f32.partialorder %v3837, 0.0
    %v4198 = vand.u32 %v3837, 2147483648
    %v4199 = vsel %vm4197, %v4198, %v4196
    %v4200 = vrsqrt.pop %v3838
    %v4201 = vmul.f32 %v3838, %v4200
    %vm4202 = vcmp.eq.f32.partialorder %v3838, inf
    %v4203 = vsel %vm4202, %v3838, %v4201
    %vm4204 = vcmp.eq.f32.partialorder %v3838, 0.0
    %v4205 = vand.u32 %v3838, 2147483648
    %v4206 = vsel %vm4204, %v4205, %v4203
    %v4207 = vrsqrt.pop %v3839
    %v4208 = vmul.f32 %v3839, %v4207
    %vm4209 = vcmp.eq.f32.partialorder %v3839, inf
    %v4210 = vsel %vm4209, %v3839, %v4208
    %vm4211 = vcmp.eq.f32.partialorder %v3839, 0.0
    %v4212 = vand.u32 %v3839, 2147483648
    %v4213 = vsel %vm4211, %v4212, %v4210
    %v4214 = vrsqrt.pop %v3840
    %v4215 = vmul.f32 %v3840, %v4214
    %vm4216 = vcmp.eq.f32.partialorder %v3840, inf
    %v4217 = vsel %vm4216, %v3840, %v4215
    %vm4218 = vcmp.eq.f32.partialorder %v3840, 0.0
    %v4219 = vand.u32 %v3840, 2147483648
    %v4220 = vsel %vm4218, %v4219, %v4217
    %v4221 = vrsqrt.pop %v3841
    %v4222 = vmul.f32 %v3841, %v4221
    %vm4223 = vcmp.eq.f32.partialorder %v3841, inf
    %v4224 = vsel %vm4223, %v3841, %v4222
    %vm4225 = vcmp.eq.f32.partialorder %v3841, 0.0
    %v4226 = vand.u32 %v3841, 2147483648
    %v4227 = vsel %vm4225, %v4226, %v4224
    %v4228 = vrsqrt.pop %v3842
    %v4229 = vmul.f32 %v3842, %v4228
    %vm4230 = vcmp.eq.f32.partialorder %v3842, inf
    %v4231 = vsel %vm4230, %v3842, %v4229
    %vm4232 = vcmp.eq.f32.partialorder %v3842, 0.0
    %v4233 = vand.u32 %v3842, 2147483648
    %v4234 = vsel %vm4232, %v4233, %v4231
    %v4235 = vrsqrt.pop %v3843
    %v4236 = vmul.f32 %v3843, %v4235
    %vm4237 = vcmp.eq.f32.partialorder %v3843, inf
    %v4238 = vsel %vm4237, %v3843, %v4236
    %vm4239 = vcmp.eq.f32.partialorder %v3843, 0.0
    %v4240 = vand.u32 %v3843, 2147483648
    %v4241 = vsel %vm4239, %v4240, %v4238
    %v4242 = vrsqrt.pop %v3844
    %v4243 = vmul.f32 %v3844, %v4242
    %vm4244 = vcmp.eq.f32.partialorder %v3844, inf
    %v4245 = vsel %vm4244, %v3844, %v4243
    %vm4246 = vcmp.eq.f32.partialorder %v3844, 0.0
    %v4247 = vand.u32 %v3844, 2147483648
    %v4248 = vsel %vm4246, %v4247, %v4245
    %v4249 = vrsqrt.pop %v3845
    %v4250 = vmul.f32 %v3845, %v4249
    %vm4251 = vcmp.eq.f32.partialorder %v3845, inf
    %v4252 = vsel %vm4251, %v3845, %v4250
    %vm4253 = vcmp.eq.f32.partialorder %v3845, 0.0
    %v4254 = vand.u32 %v3845, 2147483648
    %v4255 = vsel %vm4253, %v4254, %v4252
    %v4256 = vrsqrt.pop %v3846
    %v4257 = vmul.f32 %v3846, %v4256
    %vm4258 = vcmp.eq.f32.partialorder %v3846, inf
    %v4259 = vsel %vm4258, %v3846, %v4257
    %vm4260 = vcmp.eq.f32.partialorder %v3846, 0.0
    %v4261 = vand.u32 %v3846, 2147483648
    %v4262 = vsel %vm4260, %v4261, %v4259
    %v4263 = vrsqrt.pop %v3847
    %v4264 = vmul.f32 %v3847, %v4263
    %vm4265 = vcmp.eq.f32.partialorder %v3847, inf
    %v4266 = vsel %vm4265, %v3847, %v4264
    %vm4267 = vcmp.eq.f32.partialorder %v3847, 0.0
    %v4268 = vand.u32 %v3847, 2147483648
    %v4269 = vsel %vm4267, %v4268, %v4266
    %v4270 = vrsqrt.pop %v3848
    %v4271 = vmul.f32 %v3848, %v4270
    %vm4272 = vcmp.eq.f32.partialorder %v3848, inf
    %v4273 = vsel %vm4272, %v3848, %v4271
    %vm4274 = vcmp.eq.f32.partialorder %v3848, 0.0
    %v4275 = vand.u32 %v3848, 2147483648
    %v4276 = vsel %vm4274, %v4275, %v4273
    %v4277 = vrsqrt.pop %v3849
    %v4278 = vmul.f32 %v3849, %v4277
    %vm4279 = vcmp.eq.f32.partialorder %v3849, inf
    %v4280 = vsel %vm4279, %v3849, %v4278
    %vm4281 = vcmp.eq.f32.partialorder %v3849, 0.0
    %v4282 = vand.u32 %v3849, 2147483648
    %v4283 = vsel %vm4281, %v4282, %v4280
    %v4284 = vrsqrt.pop %v3850
    %v4285 = vmul.f32 %v3850, %v4284
    %vm4286 = vcmp.eq.f32.partialorder %v3850, inf
    %v4287 = vsel %vm4286, %v3850, %v4285
    %vm4288 = vcmp.eq.f32.partialorder %v3850, 0.0
    %v4289 = vand.u32 %v3850, 2147483648
    %v4290 = vsel %vm4288, %v4289, %v4287
    %v4291 = vrsqrt.pop %v3851
    %v4292 = vmul.f32 %v3851, %v4291
    %vm4293 = vcmp.eq.f32.partialorder %v3851, inf
    %v4294 = vsel %vm4293, %v3851, %v4292
    %vm4295 = vcmp.eq.f32.partialorder %v3851, 0.0
    %v4296 = vand.u32 %v3851, 2147483648
    %v4297 = vsel %vm4295, %v4296, %v4294
    %v4298 = vrsqrt.pop %v3852
    %v4299 = vmul.f32 %v3852, %v4298
    %vm4300 = vcmp.eq.f32.partialorder %v3852, inf
    %v4301 = vsel %vm4300, %v3852, %v4299
    %vm4302 = vcmp.eq.f32.partialorder %v3852, 0.0
    %v4303 = vand.u32 %v3852, 2147483648
    %v4304 = vsel %vm4302, %v4303, %v4301
    %v4305 = vrsqrt.pop %v3853
    %v4306 = vmul.f32 %v3853, %v4305
    %vm4307 = vcmp.eq.f32.partialorder %v3853, inf
    %v4308 = vsel %vm4307, %v3853, %v4306
    %vm4309 = vcmp.eq.f32.partialorder %v3853, 0.0
    %v4310 = vand.u32 %v3853, 2147483648
    %v4311 = vsel %vm4309, %v4310, %v4308
    %v4312 = vrsqrt.pop %v3854
    %v4313 = vmul.f32 %v3854, %v4312
    %vm4314 = vcmp.eq.f32.partialorder %v3854, inf
    %v4315 = vsel %vm4314, %v3854, %v4313
    %vm4316 = vcmp.eq.f32.partialorder %v3854, 0.0
    %v4317 = vand.u32 %v3854, 2147483648
    %v4318 = vsel %vm4316, %v4317, %v4315
    %v4319 = vrsqrt.pop %v3855
    %v4320 = vmul.f32 %v3855, %v4319
    %vm4321 = vcmp.eq.f32.partialorder %v3855, inf
    %v4322 = vsel %vm4321, %v3855, %v4320
    %vm4323 = vcmp.eq.f32.partialorder %v3855, 0.0
    %v4324 = vand.u32 %v3855, 2147483648
    %v4325 = vsel %vm4323, %v4324, %v4322
    %v4326 = vrsqrt.pop %v3856
    %v4327 = vmul.f32 %v3856, %v4326
    %vm4328 = vcmp.eq.f32.partialorder %v3856, inf
    %v4329 = vsel %vm4328, %v3856, %v4327
    %vm4330 = vcmp.eq.f32.partialorder %v3856, 0.0
    %v4331 = vand.u32 %v3856, 2147483648
    %v4332 = vsel %vm4330, %v4331, %v4329
    %v4333 = vrsqrt.pop %v3857
    %v4334 = vmul.f32 %v3857, %v4333
    %vm4335 = vcmp.eq.f32.partialorder %v3857, inf
    %v4336 = vsel %vm4335, %v3857, %v4334
    %vm4337 = vcmp.eq.f32.partialorder %v3857, 0.0
    %v4338 = vand.u32 %v3857, 2147483648
    %v4339 = vsel %vm4337, %v4338, %v4336
    %v4340 = vrsqrt.pop %v3858
    %v4341 = vmul.f32 %v3858, %v4340
    %vm4342 = vcmp.eq.f32.partialorder %v3858, inf
    %v4343 = vsel %vm4342, %v3858, %v4341
    %vm4344 = vcmp.eq.f32.partialorder %v3858, 0.0
    %v4345 = vand.u32 %v3858, 2147483648
    %v4346 = vsel %vm4344, %v4345, %v4343
    %v4347 = vrsqrt.pop %v3859
    %v4348 = vmul.f32 %v3859, %v4347
    %vm4349 = vcmp.eq.f32.partialorder %v3859, inf
    %v4350 = vsel %vm4349, %v3859, %v4348
    %vm4351 = vcmp.eq.f32.partialorder %v3859, 0.0
    %v4352 = vand.u32 %v3859, 2147483648
    %v4353 = vsel %vm4351, %v4352, %v4350
    %v4354 = vrsqrt.pop %v3860
    %v4355 = vmul.f32 %v3860, %v4354
    %vm4356 = vcmp.eq.f32.partialorder %v3860, inf
    %v4357 = vsel %vm4356, %v3860, %v4355
    %vm4358 = vcmp.eq.f32.partialorder %v3860, 0.0
    %v4359 = vand.u32 %v3860, 2147483648
    %v4360 = vsel %vm4358, %v4359, %v4357
    %v4361 = vrsqrt.pop %v3861
    %v4362 = vmul.f32 %v3861, %v4361
    %vm4363 = vcmp.eq.f32.partialorder %v3861, inf
    %v4364 = vsel %vm4363, %v3861, %v4362
    %vm4365 = vcmp.eq.f32.partialorder %v3861, 0.0
    %v4366 = vand.u32 %v3861, 2147483648
    %v4367 = vsel %vm4365, %v4366, %v4364
    %v4368 = vrsqrt.pop %v3862
    %v4369 = vmul.f32 %v3862, %v4368
    %vm4370 = vcmp.eq.f32.partialorder %v3862, inf
    %v4371 = vsel %vm4370, %v3862, %v4369
    %vm4372 = vcmp.eq.f32.partialorder %v3862, 0.0
    %v4373 = vand.u32 %v3862, 2147483648
    %v4374 = vsel %vm4372, %v4373, %v4371
    %v4375 = vrsqrt.pop %v3863
    %v4376 = vmul.f32 %v3863, %v4375
    %vm4377 = vcmp.eq.f32.partialorder %v3863, inf
    %v4378 = vsel %vm4377, %v3863, %v4376
    %vm4379 = vcmp.eq.f32.partialorder %v3863, 0.0
    %v4380 = vand.u32 %v3863, 2147483648
    %v4381 = vsel %vm4379, %v4380, %v4378
    %v4382 = vrsqrt.pop %v3864
    %v4383 = vmul.f32 %v3864, %v4382
    %vm4384 = vcmp.eq.f32.partialorder %v3864, inf
    %v4385 = vsel %vm4384, %v3864, %v4383
    %vm4386 = vcmp.eq.f32.partialorder %v3864, 0.0
    %v4387 = vand.u32 %v3864, 2147483648
    %v4388 = vsel %vm4386, %v4387, %v4385
    %v4389 = vrsqrt.pop %v3865
    %v4390 = vmul.f32 %v3865, %v4389
    %vm4391 = vcmp.eq.f32.partialorder %v3865, inf
    %v4392 = vsel %vm4391, %v3865, %v4390
    %vm4393 = vcmp.eq.f32.partialorder %v3865, 0.0
    %v4394 = vand.u32 %v3865, 2147483648
    %v4395 = vsel %vm4393, %v4394, %v4392
    %v4396 = vrsqrt.pop %v3866
    %v4397 = vmul.f32 %v3866, %v4396
    %vm4398 = vcmp.eq.f32.partialorder %v3866, inf
    %v4399 = vsel %vm4398, %v3866, %v4397
    %vm4400 = vcmp.eq.f32.partialorder %v3866, 0.0
    %v4401 = vand.u32 %v3866, 2147483648
    %v4402 = vsel %vm4400, %v4401, %v4399
    %v4403 = vrsqrt.pop %v3867
    %v4404 = vmul.f32 %v3867, %v4403
    %vm4405 = vcmp.eq.f32.partialorder %v3867, inf
    %v4406 = vsel %vm4405, %v3867, %v4404
    %vm4407 = vcmp.eq.f32.partialorder %v3867, 0.0
    %v4408 = vand.u32 %v3867, 2147483648
    %v4409 = vsel %vm4407, %v4408, %v4406
    %v4410 = vrsqrt.pop %v3868
    %v4411 = vmul.f32 %v3868, %v4410
    %vm4412 = vcmp.eq.f32.partialorder %v3868, inf
    %v4413 = vsel %vm4412, %v3868, %v4411
    %vm4414 = vcmp.eq.f32.partialorder %v3868, 0.0
    %v4415 = vand.u32 %v3868, 2147483648
    %v4416 = vsel %vm4414, %v4415, %v4413
    %v4417 = vrsqrt.pop %v3869
    %v4418 = vmul.f32 %v3869, %v4417
    %vm4419 = vcmp.eq.f32.partialorder %v3869, inf
    %v4420 = vsel %vm4419, %v3869, %v4418
    %vm4421 = vcmp.eq.f32.partialorder %v3869, 0.0
    %v4422 = vand.u32 %v3869, 2147483648
    %v4423 = vsel %vm4421, %v4422, %v4420
    %v4424 = vrsqrt.pop %v3870
    %v4425 = vmul.f32 %v3870, %v4424
    %vm4426 = vcmp.eq.f32.partialorder %v3870, inf
    %v4427 = vsel %vm4426, %v3870, %v4425
    %vm4428 = vcmp.eq.f32.partialorder %v3870, 0.0
    %v4429 = vand.u32 %v3870, 2147483648
    %v4430 = vsel %vm4428, %v4429, %v4427
    %v4431 = vrsqrt.pop %v3871
    %v4432 = vmul.f32 %v3871, %v4431
    %vm4433 = vcmp.eq.f32.partialorder %v3871, inf
    %v4434 = vsel %vm4433, %v3871, %v4432
    %vm4435 = vcmp.eq.f32.partialorder %v3871, 0.0
    %v4436 = vand.u32 %v3871, 2147483648
    %v4437 = vsel %vm4435, %v4436, %v4434
    %v4438 = vrsqrt.pop %v3872
    %v4439 = vmul.f32 %v3872, %v4438
    %vm4440 = vcmp.eq.f32.partialorder %v3872, inf
    %v4441 = vsel %vm4440, %v3872, %v4439
    %vm4442 = vcmp.eq.f32.partialorder %v3872, 0.0
    %v4443 = vand.u32 %v3872, 2147483648
    %v4444 = vsel %vm4442, %v4443, %v4441
    %v4445 = vrsqrt.pop %v3873
    %v4446 = vmul.f32 %v3873, %v4445
    %vm4447 = vcmp.eq.f32.partialorder %v3873, inf
    %v4448 = vsel %vm4447, %v3873, %v4446
    %vm4449 = vcmp.eq.f32.partialorder %v3873, 0.0
    %v4450 = vand.u32 %v3873, 2147483648
    %v4451 = vsel %vm4449, %v4450, %v4448
    %v4452 = vrsqrt.pop %v3874
    %v4453 = vmul.f32 %v3874, %v4452
    %vm4454 = vcmp.eq.f32.partialorder %v3874, inf
    %v4455 = vsel %vm4454, %v3874, %v4453
    %vm4456 = vcmp.eq.f32.partialorder %v3874, 0.0
    %v4457 = vand.u32 %v3874, 2147483648
    %v4458 = vsel %vm4456, %v4457, %v4455
    %v4459 = vrsqrt.pop %v3875
    %v4460 = vmul.f32 %v3875, %v4459
    %vm4461 = vcmp.eq.f32.partialorder %v3875, inf
    %v4462 = vsel %vm4461, %v3875, %v4460
    %vm4463 = vcmp.eq.f32.partialorder %v3875, 0.0
    %v4464 = vand.u32 %v3875, 2147483648
    %v4465 = vsel %vm4463, %v4464, %v4462
    %v4466 = vrsqrt.pop %v3876
    %v4467 = vmul.f32 %v3876, %v4466
    %vm4468 = vcmp.eq.f32.partialorder %v3876, inf
    %v4469 = vsel %vm4468, %v3876, %v4467
    %vm4470 = vcmp.eq.f32.partialorder %v3876, 0.0
    %v4471 = vand.u32 %v3876, 2147483648
    %v4472 = vsel %vm4470, %v4471, %v4469
    %v4473 = vrsqrt.pop %v3877
    %v4474 = vmul.f32 %v3877, %v4473
    %vm4475 = vcmp.eq.f32.partialorder %v3877, inf
    %v4476 = vsel %vm4475, %v3877, %v4474
    %vm4477 = vcmp.eq.f32.partialorder %v3877, 0.0
    %v4478 = vand.u32 %v3877, 2147483648
    %v4479 = vsel %vm4477, %v4478, %v4476
    %v4480 = vrsqrt.pop %v3878
    %v4481 = vmul.f32 %v3878, %v4480
    %vm4482 = vcmp.eq.f32.partialorder %v3878, inf
    %v4483 = vsel %vm4482, %v3878, %v4481
    %vm4484 = vcmp.eq.f32.partialorder %v3878, 0.0
    %v4485 = vand.u32 %v3878, 2147483648
    %v4486 = vsel %vm4484, %v4485, %v4483
    %v4487 = vrsqrt.pop %v3879
    %v4488 = vmul.f32 %v3879, %v4487
    %vm4489 = vcmp.eq.f32.partialorder %v3879, inf
    %v4490 = vsel %vm4489, %v3879, %v4488
    %vm4491 = vcmp.eq.f32.partialorder %v3879, 0.0
    %v4492 = vand.u32 %v3879, 2147483648
    %v4493 = vsel %vm4491, %v4492, %v4490
    %v4494 = vrsqrt.pop %v3880
    %v4495 = vmul.f32 %v3880, %v4494
    %vm4496 = vcmp.eq.f32.partialorder %v3880, inf
    %v4497 = vsel %vm4496, %v3880, %v4495
    %vm4498 = vcmp.eq.f32.partialorder %v3880, 0.0
    %v4499 = vand.u32 %v3880, 2147483648
    %v4500 = vsel %vm4498, %v4499, %v4497
    %v4501 = vrsqrt.pop %v3881
    %v4502 = vmul.f32 %v3881, %v4501
    %vm4503 = vcmp.eq.f32.partialorder %v3881, inf
    %v4504 = vsel %vm4503, %v3881, %v4502
    %vm4505 = vcmp.eq.f32.partialorder %v3881, 0.0
    %v4506 = vand.u32 %v3881, 2147483648
    %v4507 = vsel %vm4505, %v4506, %v4504
    %v4508 = vrsqrt.pop %v3882
    %v4509 = vmul.f32 %v3882, %v4508
    %vm4510 = vcmp.eq.f32.partialorder %v3882, inf
    %v4511 = vsel %vm4510, %v3882, %v4509
    %vm4512 = vcmp.eq.f32.partialorder %v3882, 0.0
    %v4513 = vand.u32 %v3882, 2147483648
    %v4514 = vsel %vm4512, %v4513, %v4511
    %v4515 = vrsqrt.pop %v3883
    %v4516 = vmul.f32 %v3883, %v4515
    %vm4517 = vcmp.eq.f32.partialorder %v3883, inf
    %v4518 = vsel %vm4517, %v3883, %v4516
    %vm4519 = vcmp.eq.f32.partialorder %v3883, 0.0
    %v4520 = vand.u32 %v3883, 2147483648
    %v4521 = vsel %vm4519, %v4520, %v4518
    %v4522 = vrsqrt.pop %v3884
    %v4523 = vmul.f32 %v3884, %v4522
    %vm4524 = vcmp.eq.f32.partialorder %v3884, inf
    %v4525 = vsel %vm4524, %v3884, %v4523
    %vm4526 = vcmp.eq.f32.partialorder %v3884, 0.0
    %v4527 = vand.u32 %v3884, 2147483648
    %v4528 = vsel %vm4526, %v4527, %v4525
    %v4529 = vrsqrt.pop %v3885
    %v4530 = vmul.f32 %v3885, %v4529
    %vm4531 = vcmp.eq.f32.partialorder %v3885, inf
    %v4532 = vsel %vm4531, %v3885, %v4530
    %vm4533 = vcmp.eq.f32.partialorder %v3885, 0.0
    %v4534 = vand.u32 %v3885, 2147483648
    %v4535 = vsel %vm4533, %v4534, %v4532
    %v4536 = vrsqrt.pop %v3886
    %v4537 = vmul.f32 %v3886, %v4536
    %vm4538 = vcmp.eq.f32.partialorder %v3886, inf
    %v4539 = vsel %vm4538, %v3886, %v4537
    %vm4540 = vcmp.eq.f32.partialorder %v3886, 0.0
    %v4541 = vand.u32 %v3886, 2147483648
    %v4542 = vsel %vm4540, %v4541, %v4539
    %v4543 = vrsqrt.pop %v3887
    %v4544 = vmul.f32 %v3887, %v4543
    %vm4545 = vcmp.eq.f32.partialorder %v3887, inf
    %v4546 = vsel %vm4545, %v3887, %v4544
    %vm4547 = vcmp.eq.f32.partialorder %v3887, 0.0
    %v4548 = vand.u32 %v3887, 2147483648
    %v4549 = vsel %vm4547, %v4548, %v4546
    %v4550 = vrsqrt.pop %v3888
    %v4551 = vmul.f32 %v3888, %v4550
    %vm4552 = vcmp.eq.f32.partialorder %v3888, inf
    %v4553 = vsel %vm4552, %v3888, %v4551
    %vm4554 = vcmp.eq.f32.partialorder %v3888, 0.0
    %v4555 = vand.u32 %v3888, 2147483648
    %v4556 = vsel %vm4554, %v4555, %v4553
    %v4557 = vrsqrt.pop %v3889
    %v4558 = vmul.f32 %v3889, %v4557
    %vm4559 = vcmp.eq.f32.partialorder %v3889, inf
    %v4560 = vsel %vm4559, %v3889, %v4558
    %vm4561 = vcmp.eq.f32.partialorder %v3889, 0.0
    %v4562 = vand.u32 %v3889, 2147483648
    %v4563 = vsel %vm4561, %v4562, %v4560
    %v4564 = vrsqrt.pop %v3890
    %v4565 = vmul.f32 %v3890, %v4564
    %vm4566 = vcmp.eq.f32.partialorder %v3890, inf
    %v4567 = vsel %vm4566, %v3890, %v4565
    %vm4568 = vcmp.eq.f32.partialorder %v3890, 0.0
    %v4569 = vand.u32 %v3890, 2147483648
    %v4570 = vsel %vm4568, %v4569, %v4567
    %v4571 = vrsqrt.pop %v3891
    %v4572 = vmul.f32 %v3891, %v4571
    %vm4573 = vcmp.eq.f32.partialorder %v3891, inf
    %v4574 = vsel %vm4573, %v3891, %v4572
    %vm4575 = vcmp.eq.f32.partialorder %v3891, 0.0
    %v4576 = vand.u32 %v3891, 2147483648
    %v4577 = vsel %vm4575, %v4576, %v4574
    %v4578 = vrsqrt.pop %v3892
    %v4579 = vmul.f32 %v3892, %v4578
    %vm4580 = vcmp.eq.f32.partialorder %v3892, inf
    %v4581 = vsel %vm4580, %v3892, %v4579
    %vm4582 = vcmp.eq.f32.partialorder %v3892, 0.0
    %v4583 = vand.u32 %v3892, 2147483648
    %v4584 = vsel %vm4582, %v4583, %v4581
    %v4585 = vrsqrt.pop %v3893
    %v4586 = vmul.f32 %v3893, %v4585
    %vm4587 = vcmp.eq.f32.partialorder %v3893, inf
    %v4588 = vsel %vm4587, %v3893, %v4586
    %vm4589 = vcmp.eq.f32.partialorder %v3893, 0.0
    %v4590 = vand.u32 %v3893, 2147483648
    %v4591 = vsel %vm4589, %v4590, %v4588
    %v4592 = vrsqrt.pop %v3894
    %v4593 = vmul.f32 %v3894, %v4592
    %vm4594 = vcmp.eq.f32.partialorder %v3894, inf
    %v4595 = vsel %vm4594, %v3894, %v4593
    %vm4596 = vcmp.eq.f32.partialorder %v3894, 0.0
    %v4597 = vand.u32 %v3894, 2147483648
    %v4598 = vsel %vm4596, %v4597, %v4595
    %v4599 = vrsqrt.pop %v3895
    %v4600 = vmul.f32 %v3895, %v4599
    %vm4601 = vcmp.eq.f32.partialorder %v3895, inf
    %v4602 = vsel %vm4601, %v3895, %v4600
    %vm4603 = vcmp.eq.f32.partialorder %v3895, 0.0
    %v4604 = vand.u32 %v3895, 2147483648
    %v4605 = vsel %vm4603, %v4604, %v4602
    %v4606 = vrsqrt.pop %v3896
    %v4607 = vmul.f32 %v3896, %v4606
    %vm4608 = vcmp.eq.f32.partialorder %v3896, inf
    %v4609 = vsel %vm4608, %v3896, %v4607
    %vm4610 = vcmp.eq.f32.partialorder %v3896, 0.0
    %v4611 = vand.u32 %v3896, 2147483648
    %v4612 = vsel %vm4610, %v4611, %v4609
    %v4613 = vrsqrt.pop %v3897
    %v4614 = vmul.f32 %v3897, %v4613
    %vm4615 = vcmp.eq.f32.partialorder %v3897, inf
    %v4616 = vsel %vm4615, %v3897, %v4614
    %vm4617 = vcmp.eq.f32.partialorder %v3897, 0.0
    %v4618 = vand.u32 %v3897, 2147483648
    %v4619 = vsel %vm4617, %v4618, %v4616
    %v4620 = vrsqrt.pop %v3898
    %v4621 = vmul.f32 %v3898, %v4620
    %vm4622 = vcmp.eq.f32.partialorder %v3898, inf
    %v4623 = vsel %vm4622, %v3898, %v4621
    %vm4624 = vcmp.eq.f32.partialorder %v3898, 0.0
    %v4625 = vand.u32 %v3898, 2147483648
    %v4626 = vsel %vm4624, %v4625, %v4623
    %v4627 = vrsqrt.pop %v3899
    %v4628 = vmul.f32 %v3899, %v4627
    %vm4629 = vcmp.eq.f32.partialorder %v3899, inf
    %v4630 = vsel %vm4629, %v3899, %v4628
    %vm4631 = vcmp.eq.f32.partialorder %v3899, 0.0
    %v4632 = vand.u32 %v3899, 2147483648
    %v4633 = vsel %vm4631, %v4632, %v4630
    %v4634 = vrsqrt.pop %v3900
    %v4635 = vmul.f32 %v3900, %v4634
    %vm4636 = vcmp.eq.f32.partialorder %v3900, inf
    %v4637 = vsel %vm4636, %v3900, %v4635
    %vm4638 = vcmp.eq.f32.partialorder %v3900, 0.0
    %v4639 = vand.u32 %v3900, 2147483648
    %v4640 = vsel %vm4638, %v4639, %v4637
    %v4641 = vrsqrt.pop %v3901
    %v4642 = vmul.f32 %v3901, %v4641
    %vm4643 = vcmp.eq.f32.partialorder %v3901, inf
    %v4644 = vsel %vm4643, %v3901, %v4642
    %vm4645 = vcmp.eq.f32.partialorder %v3901, 0.0
    %v4646 = vand.u32 %v3901, 2147483648
    %v4647 = vsel %vm4645, %v4646, %v4644
    %v4648 = vrsqrt.pop %v3902
    %v4649 = vmul.f32 %v3902, %v4648
    %vm4650 = vcmp.eq.f32.partialorder %v3902, inf
    %v4651 = vsel %vm4650, %v3902, %v4649
    %vm4652 = vcmp.eq.f32.partialorder %v3902, 0.0
    %v4653 = vand.u32 %v3902, 2147483648
    %v4654 = vsel %vm4652, %v4653, %v4651
    %v4655 = vrsqrt.pop %v3903
    %v4656 = vmul.f32 %v3903, %v4655
    %vm4657 = vcmp.eq.f32.partialorder %v3903, inf
    %v4658 = vsel %vm4657, %v3903, %v4656
    %vm4659 = vcmp.eq.f32.partialorder %v3903, 0.0
    %v4660 = vand.u32 %v3903, 2147483648
    %v4661 = vsel %vm4659, %v4660, %v4658
    %v4662 = vrsqrt.pop %v3904
    %v4663 = vmul.f32 %v3904, %v4662
    %vm4664 = vcmp.eq.f32.partialorder %v3904, inf
    %v4665 = vsel %vm4664, %v3904, %v4663
    %vm4666 = vcmp.eq.f32.partialorder %v3904, 0.0
    %v4667 = vand.u32 %v3904, 2147483648
    %v4668 = vsel %vm4666, %v4667, %v4665
    %v4669 = vrsqrt.pop %v3905
    %v4670 = vmul.f32 %v3905, %v4669
    %vm4671 = vcmp.eq.f32.partialorder %v3905, inf
    %v4672 = vsel %vm4671, %v3905, %v4670
    %vm4673 = vcmp.eq.f32.partialorder %v3905, 0.0
    %v4674 = vand.u32 %v3905, 2147483648
    %v4675 = vsel %vm4673, %v4674, %v4672
    %v4676 = vrsqrt.pop %v3906
    %v4677 = vmul.f32 %v3906, %v4676
    %vm4678 = vcmp.eq.f32.partialorder %v3906, inf
    %v4679 = vsel %vm4678, %v3906, %v4677
    %vm4680 = vcmp.eq.f32.partialorder %v3906, 0.0
    %v4681 = vand.u32 %v3906, 2147483648
    %v4682 = vsel %vm4680, %v4681, %v4679
    %v4683 = vrsqrt.pop %v3907
    %v4684 = vmul.f32 %v3907, %v4683
    %vm4685 = vcmp.eq.f32.partialorder %v3907, inf
    %v4686 = vsel %vm4685, %v3907, %v4684
    %vm4687 = vcmp.eq.f32.partialorder %v3907, 0.0
    %v4688 = vand.u32 %v3907, 2147483648
    %v4689 = vsel %vm4687, %v4688, %v4686
    %v4690 = vrsqrt.pop %v3908
    %v4691 = vmul.f32 %v3908, %v4690
    %vm4692 = vcmp.eq.f32.partialorder %v3908, inf
    %v4693 = vsel %vm4692, %v3908, %v4691
    %vm4694 = vcmp.eq.f32.partialorder %v3908, 0.0
    %v4695 = vand.u32 %v3908, 2147483648
    %v4696 = vsel %vm4694, %v4695, %v4693
    %v4697 = vrsqrt.pop %v3909
    %v4698 = vmul.f32 %v3909, %v4697
    %vm4699 = vcmp.eq.f32.partialorder %v3909, inf
    %v4700 = vsel %vm4699, %v3909, %v4698
    %vm4701 = vcmp.eq.f32.partialorder %v3909, 0.0
    %v4702 = vand.u32 %v3909, 2147483648
    %v4703 = vsel %vm4701, %v4702, %v4700
    %v4704 = vrsqrt.pop %v3910
    %v4705 = vmul.f32 %v3910, %v4704
    %vm4706 = vcmp.eq.f32.partialorder %v3910, inf
    %v4707 = vsel %vm4706, %v3910, %v4705
    %vm4708 = vcmp.eq.f32.partialorder %v3910, 0.0
    %v4709 = vand.u32 %v3910, 2147483648
    %v4710 = vsel %vm4708, %v4709, %v4707
    %v4711 = vrsqrt.pop %v3911
    %v4712 = vmul.f32 %v3911, %v4711
    %vm4713 = vcmp.eq.f32.partialorder %v3911, inf
    %v4714 = vsel %vm4713, %v3911, %v4712
    %vm4715 = vcmp.eq.f32.partialorder %v3911, 0.0
    %v4716 = vand.u32 %v3911, 2147483648
    %v4717 = vsel %vm4715, %v4716, %v4714
    %v4718 = vrsqrt.pop %v3912
    %v4719 = vmul.f32 %v3912, %v4718
    %vm4720 = vcmp.eq.f32.partialorder %v3912, inf
    %v4721 = vsel %vm4720, %v3912, %v4719
    %vm4722 = vcmp.eq.f32.partialorder %v3912, 0.0
    %v4723 = vand.u32 %v3912, 2147483648
    %v4724 = vsel %vm4722, %v4723, %v4721
    %v4725 = vrsqrt.pop %v3913
    %v4726 = vmul.f32 %v3913, %v4725
    %vm4727 = vcmp.eq.f32.partialorder %v3913, inf
    %v4728 = vsel %vm4727, %v3913, %v4726
    %vm4729 = vcmp.eq.f32.partialorder %v3913, 0.0
    %v4730 = vand.u32 %v3913, 2147483648
    %v4731 = vsel %vm4729, %v4730, %v4728
    %v4732 = vrsqrt.pop %v3914
    %v4733 = vmul.f32 %v3914, %v4732
    %vm4734 = vcmp.eq.f32.partialorder %v3914, inf
    %v4735 = vsel %vm4734, %v3914, %v4733
    %vm4736 = vcmp.eq.f32.partialorder %v3914, 0.0
    %v4737 = vand.u32 %v3914, 2147483648
    %v4738 = vsel %vm4736, %v4737, %v4735
    %v4739 = vrsqrt.pop %v3915
    %v4740 = vmul.f32 %v3915, %v4739
    %vm4741 = vcmp.eq.f32.partialorder %v3915, inf
    %v4742 = vsel %vm4741, %v3915, %v4740
    %vm4743 = vcmp.eq.f32.partialorder %v3915, 0.0
    %v4744 = vand.u32 %v3915, 2147483648
    %v4745 = vsel %vm4743, %v4744, %v4742
    %v4746 = vrsqrt.pop %v3916
    %v4747 = vmul.f32 %v3916, %v4746
    %vm4748 = vcmp.eq.f32.partialorder %v3916, inf
    %v4749 = vsel %vm4748, %v3916, %v4747
    %vm4750 = vcmp.eq.f32.partialorder %v3916, 0.0
    %v4751 = vand.u32 %v3916, 2147483648
    %v4752 = vsel %vm4750, %v4751, %v4749
    %v4753 = vrsqrt.pop %v3917
    %v4754 = vmul.f32 %v3917, %v4753
    %vm4755 = vcmp.eq.f32.partialorder %v3917, inf
    %v4756 = vsel %vm4755, %v3917, %v4754
    %vm4757 = vcmp.eq.f32.partialorder %v3917, 0.0
    %v4758 = vand.u32 %v3917, 2147483648
    %v4759 = vsel %vm4757, %v4758, %v4756
    %v4760 = vrsqrt.pop %v3918
    %v4761 = vmul.f32 %v3918, %v4760
    %vm4762 = vcmp.eq.f32.partialorder %v3918, inf
    %v4763 = vsel %vm4762, %v3918, %v4761
    %vm4764 = vcmp.eq.f32.partialorder %v3918, 0.0
    %v4765 = vand.u32 %v3918, 2147483648
    %v4766 = vsel %vm4764, %v4765, %v4763
    %v4767 = vrsqrt.pop %v3919
    %v4768 = vmul.f32 %v3919, %v4767
    %vm4769 = vcmp.eq.f32.partialorder %v3919, inf
    %v4770 = vsel %vm4769, %v3919, %v4768
    %vm4771 = vcmp.eq.f32.partialorder %v3919, 0.0
    %v4772 = vand.u32 %v3919, 2147483648
    %v4773 = vsel %vm4771, %v4772, %v4770
    %v4774 = vrsqrt.pop %v3920
    %v4775 = vmul.f32 %v3920, %v4774
    %vm4776 = vcmp.eq.f32.partialorder %v3920, inf
    %v4777 = vsel %vm4776, %v3920, %v4775
    %vm4778 = vcmp.eq.f32.partialorder %v3920, 0.0
    %v4779 = vand.u32 %v3920, 2147483648
    %v4780 = vsel %vm4778, %v4779, %v4777
    %v4781 = vrsqrt.pop %v3921
    %v4782 = vmul.f32 %v3921, %v4781
    %vm4783 = vcmp.eq.f32.partialorder %v3921, inf
    %v4784 = vsel %vm4783, %v3921, %v4782
    %vm4785 = vcmp.eq.f32.partialorder %v3921, 0.0
    %v4786 = vand.u32 %v3921, 2147483648
    %v4787 = vsel %vm4785, %v4786, %v4784
    %v4788 = vrsqrt.pop %v3922
    %v4789 = vmul.f32 %v3922, %v4788
    %vm4790 = vcmp.eq.f32.partialorder %v3922, inf
    %v4791 = vsel %vm4790, %v3922, %v4789
    %vm4792 = vcmp.eq.f32.partialorder %v3922, 0.0
    %v4793 = vand.u32 %v3922, 2147483648
    %v4794 = vsel %vm4792, %v4793, %v4791
    %v4795 = vrsqrt.pop %v3923
    %v4796 = vmul.f32 %v3923, %v4795
    %vm4797 = vcmp.eq.f32.partialorder %v3923, inf
    %v4798 = vsel %vm4797, %v3923, %v4796
    %vm4799 = vcmp.eq.f32.partialorder %v3923, 0.0
    %v4800 = vand.u32 %v3923, 2147483648
    %v4801 = vsel %vm4799, %v4800, %v4798
    %v4802 = vrsqrt.pop %v3924
    %v4803 = vmul.f32 %v3924, %v4802
    %vm4804 = vcmp.eq.f32.partialorder %v3924, inf
    %v4805 = vsel %vm4804, %v3924, %v4803
    %vm4806 = vcmp.eq.f32.partialorder %v3924, 0.0
    %v4807 = vand.u32 %v3924, 2147483648
    %v4808 = vsel %vm4806, %v4807, %v4805
    %v4809 = vrsqrt.pop %v3925
    %v4810 = vmul.f32 %v3925, %v4809
    %vm4811 = vcmp.eq.f32.partialorder %v3925, inf
    %v4812 = vsel %vm4811, %v3925, %v4810
    %vm4813 = vcmp.eq.f32.partialorder %v3925, 0.0
    %v4814 = vand.u32 %v3925, 2147483648
    %v4815 = vsel %vm4813, %v4814, %v4812
    %v4816 = vrsqrt.pop %v3926
    %v4817 = vmul.f32 %v3926, %v4816
    %vm4818 = vcmp.eq.f32.partialorder %v3926, inf
    %v4819 = vsel %vm4818, %v3926, %v4817
    %vm4820 = vcmp.eq.f32.partialorder %v3926, 0.0
    %v4821 = vand.u32 %v3926, 2147483648
    %v4822 = vsel %vm4820, %v4821, %v4819
    %v4823 = vld [vmem:[#allocation5] sm:$0xff]
    %v4824 = vld [vmem:[#allocation5 + $0x8] sm:$0xff]
    %v4825 = vld [vmem:[#allocation5 + $0x10] sm:$0xff]
    %v4826 = vld [vmem:[#allocation5 + $0x18] sm:$0xff]
    %v4827 = vld [vmem:[#allocation5 + $0x20] sm:$0xff]
    %v4828 = vld [vmem:[#allocation5 + $0x28] sm:$0xff]
    %v4829 = vld [vmem:[#allocation5 + $0x30] sm:$0xff]
    %v4830 = vld [vmem:[#allocation5 + $0x38] sm:$0xff]
    %v4831 = vld [vmem:[#allocation5 + $0x40] sm:$0xff]
    %v4832 = vld [vmem:[#allocation5 + $0x48] sm:$0xff]
    %v4833 = vld [vmem:[#allocation5 + $0x50] sm:$0xff]
    %v4834 = vld [vmem:[#allocation5 + $0x58] sm:$0xff]
    %v4835 = vld [vmem:[#allocation5 + $0x60] sm:$0xff]
    %v4836 = vld [vmem:[#allocation5 + $0x68] sm:$0xff]
    %v4837 = vld [vmem:[#allocation5 + $0x70] sm:$0xff]
    %v4838 = vld [vmem:[#allocation5 + $0x78] sm:$0xff]
    %v4840 = vsel %vm131, %v4823, 0
    %v4843 = vsel %vm131, %v4824, 0
    %v4846 = vsel %vm131, %v4825, 0
    %v4849 = vsel %vm131, %v4826, 0
    %v4852 = vsel %vm131, %v4827, 0
    %v4855 = vsel %vm131, %v4828, 0
    %v4858 = vsel %vm131, %v4829, 0
    %v4861 = vsel %vm131, %v4830, 0
    %v4864 = vsel %vm131, %v4831, 0
    %v4867 = vsel %vm131, %v4832, 0
    %v4870 = vsel %vm131, %v4833, 0
    %v4873 = vsel %vm131, %v4834, 0
    %v4876 = vsel %vm131, %v4835, 0
    %v4879 = vsel %vm131, %v4836, 0
    %v4882 = vsel %vm131, %v4837, 0
    %v4885 = vsel %vm131, %v4838, 0
    %4887 = vmatprep.subr.mxu0 %v108
    %4888 = vmatpush1.msra.mxu0 %v107
    %4889 = vmatprep.subr.mxu0 %v110
    %4890 = vmatpush1.msra.mxu0 %v109
    %4891 = vmatprep.subr.mxu0 0.0
    %4892 = vmatpush1.msra.mxu0 0.0
    %4893 = vmatprep.subr.mxu0 0.0
    %4894 = vmatpush1.msra.mxu0 0.0
    %4895 = vmatprep.subr.mxu0 0.0
    %4896 = vmatpush1.msra.mxu0 0.0
    %4897 = vmatprep.subr.mxu0 0.0
    %4898 = vmatpush1.msra.mxu0 0.0
    %4899 = vmatprep.subr.mxu0 0.0
    %4900 = vmatpush1.msra.mxu0 0.0
    %4901 = vmatprep.subr.mxu0 0.0
    %4902 = vmatpush1.msra.mxu0 0.0
    %4903 = vmatprep.subr.mxu0 0.0
    %4904 = vmatpush1.msra.mxu0 0.0
    %4905 = vmatprep.subr.mxu0 0.0
    %4906 = vmatpush1.msra.mxu0 0.0
    %4907 = vmatprep.subr.mxu0 0.0
    %4908 = vmatpush1.msra.mxu0 0.0
    %4909 = vmatprep.subr.mxu0 0.0
    %4910 = vmatpush1.msra.mxu0 0.0
    %4911 = vmatprep.subr.mxu0 0.0
    %4912 = vmatpush1.msra.mxu0 0.0
    %4913 = vmatprep.subr.mxu0 0.0
    %4914 = vmatpush1.msra.mxu0 0.0
    %4915 = vmatprep.subr.mxu0 0.0
    %4916 = vmatpush1.msra.mxu0 0.0
    %4917 = vmatprep.subr.mxu0 0.0
    %4918 = vmatpush1.msra.mxu0 0.0
    %4919 = vmatprep.subr.mxu0 0.0
    %4920 = vmatpush1.msra.mxu0 0.0
    %4921 = vmatprep.subr.mxu0 0.0
    %4922 = vmatpush1.msra.mxu0 0.0
    %4923 = vmatprep.subr.mxu0 0.0
    %4924 = vmatpush1.msra.mxu0 0.0
    %4925 = vmatprep.subr.mxu0 0.0
    %4926 = vmatpush1.msra.mxu0 0.0
    %4927 = vmatprep.subr.mxu0 0.0
    %4928 = vmatpush1.msra.mxu0 0.0
    %4929 = vmatprep.subr.mxu0 0.0
    %4930 = vmatpush1.msra.mxu0 0.0
    %4931 = vmatprep.subr.mxu0 0.0
    %4932 = vmatpush1.msra.mxu0 0.0
    %4933 = vmatprep.subr.mxu0 0.0
    %4934 = vmatpush1.msra.mxu0 0.0
    %4935 = vmatprep.subr.mxu0 0.0
    %4936 = vmatpush1.msra.mxu0 0.0
    %4937 = vmatprep.subr.mxu0 0.0
    %4938 = vmatpush1.msra.mxu0 0.0
    %4939 = vmatprep.subr.mxu0 0.0
    %4940 = vmatpush1.msra.mxu0 0.0
    %4941 = vmatprep.subr.mxu0 0.0
    %4942 = vmatpush1.msra.mxu0 0.0
    %4943 = vmatprep.subr.mxu0 0.0
    %4944 = vmatpush1.msra.mxu0 0.0
    %4945 = vmatprep.subr.mxu0 0.0
    %4946 = vmatpush1.msra.mxu0 0.0
    %4947 = vmatprep.subr.mxu0 0.0
    %4948 = vmatpush1.msra.mxu0 0.0
    %4949 = vmatprep.subr.mxu0 0.0
    %4950 = vmatpush1.msra.mxu0 0.0
    %4951 = vmatprep.mubr.f32.mxu0 0.0
    %4952 = vmatmul.mubr.f32.gmra.mrb[0].mxu0 %v4840
    %v4953 = vpop.f32.mrb[0].mxu0
    %v4954 = vadd.f32 0.0, %v4953
    %v4955 = vpop.f32.mrb[0].mxu0
    %v4956 = vadd.f32 0.0, %v4955
    %4957 = vmatprep.mubr.f32.mxu0 0.0
    %4958 = vmatmul.mubr.f32.gmra.mrb[0].mxu0 %v4843
    %v4959 = vpop.f32.mrb[0].mxu0
    %v4960 = vadd.f32 0.0, %v4959
    %v4961 = vpop.f32.mrb[0].mxu0
    %v4962 = vadd.f32 0.0, %v4961
    %4963 = vmatprep.mubr.f32.mxu0 0.0
    %4964 = vmatmul.mubr.f32.gmra.mrb[0].mxu0 %v4846
    %v4965 = vpop.f32.mrb[0].mxu0
    %v4966 = vadd.f32 0.0, %v4965
    %v4967 = vpop.f32.mrb[0].mxu0
    %v4968 = vadd.f32 0.0, %v4967
    %4969 = vmatprep.mubr.f32.mxu0 0.0
    %4970 = vmatmul.mubr.f32.gmra.mrb[0].mxu0 %v4849
    %v4971 = vpop.f32.mrb[0].mxu0
    %v4972 = vadd.f32 0.0, %v4971
    %v4973 = vpop.f32.mrb[0].mxu0
    %v4974 = vadd.f32 0.0, %v4973
    %4975 = vmatprep.mubr.f32.mxu0 0.0
    %4976 = vmatmul.mubr.f32.gmra.mrb[0].mxu0 %v4852
    %v4977 = vpop.f32.mrb[0].mxu0
    %v4978 = vadd.f32 0.0, %v4977
    %v4979 = vpop.f32.mrb[0].mxu0
    %v4980 = vadd.f32 0.0, %v4979
    %4981 = vmatprep.mubr.f32.mxu0 0.0
    %4982 = vmatmul.mubr.f32.gmra.mrb[0].mxu0 %v4855
    %v4983 = vpop.f32.mrb[0].mxu0
    %v4984 = vadd.f32 0.0, %v4983
    %v4985 = vpop.f32.mrb[0].mxu0
    %v4986 = vadd.f32 0.0, %v4985
    %4987 = vmatprep.mubr.f32.mxu0 0.0
    %4988 = vmatmul.mubr.f32.gmra.mrb[0].mxu0 %v4858
    %v4989 = vpop.f32.mrb[0].mxu0
    %v4990 = vadd.f32 0.0, %v4989
    %v4991 = vpop.f32.mrb[0].mxu0
    %v4992 = vadd.f32 0.0, %v4991
    %4993 = vmatprep.mubr.f32.mxu0 0.0
    %4994 = vmatmul.mubr.f32.gmra.mrb[0].mxu0 %v4861
    %v4995 = vpop.f32.mrb[0].mxu0
    %v4996 = vadd.f32 0.0, %v4995
    %v4997 = vpop.f32.mrb[0].mxu0
    %v4998 = vadd.f32 0.0, %v4997
    %4999 = vmatprep.mubr.f32.mxu0 0.0
    %5000 = vmatmul.mubr.f32.gmra.mrb[0].mxu0 %v4864
    %v5001 = vpop.f32.mrb[0].mxu0
    %v5002 = vadd.f32 0.0, %v5001
    %v5003 = vpop.f32.mrb[0].mxu0
    %v5004 = vadd.f32 0.0, %v5003
    %5005 = vmatprep.mubr.f32.mxu0 0.0
    %5006 = vmatmul.mubr.f32.gmra.mrb[0].mxu0 %v4867
    %v5007 = vpop.f32.mrb[0].mxu0
    %v5008 = vadd.f32 0.0, %v5007
    %v5009 = vpop.f32.mrb[0].mxu0
    %v5010 = vadd.f32 0.0, %v5009
    %5011 = vmatprep.mubr.f32.mxu0 0.0
    %5012 = vmatmul.mubr.f32.gmra.mrb[0].mxu0 %v4870
    %v5013 = vpop.f32.mrb[0].mxu0
    %v5014 = vadd.f32 0.0, %v5013
    %v5015 = vpop.f32.mrb[0].mxu0
    %v5016 = vadd.f32 0.0, %v5015
    %5017 = vmatprep.mubr.f32.mxu0 0.0
    %5018 = vmatmul.mubr.f32.gmra.mrb[0].mxu0 %v4873
    %v5019 = vpop.f32.mrb[0].mxu0
    %v5020 = vadd.f32 0.0, %v5019
    %v5021 = vpop.f32.mrb[0].mxu0
    %v5022 = vadd.f32 0.0, %v5021
    %5023 = vmatprep.mubr.f32.mxu0 0.0
    %5024 = vmatmul.mubr.f32.gmra.mrb[0].mxu0 %v4876
    %v5025 = vpop.f32.mrb[0].mxu0
    %v5026 = vadd.f32 0.0, %v5025
    %v5027 = vpop.f32.mrb[0].mxu0
    %v5028 = vadd.f32 0.0, %v5027
    %5029 = vmatprep.mubr.f32.mxu0 0.0
    %5030 = vmatmul.mubr.f32.gmra.mrb[0].mxu0 %v4879
    %v5031 = vpop.f32.mrb[0].mxu0
    %v5032 = vadd.f32 0.0, %v5031
    %v5033 = vpop.f32.mrb[0].mxu0
    %v5034 = vadd.f32 0.0, %v5033
    %5035 = vmatprep.mubr.f32.mxu0 0.0
    %5036 = vmatmul.mubr.f32.gmra.mrb[0].mxu0 %v4882
    %v5037 = vpop.f32.mrb[0].mxu0
    %v5038 = vadd.f32 0.0, %v5037
    %v5039 = vpop.f32.mrb[0].mxu0
    %v5040 = vadd.f32 0.0, %v5039
    %5041 = vmatprep.mubr.f32.mxu0 0.0
    %5042 = vmatmul.mubr.f32.gmra.mrb[0].mxu0 %v4885
    %v5043 = vpop.f32.mrb[0].mxu0
    %v5044 = vadd.f32 0.0, %v5043
    %v5045 = vpop.f32.mrb[0].mxu0
    %v5046 = vadd.f32 0.0, %v5045
    %5047 = vdwg.mxu0
    %5048 = vxpose.xlu0.b32.start [1/16] %v4954, 128
    %5049 = vxpose.xlu0.b32.cont [2/16] %v4960, 128
    %5050 = vxpose.xlu0.b32.cont [3/16] 0.0, 128
    %5051 = vxpose.xlu0.b32.cont [4/16] 0.0, 128
    %5052 = vxpose.xlu0.b32.cont [5/16] 0.0, 128
    %5053 = vxpose.xlu0.b32.cont [6/16] 0.0, 128
    %5054 = vxpose.xlu0.b32.cont [7/16] 0.0, 128
    %5055 = vxpose.xlu0.b32.cont [8/16] 0.0, 128
    %5056 = vxpose.xlu0.b32.cont [9/16] 0.0, 128
    %5057 = vxpose.xlu0.b32.cont [10/16] 0.0, 128
    %5058 = vxpose.xlu0.b32.cont [11/16] 0.0, 128
    %5059 = vxpose.xlu0.b32.cont [12/16] 0.0, 128
    %5060 = vxpose.xlu0.b32.cont [13/16] 0.0, 128
    %5061 = vxpose.xlu0.b32.cont [14/16] 0.0, 128
    %5062 = vxpose.xlu0.b32.cont [15/16] 0.0, 128
    %5063 = vxpose.xlu0.b32.end [16/16] 0.0, 128
    %v5064 = vpop.trf.xlu0
    %v5065 = vpop.trf.xlu0
    %v5066 = vpop.trf.xlu0
    %v5067 = vpop.trf.xlu0
    %v5068 = vpop.trf.xlu0
    %v5069 = vpop.trf.xlu0
    %v5070 = vpop.trf.xlu0
    %v5071 = vpop.trf.xlu0
    %v5072 = vpop.trf.xlu0
    %v5073 = vpop.trf.xlu0
    %v5074 = vpop.trf.xlu0
    %v5075 = vpop.trf.xlu0
    %v5076 = vpop.trf.xlu0
    %v5077 = vpop.trf.xlu0
    %v5078 = vpop.trf.xlu0
    %v5079 = vpop.trf.xlu0
    %5080 = vxpose.xlu0.b32.start [1/16] %v4966, 128
    %5081 = vxpose.xlu0.b32.cont [2/16] %v4972, 128
    %5082 = vxpose.xlu0.b32.cont [3/16] 0.0, 128
    %5083 = vxpose.xlu0.b32.cont [4/16] 0.0, 128
    %5084 = vxpose.xlu0.b32.cont [5/16] 0.0, 128
    %5085 = vxpose.xlu0.b32.cont [6/16] 0.0, 128
    %5086 = vxpose.xlu0.b32.cont [7/16] 0.0, 128
    %5087 = vxpose.xlu0.b32.cont [8/16] 0.0, 128
    %5088 = vxpose.xlu0.b32.cont [9/16] 0.0, 128
    %5089 = vxpose.xlu0.b32.cont [10/16] 0.0, 128
    %5090 = vxpose.xlu0.b32.cont [11/16] 0.0, 128
    %5091 = vxpose.xlu0.b32.cont [12/16] 0.0, 128
    %5092 = vxpose.xlu0.b32.cont [13/16] 0.0, 128
    %5093 = vxpose.xlu0.b32.cont [14/16] 0.0, 128
    %5094 = vxpose.xlu0.b32.cont [15/16] 0.0, 128
    %5095 = vxpose.xlu0.b32.end [16/16] 0.0, 128
    %v5096 = vpop.trf.xlu0
    %v5097 = vpop.trf.xlu0
    %v5098 = vpop.trf.xlu0
    %v5099 = vpop.trf.xlu0
    %v5100 = vpop.trf.xlu0
    %v5101 = vpop.trf.xlu0
    %v5102 = vpop.trf.xlu0
    %v5103 = vpop.trf.xlu0
    %v5104 = vpop.trf.xlu0
    %v5105 = vpop.trf.xlu0
    %v5106 = vpop.trf.xlu0
    %v5107 = vpop.trf.xlu0
    %v5108 = vpop.trf.xlu0
    %v5109 = vpop.trf.xlu0
    %v5110 = vpop.trf.xlu0
    %v5111 = vpop.trf.xlu0
    %5112 = vxpose.xlu0.b32.start [1/16] %v4978, 128
    %5113 = vxpose.xlu0.b32.cont [2/16] %v4984, 128
    %5114 = vxpose.xlu0.b32.cont [3/16] 0.0, 128
    %5115 = vxpose.xlu0.b32.cont [4/16] 0.0, 128
    %5116 = vxpose.xlu0.b32.cont [5/16] 0.0, 128
    %5117 = vxpose.xlu0.b32.cont [6/16] 0.0, 128
    %5118 = vxpose.xlu0.b32.cont [7/16] 0.0, 128
    %5119 = vxpose.xlu0.b32.cont [8/16] 0.0, 128
    %5120 = vxpose.xlu0.b32.cont [9/16] 0.0, 128
    %5121 = vxpose.xlu0.b32.cont [10/16] 0.0, 128
    %5122 = vxpose.xlu0.b32.cont [11/16] 0.0, 128
    %5123 = vxpose.xlu0.b32.cont [12/16] 0.0, 128
    %5124 = vxpose.xlu0.b32.cont [13/16] 0.0, 128
    %5125 = vxpose.xlu0.b32.cont [14/16] 0.0, 128
    %5126 = vxpose.xlu0.b32.cont [15/16] 0.0, 128
    %5127 = vxpose.xlu0.b32.end [16/16] 0.0, 128
    %v5128 = vpop.trf.xlu0
    %v5129 = vpop.trf.xlu0
    %v5130 = vpop.trf.xlu0
    %v5131 = vpop.trf.xlu0
    %v5132 = vpop.trf.xlu0
    %v5133 = vpop.trf.xlu0
    %v5134 = vpop.trf.xlu0
    %v5135 = vpop.trf.xlu0
    %v5136 = vpop.trf.xlu0
    %v5137 = vpop.trf.xlu0
    %v5138 = vpop.trf.xlu0
    %v5139 = vpop.trf.xlu0
    %v5140 = vpop.trf.xlu0
    %v5141 = vpop.trf.xlu0
    %v5142 = vpop.trf.xlu0
    %v5143 = vpop.trf.xlu0
    %5144 = vxpose.xlu0.b32.start [1/16] %v4990, 128
    %5145 = vxpose.xlu0.b32.cont [2/16] %v4996, 128
    %5146 = vxpose.xlu0.b32.cont [3/16] 0.0, 128
    %5147 = vxpose.xlu0.b32.cont [4/16] 0.0, 128
    %5148 = vxpose.xlu0.b32.cont [5/16] 0.0, 128
    %5149 = vxpose.xlu0.b32.cont [6/16] 0.0, 128
    %5150 = vxpose.xlu0.b32.cont [7/16] 0.0, 128
    %5151 = vxpose.xlu0.b32.cont [8/16] 0.0, 128
    %5152 = vxpose.xlu0.b32.cont [9/16] 0.0, 128
    %5153 = vxpose.xlu0.b32.cont [10/16] 0.0, 128
    %5154 = vxpose.xlu0.b32.cont [11/16] 0.0, 128
    %5155 = vxpose.xlu0.b32.cont [12/16] 0.0, 128
    %5156 = vxpose.xlu0.b32.cont [13/16] 0.0, 128
    %5157 = vxpose.xlu0.b32.cont [14/16] 0.0, 128
    %5158 = vxpose.xlu0.b32.cont [15/16] 0.0, 128
    %5159 = vxpose.xlu0.b32.end [16/16] 0.0, 128
    %v5160 = vpop.trf.xlu0
    %v5161 = vpop.trf.xlu0
    %v5162 = vpop.trf.xlu0
    %v5163 = vpop.trf.xlu0
    %v5164 = vpop.trf.xlu0
    %v5165 = vpop.trf.xlu0
    %v5166 = vpop.trf.xlu0
    %v5167 = vpop.trf.xlu0
    %v5168 = vpop.trf.xlu0
    %v5169 = vpop.trf.xlu0
    %v5170 = vpop.trf.xlu0
    %v5171 = vpop.trf.xlu0
    %v5172 = vpop.trf.xlu0
    %v5173 = vpop.trf.xlu0
    %v5174 = vpop.trf.xlu0
    %v5175 = vpop.trf.xlu0
    %5176 = vxpose.xlu0.b32.start [1/16] %v5002, 128
    %5177 = vxpose.xlu0.b32.cont [2/16] %v5008, 128
    %5178 = vxpose.xlu0.b32.cont [3/16] 0.0, 128
    %5179 = vxpose.xlu0.b32.cont [4/16] 0.0, 128
    %5180 = vxpose.xlu0.b32.cont [5/16] 0.0, 128
    %5181 = vxpose.xlu0.b32.cont [6/16] 0.0, 128
    %5182 = vxpose.xlu0.b32.cont [7/16] 0.0, 128
    %5183 = vxpose.xlu0.b32.cont [8/16] 0.0, 128
    %5184 = vxpose.xlu0.b32.cont [9/16] 0.0, 128
    %5185 = vxpose.xlu0.b32.cont [10/16] 0.0, 128
    %5186 = vxpose.xlu0.b32.cont [11/16] 0.0, 128
    %5187 = vxpose.xlu0.b32.cont [12/16] 0.0, 128
    %5188 = vxpose.xlu0.b32.cont [13/16] 0.0, 128
    %5189 = vxpose.xlu0.b32.cont [14/16] 0.0, 128
    %5190 = vxpose.xlu0.b32.cont [15/16] 0.0, 128
    %5191 = vxpose.xlu0.b32.end [16/16] 0.0, 128
    %v5192 = vpop.trf.xlu0
    %v5193 = vpop.trf.xlu0
    %v5194 = vpop.trf.xlu0
    %v5195 = vpop.trf.xlu0
    %v5196 = vpop.trf.xlu0
    %v5197 = vpop.trf.xlu0
    %v5198 = vpop.trf.xlu0
    %v5199 = vpop.trf.xlu0
    %v5200 = vpop.trf.xlu0
    %v5201 = vpop.trf.xlu0
    %v5202 = vpop.trf.xlu0
    %v5203 = vpop.trf.xlu0
    %v5204 = vpop.trf.xlu0
    %v5205 = vpop.trf.xlu0
    %v5206 = vpop.trf.xlu0
    %v5207 = vpop.trf.xlu0
    %5208 = vxpose.xlu0.b32.start [1/16] %v5014, 128
    %5209 = vxpose.xlu0.b32.cont [2/16] %v5020, 128
    %5210 = vxpose.xlu0.b32.cont [3/16] 0.0, 128
    %5211 = vxpose.xlu0.b32.cont [4/16] 0.0, 128
    %5212 = vxpose.xlu0.b32.cont [5/16] 0.0, 128
    %5213 = vxpose.xlu0.b32.cont [6/16] 0.0, 128
    %5214 = vxpose.xlu0.b32.cont [7/16] 0.0, 128
    %5215 = vxpose.xlu0.b32.cont [8/16] 0.0, 128
    %5216 = vxpose.xlu0.b32.cont [9/16] 0.0, 128
    %5217 = vxpose.xlu0.b32.cont [10/16] 0.0, 128
    %5218 = vxpose.xlu0.b32.cont [11/16] 0.0, 128
    %5219 = vxpose.xlu0.b32.cont [12/16] 0.0, 128
    %5220 = vxpose.xlu0.b32.cont [13/16] 0.0, 128
    %5221 = vxpose.xlu0.b32.cont [14/16] 0.0, 128
    %5222 = vxpose.xlu0.b32.cont [15/16] 0.0, 128
    %5223 = vxpose.xlu0.b32.end [16/16] 0.0, 128
    %v5224 = vpop.trf.xlu0
    %v5225 = vpop.trf.xlu0
    %v5226 = vpop.trf.xlu0
    %v5227 = vpop.trf.xlu0
    %v5228 = vpop.trf.xlu0
    %v5229 = vpop.trf.xlu0
    %v5230 = vpop.trf.xlu0
    %v5231 = vpop.trf.xlu0
    %v5232 = vpop.trf.xlu0
    %v5233 = vpop.trf.xlu0
    %v5234 = vpop.trf.xlu0
    %v5235 = vpop.trf.xlu0
    %v5236 = vpop.trf.xlu0
    %v5237 = vpop.trf.xlu0
    %v5238 = vpop.trf.xlu0
    %v5239 = vpop.trf.xlu0
    %5240 = vxpose.xlu0.b32.start [1/16] %v5026, 128
    %5241 = vxpose.xlu0.b32.cont [2/16] %v5032, 128
    %5242 = vxpose.xlu0.b32.cont [3/16] 0.0, 128
    %5243 = vxpose.xlu0.b32.cont [4/16] 0.0, 128
    %5244 = vxpose.xlu0.b32.cont [5/16] 0.0, 128
    %5245 = vxpose.xlu0.b32.cont [6/16] 0.0, 128
    %5246 = vxpose.xlu0.b32.cont [7/16] 0.0, 128
    %5247 = vxpose.xlu0.b32.cont [8/16] 0.0, 128
    %5248 = vxpose.xlu0.b32.cont [9/16] 0.0, 128
    %5249 = vxpose.xlu0.b32.cont [10/16] 0.0, 128
    %5250 = vxpose.xlu0.b32.cont [11/16] 0.0, 128
    %5251 = vxpose.xlu0.b32.cont [12/16] 0.0, 128
    %5252 = vxpose.xlu0.b32.cont [13/16] 0.0, 128
    %5253 = vxpose.xlu0.b32.cont [14/16] 0.0, 128
    %5254 = vxpose.xlu0.b32.cont [15/16] 0.0, 128
    %5255 = vxpose.xlu0.b32.end [16/16] 0.0, 128
    %v5256 = vpop.trf.xlu0
    %v5257 = vpop.trf.xlu0
    %v5258 = vpop.trf.xlu0
    %v5259 = vpop.trf.xlu0
    %v5260 = vpop.trf.xlu0
    %v5261 = vpop.trf.xlu0
    %v5262 = vpop.trf.xlu0
    %v5263 = vpop.trf.xlu0
    %v5264 = vpop.trf.xlu0
    %v5265 = vpop.trf.xlu0
    %v5266 = vpop.trf.xlu0
    %v5267 = vpop.trf.xlu0
    %v5268 = vpop.trf.xlu0
    %v5269 = vpop.trf.xlu0
    %v5270 = vpop.trf.xlu0
    %v5271 = vpop.trf.xlu0
    %5272 = vxpose.xlu0.b32.start [1/16] %v5038, 128
    %5273 = vxpose.xlu0.b32.cont [2/16] %v5044, 128
    %5274 = vxpose.xlu0.b32.cont [3/16] 0.0, 128
    %5275 = vxpose.xlu0.b32.cont [4/16] 0.0, 128
    %5276 = vxpose.xlu0.b32.cont [5/16] 0.0, 128
    %5277 = vxpose.xlu0.b32.cont [6/16] 0.0, 128
    %5278 = vxpose.xlu0.b32.cont [7/16] 0.0, 128
    %5279 = vxpose.xlu0.b32.cont [8/16] 0.0, 128
    %5280 = vxpose.xlu0.b32.cont [9/16] 0.0, 128
    %5281 = vxpose.xlu0.b32.cont [10/16] 0.0, 128
    %5282 = vxpose.xlu0.b32.cont [11/16] 0.0, 128
    %5283 = vxpose.xlu0.b32.cont [12/16] 0.0, 128
    %5284 = vxpose.xlu0.b32.cont [13/16] 0.0, 128
    %5285 = vxpose.xlu0.b32.cont [14/16] 0.0, 128
    %5286 = vxpose.xlu0.b32.cont [15/16] 0.0, 128
    %5287 = vxpose.xlu0.b32.end [16/16] 0.0, 128
    %v5288 = vpop.trf.xlu0
    %v5289 = vpop.trf.xlu0
    %v5290 = vpop.trf.xlu0
    %v5291 = vpop.trf.xlu0
    %v5292 = vpop.trf.xlu0
    %v5293 = vpop.trf.xlu0
    %v5294 = vpop.trf.xlu0
    %v5295 = vpop.trf.xlu0
    %v5296 = vpop.trf.xlu0
    %v5297 = vpop.trf.xlu0
    %v5298 = vpop.trf.xlu0
    %v5299 = vpop.trf.xlu0
    %v5300 = vpop.trf.xlu0
    %v5301 = vpop.trf.xlu0
    %v5302 = vpop.trf.xlu0
    %v5303 = vpop.trf.xlu0
    %5304 = vxpose.xlu0.b32.start [1/16] %v4956, 128
    %5305 = vxpose.xlu0.b32.cont [2/16] %v4962, 128
    %5306 = vxpose.xlu0.b32.cont [3/16] 0.0, 128
    %5307 = vxpose.xlu0.b32.cont [4/16] 0.0, 128
    %5308 = vxpose.xlu0.b32.cont [5/16] 0.0, 128
    %5309 = vxpose.xlu0.b32.cont [6/16] 0.0, 128
    %5310 = vxpose.xlu0.b32.cont [7/16] 0.0, 128
    %5311 = vxpose.xlu0.b32.cont [8/16] 0.0, 128
    %5312 = vxpose.xlu0.b32.cont [9/16] 0.0, 128
    %5313 = vxpose.xlu0.b32.cont [10/16] 0.0, 128
    %5314 = vxpose.xlu0.b32.cont [11/16] 0.0, 128
    %5315 = vxpose.xlu0.b32.cont [12/16] 0.0, 128
    %5316 = vxpose.xlu0.b32.cont [13/16] 0.0, 128
    %5317 = vxpose.xlu0.b32.cont [14/16] 0.0, 128
    %5318 = vxpose.xlu0.b32.cont [15/16] 0.0, 128
    %5319 = vxpose.xlu0.b32.end [16/16] 0.0, 128
    %v5320 = vpop.trf.xlu0
    %v5321 = vpop.trf.xlu0
    %v5322 = vpop.trf.xlu0
    %v5323 = vpop.trf.xlu0
    %v5324 = vpop.trf.xlu0
    %v5325 = vpop.trf.xlu0
    %v5326 = vpop.trf.xlu0
    %v5327 = vpop.trf.xlu0
    %v5328 = vpop.trf.xlu0
    %v5329 = vpop.trf.xlu0
    %v5330 = vpop.trf.xlu0
    %v5331 = vpop.trf.xlu0
    %v5332 = vpop.trf.xlu0
    %v5333 = vpop.trf.xlu0
    %v5334 = vpop.trf.xlu0
    %v5335 = vpop.trf.xlu0
    %5336 = vxpose.xlu0.b32.start [1/16] %v4968, 128
    %5337 = vxpose.xlu0.b32.cont [2/16] %v4974, 128
    %5338 = vxpose.xlu0.b32.cont [3/16] 0.0, 128
    %5339 = vxpose.xlu0.b32.cont [4/16] 0.0, 128
    %5340 = vxpose.xlu0.b32.cont [5/16] 0.0, 128
    %5341 = vxpose.xlu0.b32.cont [6/16] 0.0, 128
    %5342 = vxpose.xlu0.b32.cont [7/16] 0.0, 128
    %5343 = vxpose.xlu0.b32.cont [8/16] 0.0, 128
    %5344 = vxpose.xlu0.b32.cont [9/16] 0.0, 128
    %5345 = vxpose.xlu0.b32.cont [10/16] 0.0, 128
    %5346 = vxpose.xlu0.b32.cont [11/16] 0.0, 128
    %5347 = vxpose.xlu0.b32.cont [12/16] 0.0, 128
    %5348 = vxpose.xlu0.b32.cont [13/16] 0.0, 128
    %5349 = vxpose.xlu0.b32.cont [14/16] 0.0, 128
    %5350 = vxpose.xlu0.b32.cont [15/16] 0.0, 128
    %5351 = vxpose.xlu0.b32.end [16/16] 0.0, 128
    %v5352 = vpop.trf.xlu0
    %v5353 = vpop.trf.xlu0
    %v5354 = vpop.trf.xlu0
    %v5355 = vpop.trf.xlu0
    %v5356 = vpop.trf.xlu0
    %v5357 = vpop.trf.xlu0
    %v5358 = vpop.trf.xlu0
    %v5359 = vpop.trf.xlu0
    %v5360 = vpop.trf.xlu0
    %v5361 = vpop.trf.xlu0
    %v5362 = vpop.trf.xlu0
    %v5363 = vpop.trf.xlu0
    %v5364 = vpop.trf.xlu0
    %v5365 = vpop.trf.xlu0
    %v5366 = vpop.trf.xlu0
    %v5367 = vpop.trf.xlu0
    %5368 = vxpose.xlu0.b32.start [1/16] %v4980, 128
    %5369 = vxpose.xlu0.b32.cont [2/16] %v4986, 128
    %5370 = vxpose.xlu0.b32.cont [3/16] 0.0, 128
    %5371 = vxpose.xlu0.b32.cont [4/16] 0.0, 128
    %5372 = vxpose.xlu0.b32.cont [5/16] 0.0, 128
    %5373 = vxpose.xlu0.b32.cont [6/16] 0.0, 128
    %5374 = vxpose.xlu0.b32.cont [7/16] 0.0, 128
    %5375 = vxpose.xlu0.b32.cont [8/16] 0.0, 128
    %5376 = vxpose.xlu0.b32.cont [9/16] 0.0, 128
    %5377 = vxpose.xlu0.b32.cont [10/16] 0.0, 128
    %5378 = vxpose.xlu0.b32.cont [11/16] 0.0, 128
    %5379 = vxpose.xlu0.b32.cont [12/16] 0.0, 128
    %5380 = vxpose.xlu0.b32.cont [13/16] 0.0, 128
    %5381 = vxpose.xlu0.b32.cont [14/16] 0.0, 128
    %5382 = vxpose.xlu0.b32.cont [15/16] 0.0, 128
    %5383 = vxpose.xlu0.b32.end [16/16] 0.0, 128
    %v5384 = vpop.trf.xlu0
    %v5385 = vpop.trf.xlu0
    %v5386 = vpop.trf.xlu0
    %v5387 = vpop.trf.xlu0
    %v5388 = vpop.trf.xlu0
    %v5389 = vpop.trf.xlu0
    %v5390 = vpop.trf.xlu0
    %v5391 = vpop.trf.xlu0
    %v5392 = vpop.trf.xlu0
    %v5393 = vpop.trf.xlu0
    %v5394 = vpop.trf.xlu0
    %v5395 = vpop.trf.xlu0
    %v5396 = vpop.trf.xlu0
    %v5397 = vpop.trf.xlu0
    %v5398 = vpop.trf.xlu0
    %v5399 = vpop.trf.xlu0
    %5400 = vxpose.xlu0.b32.start [1/16] %v4992, 128
    %5401 = vxpose.xlu0.b32.cont [2/16] %v4998, 128
    %5402 = vxpose.xlu0.b32.cont [3/16] 0.0, 128
    %5403 = vxpose.xlu0.b32.cont [4/16] 0.0, 128
    %5404 = vxpose.xlu0.b32.cont [5/16] 0.0, 128
    %5405 = vxpose.xlu0.b32.cont [6/16] 0.0, 128
    %5406 = vxpose.xlu0.b32.cont [7/16] 0.0, 128
    %5407 = vxpose.xlu0.b32.cont [8/16] 0.0, 128
    %5408 = vxpose.xlu0.b32.cont [9/16] 0.0, 128
    %5409 = vxpose.xlu0.b32.cont [10/16] 0.0, 128
    %5410 = vxpose.xlu0.b32.cont [11/16] 0.0, 128
    %5411 = vxpose.xlu0.b32.cont [12/16] 0.0, 128
    %5412 = vxpose.xlu0.b32.cont [13/16] 0.0, 128
    %5413 = vxpose.xlu0.b32.cont [14/16] 0.0, 128
    %5414 = vxpose.xlu0.b32.cont [15/16] 0.0, 128
    %5415 = vxpose.xlu0.b32.end [16/16] 0.0, 128
    %v5416 = vpop.trf.xlu0
    %v5417 = vpop.trf.xlu0
    %v5418 = vpop.trf.xlu0
    %v5419 = vpop.trf.xlu0
    %v5420 = vpop.trf.xlu0
    %v5421 = vpop.trf.xlu0
    %v5422 = vpop.trf.xlu0
    %v5423 = vpop.trf.xlu0
    %v5424 = vpop.trf.xlu0
    %v5425 = vpop.trf.xlu0
    %v5426 = vpop.trf.xlu0
    %v5427 = vpop.trf.xlu0
    %v5428 = vpop.trf.xlu0
    %v5429 = vpop.trf.xlu0
    %v5430 = vpop.trf.xlu0
    %v5431 = vpop.trf.xlu0
    %5432 = vxpose.xlu0.b32.start [1/16] %v5004, 128
    %5433 = vxpose.xlu0.b32.cont [2/16] %v5010, 128
    %5434 = vxpose.xlu0.b32.cont [3/16] 0.0, 128
    %5435 = vxpose.xlu0.b32.cont [4/16] 0.0, 128
    %5436 = vxpose.xlu0.b32.cont [5/16] 0.0, 128
    %5437 = vxpose.xlu0.b32.cont [6/16] 0.0, 128
    %5438 = vxpose.xlu0.b32.cont [7/16] 0.0, 128
    %5439 = vxpose.xlu0.b32.cont [8/16] 0.0, 128
    %5440 = vxpose.xlu0.b32.cont [9/16] 0.0, 128
    %5441 = vxpose.xlu0.b32.cont [10/16] 0.0, 128
    %5442 = vxpose.xlu0.b32.cont [11/16] 0.0, 128
    %5443 = vxpose.xlu0.b32.cont [12/16] 0.0, 128
    %5444 = vxpose.xlu0.b32.cont [13/16] 0.0, 128
    %5445 = vxpose.xlu0.b32.cont [14/16] 0.0, 128
    %5446 = vxpose.xlu0.b32.cont [15/16] 0.0, 128
    %5447 = vxpose.xlu0.b32.end [16/16] 0.0, 128
    %v5448 = vpop.trf.xlu0
    %v5449 = vpop.trf.xlu0
    %v5450 = vpop.trf.xlu0
    %v5451 = vpop.trf.xlu0
    %v5452 = vpop.trf.xlu0
    %v5453 = vpop.trf.xlu0
    %v5454 = vpop.trf.xlu0
    %v5455 = vpop.trf.xlu0
    %v5456 = vpop.trf.xlu0
    %v5457 = vpop.trf.xlu0
    %v5458 = vpop.trf.xlu0
    %v5459 = vpop.trf.xlu0
    %v5460 = vpop.trf.xlu0
    %v5461 = vpop.trf.xlu0
    %v5462 = vpop.trf.xlu0
    %v5463 = vpop.trf.xlu0
    %5464 = vxpose.xlu0.b32.start [1/16] %v5016, 128
    %5465 = vxpose.xlu0.b32.cont [2/16] %v5022, 128
    %5466 = vxpose.xlu0.b32.cont [3/16] 0.0, 128
    %5467 = vxpose.xlu0.b32.cont [4/16] 0.0, 128
    %5468 = vxpose.xlu0.b32.cont [5/16] 0.0, 128
    %5469 = vxpose.xlu0.b32.cont [6/16] 0.0, 128
    %5470 = vxpose.xlu0.b32.cont [7/16] 0.0, 128
    %5471 = vxpose.xlu0.b32.cont [8/16] 0.0, 128
    %5472 = vxpose.xlu0.b32.cont [9/16] 0.0, 128
    %5473 = vxpose.xlu0.b32.cont [10/16] 0.0, 128
    %5474 = vxpose.xlu0.b32.cont [11/16] 0.0, 128
    %5475 = vxpose.xlu0.b32.cont [12/16] 0.0, 128
    %5476 = vxpose.xlu0.b32.cont [13/16] 0.0, 128
    %5477 = vxpose.xlu0.b32.cont [14/16] 0.0, 128
    %5478 = vxpose.xlu0.b32.cont [15/16] 0.0, 128
    %5479 = vxpose.xlu0.b32.end [16/16] 0.0, 128
    %v5480 = vpop.trf.xlu0
    %v5481 = vpop.trf.xlu0
    %v5482 = vpop.trf.xlu0
    %v5483 = vpop.trf.xlu0
    %v5484 = vpop.trf.xlu0
    %v5485 = vpop.trf.xlu0
    %v5486 = vpop.trf.xlu0
    %v5487 = vpop.trf.xlu0
    %v5488 = vpop.trf.xlu0
    %v5489 = vpop.trf.xlu0
    %v5490 = vpop.trf.xlu0
    %v5491 = vpop.trf.xlu0
    %v5492 = vpop.trf.xlu0
    %v5493 = vpop.trf.xlu0
    %v5494 = vpop.trf.xlu0
    %v5495 = vpop.trf.xlu0
    %5496 = vxpose.xlu0.b32.start [1/16] %v5028, 128
    %5497 = vxpose.xlu0.b32.cont [2/16] %v5034, 128
    %5498 = vxpose.xlu0.b32.cont [3/16] 0.0, 128
    %5499 = vxpose.xlu0.b32.cont [4/16] 0.0, 128
    %5500 = vxpose.xlu0.b32.cont [5/16] 0.0, 128
    %5501 = vxpose.xlu0.b32.cont [6/16] 0.0, 128
    %5502 = vxpose.xlu0.b32.cont [7/16] 0.0, 128
    %5503 = vxpose.xlu0.b32.cont [8/16] 0.0, 128
    %5504 = vxpose.xlu0.b32.cont [9/16] 0.0, 128
    %5505 = vxpose.xlu0.b32.cont [10/16] 0.0, 128
    %5506 = vxpose.xlu0.b32.cont [11/16] 0.0, 128
    %5507 = vxpose.xlu0.b32.cont [12/16] 0.0, 128
    %5508 = vxpose.xlu0.b32.cont [13/16] 0.0, 128
    %5509 = vxpose.xlu0.b32.cont [14/16] 0.0, 128
    %5510 = vxpose.xlu0.b32.cont [15/16] 0.0, 128
    %5511 = vxpose.xlu0.b32.end [16/16] 0.0, 128
    %v5512 = vpop.trf.xlu0
    %v5513 = vpop.trf.xlu0
    %v5514 = vpop.trf.xlu0
    %v5515 = vpop.trf.xlu0
    %v5516 = vpop.trf.xlu0
    %v5517 = vpop.trf.xlu0
    %v5518 = vpop.trf.xlu0
    %v5519 = vpop.trf.xlu0
    %v5520 = vpop.trf.xlu0
    %v5521 = vpop.trf.xlu0
    %v5522 = vpop.trf.xlu0
    %v5523 = vpop.trf.xlu0
    %v5524 = vpop.trf.xlu0
    %v5525 = vpop.trf.xlu0
    %v5526 = vpop.trf.xlu0
    %v5527 = vpop.trf.xlu0
    %5528 = vxpose.xlu0.b32.start [1/16] %v5040, 128
    %5529 = vxpose.xlu0.b32.cont [2/16] %v5046, 128
    %5530 = vxpose.xlu0.b32.cont [3/16] 0.0, 128
    %5531 = vxpose.xlu0.b32.cont [4/16] 0.0, 128
    %5532 = vxpose.xlu0.b32.cont [5/16] 0.0, 128
    %5533 = vxpose.xlu0.b32.cont [6/16] 0.0, 128
    %5534 = vxpose.xlu0.b32.cont [7/16] 0.0, 128
    %5535 = vxpose.xlu0.b32.cont [8/16] 0.0, 128
    %5536 = vxpose.xlu0.b32.cont [9/16] 0.0, 128
    %5537 = vxpose.xlu0.b32.cont [10/16] 0.0, 128
    %5538 = vxpose.xlu0.b32.cont [11/16] 0.0, 128
    %5539 = vxpose.xlu0.b32.cont [12/16] 0.0, 128
    %5540 = vxpose.xlu0.b32.cont [13/16] 0.0, 128
    %5541 = vxpose.xlu0.b32.cont [14/16] 0.0, 128
    %5542 = vxpose.xlu0.b32.cont [15/16] 0.0, 128
    %5543 = vxpose.xlu0.b32.end [16/16] 0.0, 128
    %v5544 = vpop.trf.xlu0
    %v5545 = vpop.trf.xlu0
    %v5546 = vpop.trf.xlu0
    %v5547 = vpop.trf.xlu0
    %v5548 = vpop.trf.xlu0
    %v5549 = vpop.trf.xlu0
    %v5550 = vpop.trf.xlu0
    %v5551 = vpop.trf.xlu0
    %v5552 = vpop.trf.xlu0
    %v5553 = vpop.trf.xlu0
    %v5554 = vpop.trf.xlu0
    %v5555 = vpop.trf.xlu0
    %v5556 = vpop.trf.xlu0
    %v5557 = vpop.trf.xlu0
    %v5558 = vpop.trf.xlu0
    %v5559 = vpop.trf.xlu0
    %v5561 = vsel %vm131, %v5064, 0
    %v5564 = vsel %vm131, %v5065, 0
    %v5567 = vsel %vm131, %v5066, 0
    %v5570 = vsel %vm131, %v5067, 0
    %v5573 = vsel %vm131, %v5068, 0
    %v5576 = vsel %vm131, %v5069, 0
    %v5579 = vsel %vm131, %v5070, 0
    %v5582 = vsel %vm131, %v5071, 0
    %v5585 = vsel %vm131, %v5072, 0
    %v5588 = vsel %vm131, %v5073, 0
    %v5591 = vsel %vm131, %v5074, 0
    %v5594 = vsel %vm131, %v5075, 0
    %v5597 = vsel %vm131, %v5076, 0
    %v5600 = vsel %vm131, %v5077, 0
    %v5603 = vsel %vm131, %v5078, 0
    %v5606 = vsel %vm131, %v5079, 0
    %v5609 = vsel %vm131, %v5096, 0
    %v5612 = vsel %vm131, %v5097, 0
    %v5615 = vsel %vm131, %v5098, 0
    %v5618 = vsel %vm131, %v5099, 0
    %v5621 = vsel %vm131, %v5100, 0
    %v5624 = vsel %vm131, %v5101, 0
    %v5627 = vsel %vm131, %v5102, 0
    %v5630 = vsel %vm131, %v5103, 0
    %v5633 = vsel %vm131, %v5104, 0
    %v5636 = vsel %vm131, %v5105, 0
    %v5639 = vsel %vm131, %v5106, 0
    %v5642 = vsel %vm131, %v5107, 0
    %v5645 = vsel %vm131, %v5108, 0
    %v5648 = vsel %vm131, %v5109, 0
    %v5651 = vsel %vm131, %v5110, 0
    %v5654 = vsel %vm131, %v5111, 0
    %v5657 = vsel %vm131, %v5128, 0
    %v5660 = vsel %vm131, %v5129, 0
    %v5663 = vsel %vm131, %v5130, 0
    %v5666 = vsel %vm131, %v5131, 0
    %v5669 = vsel %vm131, %v5132, 0
    %v5672 = vsel %vm131, %v5133, 0
    %v5675 = vsel %vm131, %v5134, 0
    %v5678 = vsel %vm131, %v5135, 0
    %v5681 = vsel %vm131, %v5136, 0
    %v5684 = vsel %vm131, %v5137, 0
    %v5687 = vsel %vm131, %v5138, 0
    %v5690 = vsel %vm131, %v5139, 0
    %v5693 = vsel %vm131, %v5140, 0
    %v5696 = vsel %vm131, %v5141, 0
    %v5699 = vsel %vm131, %v5142, 0
    %v5702 = vsel %vm131, %v5143, 0
    %v5705 = vsel %vm131, %v5160, 0
    %v5708 = vsel %vm131, %v5161, 0
    %v5711 = vsel %vm131, %v5162, 0
    %v5714 = vsel %vm131, %v5163, 0
    %v5717 = vsel %vm131, %v5164, 0
    %v5720 = vsel %vm131, %v5165, 0
    %v5723 = vsel %vm131, %v5166, 0
    %v5726 = vsel %vm131, %v5167, 0
    %v5729 = vsel %vm131, %v5168, 0
    %v5732 = vsel %vm131, %v5169, 0
    %v5735 = vsel %vm131, %v5170, 0
    %v5738 = vsel %vm131, %v5171, 0
    %v5741 = vsel %vm131, %v5172, 0
    %v5744 = vsel %vm131, %v5173, 0
    %v5747 = vsel %vm131, %v5174, 0
    %v5750 = vsel %vm131, %v5175, 0
    %v5753 = vsel %vm131, %v5192, 0
    %v5756 = vsel %vm131, %v5193, 0
    %v5759 = vsel %vm131, %v5194, 0
    %v5762 = vsel %vm131, %v5195, 0
    %v5765 = vsel %vm131, %v5196, 0
    %v5768 = vsel %vm131, %v5197, 0
    %v5771 = vsel %vm131, %v5198, 0
    %v5774 = vsel %vm131, %v5199, 0
    %v5777 = vsel %vm131, %v5200, 0
    %v5780 = vsel %vm131, %v5201, 0
    %v5783 = vsel %vm131, %v5202, 0
    %v5786 = vsel %vm131, %v5203, 0
    %v5789 = vsel %vm131, %v5204, 0
    %v5792 = vsel %vm131, %v5205, 0
    %v5795 = vsel %vm131, %v5206, 0
    %v5798 = vsel %vm131, %v5207, 0
    %v5801 = vsel %vm131, %v5224, 0
    %v5804 = vsel %vm131, %v5225, 0
    %v5807 = vsel %vm131, %v5226, 0
    %v5810 = vsel %vm131, %v5227, 0
    %v5813 = vsel %vm131, %v5228, 0
    %v5816 = vsel %vm131, %v5229, 0
    %v5819 = vsel %vm131, %v5230, 0
    %v5822 = vsel %vm131, %v5231, 0
    %v5825 = vsel %vm131, %v5232, 0
    %v5828 = vsel %vm131, %v5233, 0
    %v5831 = vsel %vm131, %v5234, 0
    %v5834 = vsel %vm131, %v5235, 0
    %v5837 = vsel %vm131, %v5236, 0
    %v5840 = vsel %vm131, %v5237, 0
    %v5843 = vsel %vm131, %v5238, 0
    %v5846 = vsel %vm131, %v5239, 0
    %v5849 = vsel %vm131, %v5256, 0
    %v5852 = vsel %vm131, %v5257, 0
    %v5855 = vsel %vm131, %v5258, 0
    %v5858 = vsel %vm131, %v5259, 0
    %v5861 = vsel %vm131, %v5260, 0
    %v5864 = vsel %vm131, %v5261, 0
    %v5867 = vsel %vm131, %v5262, 0
    %v5870 = vsel %vm131, %v5263, 0
    %v5873 = vsel %vm131, %v5264, 0
    %v5876 = vsel %vm131, %v5265, 0
    %v5879 = vsel %vm131, %v5266, 0
    %v5882 = vsel %vm131, %v5267, 0
    %v5885 = vsel %vm131, %v5268, 0
    %v5888 = vsel %vm131, %v5269, 0
    %v5891 = vsel %vm131, %v5270, 0
    %v5894 = vsel %vm131, %v5271, 0
    %v5897 = vsel %vm131, %v5288, 0
    %v5900 = vsel %vm131, %v5289, 0
    %v5903 = vsel %vm131, %v5290, 0
    %v5906 = vsel %vm131, %v5291, 0
    %v5909 = vsel %vm131, %v5292, 0
    %v5912 = vsel %vm131, %v5293, 0
    %v5915 = vsel %vm131, %v5294, 0
    %v5918 = vsel %vm131, %v5295, 0
    %v5921 = vsel %vm131, %v5296, 0
    %v5924 = vsel %vm131, %v5297, 0
    %v5927 = vsel %vm131, %v5298, 0
    %v5930 = vsel %vm131, %v5299, 0
    %v5933 = vsel %vm131, %v5300, 0
    %v5936 = vsel %vm131, %v5301, 0
    %v5939 = vsel %vm131, %v5302, 0
    %v5942 = vsel %vm131, %v5303, 0
    %5944 = vmatprep.subr.mxu0 %v112
    %5945 = vmatpush1.msra.mxu0 %v111
    %5946 = vmatprep.subr.mxu0 %v114
    %5947 = vmatpush1.msra.mxu0 %v113
    %5948 = vmatprep.subr.mxu0 0.0
    %5949 = vmatpush1.msra.mxu0 0.0
    %5950 = vmatprep.subr.mxu0 0.0
    %5951 = vmatpush1.msra.mxu0 0.0
    %5952 = vmatprep.subr.mxu0 0.0
    %5953 = vmatpush1.msra.mxu0 0.0
    %5954 = vmatprep.subr.mxu0 0.0
    %5955 = vmatpush1.msra.mxu0 0.0
    %5956 = vmatprep.subr.mxu0 0.0
    %5957 = vmatpush1.msra.mxu0 0.0
    %5958 = vmatprep.subr.mxu0 0.0
    %5959 = vmatpush1.msra.mxu0 0.0
    %5960 = vmatprep.subr.mxu0 0.0
    %5961 = vmatpush1.msra.mxu0 0.0
    %5962 = vmatprep.subr.mxu0 0.0
    %5963 = vmatpush1.msra.mxu0 0.0
    %5964 = vmatprep.subr.mxu0 0.0
    %5965 = vmatpush1.msra.mxu0 0.0
    %5966 = vmatprep.subr.mxu0 0.0
    %5967 = vmatpush1.msra.mxu0 0.0
    %5968 = vmatprep.subr.mxu0 0.0
    %5969 = vmatpush1.msra.mxu0 0.0
    %5970 = vmatprep.subr.mxu0 0.0
    %5971 = vmatpush1.msra.mxu0 0.0
    %5972 = vmatprep.subr.mxu0 0.0
    %5973 = vmatpush1.msra.mxu0 0.0
    %5974 = vmatprep.subr.mxu0 0.0
    %5975 = vmatpush1.msra.mxu0 0.0
    %5976 = vmatprep.subr.mxu0 0.0
    %5977 = vmatpush1.msra.mxu0 0.0
    %5978 = vmatprep.subr.mxu0 0.0
    %5979 = vmatpush1.msra.mxu0 0.0
    %5980 = vmatprep.subr.mxu0 0.0
    %5981 = vmatpush1.msra.mxu0 0.0
    %5982 = vmatprep.subr.mxu0 0.0
    %5983 = vmatpush1.msra.mxu0 0.0
    %5984 = vmatprep.subr.mxu0 0.0
    %5985 = vmatpush1.msra.mxu0 0.0
    %5986 = vmatprep.subr.mxu0 0.0
    %5987 = vmatpush1.msra.mxu0 0.0
    %5988 = vmatprep.subr.mxu0 0.0
    %5989 = vmatpush1.msra.mxu0 0.0
    %5990 = vmatprep.subr.mxu0 0.0
    %5991 = vmatpush1.msra.mxu0 0.0
    %5992 = vmatprep.subr.mxu0 0.0
    %5993 = vmatpush1.msra.mxu0 0.0
    %5994 = vmatprep.subr.mxu0 0.0
    %5995 = vmatpush1.msra.mxu0 0.0
    %5996 = vmatprep.subr.mxu0 0.0
    %5997 = vmatpush1.msra.mxu0 0.0
    %5998 = vmatprep.subr.mxu0 0.0
    %5999 = vmatpush1.msra.mxu0 0.0
    %6000 = vmatprep.subr.mxu0 0.0
    %6001 = vmatpush1.msra.mxu0 0.0
    %6002 = vmatprep.subr.mxu0 0.0
    %6003 = vmatpush1.msra.mxu0 0.0
    %6004 = vmatprep.subr.mxu0 0.0
    %6005 = vmatpush1.msra.mxu0 0.0
    %6006 = vmatprep.subr.mxu0 0.0
    %6007 = vmatpush1.msra.mxu0 0.0
    %6008 = vmatprep.mubr.f32.mxu0 0.0
    %6009 = vmatmul.mubr.f32.gmra.mrb[0].mxu0 %v5561
    %v6010 = vpop.f32.mrb[0].mxu0
    %v6011 = vadd.f32 0.0, %v6010
    %v6012 = vpop.f32.mrb[0].mxu0
    %v6013 = vadd.f32 0.0, %v6012
    %6014 = vmatprep.mubr.f32.mxu0 0.0
    %6015 = vmatmul.mubr.f32.gmra.mrb[0].mxu0 %v5564
    %v6016 = vpop.f32.mrb[0].mxu0
    %v6017 = vadd.f32 0.0, %v6016
    %v6018 = vpop.f32.mrb[0].mxu0
    %v6019 = vadd.f32 0.0, %v6018
    %6020 = vmatprep.mubr.f32.mxu0 0.0
    %6021 = vmatmul.mubr.f32.gmra.mrb[0].mxu0 %v5567
    %v6022 = vpop.f32.mrb[0].mxu0
    %v6023 = vadd.f32 0.0, %v6022
    %v6024 = vpop.f32.mrb[0].mxu0
    %v6025 = vadd.f32 0.0, %v6024
    %6026 = vmatprep.mubr.f32.mxu0 0.0
    %6027 = vmatmul.mubr.f32.gmra.mrb[0].mxu0 %v5570
    %v6028 = vpop.f32.mrb[0].mxu0
    %v6029 = vadd.f32 0.0, %v6028
    %v6030 = vpop.f32.mrb[0].mxu0
    %v6031 = vadd.f32 0.0, %v6030
    %6032 = vmatprep.mubr.f32.mxu0 0.0
    %6033 = vmatmul.mubr.f32.gmra.mrb[0].mxu0 %v5573
    %v6034 = vpop.f32.mrb[0].mxu0
    %v6035 = vadd.f32 0.0, %v6034
    %v6036 = vpop.f32.mrb[0].mxu0
    %v6037 = vadd.f32 0.0, %v6036
    %6038 = vmatprep.mubr.f32.mxu0 0.0
    %6039 = vmatmul.mubr.f32.gmra.mrb[0].mxu0 %v5576
    %v6040 = vpop.f32.mrb[0].mxu0
    %v6041 = vadd.f32 0.0, %v6040
    %v6042 = vpop.f32.mrb[0].mxu0
    %v6043 = vadd.f32 0.0, %v6042
    %6044 = vmatprep.mubr.f32.mxu0 0.0
    %6045 = vmatmul.mubr.f32.gmra.mrb[0].mxu0 %v5579
    %v6046 = vpop.f32.mrb[0].mxu0
    %v6047 = vadd.f32 0.0, %v6046
    %v6048 = vpop.f32.mrb[0].mxu0
    %v6049 = vadd.f32 0.0, %v6048
    %6050 = vmatprep.mubr.f32.mxu0 0.0
    %6051 = vmatmul.mubr.f32.gmra.mrb[0].mxu0 %v5582
    %v6052 = vpop.f32.mrb[0].mxu0
    %v6053 = vadd.f32 0.0, %v6052
    %v6054 = vpop.f32.mrb[0].mxu0
    %v6055 = vadd.f32 0.0, %v6054
    %6056 = vmatprep.mubr.f32.mxu0 0.0
    %6057 = vmatmul.mubr.f32.gmra.mrb[0].mxu0 %v5585
    %v6058 = vpop.f32.mrb[0].mxu0
    %v6059 = vadd.f32 0.0, %v6058
    %v6060 = vpop.f32.mrb[0].mxu0
    %v6061 = vadd.f32 0.0, %v6060
    %6062 = vmatprep.mubr.f32.mxu0 0.0
    %6063 = vmatmul.mubr.f32.gmra.mrb[0].mxu0 %v5588
    %v6064 = vpop.f32.mrb[0].mxu0
    %v6065 = vadd.f32 0.0, %v6064
    %v6066 = vpop.f32.mrb[0].mxu0
    %v6067 = vadd.f32 0.0, %v6066
    %6068 = vmatprep.mubr.f32.mxu0 0.0
    %6069 = vmatmul.mubr.f32.gmra.mrb[0].mxu0 %v5591
    %v6070 = vpop.f32.mrb[0].mxu0
    %v6071 = vadd.f32 0.0, %v6070
    %v6072 = vpop.f32.mrb[0].mxu0
    %v6073 = vadd.f32 0.0, %v6072
    %6074 = vmatprep.mubr.f32.mxu0 0.0
    %6075 = vmatmul.mubr.f32.gmra.mrb[0].mxu0 %v5594
    %v6076 = vpop.f32.mrb[0].mxu0
    %v6077 = vadd.f32 0.0, %v6076
    %v6078 = vpop.f32.mrb[0].mxu0
    %v6079 = vadd.f32 0.0, %v6078
    %6080 = vmatprep.mubr.f32.mxu0 0.0
    %6081 = vmatmul.mubr.f32.gmra.mrb[0].mxu0 %v5597
    %v6082 = vpop.f32.mrb[0].mxu0
    %v6083 = vadd.f32 0.0, %v6082
    %v6084 = vpop.f32.mrb[0].mxu0
    %v6085 = vadd.f32 0.0, %v6084
    %6086 = vmatprep.mubr.f32.mxu0 0.0
    %6087 = vmatmul.mubr.f32.gmra.mrb[0].mxu0 %v5600
    %v6088 = vpop.f32.mrb[0].mxu0
    %v6089 = vadd.f32 0.0, %v6088
    %v6090 = vpop.f32.mrb[0].mxu0
    %v6091 = vadd.f32 0.0, %v6090
    %6092 = vmatprep.mubr.f32.mxu0 0.0
    %6093 = vmatmul.mubr.f32.gmra.mrb[0].mxu0 %v5603
    %v6094 = vpop.f32.mrb[0].mxu0
    %v6095 = vadd.f32 0.0, %v6094
    %v6096 = vpop.f32.mrb[0].mxu0
    %v6097 = vadd.f32 0.0, %v6096
    %6098 = vmatprep.mubr.f32.mxu0 0.0
    %6099 = vmatmul.mubr.f32.gmra.mrb[0].mxu0 %v5606
    %v6100 = vpop.f32.mrb[0].mxu0
    %v6101 = vadd.f32 0.0, %v6100
    %v6102 = vpop.f32.mrb[0].mxu0
    %v6103 = vadd.f32 0.0, %v6102
    %6104 = vmatprep.mubr.f32.mxu0 0.0
    %6105 = vmatmul.mubr.f32.gmra.mrb[0].mxu0 %v5609
    %v6106 = vpop.f32.mrb[0].mxu0
    %v6107 = vadd.f32 0.0, %v6106
    %v6108 = vpop.f32.mrb[0].mxu0
    %v6109 = vadd.f32 0.0, %v6108
    %6110 = vmatprep.mubr.f32.mxu0 0.0
    %6111 = vmatmul.mubr.f32.gmra.mrb[0].mxu0 %v5612
    %v6112 = vpop.f32.mrb[0].mxu0
    %v6113 = vadd.f32 0.0, %v6112
    %v6114 = vpop.f32.mrb[0].mxu0
    %v6115 = vadd.f32 0.0, %v6114
    %6116 = vmatprep.mubr.f32.mxu0 0.0
    %6117 = vmatmul.mubr.f32.gmra.mrb[0].mxu0 %v5615
    %v6118 = vpop.f32.mrb[0].mxu0
    %v6119 = vadd.f32 0.0, %v6118
    %v6120 = vpop.f32.mrb[0].mxu0
    %v6121 = vadd.f32 0.0, %v6120
    %6122 = vmatprep.mubr.f32.mxu0 0.0
    %6123 = vmatmul.mubr.f32.gmra.mrb[0].mxu0 %v5618
    %v6124 = vpop.f32.mrb[0].mxu0
    %v6125 = vadd.f32 0.0, %v6124
    %v6126 = vpop.f32.mrb[0].mxu0
    %v6127 = vadd.f32 0.0, %v6126
    %6128 = vmatprep.mubr.f32.mxu0 0.0
    %6129 = vmatmul.mubr.f32.gmra.mrb[0].mxu0 %v5621
    %v6130 = vpop.f32.mrb[0].mxu0
    %v6131 = vadd.f32 0.0, %v6130
    %v6132 = vpop.f32.mrb[0].mxu0
    %v6133 = vadd.f32 0.0, %v6132
    %6134 = vmatprep.mubr.f32.mxu0 0.0
    %6135 = vmatmul.mubr.f32.gmra.mrb[0].mxu0 %v5624
    %v6136 = vpop.f32.mrb[0].mxu0
    %v6137 = vadd.f32 0.0, %v6136
    %v6138 = vpop.f32.mrb[0].mxu0
    %v6139 = vadd.f32 0.0, %v6138
    %6140 = vmatprep.mubr.f32.mxu0 0.0
    %6141 = vmatmul.mubr.f32.gmra.mrb[0].mxu0 %v5627
    %v6142 = vpop.f32.mrb[0].mxu0
    %v6143 = vadd.f32 0.0, %v6142
    %v6144 = vpop.f32.mrb[0].mxu0
    %v6145 = vadd.f32 0.0, %v6144
    %6146 = vmatprep.mubr.f32.mxu0 0.0
    %6147 = vmatmul.mubr.f32.gmra.mrb[0].mxu0 %v5630
    %v6148 = vpop.f32.mrb[0].mxu0
    %v6149 = vadd.f32 0.0, %v6148
    %v6150 = vpop.f32.mrb[0].mxu0
    %v6151 = vadd.f32 0.0, %v6150
    %6152 = vmatprep.mubr.f32.mxu0 0.0
    %6153 = vmatmul.mubr.f32.gmra.mrb[0].mxu0 %v5633
    %v6154 = vpop.f32.mrb[0].mxu0
    %v6155 = vadd.f32 0.0, %v6154
    %v6156 = vpop.f32.mrb[0].mxu0
    %v6157 = vadd.f32 0.0, %v6156
    %6158 = vmatprep.mubr.f32.mxu0 0.0
    %6159 = vmatmul.mubr.f32.gmra.mrb[0].mxu0 %v5636
    %v6160 = vpop.f32.mrb[0].mxu0
    %v6161 = vadd.f32 0.0, %v6160
    %v6162 = vpop.f32.mrb[0].mxu0
    %v6163 = vadd.f32 0.0, %v6162
    %6164 = vmatprep.mubr.f32.mxu0 0.0
    %6165 = vmatmul.mubr.f32.gmra.mrb[0].mxu0 %v5639
    %v6166 = vpop.f32.mrb[0].mxu0
    %v6167 = vadd.f32 0.0, %v6166
    %v6168 = vpop.f32.mrb[0].mxu0
    %v6169 = vadd.f32 0.0, %v6168
    %6170 = vmatprep.mubr.f32.mxu0 0.0
    %6171 = vmatmul.mubr.f32.gmra.mrb[0].mxu0 %v5642
    %v6172 = vpop.f32.mrb[0].mxu0
    %v6173 = vadd.f32 0.0, %v6172
    %v6174 = vpop.f32.mrb[0].mxu0
    %v6175 = vadd.f32 0.0, %v6174
    %6176 = vmatprep.mubr.f32.mxu0 0.0
    %6177 = vmatmul.mubr.f32.gmra.mrb[0].mxu0 %v5645
    %v6178 = vpop.f32.mrb[0].mxu0
    %v6179 = vadd.f32 0.0, %v6178
    %v6180 = vpop.f32.mrb[0].mxu0
    %v6181 = vadd.f32 0.0, %v6180
    %6182 = vmatprep.mubr.f32.mxu0 0.0
    %6183 = vmatmul.mubr.f32.gmra.mrb[0].mxu0 %v5648
    %v6184 = vpop.f32.mrb[0].mxu0
    %v6185 = vadd.f32 0.0, %v6184
    %v6186 = vpop.f32.mrb[0].mxu0
    %v6187 = vadd.f32 0.0, %v6186
    %6188 = vmatprep.mubr.f32.mxu0 0.0
    %6189 = vmatmul.mubr.f32.gmra.mrb[0].mxu0 %v5651
    %v6190 = vpop.f32.mrb[0].mxu0
    %v6191 = vadd.f32 0.0, %v6190
    %v6192 = vpop.f32.mrb[0].mxu0
    %v6193 = vadd.f32 0.0, %v6192
    %6194 = vmatprep.mubr.f32.mxu0 0.0
    %6195 = vmatmul.mubr.f32.gmra.mrb[0].mxu0 %v5654
    %v6196 = vpop.f32.mrb[0].mxu0
    %v6197 = vadd.f32 0.0, %v6196
    %v6198 = vpop.f32.mrb[0].mxu0
    %v6199 = vadd.f32 0.0, %v6198
    %6200 = vmatprep.mubr.f32.mxu0 0.0
    %6201 = vmatmul.mubr.f32.gmra.mrb[0].mxu0 %v5657
    %v6202 = vpop.f32.mrb[0].mxu0
    %v6203 = vadd.f32 0.0, %v6202
    %v6204 = vpop.f32.mrb[0].mxu0
    %v6205 = vadd.f32 0.0, %v6204
    %6206 = vmatprep.mubr.f32.mxu0 0.0
    %6207 = vmatmul.mubr.f32.gmra.mrb[0].mxu0 %v5660
    %v6208 = vpop.f32.mrb[0].mxu0
    %v6209 = vadd.f32 0.0, %v6208
    %v6210 = vpop.f32.mrb[0].mxu0
    %v6211 = vadd.f32 0.0, %v6210
    %6212 = vmatprep.mubr.f32.mxu0 0.0
    %6213 = vmatmul.mubr.f32.gmra.mrb[0].mxu0 %v5663
    %v6214 = vpop.f32.mrb[0].mxu0
    %v6215 = vadd.f32 0.0, %v6214
    %v6216 = vpop.f32.mrb[0].mxu0
    %v6217 = vadd.f32 0.0, %v6216
    %6218 = vmatprep.mubr.f32.mxu0 0.0
    %6219 = vmatmul.mubr.f32.gmra.mrb[0].mxu0 %v5666
    %v6220 = vpop.f32.mrb[0].mxu0
    %v6221 = vadd.f32 0.0, %v6220
    %v6222 = vpop.f32.mrb[0].mxu0
    %v6223 = vadd.f32 0.0, %v6222
    %6224 = vmatprep.mubr.f32.mxu0 0.0
    %6225 = vmatmul.mubr.f32.gmra.mrb[0].mxu0 %v5669
    %v6226 = vpop.f32.mrb[0].mxu0
    %v6227 = vadd.f32 0.0, %v6226
    %v6228 = vpop.f32.mrb[0].mxu0
    %v6229 = vadd.f32 0.0, %v6228
    %6230 = vmatprep.mubr.f32.mxu0 0.0
    %6231 = vmatmul.mubr.f32.gmra.mrb[0].mxu0 %v5672
    %v6232 = vpop.f32.mrb[0].mxu0
    %v6233 = vadd.f32 0.0, %v6232
    %v6234 = vpop.f32.mrb[0].mxu0
    %v6235 = vadd.f32 0.0, %v6234
    %6236 = vmatprep.mubr.f32.mxu0 0.0
    %6237 = vmatmul.mubr.f32.gmra.mrb[0].mxu0 %v5675
    %v6238 = vpop.f32.mrb[0].mxu0
    %v6239 = vadd.f32 0.0, %v6238
    %v6240 = vpop.f32.mrb[0].mxu0
    %v6241 = vadd.f32 0.0, %v6240
    %6242 = vmatprep.mubr.f32.mxu0 0.0
    %6243 = vmatmul.mubr.f32.gmra.mrb[0].mxu0 %v5678
    %v6244 = vpop.f32.mrb[0].mxu0
    %v6245 = vadd.f32 0.0, %v6244
    %v6246 = vpop.f32.mrb[0].mxu0
    %v6247 = vadd.f32 0.0, %v6246
    %6248 = vmatprep.mubr.f32.mxu0 0.0
    %6249 = vmatmul.mubr.f32.gmra.mrb[0].mxu0 %v5681
    %v6250 = vpop.f32.mrb[0].mxu0
    %v6251 = vadd.f32 0.0, %v6250
    %v6252 = vpop.f32.mrb[0].mxu0
    %v6253 = vadd.f32 0.0, %v6252
    %6254 = vmatprep.mubr.f32.mxu0 0.0
    %6255 = vmatmul.mubr.f32.gmra.mrb[0].mxu0 %v5684
    %v6256 = vpop.f32.mrb[0].mxu0
    %v6257 = vadd.f32 0.0, %v6256
    %v6258 = vpop.f32.mrb[0].mxu0
    %v6259 = vadd.f32 0.0, %v6258
    %6260 = vmatprep.mubr.f32.mxu0 0.0
    %6261 = vmatmul.mubr.f32.gmra.mrb[0].mxu0 %v5687
    %v6262 = vpop.f32.mrb[0].mxu0
    %v6263 = vadd.f32 0.0, %v6262
    %v6264 = vpop.f32.mrb[0].mxu0
    %v6265 = vadd.f32 0.0, %v6264
    %6266 = vmatprep.mubr.f32.mxu0 0.0
    %6267 = vmatmul.mubr.f32.gmra.mrb[0].mxu0 %v5690
    %v6268 = vpop.f32.mrb[0].mxu0
    %v6269 = vadd.f32 0.0, %v6268
    %v6270 = vpop.f32.mrb[0].mxu0
    %v6271 = vadd.f32 0.0, %v6270
    %6272 = vmatprep.mubr.f32.mxu0 0.0
    %6273 = vmatmul.mubr.f32.gmra.mrb[0].mxu0 %v5693
    %v6274 = vpop.f32.mrb[0].mxu0
    %v6275 = vadd.f32 0.0, %v6274
    %v6276 = vpop.f32.mrb[0].mxu0
    %v6277 = vadd.f32 0.0, %v6276
    %6278 = vmatprep.mubr.f32.mxu0 0.0
    %6279 = vmatmul.mubr.f32.gmra.mrb[0].mxu0 %v5696
    %v6280 = vpop.f32.mrb[0].mxu0
    %v6281 = vadd.f32 0.0, %v6280
    %v6282 = vpop.f32.mrb[0].mxu0
    %v6283 = vadd.f32 0.0, %v6282
    %6284 = vmatprep.mubr.f32.mxu0 0.0
    %6285 = vmatmul.mubr.f32.gmra.mrb[0].mxu0 %v5699
    %v6286 = vpop.f32.mrb[0].mxu0
    %v6287 = vadd.f32 0.0, %v6286
    %v6288 = vpop.f32.mrb[0].mxu0
    %v6289 = vadd.f32 0.0, %v6288
    %6290 = vmatprep.mubr.f32.mxu0 0.0
    %6291 = vmatmul.mubr.f32.gmra.mrb[0].mxu0 %v5702
    %v6292 = vpop.f32.mrb[0].mxu0
    %v6293 = vadd.f32 0.0, %v6292
    %v6294 = vpop.f32.mrb[0].mxu0
    %v6295 = vadd.f32 0.0, %v6294
    %6296 = vmatprep.mubr.f32.mxu0 0.0
    %6297 = vmatmul.mubr.f32.gmra.mrb[0].mxu0 %v5705
    %v6298 = vpop.f32.mrb[0].mxu0
    %v6299 = vadd.f32 0.0, %v6298
    %v6300 = vpop.f32.mrb[0].mxu0
    %v6301 = vadd.f32 0.0, %v6300
    %6302 = vmatprep.mubr.f32.mxu0 0.0
    %6303 = vmatmul.mubr.f32.gmra.mrb[0].mxu0 %v5708
    %v6304 = vpop.f32.mrb[0].mxu0
    %v6305 = vadd.f32 0.0, %v6304
    %v6306 = vpop.f32.mrb[0].mxu0
    %v6307 = vadd.f32 0.0, %v6306
    %6308 = vmatprep.mubr.f32.mxu0 0.0
    %6309 = vmatmul.mubr.f32.gmra.mrb[0].mxu0 %v5711
    %v6310 = vpop.f32.mrb[0].mxu0
    %v6311 = vadd.f32 0.0, %v6310
    %v6312 = vpop.f32.mrb[0].mxu0
    %v6313 = vadd.f32 0.0, %v6312
    %6314 = vmatprep.mubr.f32.mxu0 0.0
    %6315 = vmatmul.mubr.f32.gmra.mrb[0].mxu0 %v5714
    %v6316 = vpop.f32.mrb[0].mxu0
    %v6317 = vadd.f32 0.0, %v6316
    %v6318 = vpop.f32.mrb[0].mxu0
    %v6319 = vadd.f32 0.0, %v6318
    %6320 = vmatprep.mubr.f32.mxu0 0.0
    %6321 = vmatmul.mubr.f32.gmra.mrb[0].mxu0 %v5717
    %v6322 = vpop.f32.mrb[0].mxu0
    %v6323 = vadd.f32 0.0, %v6322
    %v6324 = vpop.f32.mrb[0].mxu0
    %v6325 = vadd.f32 0.0, %v6324
    %6326 = vmatprep.mubr.f32.mxu0 0.0
    %6327 = vmatmul.mubr.f32.gmra.mrb[0].mxu0 %v5720
    %v6328 = vpop.f32.mrb[0].mxu0
    %v6329 = vadd.f32 0.0, %v6328
    %v6330 = vpop.f32.mrb[0].mxu0
    %v6331 = vadd.f32 0.0, %v6330
    %6332 = vmatprep.mubr.f32.mxu0 0.0
    %6333 = vmatmul.mubr.f32.gmra.mrb[0].mxu0 %v5723
    %v6334 = vpop.f32.mrb[0].mxu0
    %v6335 = vadd.f32 0.0, %v6334
    %v6336 = vpop.f32.mrb[0].mxu0
    %v6337 = vadd.f32 0.0, %v6336
    %6338 = vmatprep.mubr.f32.mxu0 0.0
    %6339 = vmatmul.mubr.f32.gmra.mrb[0].mxu0 %v5726
    %v6340 = vpop.f32.mrb[0].mxu0
    %v6341 = vadd.f32 0.0, %v6340
    %v6342 = vpop.f32.mrb[0].mxu0
    %v6343 = vadd.f32 0.0, %v6342
    %6344 = vmatprep.mubr.f32.mxu0 0.0
    %6345 = vmatmul.mubr.f32.gmra.mrb[0].mxu0 %v5729
    %v6346 = vpop.f32.mrb[0].mxu0
    %v6347 = vadd.f32 0.0, %v6346
    %v6348 = vpop.f32.mrb[0].mxu0
    %v6349 = vadd.f32 0.0, %v6348
    %6350 = vmatprep.mubr.f32.mxu0 0.0
    %6351 = vmatmul.mubr.f32.gmra.mrb[0].mxu0 %v5732
    %v6352 = vpop.f32.mrb[0].mxu0
    %v6353 = vadd.f32 0.0, %v6352
    %v6354 = vpop.f32.mrb[0].mxu0
    %v6355 = vadd.f32 0.0, %v6354
    %6356 = vmatprep.mubr.f32.mxu0 0.0
    %6357 = vmatmul.mubr.f32.gmra.mrb[0].mxu0 %v5735
    %v6358 = vpop.f32.mrb[0].mxu0
    %v6359 = vadd.f32 0.0, %v6358
    %v6360 = vpop.f32.mrb[0].mxu0
    %v6361 = vadd.f32 0.0, %v6360
    %6362 = vmatprep.mubr.f32.mxu0 0.0
    %6363 = vmatmul.mubr.f32.gmra.mrb[0].mxu0 %v5738
    %v6364 = vpop.f32.mrb[0].mxu0
    %v6365 = vadd.f32 0.0, %v6364
    %v6366 = vpop.f32.mrb[0].mxu0
    %v6367 = vadd.f32 0.0, %v6366
    %6368 = vmatprep.mubr.f32.mxu0 0.0
    %6369 = vmatmul.mubr.f32.gmra.mrb[0].mxu0 %v5741
    %v6370 = vpop.f32.mrb[0].mxu0
    %v6371 = vadd.f32 0.0, %v6370
    %v6372 = vpop.f32.mrb[0].mxu0
    %v6373 = vadd.f32 0.0, %v6372
    %6374 = vmatprep.mubr.f32.mxu0 0.0
    %6375 = vmatmul.mubr.f32.gmra.mrb[0].mxu0 %v5744
    %v6376 = vpop.f32.mrb[0].mxu0
    %v6377 = vadd.f32 0.0, %v6376
    %v6378 = vpop.f32.mrb[0].mxu0
    %v6379 = vadd.f32 0.0, %v6378
    %6380 = vmatprep.mubr.f32.mxu0 0.0
    %6381 = vmatmul.mubr.f32.gmra.mrb[0].mxu0 %v5747
    %v6382 = vpop.f32.mrb[0].mxu0
    %v6383 = vadd.f32 0.0, %v6382
    %v6384 = vpop.f32.mrb[0].mxu0
    %v6385 = vadd.f32 0.0, %v6384
    %6386 = vmatprep.mubr.f32.mxu0 0.0
    %6387 = vmatmul.mubr.f32.gmra.mrb[0].mxu0 %v5750
    %v6388 = vpop.f32.mrb[0].mxu0
    %v6389 = vadd.f32 0.0, %v6388
    %v6390 = vpop.f32.mrb[0].mxu0
    %v6391 = vadd.f32 0.0, %v6390
    %6392 = vmatprep.mubr.f32.mxu0 0.0
    %6393 = vmatmul.mubr.f32.gmra.mrb[0].mxu0 %v5753
    %v6394 = vpop.f32.mrb[0].mxu0
    %v6395 = vadd.f32 0.0, %v6394
    %v6396 = vpop.f32.mrb[0].mxu0
    %v6397 = vadd.f32 0.0, %v6396
    %6398 = vmatprep.mubr.f32.mxu0 0.0
    %6399 = vmatmul.mubr.f32.gmra.mrb[0].mxu0 %v5756
    %v6400 = vpop.f32.mrb[0].mxu0
    %v6401 = vadd.f32 0.0, %v6400
    %v6402 = vpop.f32.mrb[0].mxu0
    %v6403 = vadd.f32 0.0, %v6402
    %6404 = vmatprep.mubr.f32.mxu0 0.0
    %6405 = vmatmul.mubr.f32.gmra.mrb[0].mxu0 %v5759
    %v6406 = vpop.f32.mrb[0].mxu0
    %v6407 = vadd.f32 0.0, %v6406
    %v6408 = vpop.f32.mrb[0].mxu0
    %v6409 = vadd.f32 0.0, %v6408
    %6410 = vmatprep.mubr.f32.mxu0 0.0
    %6411 = vmatmul.mubr.f32.gmra.mrb[0].mxu0 %v5762
    %v6412 = vpop.f32.mrb[0].mxu0
    %v6413 = vadd.f32 0.0, %v6412
    %v6414 = vpop.f32.mrb[0].mxu0
    %v6415 = vadd.f32 0.0, %v6414
    %6416 = vmatprep.mubr.f32.mxu0 0.0
    %6417 = vmatmul.mubr.f32.gmra.mrb[0].mxu0 %v5765
    %v6418 = vpop.f32.mrb[0].mxu0
    %v6419 = vadd.f32 0.0, %v6418
    %v6420 = vpop.f32.mrb[0].mxu0
    %v6421 = vadd.f32 0.0, %v6420
    %6422 = vmatprep.mubr.f32.mxu0 0.0
    %6423 = vmatmul.mubr.f32.gmra.mrb[0].mxu0 %v5768
    %v6424 = vpop.f32.mrb[0].mxu0
    %v6425 = vadd.f32 0.0, %v6424
    %v6426 = vpop.f32.mrb[0].mxu0
    %v6427 = vadd.f32 0.0, %v6426
    %6428 = vmatprep.mubr.f32.mxu0 0.0
    %6429 = vmatmul.mubr.f32.gmra.mrb[0].mxu0 %v5771
    %v6430 = vpop.f32.mrb[0].mxu0
    %v6431 = vadd.f32 0.0, %v6430
    %v6432 = vpop.f32.mrb[0].mxu0
    %v6433 = vadd.f32 0.0, %v6432
    %6434 = vmatprep.mubr.f32.mxu0 0.0
    %6435 = vmatmul.mubr.f32.gmra.mrb[0].mxu0 %v5774
    %v6436 = vpop.f32.mrb[0].mxu0
    %v6437 = vadd.f32 0.0, %v6436
    %v6438 = vpop.f32.mrb[0].mxu0
    %v6439 = vadd.f32 0.0, %v6438
    %6440 = vmatprep.mubr.f32.mxu0 0.0
    %6441 = vmatmul.mubr.f32.gmra.mrb[0].mxu0 %v5777
    %v6442 = vpop.f32.mrb[0].mxu0
    %v6443 = vadd.f32 0.0, %v6442
    %v6444 = vpop.f32.mrb[0].mxu0
    %v6445 = vadd.f32 0.0, %v6444
    %6446 = vmatprep.mubr.f32.mxu0 0.0
    %6447 = vmatmul.mubr.f32.gmra.mrb[0].mxu0 %v5780
    %v6448 = vpop.f32.mrb[0].mxu0
    %v6449 = vadd.f32 0.0, %v6448
    %v6450 = vpop.f32.mrb[0].mxu0
    %v6451 = vadd.f32 0.0, %v6450
    %6452 = vmatprep.mubr.f32.mxu0 0.0
    %6453 = vmatmul.mubr.f32.gmra.mrb[0].mxu0 %v5783
    %v6454 = vpop.f32.mrb[0].mxu0
    %v6455 = vadd.f32 0.0, %v6454
    %v6456 = vpop.f32.mrb[0].mxu0
    %v6457 = vadd.f32 0.0, %v6456
    %6458 = vmatprep.mubr.f32.mxu0 0.0
    %6459 = vmatmul.mubr.f32.gmra.mrb[0].mxu0 %v5786
    %v6460 = vpop.f32.mrb[0].mxu0
    %v6461 = vadd.f32 0.0, %v6460
    %v6462 = vpop.f32.mrb[0].mxu0
    %v6463 = vadd.f32 0.0, %v6462
    %6464 = vmatprep.mubr.f32.mxu0 0.0
    %6465 = vmatmul.mubr.f32.gmra.mrb[0].mxu0 %v5789
    %v6466 = vpop.f32.mrb[0].mxu0
    %v6467 = vadd.f32 0.0, %v6466
    %v6468 = vpop.f32.mrb[0].mxu0
    %v6469 = vadd.f32 0.0, %v6468
    %6470 = vmatprep.mubr.f32.mxu0 0.0
    %6471 = vmatmul.mubr.f32.gmra.mrb[0].mxu0 %v5792
    %v6472 = vpop.f32.mrb[0].mxu0
    %v6473 = vadd.f32 0.0, %v6472
    %v6474 = vpop.f32.mrb[0].mxu0
    %v6475 = vadd.f32 0.0, %v6474
    %6476 = vmatprep.mubr.f32.mxu0 0.0
    %6477 = vmatmul.mubr.f32.gmra.mrb[0].mxu0 %v5795
    %v6478 = vpop.f32.mrb[0].mxu0
    %v6479 = vadd.f32 0.0, %v6478
    %v6480 = vpop.f32.mrb[0].mxu0
    %v6481 = vadd.f32 0.0, %v6480
    %6482 = vmatprep.mubr.f32.mxu0 0.0
    %6483 = vmatmul.mubr.f32.gmra.mrb[0].mxu0 %v5798
    %v6484 = vpop.f32.mrb[0].mxu0
    %v6485 = vadd.f32 0.0, %v6484
    %v6486 = vpop.f32.mrb[0].mxu0
    %v6487 = vadd.f32 0.0, %v6486
    %6488 = vmatprep.mubr.f32.mxu0 0.0
    %6489 = vmatmul.mubr.f32.gmra.mrb[0].mxu0 %v5801
    %v6490 = vpop.f32.mrb[0].mxu0
    %v6491 = vadd.f32 0.0, %v6490
    %v6492 = vpop.f32.mrb[0].mxu0
    %v6493 = vadd.f32 0.0, %v6492
    %6494 = vmatprep.mubr.f32.mxu0 0.0
    %6495 = vmatmul.mubr.f32.gmra.mrb[0].mxu0 %v5804
    %v6496 = vpop.f32.mrb[0].mxu0
    %v6497 = vadd.f32 0.0, %v6496
    %v6498 = vpop.f32.mrb[0].mxu0
    %v6499 = vadd.f32 0.0, %v6498
    %6500 = vmatprep.mubr.f32.mxu0 0.0
    %6501 = vmatmul.mubr.f32.gmra.mrb[0].mxu0 %v5807
    %v6502 = vpop.f32.mrb[0].mxu0
    %v6503 = vadd.f32 0.0, %v6502
    %v6504 = vpop.f32.mrb[0].mxu0
    %v6505 = vadd.f32 0.0, %v6504
    %6506 = vmatprep.mubr.f32.mxu0 0.0
    %6507 = vmatmul.mubr.f32.gmra.mrb[0].mxu0 %v5810
    %v6508 = vpop.f32.mrb[0].mxu0
    %v6509 = vadd.f32 0.0, %v6508
    %v6510 = vpop.f32.mrb[0].mxu0
    %v6511 = vadd.f32 0.0, %v6510
    %6512 = vmatprep.mubr.f32.mxu0 0.0
    %6513 = vmatmul.mubr.f32.gmra.mrb[0].mxu0 %v5813
    %v6514 = vpop.f32.mrb[0].mxu0
    %v6515 = vadd.f32 0.0, %v6514
    %v6516 = vpop.f32.mrb[0].mxu0
    %v6517 = vadd.f32 0.0, %v6516
    %6518 = vmatprep.mubr.f32.mxu0 0.0
    %6519 = vmatmul.mubr.f32.gmra.mrb[0].mxu0 %v5816
    %v6520 = vpop.f32.mrb[0].mxu0
    %v6521 = vadd.f32 0.0, %v6520
    %v6522 = vpop.f32.mrb[0].mxu0
    %v6523 = vadd.f32 0.0, %v6522
    %6524 = vmatprep.mubr.f32.mxu0 0.0
    %6525 = vmatmul.mubr.f32.gmra.mrb[0].mxu0 %v5819
    %v6526 = vpop.f32.mrb[0].mxu0
    %v6527 = vadd.f32 0.0, %v6526
    %v6528 = vpop.f32.mrb[0].mxu0
    %v6529 = vadd.f32 0.0, %v6528
    %6530 = vmatprep.mubr.f32.mxu0 0.0
    %6531 = vmatmul.mubr.f32.gmra.mrb[0].mxu0 %v5822
    %v6532 = vpop.f32.mrb[0].mxu0
    %v6533 = vadd.f32 0.0, %v6532
    %v6534 = vpop.f32.mrb[0].mxu0
    %v6535 = vadd.f32 0.0, %v6534
    %6536 = vmatprep.mubr.f32.mxu0 0.0
    %6537 = vmatmul.mubr.f32.gmra.mrb[0].mxu0 %v5825
    %v6538 = vpop.f32.mrb[0].mxu0
    %v6539 = vadd.f32 0.0, %v6538
    %v6540 = vpop.f32.mrb[0].mxu0
    %v6541 = vadd.f32 0.0, %v6540
    %6542 = vmatprep.mubr.f32.mxu0 0.0
    %6543 = vmatmul.mubr.f32.gmra.mrb[0].mxu0 %v5828
    %v6544 = vpop.f32.mrb[0].mxu0
    %v6545 = vadd.f32 0.0, %v6544
    %v6546 = vpop.f32.mrb[0].mxu0
    %v6547 = vadd.f32 0.0, %v6546
    %6548 = vmatprep.mubr.f32.mxu0 0.0
    %6549 = vmatmul.mubr.f32.gmra.mrb[0].mxu0 %v5831
    %v6550 = vpop.f32.mrb[0].mxu0
    %v6551 = vadd.f32 0.0, %v6550
    %v6552 = vpop.f32.mrb[0].mxu0
    %v6553 = vadd.f32 0.0, %v6552
    %6554 = vmatprep.mubr.f32.mxu0 0.0
    %6555 = vmatmul.mubr.f32.gmra.mrb[0].mxu0 %v5834
    %v6556 = vpop.f32.mrb[0].mxu0
    %v6557 = vadd.f32 0.0, %v6556
    %v6558 = vpop.f32.mrb[0].mxu0
    %v6559 = vadd.f32 0.0, %v6558
    %6560 = vmatprep.mubr.f32.mxu0 0.0
    %6561 = vmatmul.mubr.f32.gmra.mrb[0].mxu0 %v5837
    %v6562 = vpop.f32.mrb[0].mxu0
    %v6563 = vadd.f32 0.0, %v6562
    %v6564 = vpop.f32.mrb[0].mxu0
    %v6565 = vadd.f32 0.0, %v6564
    %6566 = vmatprep.mubr.f32.mxu0 0.0
    %6567 = vmatmul.mubr.f32.gmra.mrb[0].mxu0 %v5840
    %v6568 = vpop.f32.mrb[0].mxu0
    %v6569 = vadd.f32 0.0, %v6568
    %v6570 = vpop.f32.mrb[0].mxu0
    %v6571 = vadd.f32 0.0, %v6570
    %6572 = vmatprep.mubr.f32.mxu0 0.0
    %6573 = vmatmul.mubr.f32.gmra.mrb[0].mxu0 %v5843
    %v6574 = vpop.f32.mrb[0].mxu0
    %v6575 = vadd.f32 0.0, %v6574
    %v6576 = vpop.f32.mrb[0].mxu0
    %v6577 = vadd.f32 0.0, %v6576
    %6578 = vmatprep.mubr.f32.mxu0 0.0
    %6579 = vmatmul.mubr.f32.gmra.mrb[0].mxu0 %v5846
    %v6580 = vpop.f32.mrb[0].mxu0
    %v6581 = vadd.f32 0.0, %v6580
    %v6582 = vpop.f32.mrb[0].mxu0
    %v6583 = vadd.f32 0.0, %v6582
    %6584 = vmatprep.mubr.f32.mxu0 0.0
    %6585 = vmatmul.mubr.f32.gmra.mrb[0].mxu0 %v5849
    %v6586 = vpop.f32.mrb[0].mxu0
    %v6587 = vadd.f32 0.0, %v6586
    %v6588 = vpop.f32.mrb[0].mxu0
    %v6589 = vadd.f32 0.0, %v6588
    %6590 = vmatprep.mubr.f32.mxu0 0.0
    %6591 = vmatmul.mubr.f32.gmra.mrb[0].mxu0 %v5852
    %v6592 = vpop.f32.mrb[0].mxu0
    %v6593 = vadd.f32 0.0, %v6592
    %v6594 = vpop.f32.mrb[0].mxu0
    %v6595 = vadd.f32 0.0, %v6594
    %6596 = vmatprep.mubr.f32.mxu0 0.0
    %6597 = vmatmul.mubr.f32.gmra.mrb[0].mxu0 %v5855
    %v6598 = vpop.f32.mrb[0].mxu0
    %v6599 = vadd.f32 0.0, %v6598
    %v6600 = vpop.f32.mrb[0].mxu0
    %v6601 = vadd.f32 0.0, %v6600
    %6602 = vmatprep.mubr.f32.mxu0 0.0
    %6603 = vmatmul.mubr.f32.gmra.mrb[0].mxu0 %v5858
    %v6604 = vpop.f32.mrb[0].mxu0
    %v6605 = vadd.f32 0.0, %v6604
    %v6606 = vpop.f32.mrb[0].mxu0
    %v6607 = vadd.f32 0.0, %v6606
    %6608 = vmatprep.mubr.f32.mxu0 0.0
    %6609 = vmatmul.mubr.f32.gmra.mrb[0].mxu0 %v5861
    %v6610 = vpop.f32.mrb[0].mxu0
    %v6611 = vadd.f32 0.0, %v6610
    %v6612 = vpop.f32.mrb[0].mxu0
    %v6613 = vadd.f32 0.0, %v6612
    %6614 = vmatprep.mubr.f32.mxu0 0.0
    %6615 = vmatmul.mubr.f32.gmra.mrb[0].mxu0 %v5864
    %v6616 = vpop.f32.mrb[0].mxu0
    %v6617 = vadd.f32 0.0, %v6616
    %v6618 = vpop.f32.mrb[0].mxu0
    %v6619 = vadd.f32 0.0, %v6618
    %6620 = vmatprep.mubr.f32.mxu0 0.0
    %6621 = vmatmul.mubr.f32.gmra.mrb[0].mxu0 %v5867
    %v6622 = vpop.f32.mrb[0].mxu0
    %v6623 = vadd.f32 0.0, %v6622
    %v6624 = vpop.f32.mrb[0].mxu0
    %v6625 = vadd.f32 0.0, %v6624
    %6626 = vmatprep.mubr.f32.mxu0 0.0
    %6627 = vmatmul.mubr.f32.gmra.mrb[0].mxu0 %v5870
    %v6628 = vpop.f32.mrb[0].mxu0
    %v6629 = vadd.f32 0.0, %v6628
    %v6630 = vpop.f32.mrb[0].mxu0
    %v6631 = vadd.f32 0.0, %v6630
    %6632 = vmatprep.mubr.f32.mxu0 0.0
    %6633 = vmatmul.mubr.f32.gmra.mrb[0].mxu0 %v5873
    %v6634 = vpop.f32.mrb[0].mxu0
    %v6635 = vadd.f32 0.0, %v6634
    %v6636 = vpop.f32.mrb[0].mxu0
    %v6637 = vadd.f32 0.0, %v6636
    %6638 = vmatprep.mubr.f32.mxu0 0.0
    %6639 = vmatmul.mubr.f32.gmra.mrb[0].mxu0 %v5876
    %v6640 = vpop.f32.mrb[0].mxu0
    %v6641 = vadd.f32 0.0, %v6640
    %v6642 = vpop.f32.mrb[0].mxu0
    %v6643 = vadd.f32 0.0, %v6642
    %6644 = vmatprep.mubr.f32.mxu0 0.0
    %6645 = vmatmul.mubr.f32.gmra.mrb[0].mxu0 %v5879
    %v6646 = vpop.f32.mrb[0].mxu0
    %v6647 = vadd.f32 0.0, %v6646
    %v6648 = vpop.f32.mrb[0].mxu0
    %v6649 = vadd.f32 0.0, %v6648
    %6650 = vmatprep.mubr.f32.mxu0 0.0
    %6651 = vmatmul.mubr.f32.gmra.mrb[0].mxu0 %v5882
    %v6652 = vpop.f32.mrb[0].mxu0
    %v6653 = vadd.f32 0.0, %v6652
    %v6654 = vpop.f32.mrb[0].mxu0
    %v6655 = vadd.f32 0.0, %v6654
    %6656 = vmatprep.mubr.f32.mxu0 0.0
    %6657 = vmatmul.mubr.f32.gmra.mrb[0].mxu0 %v5885
    %v6658 = vpop.f32.mrb[0].mxu0
    %v6659 = vadd.f32 0.0, %v6658
    %v6660 = vpop.f32.mrb[0].mxu0
    %v6661 = vadd.f32 0.0, %v6660
    %6662 = vmatprep.mubr.f32.mxu0 0.0
    %6663 = vmatmul.mubr.f32.gmra.mrb[0].mxu0 %v5888
    %v6664 = vpop.f32.mrb[0].mxu0
    %v6665 = vadd.f32 0.0, %v6664
    %v6666 = vpop.f32.mrb[0].mxu0
    %v6667 = vadd.f32 0.0, %v6666
    %6668 = vmatprep.mubr.f32.mxu0 0.0
    %6669 = vmatmul.mubr.f32.gmra.mrb[0].mxu0 %v5891
    %v6670 = vpop.f32.mrb[0].mxu0
    %v6671 = vadd.f32 0.0, %v6670
    %v6672 = vpop.f32.mrb[0].mxu0
    %v6673 = vadd.f32 0.0, %v6672
    %6674 = vmatprep.mubr.f32.mxu0 0.0
    %6675 = vmatmul.mubr.f32.gmra.mrb[0].mxu0 %v5894
    %v6676 = vpop.f32.mrb[0].mxu0
    %v6677 = vadd.f32 0.0, %v6676
    %v6678 = vpop.f32.mrb[0].mxu0
    %v6679 = vadd.f32 0.0, %v6678
    %6680 = vmatprep.mubr.f32.mxu0 0.0
    %6681 = vmatmul.mubr.f32.gmra.mrb[0].mxu0 %v5897
    %v6682 = vpop.f32.mrb[0].mxu0
    %v6683 = vadd.f32 0.0, %v6682
    %v6684 = vpop.f32.mrb[0].mxu0
    %v6685 = vadd.f32 0.0, %v6684
    %6686 = vmatprep.mubr.f32.mxu0 0.0
    %6687 = vmatmul.mubr.f32.gmra.mrb[0].mxu0 %v5900
    %v6688 = vpop.f32.mrb[0].mxu0
    %v6689 = vadd.f32 0.0, %v6688
    %v6690 = vpop.f32.mrb[0].mxu0
    %v6691 = vadd.f32 0.0, %v6690
    %6692 = vmatprep.mubr.f32.mxu0 0.0
    %6693 = vmatmul.mubr.f32.gmra.mrb[0].mxu0 %v5903
    %v6694 = vpop.f32.mrb[0].mxu0
    %v6695 = vadd.f32 0.0, %v6694
    %v6696 = vpop.f32.mrb[0].mxu0
    %v6697 = vadd.f32 0.0, %v6696
    %6698 = vmatprep.mubr.f32.mxu0 0.0
    %6699 = vmatmul.mubr.f32.gmra.mrb[0].mxu0 %v5906
    %v6700 = vpop.f32.mrb[0].mxu0
    %v6701 = vadd.f32 0.0, %v6700
    %v6702 = vpop.f32.mrb[0].mxu0
    %v6703 = vadd.f32 0.0, %v6702
    %6704 = vmatprep.mubr.f32.mxu0 0.0
    %6705 = vmatmul.mubr.f32.gmra.mrb[0].mxu0 %v5909
    %v6706 = vpop.f32.mrb[0].mxu0
    %v6707 = vadd.f32 0.0, %v6706
    %v6708 = vpop.f32.mrb[0].mxu0
    %v6709 = vadd.f32 0.0, %v6708
    %6710 = vmatprep.mubr.f32.mxu0 0.0
    %6711 = vmatmul.mubr.f32.gmra.mrb[0].mxu0 %v5912
    %v6712 = vpop.f32.mrb[0].mxu0
    %v6713 = vadd.f32 0.0, %v6712
    %v6714 = vpop.f32.mrb[0].mxu0
    %v6715 = vadd.f32 0.0, %v6714
    %6716 = vmatprep.mubr.f32.mxu0 0.0
    %6717 = vmatmul.mubr.f32.gmra.mrb[0].mxu0 %v5915
    %v6718 = vpop.f32.mrb[0].mxu0
    %v6719 = vadd.f32 0.0, %v6718
    %v6720 = vpop.f32.mrb[0].mxu0
    %v6721 = vadd.f32 0.0, %v6720
    %6722 = vmatprep.mubr.f32.mxu0 0.0
    %6723 = vmatmul.mubr.f32.gmra.mrb[0].mxu0 %v5918
    %v6724 = vpop.f32.mrb[0].mxu0
    %v6725 = vadd.f32 0.0, %v6724
    %v6726 = vpop.f32.mrb[0].mxu0
    %v6727 = vadd.f32 0.0, %v6726
    %6728 = vmatprep.mubr.f32.mxu0 0.0
    %6729 = vmatmul.mubr.f32.gmra.mrb[0].mxu0 %v5921
    %v6730 = vpop.f32.mrb[0].mxu0
    %v6731 = vadd.f32 0.0, %v6730
    %v6732 = vpop.f32.mrb[0].mxu0
    %v6733 = vadd.f32 0.0, %v6732
    %6734 = vmatprep.mubr.f32.mxu0 0.0
    %6735 = vmatmul.mubr.f32.gmra.mrb[0].mxu0 %v5924
    %v6736 = vpop.f32.mrb[0].mxu0
    %v6737 = vadd.f32 0.0, %v6736
    %v6738 = vpop.f32.mrb[0].mxu0
    %v6739 = vadd.f32 0.0, %v6738
    %6740 = vmatprep.mubr.f32.mxu0 0.0
    %6741 = vmatmul.mubr.f32.gmra.mrb[0].mxu0 %v5927
    %v6742 = vpop.f32.mrb[0].mxu0
    %v6743 = vadd.f32 0.0, %v6742
    %v6744 = vpop.f32.mrb[0].mxu0
    %v6745 = vadd.f32 0.0, %v6744
    %6746 = vmatprep.mubr.f32.mxu0 0.0
    %6747 = vmatmul.mubr.f32.gmra.mrb[0].mxu0 %v5930
    %v6748 = vpop.f32.mrb[0].mxu0
    %v6749 = vadd.f32 0.0, %v6748
    %v6750 = vpop.f32.mrb[0].mxu0
    %v6751 = vadd.f32 0.0, %v6750
    %6752 = vmatprep.mubr.f32.mxu0 0.0
    %6753 = vmatmul.mubr.f32.gmra.mrb[0].mxu0 %v5933
    %v6754 = vpop.f32.mrb[0].mxu0
    %v6755 = vadd.f32 0.0, %v6754
    %v6756 = vpop.f32.mrb[0].mxu0
    %v6757 = vadd.f32 0.0, %v6756
    %6758 = vmatprep.mubr.f32.mxu0 0.0
    %6759 = vmatmul.mubr.f32.gmra.mrb[0].mxu0 %v5936
    %v6760 = vpop.f32.mrb[0].mxu0
    %v6761 = vadd.f32 0.0, %v6760
    %v6762 = vpop.f32.mrb[0].mxu0
    %v6763 = vadd.f32 0.0, %v6762
    %6764 = vmatprep.mubr.f32.mxu0 0.0
    %6765 = vmatmul.mubr.f32.gmra.mrb[0].mxu0 %v5939
    %v6766 = vpop.f32.mrb[0].mxu0
    %v6767 = vadd.f32 0.0, %v6766
    %v6768 = vpop.f32.mrb[0].mxu0
    %v6769 = vadd.f32 0.0, %v6768
    %6770 = vmatprep.mubr.f32.mxu0 0.0
    %6771 = vmatmul.mubr.f32.gmra.mrb[0].mxu0 %v5942
    %v6772 = vpop.f32.mrb[0].mxu0
    %v6773 = vadd.f32 0.0, %v6772
    %v6774 = vpop.f32.mrb[0].mxu0
    %v6775 = vadd.f32 0.0, %v6774
    %6776 = vdwg.mxu0
    %v6778 = vsel %vm131, %v5320, 0
    %v6781 = vsel %vm131, %v5321, 0
    %v6784 = vsel %vm131, %v5322, 0
    %v6787 = vsel %vm131, %v5323, 0
    %v6790 = vsel %vm131, %v5324, 0
    %v6793 = vsel %vm131, %v5325, 0
    %v6796 = vsel %vm131, %v5326, 0
    %v6799 = vsel %vm131, %v5327, 0
    %v6802 = vsel %vm131, %v5328, 0
    %v6805 = vsel %vm131, %v5329, 0
    %v6808 = vsel %vm131, %v5330, 0
    %v6811 = vsel %vm131, %v5331, 0
    %v6814 = vsel %vm131, %v5332, 0
    %v6817 = vsel %vm131, %v5333, 0
    %v6820 = vsel %vm131, %v5334, 0
    %v6823 = vsel %vm131, %v5335, 0
    %v6826 = vsel %vm131, %v5352, 0
    %v6829 = vsel %vm131, %v5353, 0
    %v6832 = vsel %vm131, %v5354, 0
    %v6835 = vsel %vm131, %v5355, 0
    %v6838 = vsel %vm131, %v5356, 0
    %v6841 = vsel %vm131, %v5357, 0
    %v6844 = vsel %vm131, %v5358, 0
    %v6847 = vsel %vm131, %v5359, 0
    %v6850 = vsel %vm131, %v5360, 0
    %v6853 = vsel %vm131, %v5361, 0
    %v6856 = vsel %vm131, %v5362, 0
    %v6859 = vsel %vm131, %v5363, 0
    %v6862 = vsel %vm131, %v5364, 0
    %v6865 = vsel %vm131, %v5365, 0
    %v6868 = vsel %vm131, %v5366, 0
    %v6871 = vsel %vm131, %v5367, 0
    %v6874 = vsel %vm131, %v5384, 0
    %v6877 = vsel %vm131, %v5385, 0
    %v6880 = vsel %vm131, %v5386, 0
    %v6883 = vsel %vm131, %v5387, 0
    %v6886 = vsel %vm131, %v5388, 0
    %v6889 = vsel %vm131, %v5389, 0
    %v6892 = vsel %vm131, %v5390, 0
    %v6895 = vsel %vm131, %v5391, 0
    %v6898 = vsel %vm131, %v5392, 0
    %v6901 = vsel %vm131, %v5393, 0
    %v6904 = vsel %vm131, %v5394, 0
    %v6907 = vsel %vm131, %v5395, 0
    %v6910 = vsel %vm131, %v5396, 0
    %v6913 = vsel %vm131, %v5397, 0
    %v6916 = vsel %vm131, %v5398, 0
    %v6919 = vsel %vm131, %v5399, 0
    %v6922 = vsel %vm131, %v5416, 0
    %v6925 = vsel %vm131, %v5417, 0
    %v6928 = vsel %vm131, %v5418, 0
    %v6931 = vsel %vm131, %v5419, 0
    %v6934 = vsel %vm131, %v5420, 0
    %v6937 = vsel %vm131, %v5421, 0
    %v6940 = vsel %vm131, %v5422, 0
    %v6943 = vsel %vm131, %v5423, 0
    %v6946 = vsel %vm131, %v5424, 0
    %v6949 = vsel %vm131, %v5425, 0
    %v6952 = vsel %vm131, %v5426, 0
    %v6955 = vsel %vm131, %v5427, 0
    %v6958 = vsel %vm131, %v5428, 0
    %v6961 = vsel %vm131, %v5429, 0
    %v6964 = vsel %vm131, %v5430, 0
    %v6967 = vsel %vm131, %v5431, 0
    %v6970 = vsel %vm131, %v5448, 0
    %v6973 = vsel %vm131, %v5449, 0
    %v6976 = vsel %vm131, %v5450, 0
    %v6979 = vsel %vm131, %v5451, 0
    %v6982 = vsel %vm131, %v5452, 0
    %v6985 = vsel %vm131, %v5453, 0
    %v6988 = vsel %vm131, %v5454, 0
    %v6991 = vsel %vm131, %v5455, 0
    %v6994 = vsel %vm131, %v5456, 0
    %v6997 = vsel %vm131, %v5457, 0
    %v7000 = vsel %vm131, %v5458, 0
    %v7003 = vsel %vm131, %v5459, 0
    %v7006 = vsel %vm131, %v5460, 0
    %v7009 = vsel %vm131, %v5461, 0
    %v7012 = vsel %vm131, %v5462, 0
    %v7015 = vsel %vm131, %v5463, 0
    %v7018 = vsel %vm131, %v5480, 0
    %v7021 = vsel %vm131, %v5481, 0
    %v7024 = vsel %vm131, %v5482, 0
    %v7027 = vsel %vm131, %v5483, 0
    %v7030 = vsel %vm131, %v5484, 0
    %v7033 = vsel %vm131, %v5485, 0
    %v7036 = vsel %vm131, %v5486, 0
    %v7039 = vsel %vm131, %v5487, 0
    %v7042 = vsel %vm131, %v5488, 0
    %v7045 = vsel %vm131, %v5489, 0
    %v7048 = vsel %vm131, %v5490, 0
    %v7051 = vsel %vm131, %v5491, 0
    %v7054 = vsel %vm131, %v5492, 0
    %v7057 = vsel %vm131, %v5493, 0
    %v7060 = vsel %vm131, %v5494, 0
    %v7063 = vsel %vm131, %v5495, 0
    %v7066 = vsel %vm131, %v5512, 0
    %v7069 = vsel %vm131, %v5513, 0
    %v7072 = vsel %vm131, %v5514, 0
    %v7075 = vsel %vm131, %v5515, 0
    %v7078 = vsel %vm131, %v5516, 0
    %v7081 = vsel %vm131, %v5517, 0
    %v7084 = vsel %vm131, %v5518, 0
    %v7087 = vsel %vm131, %v5519, 0
    %v7090 = vsel %vm131, %v5520, 0
    %v7093 = vsel %vm131, %v5521, 0
    %v7096 = vsel %vm131, %v5522, 0
    %v7099 = vsel %vm131, %v5523, 0
    %v7102 = vsel %vm131, %v5524, 0
    %v7105 = vsel %vm131, %v5525, 0
    %v7108 = vsel %vm131, %v5526, 0
    %v7111 = vsel %vm131, %v5527, 0
    %v7114 = vsel %vm131, %v5544, 0
    %v7117 = vsel %vm131, %v5545, 0
    %v7120 = vsel %vm131, %v5546, 0
    %v7123 = vsel %vm131, %v5547, 0
    %v7126 = vsel %vm131, %v5548, 0
    %v7129 = vsel %vm131, %v5549, 0
    %v7132 = vsel %vm131, %v5550, 0
    %v7135 = vsel %vm131, %v5551, 0
    %v7138 = vsel %vm131, %v5552, 0
    %v7141 = vsel %vm131, %v5553, 0
    %v7144 = vsel %vm131, %v5554, 0
    %v7147 = vsel %vm131, %v5555, 0
    %v7150 = vsel %vm131, %v5556, 0
    %v7153 = vsel %vm131, %v5557, 0
    %v7156 = vsel %vm131, %v5558, 0
    %v7159 = vsel %vm131, %v5559, 0
    %7161 = vmatprep.subr.mxu0 %v112
    %7162 = vmatpush1.msra.mxu0 %v111
    %7163 = vmatprep.subr.mxu0 %v114
    %7164 = vmatpush1.msra.mxu0 %v113
    %7165 = vmatprep.subr.mxu0 0.0
    %7166 = vmatpush1.msra.mxu0 0.0
    %7167 = vmatprep.subr.mxu0 0.0
    %7168 = vmatpush1.msra.mxu0 0.0
    %7169 = vmatprep.subr.mxu0 0.0
    %7170 = vmatpush1.msra.mxu0 0.0
    %7171 = vmatprep.subr.mxu0 0.0
    %7172 = vmatpush1.msra.mxu0 0.0
    %7173 = vmatprep.subr.mxu0 0.0
    %7174 = vmatpush1.msra.mxu0 0.0
    %7175 = vmatprep.subr.mxu0 0.0
    %7176 = vmatpush1.msra.mxu0 0.0
    %7177 = vmatprep.subr.mxu0 0.0
    %7178 = vmatpush1.msra.mxu0 0.0
    %7179 = vmatprep.subr.mxu0 0.0
    %7180 = vmatpush1.msra.mxu0 0.0
    %7181 = vmatprep.subr.mxu0 0.0
    %7182 = vmatpush1.msra.mxu0 0.0
    %7183 = vmatprep.subr.mxu0 0.0
    %7184 = vmatpush1.msra.mxu0 0.0
    %7185 = vmatprep.subr.mxu0 0.0
    %7186 = vmatpush1.msra.mxu0 0.0
    %7187 = vmatprep.subr.mxu0 0.0
    %7188 = vmatpush1.msra.mxu0 0.0
    %7189 = vmatprep.subr.mxu0 0.0
    %7190 = vmatpush1.msra.mxu0 0.0
    %7191 = vmatprep.subr.mxu0 0.0
    %7192 = vmatpush1.msra.mxu0 0.0
    %7193 = vmatprep.subr.mxu0 0.0
    %7194 = vmatpush1.msra.mxu0 0.0
    %7195 = vmatprep.subr.mxu0 0.0
    %7196 = vmatpush1.msra.mxu0 0.0
    %7197 = vmatprep.subr.mxu0 0.0
    %7198 = vmatpush1.msra.mxu0 0.0
    %7199 = vmatprep.subr.mxu0 0.0
    %7200 = vmatpush1.msra.mxu0 0.0
    %7201 = vmatprep.subr.mxu0 0.0
    %7202 = vmatpush1.msra.mxu0 0.0
    %7203 = vmatprep.subr.mxu0 0.0
    %7204 = vmatpush1.msra.mxu0 0.0
    %7205 = vmatprep.subr.mxu0 0.0
    %7206 = vmatpush1.msra.mxu0 0.0
    %7207 = vmatprep.subr.mxu0 0.0
    %7208 = vmatpush1.msra.mxu0 0.0
    %7209 = vmatprep.subr.mxu0 0.0
    %7210 = vmatpush1.msra.mxu0 0.0
    %7211 = vmatprep.subr.mxu0 0.0
    %7212 = vmatpush1.msra.mxu0 0.0
    %7213 = vmatprep.subr.mxu0 0.0
    %7214 = vmatpush1.msra.mxu0 0.0
    %7215 = vmatprep.subr.mxu0 0.0
    %7216 = vmatpush1.msra.mxu0 0.0
    %7217 = vmatprep.subr.mxu0 0.0
    %7218 = vmatpush1.msra.mxu0 0.0
    %7219 = vmatprep.subr.mxu0 0.0
    %7220 = vmatpush1.msra.mxu0 0.0
    %7221 = vmatprep.subr.mxu0 0.0
    %7222 = vmatpush1.msra.mxu0 0.0
    %7223 = vmatprep.subr.mxu0 0.0
    %7224 = vmatpush1.msra.mxu0 0.0
    %7225 = vmatprep.mubr.f32.mxu0 0.0
    %7226 = vmatmul.mubr.f32.gmra.mrb[0].mxu0 %v6778
    %v7227 = vpop.f32.mrb[0].mxu0
    %v7228 = vadd.f32 0.0, %v7227
    %v7229 = vpop.f32.mrb[0].mxu0
    %v7230 = vadd.f32 0.0, %v7229
    %7231 = vmatprep.mubr.f32.mxu0 0.0
    %7232 = vmatmul.mubr.f32.gmra.mrb[0].mxu0 %v6781
    %v7233 = vpop.f32.mrb[0].mxu0
    %v7234 = vadd.f32 0.0, %v7233
    %v7235 = vpop.f32.mrb[0].mxu0
    %v7236 = vadd.f32 0.0, %v7235
    %7237 = vmatprep.mubr.f32.mxu0 0.0
    %7238 = vmatmul.mubr.f32.gmra.mrb[0].mxu0 %v6784
    %v7239 = vpop.f32.mrb[0].mxu0
    %v7240 = vadd.f32 0.0, %v7239
    %v7241 = vpop.f32.mrb[0].mxu0
    %v7242 = vadd.f32 0.0, %v7241
    %7243 = vmatprep.mubr.f32.mxu0 0.0
    %7244 = vmatmul.mubr.f32.gmra.mrb[0].mxu0 %v6787
    %v7245 = vpop.f32.mrb[0].mxu0
    %v7246 = vadd.f32 0.0, %v7245
    %v7247 = vpop.f32.mrb[0].mxu0
    %v7248 = vadd.f32 0.0, %v7247
    %7249 = vmatprep.mubr.f32.mxu0 0.0
    %7250 = vmatmul.mubr.f32.gmra.mrb[0].mxu0 %v6790
    %v7251 = vpop.f32.mrb[0].mxu0
    %v7252 = vadd.f32 0.0, %v7251
    %v7253 = vpop.f32.mrb[0].mxu0
    %v7254 = vadd.f32 0.0, %v7253
    %7255 = vmatprep.mubr.f32.mxu0 0.0
    %7256 = vmatmul.mubr.f32.gmra.mrb[0].mxu0 %v6793
    %v7257 = vpop.f32.mrb[0].mxu0
    %v7258 = vadd.f32 0.0, %v7257
    %v7259 = vpop.f32.mrb[0].mxu0
    %v7260 = vadd.f32 0.0, %v7259
    %7261 = vmatprep.mubr.f32.mxu0 0.0
    %7262 = vmatmul.mubr.f32.gmra.mrb[0].mxu0 %v6796
    %v7263 = vpop.f32.mrb[0].mxu0
    %v7264 = vadd.f32 0.0, %v7263
    %v7265 = vpop.f32.mrb[0].mxu0
    %v7266 = vadd.f32 0.0, %v7265
    %7267 = vmatprep.mubr.f32.mxu0 0.0
    %7268 = vmatmul.mubr.f32.gmra.mrb[0].mxu0 %v6799
    %v7269 = vpop.f32.mrb[0].mxu0
    %v7270 = vadd.f32 0.0, %v7269
    %v7271 = vpop.f32.mrb[0].mxu0
    %v7272 = vadd.f32 0.0, %v7271
    %7273 = vmatprep.mubr.f32.mxu0 0.0
    %7274 = vmatmul.mubr.f32.gmra.mrb[0].mxu0 %v6802
    %v7275 = vpop.f32.mrb[0].mxu0
    %v7276 = vadd.f32 0.0, %v7275
    %v7277 = vpop.f32.mrb[0].mxu0
    %v7278 = vadd.f32 0.0, %v7277
    %7279 = vmatprep.mubr.f32.mxu0 0.0
    %7280 = vmatmul.mubr.f32.gmra.mrb[0].mxu0 %v6805
    %v7281 = vpop.f32.mrb[0].mxu0
    %v7282 = vadd.f32 0.0, %v7281
    %v7283 = vpop.f32.mrb[0].mxu0
    %v7284 = vadd.f32 0.0, %v7283
    %7285 = vmatprep.mubr.f32.mxu0 0.0
    %7286 = vmatmul.mubr.f32.gmra.mrb[0].mxu0 %v6808
    %v7287 = vpop.f32.mrb[0].mxu0
    %v7288 = vadd.f32 0.0, %v7287
    %v7289 = vpop.f32.mrb[0].mxu0
    %v7290 = vadd.f32 0.0, %v7289
    %7291 = vmatprep.mubr.f32.mxu0 0.0
    %7292 = vmatmul.mubr.f32.gmra.mrb[0].mxu0 %v6811
    %v7293 = vpop.f32.mrb[0].mxu0
    %v7294 = vadd.f32 0.0, %v7293
    %v7295 = vpop.f32.mrb[0].mxu0
    %v7296 = vadd.f32 0.0, %v7295
    %7297 = vmatprep.mubr.f32.mxu0 0.0
    %7298 = vmatmul.mubr.f32.gmra.mrb[0].mxu0 %v6814
    %v7299 = vpop.f32.mrb[0].mxu0
    %v7300 = vadd.f32 0.0, %v7299
    %v7301 = vpop.f32.mrb[0].mxu0
    %v7302 = vadd.f32 0.0, %v7301
    %7303 = vmatprep.mubr.f32.mxu0 0.0
    %7304 = vmatmul.mubr.f32.gmra.mrb[0].mxu0 %v6817
    %v7305 = vpop.f32.mrb[0].mxu0
    %v7306 = vadd.f32 0.0, %v7305
    %v7307 = vpop.f32.mrb[0].mxu0
    %v7308 = vadd.f32 0.0, %v7307
    %7309 = vmatprep.mubr.f32.mxu0 0.0
    %7310 = vmatmul.mubr.f32.gmra.mrb[0].mxu0 %v6820
    %v7311 = vpop.f32.mrb[0].mxu0
    %v7312 = vadd.f32 0.0, %v7311
    %v7313 = vpop.f32.mrb[0].mxu0
    %v7314 = vadd.f32 0.0, %v7313
    %7315 = vmatprep.mubr.f32.mxu0 0.0
    %7316 = vmatmul.mubr.f32.gmra.mrb[0].mxu0 %v6823
    %v7317 = vpop.f32.mrb[0].mxu0
    %v7318 = vadd.f32 0.0, %v7317
    %v7319 = vpop.f32.mrb[0].mxu0
    %v7320 = vadd.f32 0.0, %v7319
    %7321 = vmatprep.mubr.f32.mxu0 0.0
    %7322 = vmatmul.mubr.f32.gmra.mrb[0].mxu0 %v6826
    %v7323 = vpop.f32.mrb[0].mxu0
    %v7324 = vadd.f32 0.0, %v7323
    %v7325 = vpop.f32.mrb[0].mxu0
    %v7326 = vadd.f32 0.0, %v7325
    %7327 = vmatprep.mubr.f32.mxu0 0.0
    %7328 = vmatmul.mubr.f32.gmra.mrb[0].mxu0 %v6829
    %v7329 = vpop.f32.mrb[0].mxu0
    %v7330 = vadd.f32 0.0, %v7329
    %v7331 = vpop.f32.mrb[0].mxu0
    %v7332 = vadd.f32 0.0, %v7331
    %7333 = vmatprep.mubr.f32.mxu0 0.0
    %7334 = vmatmul.mubr.f32.gmra.mrb[0].mxu0 %v6832
    %v7335 = vpop.f32.mrb[0].mxu0
    %v7336 = vadd.f32 0.0, %v7335
    %v7337 = vpop.f32.mrb[0].mxu0
    %v7338 = vadd.f32 0.0, %v7337
    %7339 = vmatprep.mubr.f32.mxu0 0.0
    %7340 = vmatmul.mubr.f32.gmra.mrb[0].mxu0 %v6835
    %v7341 = vpop.f32.mrb[0].mxu0
    %v7342 = vadd.f32 0.0, %v7341
    %v7343 = vpop.f32.mrb[0].mxu0
    %v7344 = vadd.f32 0.0, %v7343
    %7345 = vmatprep.mubr.f32.mxu0 0.0
    %7346 = vmatmul.mubr.f32.gmra.mrb[0].mxu0 %v6838
    %v7347 = vpop.f32.mrb[0].mxu0
    %v7348 = vadd.f32 0.0, %v7347
    %v7349 = vpop.f32.mrb[0].mxu0
    %v7350 = vadd.f32 0.0, %v7349
    %7351 = vmatprep.mubr.f32.mxu0 0.0
    %7352 = vmatmul.mubr.f32.gmra.mrb[0].mxu0 %v6841
    %v7353 = vpop.f32.mrb[0].mxu0
    %v7354 = vadd.f32 0.0, %v7353
    %v7355 = vpop.f32.mrb[0].mxu0
    %v7356 = vadd.f32 0.0, %v7355
    %7357 = vmatprep.mubr.f32.mxu0 0.0
    %7358 = vmatmul.mubr.f32.gmra.mrb[0].mxu0 %v6844
    %v7359 = vpop.f32.mrb[0].mxu0
    %v7360 = vadd.f32 0.0, %v7359
    %v7361 = vpop.f32.mrb[0].mxu0
    %v7362 = vadd.f32 0.0, %v7361
    %7363 = vmatprep.mubr.f32.mxu0 0.0
    %7364 = vmatmul.mubr.f32.gmra.mrb[0].mxu0 %v6847
    %v7365 = vpop.f32.mrb[0].mxu0
    %v7366 = vadd.f32 0.0, %v7365
    %v7367 = vpop.f32.mrb[0].mxu0
    %v7368 = vadd.f32 0.0, %v7367
    %7369 = vmatprep.mubr.f32.mxu0 0.0
    %7370 = vmatmul.mubr.f32.gmra.mrb[0].mxu0 %v6850
    %v7371 = vpop.f32.mrb[0].mxu0
    %v7372 = vadd.f32 0.0, %v7371
    %v7373 = vpop.f32.mrb[0].mxu0
    %v7374 = vadd.f32 0.0, %v7373
    %7375 = vmatprep.mubr.f32.mxu0 0.0
    %7376 = vmatmul.mubr.f32.gmra.mrb[0].mxu0 %v6853
    %v7377 = vpop.f32.mrb[0].mxu0
    %v7378 = vadd.f32 0.0, %v7377
    %v7379 = vpop.f32.mrb[0].mxu0
    %v7380 = vadd.f32 0.0, %v7379
    %7381 = vmatprep.mubr.f32.mxu0 0.0
    %7382 = vmatmul.mubr.f32.gmra.mrb[0].mxu0 %v6856
    %v7383 = vpop.f32.mrb[0].mxu0
    %v7384 = vadd.f32 0.0, %v7383
    %v7385 = vpop.f32.mrb[0].mxu0
    %v7386 = vadd.f32 0.0, %v7385
    %7387 = vmatprep.mubr.f32.mxu0 0.0
    %7388 = vmatmul.mubr.f32.gmra.mrb[0].mxu0 %v6859
    %v7389 = vpop.f32.mrb[0].mxu0
    %v7390 = vadd.f32 0.0, %v7389
    %v7391 = vpop.f32.mrb[0].mxu0
    %v7392 = vadd.f32 0.0, %v7391
    %7393 = vmatprep.mubr.f32.mxu0 0.0
    %7394 = vmatmul.mubr.f32.gmra.mrb[0].mxu0 %v6862
    %v7395 = vpop.f32.mrb[0].mxu0
    %v7396 = vadd.f32 0.0, %v7395
    %v7397 = vpop.f32.mrb[0].mxu0
    %v7398 = vadd.f32 0.0, %v7397
    %7399 = vmatprep.mubr.f32.mxu0 0.0
    %7400 = vmatmul.mubr.f32.gmra.mrb[0].mxu0 %v6865
    %v7401 = vpop.f32.mrb[0].mxu0
    %v7402 = vadd.f32 0.0, %v7401
    %v7403 = vpop.f32.mrb[0].mxu0
    %v7404 = vadd.f32 0.0, %v7403
    %7405 = vmatprep.mubr.f32.mxu0 0.0
    %7406 = vmatmul.mubr.f32.gmra.mrb[0].mxu0 %v6868
    %v7407 = vpop.f32.mrb[0].mxu0
    %v7408 = vadd.f32 0.0, %v7407
    %v7409 = vpop.f32.mrb[0].mxu0
    %v7410 = vadd.f32 0.0, %v7409
    %7411 = vmatprep.mubr.f32.mxu0 0.0
    %7412 = vmatmul.mubr.f32.gmra.mrb[0].mxu0 %v6871
    %v7413 = vpop.f32.mrb[0].mxu0
    %v7414 = vadd.f32 0.0, %v7413
    %v7415 = vpop.f32.mrb[0].mxu0
    %v7416 = vadd.f32 0.0, %v7415
    %7417 = vmatprep.mubr.f32.mxu0 0.0
    %7418 = vmatmul.mubr.f32.gmra.mrb[0].mxu0 %v6874
    %v7419 = vpop.f32.mrb[0].mxu0
    %v7420 = vadd.f32 0.0, %v7419
    %v7421 = vpop.f32.mrb[0].mxu0
    %v7422 = vadd.f32 0.0, %v7421
    %7423 = vmatprep.mubr.f32.mxu0 0.0
    %7424 = vmatmul.mubr.f32.gmra.mrb[0].mxu0 %v6877
    %v7425 = vpop.f32.mrb[0].mxu0
    %v7426 = vadd.f32 0.0, %v7425
    %v7427 = vpop.f32.mrb[0].mxu0
    %v7428 = vadd.f32 0.0, %v7427
    %7429 = vmatprep.mubr.f32.mxu0 0.0
    %7430 = vmatmul.mubr.f32.gmra.mrb[0].mxu0 %v6880
    %v7431 = vpop.f32.mrb[0].mxu0
    %v7432 = vadd.f32 0.0, %v7431
    %v7433 = vpop.f32.mrb[0].mxu0
    %v7434 = vadd.f32 0.0, %v7433
    %7435 = vmatprep.mubr.f32.mxu0 0.0
    %7436 = vmatmul.mubr.f32.gmra.mrb[0].mxu0 %v6883
    %v7437 = vpop.f32.mrb[0].mxu0
    %v7438 = vadd.f32 0.0, %v7437
    %v7439 = vpop.f32.mrb[0].mxu0
    %v7440 = vadd.f32 0.0, %v7439
    %7441 = vmatprep.mubr.f32.mxu0 0.0
    %7442 = vmatmul.mubr.f32.gmra.mrb[0].mxu0 %v6886
    %v7443 = vpop.f32.mrb[0].mxu0
    %v7444 = vadd.f32 0.0, %v7443
    %v7445 = vpop.f32.mrb[0].mxu0
    %v7446 = vadd.f32 0.0, %v7445
    %7447 = vmatprep.mubr.f32.mxu0 0.0
    %7448 = vmatmul.mubr.f32.gmra.mrb[0].mxu0 %v6889
    %v7449 = vpop.f32.mrb[0].mxu0
    %v7450 = vadd.f32 0.0, %v7449
    %v7451 = vpop.f32.mrb[0].mxu0
    %v7452 = vadd.f32 0.0, %v7451
    %7453 = vmatprep.mubr.f32.mxu0 0.0
    %7454 = vmatmul.mubr.f32.gmra.mrb[0].mxu0 %v6892
    %v7455 = vpop.f32.mrb[0].mxu0
    %v7456 = vadd.f32 0.0, %v7455
    %v7457 = vpop.f32.mrb[0].mxu0
    %v7458 = vadd.f32 0.0, %v7457
    %7459 = vmatprep.mubr.f32.mxu0 0.0
    %7460 = vmatmul.mubr.f32.gmra.mrb[0].mxu0 %v6895
    %v7461 = vpop.f32.mrb[0].mxu0
    %v7462 = vadd.f32 0.0, %v7461
    %v7463 = vpop.f32.mrb[0].mxu0
    %v7464 = vadd.f32 0.0, %v7463
    %7465 = vmatprep.mubr.f32.mxu0 0.0
    %7466 = vmatmul.mubr.f32.gmra.mrb[0].mxu0 %v6898
    %v7467 = vpop.f32.mrb[0].mxu0
    %v7468 = vadd.f32 0.0, %v7467
    %v7469 = vpop.f32.mrb[0].mxu0
    %v7470 = vadd.f32 0.0, %v7469
    %7471 = vmatprep.mubr.f32.mxu0 0.0
    %7472 = vmatmul.mubr.f32.gmra.mrb[0].mxu0 %v6901
    %v7473 = vpop.f32.mrb[0].mxu0
    %v7474 = vadd.f32 0.0, %v7473
    %v7475 = vpop.f32.mrb[0].mxu0
    %v7476 = vadd.f32 0.0, %v7475
    %7477 = vmatprep.mubr.f32.mxu0 0.0
    %7478 = vmatmul.mubr.f32.gmra.mrb[0].mxu0 %v6904
    %v7479 = vpop.f32.mrb[0].mxu0
    %v7480 = vadd.f32 0.0, %v7479
    %v7481 = vpop.f32.mrb[0].mxu0
    %v7482 = vadd.f32 0.0, %v7481
    %7483 = vmatprep.mubr.f32.mxu0 0.0
    %7484 = vmatmul.mubr.f32.gmra.mrb[0].mxu0 %v6907
    %v7485 = vpop.f32.mrb[0].mxu0
    %v7486 = vadd.f32 0.0, %v7485
    %v7487 = vpop.f32.mrb[0].mxu0
    %v7488 = vadd.f32 0.0, %v7487
    %7489 = vmatprep.mubr.f32.mxu0 0.0
    %7490 = vmatmul.mubr.f32.gmra.mrb[0].mxu0 %v6910
    %v7491 = vpop.f32.mrb[0].mxu0
    %v7492 = vadd.f32 0.0, %v7491
    %v7493 = vpop.f32.mrb[0].mxu0
    %v7494 = vadd.f32 0.0, %v7493
    %7495 = vmatprep.mubr.f32.mxu0 0.0
    %7496 = vmatmul.mubr.f32.gmra.mrb[0].mxu0 %v6913
    %v7497 = vpop.f32.mrb[0].mxu0
    %v7498 = vadd.f32 0.0, %v7497
    %v7499 = vpop.f32.mrb[0].mxu0
    %v7500 = vadd.f32 0.0, %v7499
    %7501 = vmatprep.mubr.f32.mxu0 0.0
    %7502 = vmatmul.mubr.f32.gmra.mrb[0].mxu0 %v6916
    %v7503 = vpop.f32.mrb[0].mxu0
    %v7504 = vadd.f32 0.0, %v7503
    %v7505 = vpop.f32.mrb[0].mxu0
    %v7506 = vadd.f32 0.0, %v7505
    %7507 = vmatprep.mubr.f32.mxu0 0.0
    %7508 = vmatmul.mubr.f32.gmra.mrb[0].mxu0 %v6919
    %v7509 = vpop.f32.mrb[0].mxu0
    %v7510 = vadd.f32 0.0, %v7509
    %v7511 = vpop.f32.mrb[0].mxu0
    %v7512 = vadd.f32 0.0, %v7511
    %7513 = vmatprep.mubr.f32.mxu0 0.0
    %7514 = vmatmul.mubr.f32.gmra.mrb[0].mxu0 %v6922
    %v7515 = vpop.f32.mrb[0].mxu0
    %v7516 = vadd.f32 0.0, %v7515
    %v7517 = vpop.f32.mrb[0].mxu0
    %v7518 = vadd.f32 0.0, %v7517
    %7519 = vmatprep.mubr.f32.mxu0 0.0
    %7520 = vmatmul.mubr.f32.gmra.mrb[0].mxu0 %v6925
    %v7521 = vpop.f32.mrb[0].mxu0
    %v7522 = vadd.f32 0.0, %v7521
    %v7523 = vpop.f32.mrb[0].mxu0
    %v7524 = vadd.f32 0.0, %v7523
    %7525 = vmatprep.mubr.f32.mxu0 0.0
    %7526 = vmatmul.mubr.f32.gmra.mrb[0].mxu0 %v6928
    %v7527 = vpop.f32.mrb[0].mxu0
    %v7528 = vadd.f32 0.0, %v7527
    %v7529 = vpop.f32.mrb[0].mxu0
    %v7530 = vadd.f32 0.0, %v7529
    %7531 = vmatprep.mubr.f32.mxu0 0.0
    %7532 = vmatmul.mubr.f32.gmra.mrb[0].mxu0 %v6931
    %v7533 = vpop.f32.mrb[0].mxu0
    %v7534 = vadd.f32 0.0, %v7533
    %v7535 = vpop.f32.mrb[0].mxu0
    %v7536 = vadd.f32 0.0, %v7535
    %7537 = vmatprep.mubr.f32.mxu0 0.0
    %7538 = vmatmul.mubr.f32.gmra.mrb[0].mxu0 %v6934
    %v7539 = vpop.f32.mrb[0].mxu0
    %v7540 = vadd.f32 0.0, %v7539
    %v7541 = vpop.f32.mrb[0].mxu0
    %v7542 = vadd.f32 0.0, %v7541
    %7543 = vmatprep.mubr.f32.mxu0 0.0
    %7544 = vmatmul.mubr.f32.gmra.mrb[0].mxu0 %v6937
    %v7545 = vpop.f32.mrb[0].mxu0
    %v7546 = vadd.f32 0.0, %v7545
    %v7547 = vpop.f32.mrb[0].mxu0
    %v7548 = vadd.f32 0.0, %v7547
    %7549 = vmatprep.mubr.f32.mxu0 0.0
    %7550 = vmatmul.mubr.f32.gmra.mrb[0].mxu0 %v6940
    %v7551 = vpop.f32.mrb[0].mxu0
    %v7552 = vadd.f32 0.0, %v7551
    %v7553 = vpop.f32.mrb[0].mxu0
    %v7554 = vadd.f32 0.0, %v7553
    %7555 = vmatprep.mubr.f32.mxu0 0.0
    %7556 = vmatmul.mubr.f32.gmra.mrb[0].mxu0 %v6943
    %v7557 = vpop.f32.mrb[0].mxu0
    %v7558 = vadd.f32 0.0, %v7557
    %v7559 = vpop.f32.mrb[0].mxu0
    %v7560 = vadd.f32 0.0, %v7559
    %7561 = vmatprep.mubr.f32.mxu0 0.0
    %7562 = vmatmul.mubr.f32.gmra.mrb[0].mxu0 %v6946
    %v7563 = vpop.f32.mrb[0].mxu0
    %v7564 = vadd.f32 0.0, %v7563
    %v7565 = vpop.f32.mrb[0].mxu0
    %v7566 = vadd.f32 0.0, %v7565
    %7567 = vmatprep.mubr.f32.mxu0 0.0
    %7568 = vmatmul.mubr.f32.gmra.mrb[0].mxu0 %v6949
    %v7569 = vpop.f32.mrb[0].mxu0
    %v7570 = vadd.f32 0.0, %v7569
    %v7571 = vpop.f32.mrb[0].mxu0
    %v7572 = vadd.f32 0.0, %v7571
    %7573 = vmatprep.mubr.f32.mxu0 0.0
    %7574 = vmatmul.mubr.f32.gmra.mrb[0].mxu0 %v6952
    %v7575 = vpop.f32.mrb[0].mxu0
    %v7576 = vadd.f32 0.0, %v7575
    %v7577 = vpop.f32.mrb[0].mxu0
    %v7578 = vadd.f32 0.0, %v7577
    %7579 = vmatprep.mubr.f32.mxu0 0.0
    %7580 = vmatmul.mubr.f32.gmra.mrb[0].mxu0 %v6955
    %v7581 = vpop.f32.mrb[0].mxu0
    %v7582 = vadd.f32 0.0, %v7581
    %v7583 = vpop.f32.mrb[0].mxu0
    %v7584 = vadd.f32 0.0, %v7583
    %7585 = vmatprep.mubr.f32.mxu0 0.0
    %7586 = vmatmul.mubr.f32.gmra.mrb[0].mxu0 %v6958
    %v7587 = vpop.f32.mrb[0].mxu0
    %v7588 = vadd.f32 0.0, %v7587
    %v7589 = vpop.f32.mrb[0].mxu0
    %v7590 = vadd.f32 0.0, %v7589
    %7591 = vmatprep.mubr.f32.mxu0 0.0
    %7592 = vmatmul.mubr.f32.gmra.mrb[0].mxu0 %v6961
    %v7593 = vpop.f32.mrb[0].mxu0
    %v7594 = vadd.f32 0.0, %v7593
    %v7595 = vpop.f32.mrb[0].mxu0
    %v7596 = vadd.f32 0.0, %v7595
    %7597 = vmatprep.mubr.f32.mxu0 0.0
    %7598 = vmatmul.mubr.f32.gmra.mrb[0].mxu0 %v6964
    %v7599 = vpop.f32.mrb[0].mxu0
    %v7600 = vadd.f32 0.0, %v7599
    %v7601 = vpop.f32.mrb[0].mxu0
    %v7602 = vadd.f32 0.0, %v7601
    %7603 = vmatprep.mubr.f32.mxu0 0.0
    %7604 = vmatmul.mubr.f32.gmra.mrb[0].mxu0 %v6967
    %v7605 = vpop.f32.mrb[0].mxu0
    %v7606 = vadd.f32 0.0, %v7605
    %v7607 = vpop.f32.mrb[0].mxu0
    %v7608 = vadd.f32 0.0, %v7607
    %7609 = vmatprep.mubr.f32.mxu0 0.0
    %7610 = vmatmul.mubr.f32.gmra.mrb[0].mxu0 %v6970
    %v7611 = vpop.f32.mrb[0].mxu0
    %v7612 = vadd.f32 0.0, %v7611
    %v7613 = vpop.f32.mrb[0].mxu0
    %v7614 = vadd.f32 0.0, %v7613
    %7615 = vmatprep.mubr.f32.mxu0 0.0
    %7616 = vmatmul.mubr.f32.gmra.mrb[0].mxu0 %v6973
    %v7617 = vpop.f32.mrb[0].mxu0
    %v7618 = vadd.f32 0.0, %v7617
    %v7619 = vpop.f32.mrb[0].mxu0
    %v7620 = vadd.f32 0.0, %v7619
    %7621 = vmatprep.mubr.f32.mxu0 0.0
    %7622 = vmatmul.mubr.f32.gmra.mrb[0].mxu0 %v6976
    %v7623 = vpop.f32.mrb[0].mxu0
    %v7624 = vadd.f32 0.0, %v7623
    %v7625 = vpop.f32.mrb[0].mxu0
    %v7626 = vadd.f32 0.0, %v7625
    %7627 = vmatprep.mubr.f32.mxu0 0.0
    %7628 = vmatmul.mubr.f32.gmra.mrb[0].mxu0 %v6979
    %v7629 = vpop.f32.mrb[0].mxu0
    %v7630 = vadd.f32 0.0, %v7629
    %v7631 = vpop.f32.mrb[0].mxu0
    %v7632 = vadd.f32 0.0, %v7631
    %7633 = vmatprep.mubr.f32.mxu0 0.0
    %7634 = vmatmul.mubr.f32.gmra.mrb[0].mxu0 %v6982
    %v7635 = vpop.f32.mrb[0].mxu0
    %v7636 = vadd.f32 0.0, %v7635
    %v7637 = vpop.f32.mrb[0].mxu0
    %v7638 = vadd.f32 0.0, %v7637
    %7639 = vmatprep.mubr.f32.mxu0 0.0
    %7640 = vmatmul.mubr.f32.gmra.mrb[0].mxu0 %v6985
    %v7641 = vpop.f32.mrb[0].mxu0
    %v7642 = vadd.f32 0.0, %v7641
    %v7643 = vpop.f32.mrb[0].mxu0
    %v7644 = vadd.f32 0.0, %v7643
    %7645 = vmatprep.mubr.f32.mxu0 0.0
    %7646 = vmatmul.mubr.f32.gmra.mrb[0].mxu0 %v6988
    %v7647 = vpop.f32.mrb[0].mxu0
    %v7648 = vadd.f32 0.0, %v7647
    %v7649 = vpop.f32.mrb[0].mxu0
    %v7650 = vadd.f32 0.0, %v7649
    %7651 = vmatprep.mubr.f32.mxu0 0.0
    %7652 = vmatmul.mubr.f32.gmra.mrb[0].mxu0 %v6991
    %v7653 = vpop.f32.mrb[0].mxu0
    %v7654 = vadd.f32 0.0, %v7653
    %v7655 = vpop.f32.mrb[0].mxu0
    %v7656 = vadd.f32 0.0, %v7655
    %7657 = vmatprep.mubr.f32.mxu0 0.0
    %7658 = vmatmul.mubr.f32.gmra.mrb[0].mxu0 %v6994
    %v7659 = vpop.f32.mrb[0].mxu0
    %v7660 = vadd.f32 0.0, %v7659
    %v7661 = vpop.f32.mrb[0].mxu0
    %v7662 = vadd.f32 0.0, %v7661
    %7663 = vmatprep.mubr.f32.mxu0 0.0
    %7664 = vmatmul.mubr.f32.gmra.mrb[0].mxu0 %v6997
    %v7665 = vpop.f32.mrb[0].mxu0
    %v7666 = vadd.f32 0.0, %v7665
    %v7667 = vpop.f32.mrb[0].mxu0
    %v7668 = vadd.f32 0.0, %v7667
    %7669 = vmatprep.mubr.f32.mxu0 0.0
    %7670 = vmatmul.mubr.f32.gmra.mrb[0].mxu0 %v7000
    %v7671 = vpop.f32.mrb[0].mxu0
    %v7672 = vadd.f32 0.0, %v7671
    %v7673 = vpop.f32.mrb[0].mxu0
    %v7674 = vadd.f32 0.0, %v7673
    %7675 = vmatprep.mubr.f32.mxu0 0.0
    %7676 = vmatmul.mubr.f32.gmra.mrb[0].mxu0 %v7003
    %v7677 = vpop.f32.mrb[0].mxu0
    %v7678 = vadd.f32 0.0, %v7677
    %v7679 = vpop.f32.mrb[0].mxu0
    %v7680 = vadd.f32 0.0, %v7679
    %7681 = vmatprep.mubr.f32.mxu0 0.0
    %7682 = vmatmul.mubr.f32.gmra.mrb[0].mxu0 %v7006
    %v7683 = vpop.f32.mrb[0].mxu0
    %v7684 = vadd.f32 0.0, %v7683
    %v7685 = vpop.f32.mrb[0].mxu0
    %v7686 = vadd.f32 0.0, %v7685
    %7687 = vmatprep.mubr.f32.mxu0 0.0
    %7688 = vmatmul.mubr.f32.gmra.mrb[0].mxu0 %v7009
    %v7689 = vpop.f32.mrb[0].mxu0
    %v7690 = vadd.f32 0.0, %v7689
    %v7691 = vpop.f32.mrb[0].mxu0
    %v7692 = vadd.f32 0.0, %v7691
    %7693 = vmatprep.mubr.f32.mxu0 0.0
    %7694 = vmatmul.mubr.f32.gmra.mrb[0].mxu0 %v7012
    %v7695 = vpop.f32.mrb[0].mxu0
    %v7696 = vadd.f32 0.0, %v7695
    %v7697 = vpop.f32.mrb[0].mxu0
    %v7698 = vadd.f32 0.0, %v7697
    %7699 = vmatprep.mubr.f32.mxu0 0.0
    %7700 = vmatmul.mubr.f32.gmra.mrb[0].mxu0 %v7015
    %v7701 = vpop.f32.mrb[0].mxu0
    %v7702 = vadd.f32 0.0, %v7701
    %v7703 = vpop.f32.mrb[0].mxu0
    %v7704 = vadd.f32 0.0, %v7703
    %7705 = vmatprep.mubr.f32.mxu0 0.0
    %7706 = vmatmul.mubr.f32.gmra.mrb[0].mxu0 %v7018
    %v7707 = vpop.f32.mrb[0].mxu0
    %v7708 = vadd.f32 0.0, %v7707
    %v7709 = vpop.f32.mrb[0].mxu0
    %v7710 = vadd.f32 0.0, %v7709
    %7711 = vmatprep.mubr.f32.mxu0 0.0
    %7712 = vmatmul.mubr.f32.gmra.mrb[0].mxu0 %v7021
    %v7713 = vpop.f32.mrb[0].mxu0
    %v7714 = vadd.f32 0.0, %v7713
    %v7715 = vpop.f32.mrb[0].mxu0
    %v7716 = vadd.f32 0.0, %v7715
    %7717 = vmatprep.mubr.f32.mxu0 0.0
    %7718 = vmatmul.mubr.f32.gmra.mrb[0].mxu0 %v7024
    %v7719 = vpop.f32.mrb[0].mxu0
    %v7720 = vadd.f32 0.0, %v7719
    %v7721 = vpop.f32.mrb[0].mxu0
    %v7722 = vadd.f32 0.0, %v7721
    %7723 = vmatprep.mubr.f32.mxu0 0.0
    %7724 = vmatmul.mubr.f32.gmra.mrb[0].mxu0 %v7027
    %v7725 = vpop.f32.mrb[0].mxu0
    %v7726 = vadd.f32 0.0, %v7725
    %v7727 = vpop.f32.mrb[0].mxu0
    %v7728 = vadd.f32 0.0, %v7727
    %7729 = vmatprep.mubr.f32.mxu0 0.0
    %7730 = vmatmul.mubr.f32.gmra.mrb[0].mxu0 %v7030
    %v7731 = vpop.f32.mrb[0].mxu0
    %v7732 = vadd.f32 0.0, %v7731
    %v7733 = vpop.f32.mrb[0].mxu0
    %v7734 = vadd.f32 0.0, %v7733
    %7735 = vmatprep.mubr.f32.mxu0 0.0
    %7736 = vmatmul.mubr.f32.gmra.mrb[0].mxu0 %v7033
    %v7737 = vpop.f32.mrb[0].mxu0
    %v7738 = vadd.f32 0.0, %v7737
    %v7739 = vpop.f32.mrb[0].mxu0
    %v7740 = vadd.f32 0.0, %v7739
    %7741 = vmatprep.mubr.f32.mxu0 0.0
    %7742 = vmatmul.mubr.f32.gmra.mrb[0].mxu0 %v7036
    %v7743 = vpop.f32.mrb[0].mxu0
    %v7744 = vadd.f32 0.0, %v7743
    %v7745 = vpop.f32.mrb[0].mxu0
    %v7746 = vadd.f32 0.0, %v7745
    %7747 = vmatprep.mubr.f32.mxu0 0.0
    %7748 = vmatmul.mubr.f32.gmra.mrb[0].mxu0 %v7039
    %v7749 = vpop.f32.mrb[0].mxu0
    %v7750 = vadd.f32 0.0, %v7749
    %v7751 = vpop.f32.mrb[0].mxu0
    %v7752 = vadd.f32 0.0, %v7751
    %7753 = vmatprep.mubr.f32.mxu0 0.0
    %7754 = vmatmul.mubr.f32.gmra.mrb[0].mxu0 %v7042
    %v7755 = vpop.f32.mrb[0].mxu0
    %v7756 = vadd.f32 0.0, %v7755
    %v7757 = vpop.f32.mrb[0].mxu0
    %v7758 = vadd.f32 0.0, %v7757
    %7759 = vmatprep.mubr.f32.mxu0 0.0
    %7760 = vmatmul.mubr.f32.gmra.mrb[0].mxu0 %v7045
    %v7761 = vpop.f32.mrb[0].mxu0
    %v7762 = vadd.f32 0.0, %v7761
    %v7763 = vpop.f32.mrb[0].mxu0
    %v7764 = vadd.f32 0.0, %v7763
    %7765 = vmatprep.mubr.f32.mxu0 0.0
    %7766 = vmatmul.mubr.f32.gmra.mrb[0].mxu0 %v7048
    %v7767 = vpop.f32.mrb[0].mxu0
    %v7768 = vadd.f32 0.0, %v7767
    %v7769 = vpop.f32.mrb[0].mxu0
    %v7770 = vadd.f32 0.0, %v7769
    %7771 = vmatprep.mubr.f32.mxu0 0.0
    %7772 = vmatmul.mubr.f32.gmra.mrb[0].mxu0 %v7051
    %v7773 = vpop.f32.mrb[0].mxu0
    %v7774 = vadd.f32 0.0, %v7773
    %v7775 = vpop.f32.mrb[0].mxu0
    %v7776 = vadd.f32 0.0, %v7775
    %7777 = vmatprep.mubr.f32.mxu0 0.0
    %7778 = vmatmul.mubr.f32.gmra.mrb[0].mxu0 %v7054
    %v7779 = vpop.f32.mrb[0].mxu0
    %v7780 = vadd.f32 0.0, %v7779
    %v7781 = vpop.f32.mrb[0].mxu0
    %v7782 = vadd.f32 0.0, %v7781
    %7783 = vmatprep.mubr.f32.mxu0 0.0
    %7784 = vmatmul.mubr.f32.gmra.mrb[0].mxu0 %v7057
    %v7785 = vpop.f32.mrb[0].mxu0
    %v7786 = vadd.f32 0.0, %v7785
    %v7787 = vpop.f32.mrb[0].mxu0
    %v7788 = vadd.f32 0.0, %v7787
    %7789 = vmatprep.mubr.f32.mxu0 0.0
    %7790 = vmatmul.mubr.f32.gmra.mrb[0].mxu0 %v7060
    %v7791 = vpop.f32.mrb[0].mxu0
    %v7792 = vadd.f32 0.0, %v7791
    %v7793 = vpop.f32.mrb[0].mxu0
    %v7794 = vadd.f32 0.0, %v7793
    %7795 = vmatprep.mubr.f32.mxu0 0.0
    %7796 = vmatmul.mubr.f32.gmra.mrb[0].mxu0 %v7063
    %v7797 = vpop.f32.mrb[0].mxu0
    %v7798 = vadd.f32 0.0, %v7797
    %v7799 = vpop.f32.mrb[0].mxu0
    %v7800 = vadd.f32 0.0, %v7799
    %7801 = vmatprep.mubr.f32.mxu0 0.0
    %7802 = vmatmul.mubr.f32.gmra.mrb[0].mxu0 %v7066
    %v7803 = vpop.f32.mrb[0].mxu0
    %v7804 = vadd.f32 0.0, %v7803
    %v7805 = vpop.f32.mrb[0].mxu0
    %v7806 = vadd.f32 0.0, %v7805
    %7807 = vmatprep.mubr.f32.mxu0 0.0
    %7808 = vmatmul.mubr.f32.gmra.mrb[0].mxu0 %v7069
    %v7809 = vpop.f32.mrb[0].mxu0
    %v7810 = vadd.f32 0.0, %v7809
    %v7811 = vpop.f32.mrb[0].mxu0
    %v7812 = vadd.f32 0.0, %v7811
    %7813 = vmatprep.mubr.f32.mxu0 0.0
    %7814 = vmatmul.mubr.f32.gmra.mrb[0].mxu0 %v7072
    %v7815 = vpop.f32.mrb[0].mxu0
    %v7816 = vadd.f32 0.0, %v7815
    %v7817 = vpop.f32.mrb[0].mxu0
    %v7818 = vadd.f32 0.0, %v7817
    %7819 = vmatprep.mubr.f32.mxu0 0.0
    %7820 = vmatmul.mubr.f32.gmra.mrb[0].mxu0 %v7075
    %v7821 = vpop.f32.mrb[0].mxu0
    %v7822 = vadd.f32 0.0, %v7821
    %v7823 = vpop.f32.mrb[0].mxu0
    %v7824 = vadd.f32 0.0, %v7823
    %7825 = vmatprep.mubr.f32.mxu0 0.0
    %7826 = vmatmul.mubr.f32.gmra.mrb[0].mxu0 %v7078
    %v7827 = vpop.f32.mrb[0].mxu0
    %v7828 = vadd.f32 0.0, %v7827
    %v7829 = vpop.f32.mrb[0].mxu0
    %v7830 = vadd.f32 0.0, %v7829
    %7831 = vmatprep.mubr.f32.mxu0 0.0
    %7832 = vmatmul.mubr.f32.gmra.mrb[0].mxu0 %v7081
    %v7833 = vpop.f32.mrb[0].mxu0
    %v7834 = vadd.f32 0.0, %v7833
    %v7835 = vpop.f32.mrb[0].mxu0
    %v7836 = vadd.f32 0.0, %v7835
    %7837 = vmatprep.mubr.f32.mxu0 0.0
    %7838 = vmatmul.mubr.f32.gmra.mrb[0].mxu0 %v7084
    %v7839 = vpop.f32.mrb[0].mxu0
    %v7840 = vadd.f32 0.0, %v7839
    %v7841 = vpop.f32.mrb[0].mxu0
    %v7842 = vadd.f32 0.0, %v7841
    %7843 = vmatprep.mubr.f32.mxu0 0.0
    %7844 = vmatmul.mubr.f32.gmra.mrb[0].mxu0 %v7087
    %v7845 = vpop.f32.mrb[0].mxu0
    %v7846 = vadd.f32 0.0, %v7845
    %v7847 = vpop.f32.mrb[0].mxu0
    %v7848 = vadd.f32 0.0, %v7847
    %7849 = vmatprep.mubr.f32.mxu0 0.0
    %7850 = vmatmul.mubr.f32.gmra.mrb[0].mxu0 %v7090
    %v7851 = vpop.f32.mrb[0].mxu0
    %v7852 = vadd.f32 0.0, %v7851
    %v7853 = vpop.f32.mrb[0].mxu0
    %v7854 = vadd.f32 0.0, %v7853
    %7855 = vmatprep.mubr.f32.mxu0 0.0
    %7856 = vmatmul.mubr.f32.gmra.mrb[0].mxu0 %v7093
    %v7857 = vpop.f32.mrb[0].mxu0
    %v7858 = vadd.f32 0.0, %v7857
    %v7859 = vpop.f32.mrb[0].mxu0
    %v7860 = vadd.f32 0.0, %v7859
    %7861 = vmatprep.mubr.f32.mxu0 0.0
    %7862 = vmatmul.mubr.f32.gmra.mrb[0].mxu0 %v7096
    %v7863 = vpop.f32.mrb[0].mxu0
    %v7864 = vadd.f32 0.0, %v7863
    %v7865 = vpop.f32.mrb[0].mxu0
    %v7866 = vadd.f32 0.0, %v7865
    %7867 = vmatprep.mubr.f32.mxu0 0.0
    %7868 = vmatmul.mubr.f32.gmra.mrb[0].mxu0 %v7099
    %v7869 = vpop.f32.mrb[0].mxu0
    %v7870 = vadd.f32 0.0, %v7869
    %v7871 = vpop.f32.mrb[0].mxu0
    %v7872 = vadd.f32 0.0, %v7871
    %7873 = vmatprep.mubr.f32.mxu0 0.0
    %7874 = vmatmul.mubr.f32.gmra.mrb[0].mxu0 %v7102
    %v7875 = vpop.f32.mrb[0].mxu0
    %v7876 = vadd.f32 0.0, %v7875
    %v7877 = vpop.f32.mrb[0].mxu0
    %v7878 = vadd.f32 0.0, %v7877
    %7879 = vmatprep.mubr.f32.mxu0 0.0
    %7880 = vmatmul.mubr.f32.gmra.mrb[0].mxu0 %v7105
    %v7881 = vpop.f32.mrb[0].mxu0
    %v7882 = vadd.f32 0.0, %v7881
    %v7883 = vpop.f32.mrb[0].mxu0
    %v7884 = vadd.f32 0.0, %v7883
    %7885 = vmatprep.mubr.f32.mxu0 0.0
    %7886 = vmatmul.mubr.f32.gmra.mrb[0].mxu0 %v7108
    %v7887 = vpop.f32.mrb[0].mxu0
    %v7888 = vadd.f32 0.0, %v7887
    %v7889 = vpop.f32.mrb[0].mxu0
    %v7890 = vadd.f32 0.0, %v7889
    %7891 = vmatprep.mubr.f32.mxu0 0.0
    %7892 = vmatmul.mubr.f32.gmra.mrb[0].mxu0 %v7111
    %v7893 = vpop.f32.mrb[0].mxu0
    %v7894 = vadd.f32 0.0, %v7893
    %v7895 = vpop.f32.mrb[0].mxu0
    %v7896 = vadd.f32 0.0, %v7895
    %7897 = vmatprep.mubr.f32.mxu0 0.0
    %7898 = vmatmul.mubr.f32.gmra.mrb[0].mxu0 %v7114
    %v7899 = vpop.f32.mrb[0].mxu0
    %v7900 = vadd.f32 0.0, %v7899
    %v7901 = vpop.f32.mrb[0].mxu0
    %v7902 = vadd.f32 0.0, %v7901
    %7903 = vmatprep.mubr.f32.mxu0 0.0
    %7904 = vmatmul.mubr.f32.gmra.mrb[0].mxu0 %v7117
    %v7905 = vpop.f32.mrb[0].mxu0
    %v7906 = vadd.f32 0.0, %v7905
    %v7907 = vpop.f32.mrb[0].mxu0
    %v7908 = vadd.f32 0.0, %v7907
    %7909 = vmatprep.mubr.f32.mxu0 0.0
    %7910 = vmatmul.mubr.f32.gmra.mrb[0].mxu0 %v7120
    %v7911 = vpop.f32.mrb[0].mxu0
    %v7912 = vadd.f32 0.0, %v7911
    %v7913 = vpop.f32.mrb[0].mxu0
    %v7914 = vadd.f32 0.0, %v7913
    %7915 = vmatprep.mubr.f32.mxu0 0.0
    %7916 = vmatmul.mubr.f32.gmra.mrb[0].mxu0 %v7123
    %v7917 = vpop.f32.mrb[0].mxu0
    %v7918 = vadd.f32 0.0, %v7917
    %v7919 = vpop.f32.mrb[0].mxu0
    %v7920 = vadd.f32 0.0, %v7919
    %7921 = vmatprep.mubr.f32.mxu0 0.0
    %7922 = vmatmul.mubr.f32.gmra.mrb[0].mxu0 %v7126
    %v7923 = vpop.f32.mrb[0].mxu0
    %v7924 = vadd.f32 0.0, %v7923
    %v7925 = vpop.f32.mrb[0].mxu0
    %v7926 = vadd.f32 0.0, %v7925
    %7927 = vmatprep.mubr.f32.mxu0 0.0
    %7928 = vmatmul.mubr.f32.gmra.mrb[0].mxu0 %v7129
    %v7929 = vpop.f32.mrb[0].mxu0
    %v7930 = vadd.f32 0.0, %v7929
    %v7931 = vpop.f32.mrb[0].mxu0
    %v7932 = vadd.f32 0.0, %v7931
    %7933 = vmatprep.mubr.f32.mxu0 0.0
    %7934 = vmatmul.mubr.f32.gmra.mrb[0].mxu0 %v7132
    %v7935 = vpop.f32.mrb[0].mxu0
    %v7936 = vadd.f32 0.0, %v7935
    %v7937 = vpop.f32.mrb[0].mxu0
    %v7938 = vadd.f32 0.0, %v7937
    %7939 = vmatprep.mubr.f32.mxu0 0.0
    %7940 = vmatmul.mubr.f32.gmra.mrb[0].mxu0 %v7135
    %v7941 = vpop.f32.mrb[0].mxu0
    %v7942 = vadd.f32 0.0, %v7941
    %v7943 = vpop.f32.mrb[0].mxu0
    %v7944 = vadd.f32 0.0, %v7943
    %7945 = vmatprep.mubr.f32.mxu0 0.0
    %7946 = vmatmul.mubr.f32.gmra.mrb[0].mxu0 %v7138
    %v7947 = vpop.f32.mrb[0].mxu0
    %v7948 = vadd.f32 0.0, %v7947
    %v7949 = vpop.f32.mrb[0].mxu0
    %v7950 = vadd.f32 0.0, %v7949
    %7951 = vmatprep.mubr.f32.mxu0 0.0
    %7952 = vmatmul.mubr.f32.gmra.mrb[0].mxu0 %v7141
    %v7953 = vpop.f32.mrb[0].mxu0
    %v7954 = vadd.f32 0.0, %v7953
    %v7955 = vpop.f32.mrb[0].mxu0
    %v7956 = vadd.f32 0.0, %v7955
    %7957 = vmatprep.mubr.f32.mxu0 0.0
    %7958 = vmatmul.mubr.f32.gmra.mrb[0].mxu0 %v7144
    %v7959 = vpop.f32.mrb[0].mxu0
    %v7960 = vadd.f32 0.0, %v7959
    %v7961 = vpop.f32.mrb[0].mxu0
    %v7962 = vadd.f32 0.0, %v7961
    %7963 = vmatprep.mubr.f32.mxu0 0.0
    %7964 = vmatmul.mubr.f32.gmra.mrb[0].mxu0 %v7147
    %v7965 = vpop.f32.mrb[0].mxu0
    %v7966 = vadd.f32 0.0, %v7965
    %v7967 = vpop.f32.mrb[0].mxu0
    %v7968 = vadd.f32 0.0, %v7967
    %7969 = vmatprep.mubr.f32.mxu0 0.0
    %7970 = vmatmul.mubr.f32.gmra.mrb[0].mxu0 %v7150
    %v7971 = vpop.f32.mrb[0].mxu0
    %v7972 = vadd.f32 0.0, %v7971
    %v7973 = vpop.f32.mrb[0].mxu0
    %v7974 = vadd.f32 0.0, %v7973
    %7975 = vmatprep.mubr.f32.mxu0 0.0
    %7976 = vmatmul.mubr.f32.gmra.mrb[0].mxu0 %v7153
    %v7977 = vpop.f32.mrb[0].mxu0
    %v7978 = vadd.f32 0.0, %v7977
    %v7979 = vpop.f32.mrb[0].mxu0
    %v7980 = vadd.f32 0.0, %v7979
    %7981 = vmatprep.mubr.f32.mxu0 0.0
    %7982 = vmatmul.mubr.f32.gmra.mrb[0].mxu0 %v7156
    %v7983 = vpop.f32.mrb[0].mxu0
    %v7984 = vadd.f32 0.0, %v7983
    %v7985 = vpop.f32.mrb[0].mxu0
    %v7986 = vadd.f32 0.0, %v7985
    %7987 = vmatprep.mubr.f32.mxu0 0.0
    %7988 = vmatmul.mubr.f32.gmra.mrb[0].mxu0 %v7159
    %v7989 = vpop.f32.mrb[0].mxu0
    %v7990 = vadd.f32 0.0, %v7989
    %v7991 = vpop.f32.mrb[0].mxu0
    %v7992 = vadd.f32 0.0, %v7991
    %7993 = vdwg.mxu0
    %v7994 = vadd.f32 %v6011, %v7230
    %v7995 = vadd.f32 %v6017, %v7236
    %v7996 = vadd.f32 %v6023, %v7242
    %v7997 = vadd.f32 %v6029, %v7248
    %v7998 = vadd.f32 %v6035, %v7254
    %v7999 = vadd.f32 %v6041, %v7260
    %v8000 = vadd.f32 %v6047, %v7266
    %v8001 = vadd.f32 %v6053, %v7272
    %v8002 = vadd.f32 %v6059, %v7278
    %v8003 = vadd.f32 %v6065, %v7284
    %v8004 = vadd.f32 %v6071, %v7290
    %v8005 = vadd.f32 %v6077, %v7296
    %v8006 = vadd.f32 %v6083, %v7302
    %v8007 = vadd.f32 %v6089, %v7308
    %v8008 = vadd.f32 %v6095, %v7314
    %v8009 = vadd.f32 %v6101, %v7320
    %v8010 = vadd.f32 %v6107, %v7326
    %v8011 = vadd.f32 %v6113, %v7332
    %v8012 = vadd.f32 %v6119, %v7338
    %v8013 = vadd.f32 %v6125, %v7344
    %v8014 = vadd.f32 %v6131, %v7350
    %v8015 = vadd.f32 %v6137, %v7356
    %v8016 = vadd.f32 %v6143, %v7362
    %v8017 = vadd.f32 %v6149, %v7368
    %v8018 = vadd.f32 %v6155, %v7374
    %v8019 = vadd.f32 %v6161, %v7380
    %v8020 = vadd.f32 %v6167, %v7386
    %v8021 = vadd.f32 %v6173, %v7392
    %v8022 = vadd.f32 %v6179, %v7398
    %v8023 = vadd.f32 %v6185, %v7404
    %v8024 = vadd.f32 %v6191, %v7410
    %v8025 = vadd.f32 %v6197, %v7416
    %v8026 = vadd.f32 %v6203, %v7422
    %v8027 = vadd.f32 %v6209, %v7428
    %v8028 = vadd.f32 %v6215, %v7434
    %v8029 = vadd.f32 %v6221, %v7440
    %v8030 = vadd.f32 %v6227, %v7446
    %v8031 = vadd.f32 %v6233, %v7452
    %v8032 = vadd.f32 %v6239, %v7458
    %v8033 = vadd.f32 %v6245, %v7464
    %v8034 = vadd.f32 %v6251, %v7470
    %v8035 = vadd.f32 %v6257, %v7476
    %v8036 = vadd.f32 %v6263, %v7482
    %v8037 = vadd.f32 %v6269, %v7488
    %v8038 = vadd.f32 %v6275, %v7494
    %v8039 = vadd.f32 %v6281, %v7500
    %v8040 = vadd.f32 %v6287, %v7506
    %v8041 = vadd.f32 %v6293, %v7512
    %v8042 = vadd.f32 %v6299, %v7518
    %v8043 = vadd.f32 %v6305, %v7524
    %v8044 = vadd.f32 %v6311, %v7530
    %v8045 = vadd.f32 %v6317, %v7536
    %v8046 = vadd.f32 %v6323, %v7542
    %v8047 = vadd.f32 %v6329, %v7548
    %v8048 = vadd.f32 %v6335, %v7554
    %v8049 = vadd.f32 %v6341, %v7560
    %v8050 = vadd.f32 %v6347, %v7566
    %v8051 = vadd.f32 %v6353, %v7572
    %v8052 = vadd.f32 %v6359, %v7578
    %v8053 = vadd.f32 %v6365, %v7584
    %v8054 = vadd.f32 %v6371, %v7590
    %v8055 = vadd.f32 %v6377, %v7596
    %v8056 = vadd.f32 %v6383, %v7602
    %v8057 = vadd.f32 %v6389, %v7608
    %v8058 = vadd.f32 %v6395, %v7614
    %v8059 = vadd.f32 %v6401, %v7620
    %v8060 = vadd.f32 %v6407, %v7626
    %v8061 = vadd.f32 %v6413, %v7632
    %v8062 = vadd.f32 %v6419, %v7638
    %v8063 = vadd.f32 %v6425, %v7644
    %v8064 = vadd.f32 %v6431, %v7650
    %v8065 = vadd.f32 %v6437, %v7656
    %v8066 = vadd.f32 %v6443, %v7662
    %v8067 = vadd.f32 %v6449, %v7668
    %v8068 = vadd.f32 %v6455, %v7674
    %v8069 = vadd.f32 %v6461, %v7680
    %v8070 = vadd.f32 %v6467, %v7686
    %v8071 = vadd.f32 %v6473, %v7692
    %v8072 = vadd.f32 %v6479, %v7698
    %v8073 = vadd.f32 %v6485, %v7704
    %v8074 = vadd.f32 %v6491, %v7710
    %v8075 = vadd.f32 %v6497, %v7716
    %v8076 = vadd.f32 %v6503, %v7722
    %v8077 = vadd.f32 %v6509, %v7728
    %v8078 = vadd.f32 %v6515, %v7734
    %v8079 = vadd.f32 %v6521, %v7740
    %v8080 = vadd.f32 %v6527, %v7746
    %v8081 = vadd.f32 %v6533, %v7752
    %v8082 = vadd.f32 %v6539, %v7758
    %v8083 = vadd.f32 %v6545, %v7764
    %v8084 = vadd.f32 %v6551, %v7770
    %v8085 = vadd.f32 %v6557, %v7776
    %v8086 = vadd.f32 %v6563, %v7782
    %v8087 = vadd.f32 %v6569, %v7788
    %v8088 = vadd.f32 %v6575, %v7794
    %v8089 = vadd.f32 %v6581, %v7800
    %v8090 = vadd.f32 %v6587, %v7806
    %v8091 = vadd.f32 %v6593, %v7812
    %v8092 = vadd.f32 %v6599, %v7818
    %v8093 = vadd.f32 %v6605, %v7824
    %v8094 = vadd.f32 %v6611, %v7830
    %v8095 = vadd.f32 %v6617, %v7836
    %v8096 = vadd.f32 %v6623, %v7842
    %v8097 = vadd.f32 %v6629, %v7848
    %v8098 = vadd.f32 %v6635, %v7854
    %v8099 = vadd.f32 %v6641, %v7860
    %v8100 = vadd.f32 %v6647, %v7866
    %v8101 = vadd.f32 %v6653, %v7872
    %v8102 = vadd.f32 %v6659, %v7878
    %v8103 = vadd.f32 %v6665, %v7884
    %v8104 = vadd.f32 %v6671, %v7890
    %v8105 = vadd.f32 %v6677, %v7896
    %v8106 = vadd.f32 %v6683, %v7902
    %v8107 = vadd.f32 %v6689, %v7908
    %v8108 = vadd.f32 %v6695, %v7914
    %v8109 = vadd.f32 %v6701, %v7920
    %v8110 = vadd.f32 %v6707, %v7926
    %v8111 = vadd.f32 %v6713, %v7932
    %v8112 = vadd.f32 %v6719, %v7938
    %v8113 = vadd.f32 %v6725, %v7944
    %v8114 = vadd.f32 %v6731, %v7950
    %v8115 = vadd.f32 %v6737, %v7956
    %v8116 = vadd.f32 %v6743, %v7962
    %v8117 = vadd.f32 %v6749, %v7968
    %v8118 = vadd.f32 %v6755, %v7974
    %v8119 = vadd.f32 %v6761, %v7980
    %v8120 = vadd.f32 %v6767, %v7986
    %v8121 = vadd.f32 %v6773, %v7992
    %v8122 = vsub.f32 %v7228, %v6013
    %v8123 = vsub.f32 %v7234, %v6019
    %v8124 = vsub.f32 %v7240, %v6025
    %v8125 = vsub.f32 %v7246, %v6031
    %v8126 = vsub.f32 %v7252, %v6037
    %v8127 = vsub.f32 %v7258, %v6043
    %v8128 = vsub.f32 %v7264, %v6049
    %v8129 = vsub.f32 %v7270, %v6055
    %v8130 = vsub.f32 %v7276, %v6061
    %v8131 = vsub.f32 %v7282, %v6067
    %v8132 = vsub.f32 %v7288, %v6073
    %v8133 = vsub.f32 %v7294, %v6079
    %v8134 = vsub.f32 %v7300, %v6085
    %v8135 = vsub.f32 %v7306, %v6091
    %v8136 = vsub.f32 %v7312, %v6097
    %v8137 = vsub.f32 %v7318, %v6103
    %v8138 = vsub.f32 %v7324, %v6109
    %v8139 = vsub.f32 %v7330, %v6115
    %v8140 = vsub.f32 %v7336, %v6121
    %v8141 = vsub.f32 %v7342, %v6127
    %v8142 = vsub.f32 %v7348, %v6133
    %v8143 = vsub.f32 %v7354, %v6139
    %v8144 = vsub.f32 %v7360, %v6145
    %v8145 = vsub.f32 %v7366, %v6151
    %v8146 = vsub.f32 %v7372, %v6157
    %v8147 = vsub.f32 %v7378, %v6163
    %v8148 = vsub.f32 %v7384, %v6169
    %v8149 = vsub.f32 %v7390, %v6175
    %v8150 = vsub.f32 %v7396, %v6181
    %v8151 = vsub.f32 %v7402, %v6187
    %v8152 = vsub.f32 %v7408, %v6193
    %v8153 = vsub.f32 %v7414, %v6199
    %v8154 = vsub.f32 %v7420, %v6205
    %v8155 = vsub.f32 %v7426, %v6211
    %v8156 = vsub.f32 %v7432, %v6217
    %v8157 = vsub.f32 %v7438, %v6223
    %v8158 = vsub.f32 %v7444, %v6229
    %v8159 = vsub.f32 %v7450, %v6235
    %v8160 = vsub.f32 %v7456, %v6241
    %v8161 = vsub.f32 %v7462, %v6247
    %v8162 = vsub.f32 %v7468, %v6253
    %v8163 = vsub.f32 %v7474, %v6259
    %v8164 = vsub.f32 %v7480, %v6265
    %v8165 = vsub.f32 %v7486, %v6271
    %v8166 = vsub.f32 %v7492, %v6277
    %v8167 = vsub.f32 %v7498, %v6283
    %v8168 = vsub.f32 %v7504, %v6289
    %v8169 = vsub.f32 %v7510, %v6295
    %v8170 = vsub.f32 %v7516, %v6301
    %v8171 = vsub.f32 %v7522, %v6307
    %v8172 = vsub.f32 %v7528, %v6313
    %v8173 = vsub.f32 %v7534, %v6319
    %v8174 = vsub.f32 %v7540, %v6325
    %v8175 = vsub.f32 %v7546, %v6331
    %v8176 = vsub.f32 %v7552, %v6337
    %v8177 = vsub.f32 %v7558, %v6343
    %v8178 = vsub.f32 %v7564, %v6349
    %v8179 = vsub.f32 %v7570, %v6355
    %v8180 = vsub.f32 %v7576, %v6361
    %v8181 = vsub.f32 %v7582, %v6367
    %v8182 = vsub.f32 %v7588, %v6373
    %v8183 = vsub.f32 %v7594, %v6379
    %v8184 = vsub.f32 %v7600, %v6385
    %v8185 = vsub.f32 %v7606, %v6391
    %v8186 = vsub.f32 %v7612, %v6397
    %v8187 = vsub.f32 %v7618, %v6403
    %v8188 = vsub.f32 %v7624, %v6409
    %v8189 = vsub.f32 %v7630, %v6415
    %v8190 = vsub.f32 %v7636, %v6421
    %v8191 = vsub.f32 %v7642, %v6427
    %v8192 = vsub.f32 %v7648, %v6433
    %v8193 = vsub.f32 %v7654, %v6439
    %v8194 = vsub.f32 %v7660, %v6445
    %v8195 = vsub.f32 %v7666, %v6451
    %v8196 = vsub.f32 %v7672, %v6457
    %v8197 = vsub.f32 %v7678, %v6463
    %v8198 = vsub.f32 %v7684, %v6469
    %v8199 = vsub.f32 %v7690, %v6475
    %v8200 = vsub.f32 %v7696, %v6481
    %v8201 = vsub.f32 %v7702, %v6487
    %v8202 = vsub.f32 %v7708, %v6493
    %v8203 = vsub.f32 %v7714, %v6499
    %v8204 = vsub.f32 %v7720, %v6505
    %v8205 = vsub.f32 %v7726, %v6511
    %v8206 = vsub.f32 %v7732, %v6517
    %v8207 = vsub.f32 %v7738, %v6523
    %v8208 = vsub.f32 %v7744, %v6529
    %v8209 = vsub.f32 %v7750, %v6535
    %v8210 = vsub.f32 %v7756, %v6541
    %v8211 = vsub.f32 %v7762, %v6547
    %v8212 = vsub.f32 %v7768, %v6553
    %v8213 = vsub.f32 %v7774, %v6559
    %v8214 = vsub.f32 %v7780, %v6565
    %v8215 = vsub.f32 %v7786, %v6571
    %v8216 = vsub.f32 %v7792, %v6577
    %v8217 = vsub.f32 %v7798, %v6583
    %v8218 = vsub.f32 %v7804, %v6589
    %v8219 = vsub.f32 %v7810, %v6595
    %v8220 = vsub.f32 %v7816, %v6601
    %v8221 = vsub.f32 %v7822, %v6607
    %v8222 = vsub.f32 %v7828, %v6613
    %v8223 = vsub.f32 %v7834, %v6619
    %v8224 = vsub.f32 %v7840, %v6625
    %v8225 = vsub.f32 %v7846, %v6631
    %v8226 = vsub.f32 %v7852, %v6637
    %v8227 = vsub.f32 %v7858, %v6643
    %v8228 = vsub.f32 %v7864, %v6649
    %v8229 = vsub.f32 %v7870, %v6655
    %v8230 = vsub.f32 %v7876, %v6661
    %v8231 = vsub.f32 %v7882, %v6667
    %v8232 = vsub.f32 %v7888, %v6673
    %v8233 = vsub.f32 %v7894, %v6679
    %v8234 = vsub.f32 %v7900, %v6685
    %v8235 = vsub.f32 %v7906, %v6691
    %v8236 = vsub.f32 %v7912, %v6697
    %v8237 = vsub.f32 %v7918, %v6703
    %v8238 = vsub.f32 %v7924, %v6709
    %v8239 = vsub.f32 %v7930, %v6715
    %v8240 = vsub.f32 %v7936, %v6721
    %v8241 = vsub.f32 %v7942, %v6727
    %v8242 = vsub.f32 %v7948, %v6733
    %v8243 = vsub.f32 %v7954, %v6739
    %v8244 = vsub.f32 %v7960, %v6745
    %v8245 = vsub.f32 %v7966, %v6751
    %v8246 = vsub.f32 %v7972, %v6757
    %v8247 = vsub.f32 %v7978, %v6763
    %v8248 = vsub.f32 %v7984, %v6769
    %v8249 = vsub.f32 %v7990, %v6775
    %v8250 = vmul.f32 %v7994, %v7994
    %v8251 = vmul.f32 %v7995, %v7995
    %v8252 = vmul.f32 %v7996, %v7996
    %v8253 = vmul.f32 %v7997, %v7997
    %v8254 = vmul.f32 %v7998, %v7998
    %v8255 = vmul.f32 %v7999, %v7999
    %v8256 = vmul.f32 %v8000, %v8000
    %v8257 = vmul.f32 %v8001, %v8001
    %v8258 = vmul.f32 %v8002, %v8002
    %v8259 = vmul.f32 %v8003, %v8003
    %v8260 = vmul.f32 %v8004, %v8004
    %v8261 = vmul.f32 %v8005, %v8005
    %v8262 = vmul.f32 %v8006, %v8006
    %v8263 = vmul.f32 %v8007, %v8007
    %v8264 = vmul.f32 %v8008, %v8008
    %v8265 = vmul.f32 %v8009, %v8009
    %v8266 = vmul.f32 %v8010, %v8010
    %v8267 = vmul.f32 %v8011, %v8011
    %v8268 = vmul.f32 %v8012, %v8012
    %v8269 = vmul.f32 %v8013, %v8013
    %v8270 = vmul.f32 %v8014, %v8014
    %v8271 = vmul.f32 %v8015, %v8015
    %v8272 = vmul.f32 %v8016, %v8016
    %v8273 = vmul.f32 %v8017, %v8017
    %v8274 = vmul.f32 %v8018, %v8018
    %v8275 = vmul.f32 %v8019, %v8019
    %v8276 = vmul.f32 %v8020, %v8020
    %v8277 = vmul.f32 %v8021, %v8021
    %v8278 = vmul.f32 %v8022, %v8022
    %v8279 = vmul.f32 %v8023, %v8023
    %v8280 = vmul.f32 %v8024, %v8024
    %v8281 = vmul.f32 %v8025, %v8025
    %v8282 = vmul.f32 %v8026, %v8026
    %v8283 = vmul.f32 %v8027, %v8027
    %v8284 = vmul.f32 %v8028, %v8028
    %v8285 = vmul.f32 %v8029, %v8029
    %v8286 = vmul.f32 %v8030, %v8030
    %v8287 = vmul.f32 %v8031, %v8031
    %v8288 = vmul.f32 %v8032, %v8032
    %v8289 = vmul.f32 %v8033, %v8033
    %v8290 = vmul.f32 %v8034, %v8034
    %v8291 = vmul.f32 %v8035, %v8035
    %v8292 = vmul.f32 %v8036, %v8036
    %v8293 = vmul.f32 %v8037, %v8037
    %v8294 = vmul.f32 %v8038, %v8038
    %v8295 = vmul.f32 %v8039, %v8039
    %v8296 = vmul.f32 %v8040, %v8040
    %v8297 = vmul.f32 %v8041, %v8041
    %v8298 = vmul.f32 %v8042, %v8042
    %v8299 = vmul.f32 %v8043, %v8043
    %v8300 = vmul.f32 %v8044, %v8044
    %v8301 = vmul.f32 %v8045, %v8045
    %v8302 = vmul.f32 %v8046, %v8046
    %v8303 = vmul.f32 %v8047, %v8047
    %v8304 = vmul.f32 %v8048, %v8048
    %v8305 = vmul.f32 %v8049, %v8049
    %v8306 = vmul.f32 %v8050, %v8050
    %v8307 = vmul.f32 %v8051, %v8051
    %v8308 = vmul.f32 %v8052, %v8052
    %v8309 = vmul.f32 %v8053, %v8053
    %v8310 = vmul.f32 %v8054, %v8054
    %v8311 = vmul.f32 %v8055, %v8055
    %v8312 = vmul.f32 %v8056, %v8056
    %v8313 = vmul.f32 %v8057, %v8057
    %v8314 = vmul.f32 %v8058, %v8058
    %v8315 = vmul.f32 %v8059, %v8059
    %v8316 = vmul.f32 %v8060, %v8060
    %v8317 = vmul.f32 %v8061, %v8061
    %v8318 = vmul.f32 %v8062, %v8062
    %v8319 = vmul.f32 %v8063, %v8063
    %v8320 = vmul.f32 %v8064, %v8064
    %v8321 = vmul.f32 %v8065, %v8065
    %v8322 = vmul.f32 %v8066, %v8066
    %v8323 = vmul.f32 %v8067, %v8067
    %v8324 = vmul.f32 %v8068, %v8068
    %v8325 = vmul.f32 %v8069, %v8069
    %v8326 = vmul.f32 %v8070, %v8070
    %v8327 = vmul.f32 %v8071, %v8071
    %v8328 = vmul.f32 %v8072, %v8072
    %v8329 = vmul.f32 %v8073, %v8073
    %v8330 = vmul.f32 %v8074, %v8074
    %v8331 = vmul.f32 %v8075, %v8075
    %v8332 = vmul.f32 %v8076, %v8076
    %v8333 = vmul.f32 %v8077, %v8077
    %v8334 = vmul.f32 %v8078, %v8078
    %v8335 = vmul.f32 %v8079, %v8079
    %v8336 = vmul.f32 %v8080, %v8080
    %v8337 = vmul.f32 %v8081, %v8081
    %v8338 = vmul.f32 %v8082, %v8082
    %v8339 = vmul.f32 %v8083, %v8083
    %v8340 = vmul.f32 %v8084, %v8084
    %v8341 = vmul.f32 %v8085, %v8085
    %v8342 = vmul.f32 %v8086, %v8086
    %v8343 = vmul.f32 %v8087, %v8087
    %v8344 = vmul.f32 %v8088, %v8088
    %v8345 = vmul.f32 %v8089, %v8089
    %v8346 = vmul.f32 %v8090, %v8090
    %v8347 = vmul.f32 %v8091, %v8091
    %v8348 = vmul.f32 %v8092, %v8092
    %v8349 = vmul.f32 %v8093, %v8093
    %v8350 = vmul.f32 %v8094, %v8094
    %v8351 = vmul.f32 %v8095, %v8095
    %v8352 = vmul.f32 %v8096, %v8096
    %v8353 = vmul.f32 %v8097, %v8097
    %v8354 = vmul.f32 %v8098, %v8098
    %v8355 = vmul.f32 %v8099, %v8099
    %v8356 = vmul.f32 %v8100, %v8100
    %v8357 = vmul.f32 %v8101, %v8101
    %v8358 = vmul.f32 %v8102, %v8102
    %v8359 = vmul.f32 %v8103, %v8103
    %v8360 = vmul.f32 %v8104, %v8104
    %v8361 = vmul.f32 %v8105, %v8105
    %v8362 = vmul.f32 %v8106, %v8106
    %v8363 = vmul.f32 %v8107, %v8107
    %v8364 = vmul.f32 %v8108, %v8108
    %v8365 = vmul.f32 %v8109, %v8109
    %v8366 = vmul.f32 %v8110, %v8110
    %v8367 = vmul.f32 %v8111, %v8111
    %v8368 = vmul.f32 %v8112, %v8112
    %v8369 = vmul.f32 %v8113, %v8113
    %v8370 = vmul.f32 %v8114, %v8114
    %v8371 = vmul.f32 %v8115, %v8115
    %v8372 = vmul.f32 %v8116, %v8116
    %v8373 = vmul.f32 %v8117, %v8117
    %v8374 = vmul.f32 %v8118, %v8118
    %v8375 = vmul.f32 %v8119, %v8119
    %v8376 = vmul.f32 %v8120, %v8120
    %v8377 = vmul.f32 %v8121, %v8121
    %v8378 = vmul.f32 %v8122, %v8122
    %v8379 = vmul.f32 %v8123, %v8123
    %v8380 = vmul.f32 %v8124, %v8124
    %v8381 = vmul.f32 %v8125, %v8125
    %v8382 = vmul.f32 %v8126, %v8126
    %v8383 = vmul.f32 %v8127, %v8127
    %v8384 = vmul.f32 %v8128, %v8128
    %v8385 = vmul.f32 %v8129, %v8129
    %v8386 = vmul.f32 %v8130, %v8130
    %v8387 = vmul.f32 %v8131, %v8131
    %v8388 = vmul.f32 %v8132, %v8132
    %v8389 = vmul.f32 %v8133, %v8133
    %v8390 = vmul.f32 %v8134, %v8134
    %v8391 = vmul.f32 %v8135, %v8135
    %v8392 = vmul.f32 %v8136, %v8136
    %v8393 = vmul.f32 %v8137, %v8137
    %v8394 = vmul.f32 %v8138, %v8138
    %v8395 = vmul.f32 %v8139, %v8139
    %v8396 = vmul.f32 %v8140, %v8140
    %v8397 = vmul.f32 %v8141, %v8141
    %v8398 = vmul.f32 %v8142, %v8142
    %v8399 = vmul.f32 %v8143, %v8143
    %v8400 = vmul.f32 %v8144, %v8144
    %v8401 = vmul.f32 %v8145, %v8145
    %v8402 = vmul.f32 %v8146, %v8146
    %v8403 = vmul.f32 %v8147, %v8147
    %v8404 = vmul.f32 %v8148, %v8148
    %v8405 = vmul.f32 %v8149, %v8149
    %v8406 = vmul.f32 %v8150, %v8150
    %v8407 = vmul.f32 %v8151, %v8151
    %v8408 = vmul.f32 %v8152, %v8152
    %v8409 = vmul.f32 %v8153, %v8153
    %v8410 = vmul.f32 %v8154, %v8154
    %v8411 = vmul.f32 %v8155, %v8155
    %v8412 = vmul.f32 %v8156, %v8156
    %v8413 = vmul.f32 %v8157, %v8157
    %v8414 = vmul.f32 %v8158, %v8158
    %v8415 = vmul.f32 %v8159, %v8159
    %v8416 = vmul.f32 %v8160, %v8160
    %v8417 = vmul.f32 %v8161, %v8161
    %v8418 = vmul.f32 %v8162, %v8162
    %v8419 = vmul.f32 %v8163, %v8163
    %v8420 = vmul.f32 %v8164, %v8164
    %v8421 = vmul.f32 %v8165, %v8165
    %v8422 = vmul.f32 %v8166, %v8166
    %v8423 = vmul.f32 %v8167, %v8167
    %v8424 = vmul.f32 %v8168, %v8168
    %v8425 = vmul.f32 %v8169, %v8169
    %v8426 = vmul.f32 %v8170, %v8170
    %v8427 = vmul.f32 %v8171, %v8171
    %v8428 = vmul.f32 %v8172, %v8172
    %v8429 = vmul.f32 %v8173, %v8173
    %v8430 = vmul.f32 %v8174, %v8174
    %v8431 = vmul.f32 %v8175, %v8175
    %v8432 = vmul.f32 %v8176, %v8176
    %v8433 = vmul.f32 %v8177, %v8177
    %v8434 = vmul.f32 %v8178, %v8178
    %v8435 = vmul.f32 %v8179, %v8179
    %v8436 = vmul.f32 %v8180, %v8180
    %v8437 = vmul.f32 %v8181, %v8181
    %v8438 = vmul.f32 %v8182, %v8182
    %v8439 = vmul.f32 %v8183, %v8183
    %v8440 = vmul.f32 %v8184, %v8184
    %v8441 = vmul.f32 %v8185, %v8185
    %v8442 = vmul.f32 %v8186, %v8186
    %v8443 = vmul.f32 %v8187, %v8187
    %v8444 = vmul.f32 %v8188, %v8188
    %v8445 = vmul.f32 %v8189, %v8189
    %v8446 = vmul.f32 %v8190, %v8190
    %v8447 = vmul.f32 %v8191, %v8191
    %v8448 = vmul.f32 %v8192, %v8192
    %v8449 = vmul.f32 %v8193, %v8193
    %v8450 = vmul.f32 %v8194, %v8194
    %v8451 = vmul.f32 %v8195, %v8195
    %v8452 = vmul.f32 %v8196, %v8196
    %v8453 = vmul.f32 %v8197, %v8197
    %v8454 = vmul.f32 %v8198, %v8198
    %v8455 = vmul.f32 %v8199, %v8199
    %v8456 = vmul.f32 %v8200, %v8200
    %v8457 = vmul.f32 %v8201, %v8201
    %v8458 = vmul.f32 %v8202, %v8202
    %v8459 = vmul.f32 %v8203, %v8203
    %v8460 = vmul.f32 %v8204, %v8204
    %v8461 = vmul.f32 %v8205, %v8205
    %v8462 = vmul.f32 %v8206, %v8206
    %v8463 = vmul.f32 %v8207, %v8207
    %v8464 = vmul.f32 %v8208, %v8208
    %v8465 = vmul.f32 %v8209, %v8209
    %v8466 = vmul.f32 %v8210, %v8210
    %v8467 = vmul.f32 %v8211, %v8211
    %v8468 = vmul.f32 %v8212, %v8212
    %v8469 = vmul.f32 %v8213, %v8213
    %v8470 = vmul.f32 %v8214, %v8214
    %v8471 = vmul.f32 %v8215, %v8215
    %v8472 = vmul.f32 %v8216, %v8216
    %v8473 = vmul.f32 %v8217, %v8217
    %v8474 = vmul.f32 %v8218, %v8218
    %v8475 = vmul.f32 %v8219, %v8219
    %v8476 = vmul.f32 %v8220, %v8220
    %v8477 = vmul.f32 %v8221, %v8221
    %v8478 = vmul.f32 %v8222, %v8222
    %v8479 = vmul.f32 %v8223, %v8223
    %v8480 = vmul.f32 %v8224, %v8224
    %v8481 = vmul.f32 %v8225, %v8225
    %v8482 = vmul.f32 %v8226, %v8226
    %v8483 = vmul.f32 %v8227, %v8227
    %v8484 = vmul.f32 %v8228, %v8228
    %v8485 = vmul.f32 %v8229, %v8229
    %v8486 = vmul.f32 %v8230, %v8230
    %v8487 = vmul.f32 %v8231, %v8231
    %v8488 = vmul.f32 %v8232, %v8232
    %v8489 = vmul.f32 %v8233, %v8233
    %v8490 = vmul.f32 %v8234, %v8234
    %v8491 = vmul.f32 %v8235, %v8235
    %v8492 = vmul.f32 %v8236, %v8236
    %v8493 = vmul.f32 %v8237, %v8237
    %v8494 = vmul.f32 %v8238, %v8238
    %v8495 = vmul.f32 %v8239, %v8239
    %v8496 = vmul.f32 %v8240, %v8240
    %v8497 = vmul.f32 %v8241, %v8241
    %v8498 = vmul.f32 %v8242, %v8242
    %v8499 = vmul.f32 %v8243, %v8243
    %v8500 = vmul.f32 %v8244, %v8244
    %v8501 = vmul.f32 %v8245, %v8245
    %v8502 = vmul.f32 %v8246, %v8246
    %v8503 = vmul.f32 %v8247, %v8247
    %v8504 = vmul.f32 %v8248, %v8248
    %v8505 = vmul.f32 %v8249, %v8249
    %v8506 = vadd.f32 %v8250, %v8378
    %v8507 = vadd.f32 %v8251, %v8379
    %v8508 = vadd.f32 %v8252, %v8380
    %v8509 = vadd.f32 %v8253, %v8381
    %v8510 = vadd.f32 %v8254, %v8382
    %v8511 = vadd.f32 %v8255, %v8383
    %v8512 = vadd.f32 %v8256, %v8384
    %v8513 = vadd.f32 %v8257, %v8385
    %v8514 = vadd.f32 %v8258, %v8386
    %v8515 = vadd.f32 %v8259, %v8387
    %v8516 = vadd.f32 %v8260, %v8388
    %v8517 = vadd.f32 %v8261, %v8389
    %v8518 = vadd.f32 %v8262, %v8390
    %v8519 = vadd.f32 %v8263, %v8391
    %v8520 = vadd.f32 %v8264, %v8392
    %v8521 = vadd.f32 %v8265, %v8393
    %v8522 = vadd.f32 %v8266, %v8394
    %v8523 = vadd.f32 %v8267, %v8395
    %v8524 = vadd.f32 %v8268, %v8396
    %v8525 = vadd.f32 %v8269, %v8397
    %v8526 = vadd.f32 %v8270, %v8398
    %v8527 = vadd.f32 %v8271, %v8399
    %v8528 = vadd.f32 %v8272, %v8400
    %v8529 = vadd.f32 %v8273, %v8401
    %v8530 = vadd.f32 %v8274, %v8402
    %v8531 = vadd.f32 %v8275, %v8403
    %v8532 = vadd.f32 %v8276, %v8404
    %v8533 = vadd.f32 %v8277, %v8405
    %v8534 = vadd.f32 %v8278, %v8406
    %v8535 = vadd.f32 %v8279, %v8407
    %v8536 = vadd.f32 %v8280, %v8408
    %v8537 = vadd.f32 %v8281, %v8409
    %v8538 = vadd.f32 %v8282, %v8410
    %v8539 = vadd.f32 %v8283, %v8411
    %v8540 = vadd.f32 %v8284, %v8412
    %v8541 = vadd.f32 %v8285, %v8413
    %v8542 = vadd.f32 %v8286, %v8414
    %v8543 = vadd.f32 %v8287, %v8415
    %v8544 = vadd.f32 %v8288, %v8416
    %v8545 = vadd.f32 %v8289, %v8417
    %v8546 = vadd.f32 %v8290, %v8418
    %v8547 = vadd.f32 %v8291, %v8419
    %v8548 = vadd.f32 %v8292, %v8420
    %v8549 = vadd.f32 %v8293, %v8421
    %v8550 = vadd.f32 %v8294, %v8422
    %v8551 = vadd.f32 %v8295, %v8423
    %v8552 = vadd.f32 %v8296, %v8424
    %v8553 = vadd.f32 %v8297, %v8425
    %v8554 = vadd.f32 %v8298, %v8426
    %v8555 = vadd.f32 %v8299, %v8427
    %v8556 = vadd.f32 %v8300, %v8428
    %v8557 = vadd.f32 %v8301, %v8429
    %v8558 = vadd.f32 %v8302, %v8430
    %v8559 = vadd.f32 %v8303, %v8431
    %v8560 = vadd.f32 %v8304, %v8432
    %v8561 = vadd.f32 %v8305, %v8433
    %v8562 = vadd.f32 %v8306, %v8434
    %v8563 = vadd.f32 %v8307, %v8435
    %v8564 = vadd.f32 %v8308, %v8436
    %v8565 = vadd.f32 %v8309, %v8437
    %v8566 = vadd.f32 %v8310, %v8438
    %v8567 = vadd.f32 %v8311, %v8439
    %v8568 = vadd.f32 %v8312, %v8440
    %v8569 = vadd.f32 %v8313, %v8441
    %v8570 = vadd.f32 %v8314, %v8442
    %v8571 = vadd.f32 %v8315, %v8443
    %v8572 = vadd.f32 %v8316, %v8444
    %v8573 = vadd.f32 %v8317, %v8445
    %v8574 = vadd.f32 %v8318, %v8446
    %v8575 = vadd.f32 %v8319, %v8447
    %v8576 = vadd.f32 %v8320, %v8448
    %v8577 = vadd.f32 %v8321, %v8449
    %v8578 = vadd.f32 %v8322, %v8450
    %v8579 = vadd.f32 %v8323, %v8451
    %v8580 = vadd.f32 %v8324, %v8452
    %v8581 = vadd.f32 %v8325, %v8453
    %v8582 = vadd.f32 %v8326, %v8454
    %v8583 = vadd.f32 %v8327, %v8455
    %v8584 = vadd.f32 %v8328, %v8456
    %v8585 = vadd.f32 %v8329, %v8457
    %v8586 = vadd.f32 %v8330, %v8458
    %v8587 = vadd.f32 %v8331, %v8459
    %v8588 = vadd.f32 %v8332, %v8460
    %v8589 = vadd.f32 %v8333, %v8461
    %v8590 = vadd.f32 %v8334, %v8462
    %v8591 = vadd.f32 %v8335, %v8463
    %v8592 = vadd.f32 %v8336, %v8464
    %v8593 = vadd.f32 %v8337, %v8465
    %v8594 = vadd.f32 %v8338, %v8466
    %v8595 = vadd.f32 %v8339, %v8467
    %v8596 = vadd.f32 %v8340, %v8468
    %v8597 = vadd.f32 %v8341, %v8469
    %v8598 = vadd.f32 %v8342, %v8470
    %v8599 = vadd.f32 %v8343, %v8471
    %v8600 = vadd.f32 %v8344, %v8472
    %v8601 = vadd.f32 %v8345, %v8473
    %v8602 = vadd.f32 %v8346, %v8474
    %v8603 = vadd.f32 %v8347, %v8475
    %v8604 = vadd.f32 %v8348, %v8476
    %v8605 = vadd.f32 %v8349, %v8477
    %v8606 = vadd.f32 %v8350, %v8478
    %v8607 = vadd.f32 %v8351, %v8479
    %v8608 = vadd.f32 %v8352, %v8480
    %v8609 = vadd.f32 %v8353, %v8481
    %v8610 = vadd.f32 %v8354, %v8482
    %v8611 = vadd.f32 %v8355, %v8483
    %v8612 = vadd.f32 %v8356, %v8484
    %v8613 = vadd.f32 %v8357, %v8485
    %v8614 = vadd.f32 %v8358, %v8486
    %v8615 = vadd.f32 %v8359, %v8487
    %v8616 = vadd.f32 %v8360, %v8488
    %v8617 = vadd.f32 %v8361, %v8489
    %v8618 = vadd.f32 %v8362, %v8490
    %v8619 = vadd.f32 %v8363, %v8491
    %v8620 = vadd.f32 %v8364, %v8492
    %v8621 = vadd.f32 %v8365, %v8493
    %v8622 = vadd.f32 %v8366, %v8494
    %v8623 = vadd.f32 %v8367, %v8495
    %v8624 = vadd.f32 %v8368, %v8496
    %v8625 = vadd.f32 %v8369, %v8497
    %v8626 = vadd.f32 %v8370, %v8498
    %v8627 = vadd.f32 %v8371, %v8499
    %v8628 = vadd.f32 %v8372, %v8500
    %v8629 = vadd.f32 %v8373, %v8501
    %v8630 = vadd.f32 %v8374, %v8502
    %v8631 = vadd.f32 %v8375, %v8503
    %v8632 = vadd.f32 %v8376, %v8504
    %v8633 = vadd.f32 %v8377, %v8505
    %v8634 = vrsqrt.pop %v8506
    %v8635 = vmul.f32 %v8506, %v8634
    %vm8636 = vcmp.eq.f32.partialorder %v8506, inf
    %v8637 = vsel %vm8636, %v8506, %v8635
    %vm8638 = vcmp.eq.f32.partialorder %v8506, 0.0
    %v8639 = vand.u32 %v8506, 2147483648
    %v8640 = vsel %vm8638, %v8639, %v8637
    %v8641 = vrsqrt.pop %v8507
    %v8642 = vmul.f32 %v8507, %v8641
    %vm8643 = vcmp.eq.f32.partialorder %v8507, inf
    %v8644 = vsel %vm8643, %v8507, %v8642
    %vm8645 = vcmp.eq.f32.partialorder %v8507, 0.0
    %v8646 = vand.u32 %v8507, 2147483648
    %v8647 = vsel %vm8645, %v8646, %v8644
    %v8648 = vrsqrt.pop %v8508
    %v8649 = vmul.f32 %v8508, %v8648
    %vm8650 = vcmp.eq.f32.partialorder %v8508, inf
    %v8651 = vsel %vm8650, %v8508, %v8649
    %vm8652 = vcmp.eq.f32.partialorder %v8508, 0.0
    %v8653 = vand.u32 %v8508, 2147483648
    %v8654 = vsel %vm8652, %v8653, %v8651
    %v8655 = vrsqrt.pop %v8509
    %v8656 = vmul.f32 %v8509, %v8655
    %vm8657 = vcmp.eq.f32.partialorder %v8509, inf
    %v8658 = vsel %vm8657, %v8509, %v8656
    %vm8659 = vcmp.eq.f32.partialorder %v8509, 0.0
    %v8660 = vand.u32 %v8509, 2147483648
    %v8661 = vsel %vm8659, %v8660, %v8658
    %v8662 = vrsqrt.pop %v8510
    %v8663 = vmul.f32 %v8510, %v8662
    %vm8664 = vcmp.eq.f32.partialorder %v8510, inf
    %v8665 = vsel %vm8664, %v8510, %v8663
    %vm8666 = vcmp.eq.f32.partialorder %v8510, 0.0
    %v8667 = vand.u32 %v8510, 2147483648
    %v8668 = vsel %vm8666, %v8667, %v8665
    %v8669 = vrsqrt.pop %v8511
    %v8670 = vmul.f32 %v8511, %v8669
    %vm8671 = vcmp.eq.f32.partialorder %v8511, inf
    %v8672 = vsel %vm8671, %v8511, %v8670
    %vm8673 = vcmp.eq.f32.partialorder %v8511, 0.0
    %v8674 = vand.u32 %v8511, 2147483648
    %v8675 = vsel %vm8673, %v8674, %v8672
    %v8676 = vrsqrt.pop %v8512
    %v8677 = vmul.f32 %v8512, %v8676
    %vm8678 = vcmp.eq.f32.partialorder %v8512, inf
    %v8679 = vsel %vm8678, %v8512, %v8677
    %vm8680 = vcmp.eq.f32.partialorder %v8512, 0.0
    %v8681 = vand.u32 %v8512, 2147483648
    %v8682 = vsel %vm8680, %v8681, %v8679
    %v8683 = vrsqrt.pop %v8513
    %v8684 = vmul.f32 %v8513, %v8683
    %vm8685 = vcmp.eq.f32.partialorder %v8513, inf
    %v8686 = vsel %vm8685, %v8513, %v8684
    %vm8687 = vcmp.eq.f32.partialorder %v8513, 0.0
    %v8688 = vand.u32 %v8513, 2147483648
    %v8689 = vsel %vm8687, %v8688, %v8686
    %v8690 = vrsqrt.pop %v8514
    %v8691 = vmul.f32 %v8514, %v8690
    %vm8692 = vcmp.eq.f32.partialorder %v8514, inf
    %v8693 = vsel %vm8692, %v8514, %v8691
    %vm8694 = vcmp.eq.f32.partialorder %v8514, 0.0
    %v8695 = vand.u32 %v8514, 2147483648
    %v8696 = vsel %vm8694, %v8695, %v8693
    %v8697 = vrsqrt.pop %v8515
    %v8698 = vmul.f32 %v8515, %v8697
    %vm8699 = vcmp.eq.f32.partialorder %v8515, inf
    %v8700 = vsel %vm8699, %v8515, %v8698
    %vm8701 = vcmp.eq.f32.partialorder %v8515, 0.0
    %v8702 = vand.u32 %v8515, 2147483648
    %v8703 = vsel %vm8701, %v8702, %v8700
    %v8704 = vrsqrt.pop %v8516
    %v8705 = vmul.f32 %v8516, %v8704
    %vm8706 = vcmp.eq.f32.partialorder %v8516, inf
    %v8707 = vsel %vm8706, %v8516, %v8705
    %vm8708 = vcmp.eq.f32.partialorder %v8516, 0.0
    %v8709 = vand.u32 %v8516, 2147483648
    %v8710 = vsel %vm8708, %v8709, %v8707
    %v8711 = vrsqrt.pop %v8517
    %v8712 = vmul.f32 %v8517, %v8711
    %vm8713 = vcmp.eq.f32.partialorder %v8517, inf
    %v8714 = vsel %vm8713, %v8517, %v8712
    %vm8715 = vcmp.eq.f32.partialorder %v8517, 0.0
    %v8716 = vand.u32 %v8517, 2147483648
    %v8717 = vsel %vm8715, %v8716, %v8714
    %v8718 = vrsqrt.pop %v8518
    %v8719 = vmul.f32 %v8518, %v8718
    %vm8720 = vcmp.eq.f32.partialorder %v8518, inf
    %v8721 = vsel %vm8720, %v8518, %v8719
    %vm8722 = vcmp.eq.f32.partialorder %v8518, 0.0
    %v8723 = vand.u32 %v8518, 2147483648
    %v8724 = vsel %vm8722, %v8723, %v8721
    %v8725 = vrsqrt.pop %v8519
    %v8726 = vmul.f32 %v8519, %v8725
    %vm8727 = vcmp.eq.f32.partialorder %v8519, inf
    %v8728 = vsel %vm8727, %v8519, %v8726
    %vm8729 = vcmp.eq.f32.partialorder %v8519, 0.0
    %v8730 = vand.u32 %v8519, 2147483648
    %v8731 = vsel %vm8729, %v8730, %v8728
    %v8732 = vrsqrt.pop %v8520
    %v8733 = vmul.f32 %v8520, %v8732
    %vm8734 = vcmp.eq.f32.partialorder %v8520, inf
    %v8735 = vsel %vm8734, %v8520, %v8733
    %vm8736 = vcmp.eq.f32.partialorder %v8520, 0.0
    %v8737 = vand.u32 %v8520, 2147483648
    %v8738 = vsel %vm8736, %v8737, %v8735
    %v8739 = vrsqrt.pop %v8521
    %v8740 = vmul.f32 %v8521, %v8739
    %vm8741 = vcmp.eq.f32.partialorder %v8521, inf
    %v8742 = vsel %vm8741, %v8521, %v8740
    %vm8743 = vcmp.eq.f32.partialorder %v8521, 0.0
    %v8744 = vand.u32 %v8521, 2147483648
    %v8745 = vsel %vm8743, %v8744, %v8742
    %v8746 = vrsqrt.pop %v8522
    %v8747 = vmul.f32 %v8522, %v8746
    %vm8748 = vcmp.eq.f32.partialorder %v8522, inf
    %v8749 = vsel %vm8748, %v8522, %v8747
    %vm8750 = vcmp.eq.f32.partialorder %v8522, 0.0
    %v8751 = vand.u32 %v8522, 2147483648
    %v8752 = vsel %vm8750, %v8751, %v8749
    %v8753 = vrsqrt.pop %v8523
    %v8754 = vmul.f32 %v8523, %v8753
    %vm8755 = vcmp.eq.f32.partialorder %v8523, inf
    %v8756 = vsel %vm8755, %v8523, %v8754
    %vm8757 = vcmp.eq.f32.partialorder %v8523, 0.0
    %v8758 = vand.u32 %v8523, 2147483648
    %v8759 = vsel %vm8757, %v8758, %v8756
    %v8760 = vrsqrt.pop %v8524
    %v8761 = vmul.f32 %v8524, %v8760
    %vm8762 = vcmp.eq.f32.partialorder %v8524, inf
    %v8763 = vsel %vm8762, %v8524, %v8761
    %vm8764 = vcmp.eq.f32.partialorder %v8524, 0.0
    %v8765 = vand.u32 %v8524, 2147483648
    %v8766 = vsel %vm8764, %v8765, %v8763
    %v8767 = vrsqrt.pop %v8525
    %v8768 = vmul.f32 %v8525, %v8767
    %vm8769 = vcmp.eq.f32.partialorder %v8525, inf
    %v8770 = vsel %vm8769, %v8525, %v8768
    %vm8771 = vcmp.eq.f32.partialorder %v8525, 0.0
    %v8772 = vand.u32 %v8525, 2147483648
    %v8773 = vsel %vm8771, %v8772, %v8770
    %v8774 = vrsqrt.pop %v8526
    %v8775 = vmul.f32 %v8526, %v8774
    %vm8776 = vcmp.eq.f32.partialorder %v8526, inf
    %v8777 = vsel %vm8776, %v8526, %v8775
    %vm8778 = vcmp.eq.f32.partialorder %v8526, 0.0
    %v8779 = vand.u32 %v8526, 2147483648
    %v8780 = vsel %vm8778, %v8779, %v8777
    %v8781 = vrsqrt.pop %v8527
    %v8782 = vmul.f32 %v8527, %v8781
    %vm8783 = vcmp.eq.f32.partialorder %v8527, inf
    %v8784 = vsel %vm8783, %v8527, %v8782
    %vm8785 = vcmp.eq.f32.partialorder %v8527, 0.0
    %v8786 = vand.u32 %v8527, 2147483648
    %v8787 = vsel %vm8785, %v8786, %v8784
    %v8788 = vrsqrt.pop %v8528
    %v8789 = vmul.f32 %v8528, %v8788
    %vm8790 = vcmp.eq.f32.partialorder %v8528, inf
    %v8791 = vsel %vm8790, %v8528, %v8789
    %vm8792 = vcmp.eq.f32.partialorder %v8528, 0.0
    %v8793 = vand.u32 %v8528, 2147483648
    %v8794 = vsel %vm8792, %v8793, %v8791
    %v8795 = vrsqrt.pop %v8529
    %v8796 = vmul.f32 %v8529, %v8795
    %vm8797 = vcmp.eq.f32.partialorder %v8529, inf
    %v8798 = vsel %vm8797, %v8529, %v8796
    %vm8799 = vcmp.eq.f32.partialorder %v8529, 0.0
    %v8800 = vand.u32 %v8529, 2147483648
    %v8801 = vsel %vm8799, %v8800, %v8798
    %v8802 = vrsqrt.pop %v8530
    %v8803 = vmul.f32 %v8530, %v8802
    %vm8804 = vcmp.eq.f32.partialorder %v8530, inf
    %v8805 = vsel %vm8804, %v8530, %v8803
    %vm8806 = vcmp.eq.f32.partialorder %v8530, 0.0
    %v8807 = vand.u32 %v8530, 2147483648
    %v8808 = vsel %vm8806, %v8807, %v8805
    %v8809 = vrsqrt.pop %v8531
    %v8810 = vmul.f32 %v8531, %v8809
    %vm8811 = vcmp.eq.f32.partialorder %v8531, inf
    %v8812 = vsel %vm8811, %v8531, %v8810
    %vm8813 = vcmp.eq.f32.partialorder %v8531, 0.0
    %v8814 = vand.u32 %v8531, 2147483648
    %v8815 = vsel %vm8813, %v8814, %v8812
    %v8816 = vrsqrt.pop %v8532
    %v8817 = vmul.f32 %v8532, %v8816
    %vm8818 = vcmp.eq.f32.partialorder %v8532, inf
    %v8819 = vsel %vm8818, %v8532, %v8817
    %vm8820 = vcmp.eq.f32.partialorder %v8532, 0.0
    %v8821 = vand.u32 %v8532, 2147483648
    %v8822 = vsel %vm8820, %v8821, %v8819
    %v8823 = vrsqrt.pop %v8533
    %v8824 = vmul.f32 %v8533, %v8823
    %vm8825 = vcmp.eq.f32.partialorder %v8533, inf
    %v8826 = vsel %vm8825, %v8533, %v8824
    %vm8827 = vcmp.eq.f32.partialorder %v8533, 0.0
    %v8828 = vand.u32 %v8533, 2147483648
    %v8829 = vsel %vm8827, %v8828, %v8826
    %v8830 = vrsqrt.pop %v8534
    %v8831 = vmul.f32 %v8534, %v8830
    %vm8832 = vcmp.eq.f32.partialorder %v8534, inf
    %v8833 = vsel %vm8832, %v8534, %v8831
    %vm8834 = vcmp.eq.f32.partialorder %v8534, 0.0
    %v8835 = vand.u32 %v8534, 2147483648
    %v8836 = vsel %vm8834, %v8835, %v8833
    %v8837 = vrsqrt.pop %v8535
    %v8838 = vmul.f32 %v8535, %v8837
    %vm8839 = vcmp.eq.f32.partialorder %v8535, inf
    %v8840 = vsel %vm8839, %v8535, %v8838
    %vm8841 = vcmp.eq.f32.partialorder %v8535, 0.0
    %v8842 = vand.u32 %v8535, 2147483648
    %v8843 = vsel %vm8841, %v8842, %v8840
    %v8844 = vrsqrt.pop %v8536
    %v8845 = vmul.f32 %v8536, %v8844
    %vm8846 = vcmp.eq.f32.partialorder %v8536, inf
    %v8847 = vsel %vm8846, %v8536, %v8845
    %vm8848 = vcmp.eq.f32.partialorder %v8536, 0.0
    %v8849 = vand.u32 %v8536, 2147483648
    %v8850 = vsel %vm8848, %v8849, %v8847
    %v8851 = vrsqrt.pop %v8537
    %v8852 = vmul.f32 %v8537, %v8851
    %vm8853 = vcmp.eq.f32.partialorder %v8537, inf
    %v8854 = vsel %vm8853, %v8537, %v8852
    %vm8855 = vcmp.eq.f32.partialorder %v8537, 0.0
    %v8856 = vand.u32 %v8537, 2147483648
    %v8857 = vsel %vm8855, %v8856, %v8854
    %v8858 = vrsqrt.pop %v8538
    %v8859 = vmul.f32 %v8538, %v8858
    %vm8860 = vcmp.eq.f32.partialorder %v8538, inf
    %v8861 = vsel %vm8860, %v8538, %v8859
    %vm8862 = vcmp.eq.f32.partialorder %v8538, 0.0
    %v8863 = vand.u32 %v8538, 2147483648
    %v8864 = vsel %vm8862, %v8863, %v8861
    %v8865 = vrsqrt.pop %v8539
    %v8866 = vmul.f32 %v8539, %v8865
    %vm8867 = vcmp.eq.f32.partialorder %v8539, inf
    %v8868 = vsel %vm8867, %v8539, %v8866
    %vm8869 = vcmp.eq.f32.partialorder %v8539, 0.0
    %v8870 = vand.u32 %v8539, 2147483648
    %v8871 = vsel %vm8869, %v8870, %v8868
    %v8872 = vrsqrt.pop %v8540
    %v8873 = vmul.f32 %v8540, %v8872
    %vm8874 = vcmp.eq.f32.partialorder %v8540, inf
    %v8875 = vsel %vm8874, %v8540, %v8873
    %vm8876 = vcmp.eq.f32.partialorder %v8540, 0.0
    %v8877 = vand.u32 %v8540, 2147483648
    %v8878 = vsel %vm8876, %v8877, %v8875
    %v8879 = vrsqrt.pop %v8541
    %v8880 = vmul.f32 %v8541, %v8879
    %vm8881 = vcmp.eq.f32.partialorder %v8541, inf
    %v8882 = vsel %vm8881, %v8541, %v8880
    %vm8883 = vcmp.eq.f32.partialorder %v8541, 0.0
    %v8884 = vand.u32 %v8541, 2147483648
    %v8885 = vsel %vm8883, %v8884, %v8882
    %v8886 = vrsqrt.pop %v8542
    %v8887 = vmul.f32 %v8542, %v8886
    %vm8888 = vcmp.eq.f32.partialorder %v8542, inf
    %v8889 = vsel %vm8888, %v8542, %v8887
    %vm8890 = vcmp.eq.f32.partialorder %v8542, 0.0
    %v8891 = vand.u32 %v8542, 2147483648
    %v8892 = vsel %vm8890, %v8891, %v8889
    %v8893 = vrsqrt.pop %v8543
    %v8894 = vmul.f32 %v8543, %v8893
    %vm8895 = vcmp.eq.f32.partialorder %v8543, inf
    %v8896 = vsel %vm8895, %v8543, %v8894
    %vm8897 = vcmp.eq.f32.partialorder %v8543, 0.0
    %v8898 = vand.u32 %v8543, 2147483648
    %v8899 = vsel %vm8897, %v8898, %v8896
    %v8900 = vrsqrt.pop %v8544
    %v8901 = vmul.f32 %v8544, %v8900
    %vm8902 = vcmp.eq.f32.partialorder %v8544, inf
    %v8903 = vsel %vm8902, %v8544, %v8901
    %vm8904 = vcmp.eq.f32.partialorder %v8544, 0.0
    %v8905 = vand.u32 %v8544, 2147483648
    %v8906 = vsel %vm8904, %v8905, %v8903
    %v8907 = vrsqrt.pop %v8545
    %v8908 = vmul.f32 %v8545, %v8907
    %vm8909 = vcmp.eq.f32.partialorder %v8545, inf
    %v8910 = vsel %vm8909, %v8545, %v8908
    %vm8911 = vcmp.eq.f32.partialorder %v8545, 0.0
    %v8912 = vand.u32 %v8545, 2147483648
    %v8913 = vsel %vm8911, %v8912, %v8910
    %v8914 = vrsqrt.pop %v8546
    %v8915 = vmul.f32 %v8546, %v8914
    %vm8916 = vcmp.eq.f32.partialorder %v8546, inf
    %v8917 = vsel %vm8916, %v8546, %v8915
    %vm8918 = vcmp.eq.f32.partialorder %v8546, 0.0
    %v8919 = vand.u32 %v8546, 2147483648
    %v8920 = vsel %vm8918, %v8919, %v8917
    %v8921 = vrsqrt.pop %v8547
    %v8922 = vmul.f32 %v8547, %v8921
    %vm8923 = vcmp.eq.f32.partialorder %v8547, inf
    %v8924 = vsel %vm8923, %v8547, %v8922
    %vm8925 = vcmp.eq.f32.partialorder %v8547, 0.0
    %v8926 = vand.u32 %v8547, 2147483648
    %v8927 = vsel %vm8925, %v8926, %v8924
    %v8928 = vrsqrt.pop %v8548
    %v8929 = vmul.f32 %v8548, %v8928
    %vm8930 = vcmp.eq.f32.partialorder %v8548, inf
    %v8931 = vsel %vm8930, %v8548, %v8929
    %vm8932 = vcmp.eq.f32.partialorder %v8548, 0.0
    %v8933 = vand.u32 %v8548, 2147483648
    %v8934 = vsel %vm8932, %v8933, %v8931
    %v8935 = vrsqrt.pop %v8549
    %v8936 = vmul.f32 %v8549, %v8935
    %vm8937 = vcmp.eq.f32.partialorder %v8549, inf
    %v8938 = vsel %vm8937, %v8549, %v8936
    %vm8939 = vcmp.eq.f32.partialorder %v8549, 0.0
    %v8940 = vand.u32 %v8549, 2147483648
    %v8941 = vsel %vm8939, %v8940, %v8938
    %v8942 = vrsqrt.pop %v8550
    %v8943 = vmul.f32 %v8550, %v8942
    %vm8944 = vcmp.eq.f32.partialorder %v8550, inf
    %v8945 = vsel %vm8944, %v8550, %v8943
    %vm8946 = vcmp.eq.f32.partialorder %v8550, 0.0
    %v8947 = vand.u32 %v8550, 2147483648
    %v8948 = vsel %vm8946, %v8947, %v8945
    %v8949 = vrsqrt.pop %v8551
    %v8950 = vmul.f32 %v8551, %v8949
    %vm8951 = vcmp.eq.f32.partialorder %v8551, inf
    %v8952 = vsel %vm8951, %v8551, %v8950
    %vm8953 = vcmp.eq.f32.partialorder %v8551, 0.0
    %v8954 = vand.u32 %v8551, 2147483648
    %v8955 = vsel %vm8953, %v8954, %v8952
    %v8956 = vrsqrt.pop %v8552
    %v8957 = vmul.f32 %v8552, %v8956
    %vm8958 = vcmp.eq.f32.partialorder %v8552, inf
    %v8959 = vsel %vm8958, %v8552, %v8957
    %vm8960 = vcmp.eq.f32.partialorder %v8552, 0.0
    %v8961 = vand.u32 %v8552, 2147483648
    %v8962 = vsel %vm8960, %v8961, %v8959
    %v8963 = vrsqrt.pop %v8553
    %v8964 = vmul.f32 %v8553, %v8963
    %vm8965 = vcmp.eq.f32.partialorder %v8553, inf
    %v8966 = vsel %vm8965, %v8553, %v8964
    %vm8967 = vcmp.eq.f32.partialorder %v8553, 0.0
    %v8968 = vand.u32 %v8553, 2147483648
    %v8969 = vsel %vm8967, %v8968, %v8966
    %v8970 = vrsqrt.pop %v8554
    %v8971 = vmul.f32 %v8554, %v8970
    %vm8972 = vcmp.eq.f32.partialorder %v8554, inf
    %v8973 = vsel %vm8972, %v8554, %v8971
    %vm8974 = vcmp.eq.f32.partialorder %v8554, 0.0
    %v8975 = vand.u32 %v8554, 2147483648
    %v8976 = vsel %vm8974, %v8975, %v8973
    %v8977 = vrsqrt.pop %v8555
    %v8978 = vmul.f32 %v8555, %v8977
    %vm8979 = vcmp.eq.f32.partialorder %v8555, inf
    %v8980 = vsel %vm8979, %v8555, %v8978
    %vm8981 = vcmp.eq.f32.partialorder %v8555, 0.0
    %v8982 = vand.u32 %v8555, 2147483648
    %v8983 = vsel %vm8981, %v8982, %v8980
    %v8984 = vrsqrt.pop %v8556
    %v8985 = vmul.f32 %v8556, %v8984
    %vm8986 = vcmp.eq.f32.partialorder %v8556, inf
    %v8987 = vsel %vm8986, %v8556, %v8985
    %vm8988 = vcmp.eq.f32.partialorder %v8556, 0.0
    %v8989 = vand.u32 %v8556, 2147483648
    %v8990 = vsel %vm8988, %v8989, %v8987
    %v8991 = vrsqrt.pop %v8557
    %v8992 = vmul.f32 %v8557, %v8991
    %vm8993 = vcmp.eq.f32.partialorder %v8557, inf
    %v8994 = vsel %vm8993, %v8557, %v8992
    %vm8995 = vcmp.eq.f32.partialorder %v8557, 0.0
    %v8996 = vand.u32 %v8557, 2147483648
    %v8997 = vsel %vm8995, %v8996, %v8994
    %v8998 = vrsqrt.pop %v8558
    %v8999 = vmul.f32 %v8558, %v8998
    %vm9000 = vcmp.eq.f32.partialorder %v8558, inf
    %v9001 = vsel %vm9000, %v8558, %v8999
    %vm9002 = vcmp.eq.f32.partialorder %v8558, 0.0
    %v9003 = vand.u32 %v8558, 2147483648
    %v9004 = vsel %vm9002, %v9003, %v9001
    %v9005 = vrsqrt.pop %v8559
    %v9006 = vmul.f32 %v8559, %v9005
    %vm9007 = vcmp.eq.f32.partialorder %v8559, inf
    %v9008 = vsel %vm9007, %v8559, %v9006
    %vm9009 = vcmp.eq.f32.partialorder %v8559, 0.0
    %v9010 = vand.u32 %v8559, 2147483648
    %v9011 = vsel %vm9009, %v9010, %v9008
    %v9012 = vrsqrt.pop %v8560
    %v9013 = vmul.f32 %v8560, %v9012
    %vm9014 = vcmp.eq.f32.partialorder %v8560, inf
    %v9015 = vsel %vm9014, %v8560, %v9013
    %vm9016 = vcmp.eq.f32.partialorder %v8560, 0.0
    %v9017 = vand.u32 %v8560, 2147483648
    %v9018 = vsel %vm9016, %v9017, %v9015
    %v9019 = vrsqrt.pop %v8561
    %v9020 = vmul.f32 %v8561, %v9019
    %vm9021 = vcmp.eq.f32.partialorder %v8561, inf
    %v9022 = vsel %vm9021, %v8561, %v9020
    %vm9023 = vcmp.eq.f32.partialorder %v8561, 0.0
    %v9024 = vand.u32 %v8561, 2147483648
    %v9025 = vsel %vm9023, %v9024, %v9022
    %v9026 = vrsqrt.pop %v8562
    %v9027 = vmul.f32 %v8562, %v9026
    %vm9028 = vcmp.eq.f32.partialorder %v8562, inf
    %v9029 = vsel %vm9028, %v8562, %v9027
    %vm9030 = vcmp.eq.f32.partialorder %v8562, 0.0
    %v9031 = vand.u32 %v8562, 2147483648
    %v9032 = vsel %vm9030, %v9031, %v9029
    %v9033 = vrsqrt.pop %v8563
    %v9034 = vmul.f32 %v8563, %v9033
    %vm9035 = vcmp.eq.f32.partialorder %v8563, inf
    %v9036 = vsel %vm9035, %v8563, %v9034
    %vm9037 = vcmp.eq.f32.partialorder %v8563, 0.0
    %v9038 = vand.u32 %v8563, 2147483648
    %v9039 = vsel %vm9037, %v9038, %v9036
    %v9040 = vrsqrt.pop %v8564
    %v9041 = vmul.f32 %v8564, %v9040
    %vm9042 = vcmp.eq.f32.partialorder %v8564, inf
    %v9043 = vsel %vm9042, %v8564, %v9041
    %vm9044 = vcmp.eq.f32.partialorder %v8564, 0.0
    %v9045 = vand.u32 %v8564, 2147483648
    %v9046 = vsel %vm9044, %v9045, %v9043
    %v9047 = vrsqrt.pop %v8565
    %v9048 = vmul.f32 %v8565, %v9047
    %vm9049 = vcmp.eq.f32.partialorder %v8565, inf
    %v9050 = vsel %vm9049, %v8565, %v9048
    %vm9051 = vcmp.eq.f32.partialorder %v8565, 0.0
    %v9052 = vand.u32 %v8565, 2147483648
    %v9053 = vsel %vm9051, %v9052, %v9050
    %v9054 = vrsqrt.pop %v8566
    %v9055 = vmul.f32 %v8566, %v9054
    %vm9056 = vcmp.eq.f32.partialorder %v8566, inf
    %v9057 = vsel %vm9056, %v8566, %v9055
    %vm9058 = vcmp.eq.f32.partialorder %v8566, 0.0
    %v9059 = vand.u32 %v8566, 2147483648
    %v9060 = vsel %vm9058, %v9059, %v9057
    %v9061 = vrsqrt.pop %v8567
    %v9062 = vmul.f32 %v8567, %v9061
    %vm9063 = vcmp.eq.f32.partialorder %v8567, inf
    %v9064 = vsel %vm9063, %v8567, %v9062
    %vm9065 = vcmp.eq.f32.partialorder %v8567, 0.0
    %v9066 = vand.u32 %v8567, 2147483648
    %v9067 = vsel %vm9065, %v9066, %v9064
    %v9068 = vrsqrt.pop %v8568
    %v9069 = vmul.f32 %v8568, %v9068
    %vm9070 = vcmp.eq.f32.partialorder %v8568, inf
    %v9071 = vsel %vm9070, %v8568, %v9069
    %vm9072 = vcmp.eq.f32.partialorder %v8568, 0.0
    %v9073 = vand.u32 %v8568, 2147483648
    %v9074 = vsel %vm9072, %v9073, %v9071
    %v9075 = vrsqrt.pop %v8569
    %v9076 = vmul.f32 %v8569, %v9075
    %vm9077 = vcmp.eq.f32.partialorder %v8569, inf
    %v9078 = vsel %vm9077, %v8569, %v9076
    %vm9079 = vcmp.eq.f32.partialorder %v8569, 0.0
    %v9080 = vand.u32 %v8569, 2147483648
    %v9081 = vsel %vm9079, %v9080, %v9078
    %v9082 = vrsqrt.pop %v8570
    %v9083 = vmul.f32 %v8570, %v9082
    %vm9084 = vcmp.eq.f32.partialorder %v8570, inf
    %v9085 = vsel %vm9084, %v8570, %v9083
    %vm9086 = vcmp.eq.f32.partialorder %v8570, 0.0
    %v9087 = vand.u32 %v8570, 2147483648
    %v9088 = vsel %vm9086, %v9087, %v9085
    %v9089 = vrsqrt.pop %v8571
    %v9090 = vmul.f32 %v8571, %v9089
    %vm9091 = vcmp.eq.f32.partialorder %v8571, inf
    %v9092 = vsel %vm9091, %v8571, %v9090
    %vm9093 = vcmp.eq.f32.partialorder %v8571, 0.0
    %v9094 = vand.u32 %v8571, 2147483648
    %v9095 = vsel %vm9093, %v9094, %v9092
    %v9096 = vrsqrt.pop %v8572
    %v9097 = vmul.f32 %v8572, %v9096
    %vm9098 = vcmp.eq.f32.partialorder %v8572, inf
    %v9099 = vsel %vm9098, %v8572, %v9097
    %vm9100 = vcmp.eq.f32.partialorder %v8572, 0.0
    %v9101 = vand.u32 %v8572, 2147483648
    %v9102 = vsel %vm9100, %v9101, %v9099
    %v9103 = vrsqrt.pop %v8573
    %v9104 = vmul.f32 %v8573, %v9103
    %vm9105 = vcmp.eq.f32.partialorder %v8573, inf
    %v9106 = vsel %vm9105, %v8573, %v9104
    %vm9107 = vcmp.eq.f32.partialorder %v8573, 0.0
    %v9108 = vand.u32 %v8573, 2147483648
    %v9109 = vsel %vm9107, %v9108, %v9106
    %v9110 = vrsqrt.pop %v8574
    %v9111 = vmul.f32 %v8574, %v9110
    %vm9112 = vcmp.eq.f32.partialorder %v8574, inf
    %v9113 = vsel %vm9112, %v8574, %v9111
    %vm9114 = vcmp.eq.f32.partialorder %v8574, 0.0
    %v9115 = vand.u32 %v8574, 2147483648
    %v9116 = vsel %vm9114, %v9115, %v9113
    %v9117 = vrsqrt.pop %v8575
    %v9118 = vmul.f32 %v8575, %v9117
    %vm9119 = vcmp.eq.f32.partialorder %v8575, inf
    %v9120 = vsel %vm9119, %v8575, %v9118
    %vm9121 = vcmp.eq.f32.partialorder %v8575, 0.0
    %v9122 = vand.u32 %v8575, 2147483648
    %v9123 = vsel %vm9121, %v9122, %v9120
    %v9124 = vrsqrt.pop %v8576
    %v9125 = vmul.f32 %v8576, %v9124
    %vm9126 = vcmp.eq.f32.partialorder %v8576, inf
    %v9127 = vsel %vm9126, %v8576, %v9125
    %vm9128 = vcmp.eq.f32.partialorder %v8576, 0.0
    %v9129 = vand.u32 %v8576, 2147483648
    %v9130 = vsel %vm9128, %v9129, %v9127
    %v9131 = vrsqrt.pop %v8577
    %v9132 = vmul.f32 %v8577, %v9131
    %vm9133 = vcmp.eq.f32.partialorder %v8577, inf
    %v9134 = vsel %vm9133, %v8577, %v9132
    %vm9135 = vcmp.eq.f32.partialorder %v8577, 0.0
    %v9136 = vand.u32 %v8577, 2147483648
    %v9137 = vsel %vm9135, %v9136, %v9134
    %v9138 = vrsqrt.pop %v8578
    %v9139 = vmul.f32 %v8578, %v9138
    %vm9140 = vcmp.eq.f32.partialorder %v8578, inf
    %v9141 = vsel %vm9140, %v8578, %v9139
    %vm9142 = vcmp.eq.f32.partialorder %v8578, 0.0
    %v9143 = vand.u32 %v8578, 2147483648
    %v9144 = vsel %vm9142, %v9143, %v9141
    %v9145 = vrsqrt.pop %v8579
    %v9146 = vmul.f32 %v8579, %v9145
    %vm9147 = vcmp.eq.f32.partialorder %v8579, inf
    %v9148 = vsel %vm9147, %v8579, %v9146
    %vm9149 = vcmp.eq.f32.partialorder %v8579, 0.0
    %v9150 = vand.u32 %v8579, 2147483648
    %v9151 = vsel %vm9149, %v9150, %v9148
    %v9152 = vrsqrt.pop %v8580
    %v9153 = vmul.f32 %v8580, %v9152
    %vm9154 = vcmp.eq.f32.partialorder %v8580, inf
    %v9155 = vsel %vm9154, %v8580, %v9153
    %vm9156 = vcmp.eq.f32.partialorder %v8580, 0.0
    %v9157 = vand.u32 %v8580, 2147483648
    %v9158 = vsel %vm9156, %v9157, %v9155
    %v9159 = vrsqrt.pop %v8581
    %v9160 = vmul.f32 %v8581, %v9159
    %vm9161 = vcmp.eq.f32.partialorder %v8581, inf
    %v9162 = vsel %vm9161, %v8581, %v9160
    %vm9163 = vcmp.eq.f32.partialorder %v8581, 0.0
    %v9164 = vand.u32 %v8581, 2147483648
    %v9165 = vsel %vm9163, %v9164, %v9162
    %v9166 = vrsqrt.pop %v8582
    %v9167 = vmul.f32 %v8582, %v9166
    %vm9168 = vcmp.eq.f32.partialorder %v8582, inf
    %v9169 = vsel %vm9168, %v8582, %v9167
    %vm9170 = vcmp.eq.f32.partialorder %v8582, 0.0
    %v9171 = vand.u32 %v8582, 2147483648
    %v9172 = vsel %vm9170, %v9171, %v9169
    %v9173 = vrsqrt.pop %v8583
    %v9174 = vmul.f32 %v8583, %v9173
    %vm9175 = vcmp.eq.f32.partialorder %v8583, inf
    %v9176 = vsel %vm9175, %v8583, %v9174
    %vm9177 = vcmp.eq.f32.partialorder %v8583, 0.0
    %v9178 = vand.u32 %v8583, 2147483648
    %v9179 = vsel %vm9177, %v9178, %v9176
    %v9180 = vrsqrt.pop %v8584
    %v9181 = vmul.f32 %v8584, %v9180
    %vm9182 = vcmp.eq.f32.partialorder %v8584, inf
    %v9183 = vsel %vm9182, %v8584, %v9181
    %vm9184 = vcmp.eq.f32.partialorder %v8584, 0.0
    %v9185 = vand.u32 %v8584, 2147483648
    %v9186 = vsel %vm9184, %v9185, %v9183
    %v9187 = vrsqrt.pop %v8585
    %v9188 = vmul.f32 %v8585, %v9187
    %vm9189 = vcmp.eq.f32.partialorder %v8585, inf
    %v9190 = vsel %vm9189, %v8585, %v9188
    %vm9191 = vcmp.eq.f32.partialorder %v8585, 0.0
    %v9192 = vand.u32 %v8585, 2147483648
    %v9193 = vsel %vm9191, %v9192, %v9190
    %v9194 = vrsqrt.pop %v8586
    %v9195 = vmul.f32 %v8586, %v9194
    %vm9196 = vcmp.eq.f32.partialorder %v8586, inf
    %v9197 = vsel %vm9196, %v8586, %v9195
    %vm9198 = vcmp.eq.f32.partialorder %v8586, 0.0
    %v9199 = vand.u32 %v8586, 2147483648
    %v9200 = vsel %vm9198, %v9199, %v9197
    %v9201 = vrsqrt.pop %v8587
    %v9202 = vmul.f32 %v8587, %v9201
    %vm9203 = vcmp.eq.f32.partialorder %v8587, inf
    %v9204 = vsel %vm9203, %v8587, %v9202
    %vm9205 = vcmp.eq.f32.partialorder %v8587, 0.0
    %v9206 = vand.u32 %v8587, 2147483648
    %v9207 = vsel %vm9205, %v9206, %v9204
    %v9208 = vrsqrt.pop %v8588
    %v9209 = vmul.f32 %v8588, %v9208
    %vm9210 = vcmp.eq.f32.partialorder %v8588, inf
    %v9211 = vsel %vm9210, %v8588, %v9209
    %vm9212 = vcmp.eq.f32.partialorder %v8588, 0.0
    %v9213 = vand.u32 %v8588, 2147483648
    %v9214 = vsel %vm9212, %v9213, %v9211
    %v9215 = vrsqrt.pop %v8589
    %v9216 = vmul.f32 %v8589, %v9215
    %vm9217 = vcmp.eq.f32.partialorder %v8589, inf
    %v9218 = vsel %vm9217, %v8589, %v9216
    %vm9219 = vcmp.eq.f32.partialorder %v8589, 0.0
    %v9220 = vand.u32 %v8589, 2147483648
    %v9221 = vsel %vm9219, %v9220, %v9218
    %v9222 = vrsqrt.pop %v8590
    %v9223 = vmul.f32 %v8590, %v9222
    %vm9224 = vcmp.eq.f32.partialorder %v8590, inf
    %v9225 = vsel %vm9224, %v8590, %v9223
    %vm9226 = vcmp.eq.f32.partialorder %v8590, 0.0
    %v9227 = vand.u32 %v8590, 2147483648
    %v9228 = vsel %vm9226, %v9227, %v9225
    %v9229 = vrsqrt.pop %v8591
    %v9230 = vmul.f32 %v8591, %v9229
    %vm9231 = vcmp.eq.f32.partialorder %v8591, inf
    %v9232 = vsel %vm9231, %v8591, %v9230
    %vm9233 = vcmp.eq.f32.partialorder %v8591, 0.0
    %v9234 = vand.u32 %v8591, 2147483648
    %v9235 = vsel %vm9233, %v9234, %v9232
    %v9236 = vrsqrt.pop %v8592
    %v9237 = vmul.f32 %v8592, %v9236
    %vm9238 = vcmp.eq.f32.partialorder %v8592, inf
    %v9239 = vsel %vm9238, %v8592, %v9237
    %vm9240 = vcmp.eq.f32.partialorder %v8592, 0.0
    %v9241 = vand.u32 %v8592, 2147483648
    %v9242 = vsel %vm9240, %v9241, %v9239
    %v9243 = vrsqrt.pop %v8593
    %v9244 = vmul.f32 %v8593, %v9243
    %vm9245 = vcmp.eq.f32.partialorder %v8593, inf
    %v9246 = vsel %vm9245, %v8593, %v9244
    %vm9247 = vcmp.eq.f32.partialorder %v8593, 0.0
    %v9248 = vand.u32 %v8593, 2147483648
    %v9249 = vsel %vm9247, %v9248, %v9246
    %v9250 = vrsqrt.pop %v8594
    %v9251 = vmul.f32 %v8594, %v9250
    %vm9252 = vcmp.eq.f32.partialorder %v8594, inf
    %v9253 = vsel %vm9252, %v8594, %v9251
    %vm9254 = vcmp.eq.f32.partialorder %v8594, 0.0
    %v9255 = vand.u32 %v8594, 2147483648
    %v9256 = vsel %vm9254, %v9255, %v9253
    %v9257 = vrsqrt.pop %v8595
    %v9258 = vmul.f32 %v8595, %v9257
    %vm9259 = vcmp.eq.f32.partialorder %v8595, inf
    %v9260 = vsel %vm9259, %v8595, %v9258
    %vm9261 = vcmp.eq.f32.partialorder %v8595, 0.0
    %v9262 = vand.u32 %v8595, 2147483648
    %v9263 = vsel %vm9261, %v9262, %v9260
    %v9264 = vrsqrt.pop %v8596
    %v9265 = vmul.f32 %v8596, %v9264
    %vm9266 = vcmp.eq.f32.partialorder %v8596, inf
    %v9267 = vsel %vm9266, %v8596, %v9265
    %vm9268 = vcmp.eq.f32.partialorder %v8596, 0.0
    %v9269 = vand.u32 %v8596, 2147483648
    %v9270 = vsel %vm9268, %v9269, %v9267
    %v9271 = vrsqrt.pop %v8597
    %v9272 = vmul.f32 %v8597, %v9271
    %vm9273 = vcmp.eq.f32.partialorder %v8597, inf
    %v9274 = vsel %vm9273, %v8597, %v9272
    %vm9275 = vcmp.eq.f32.partialorder %v8597, 0.0
    %v9276 = vand.u32 %v8597, 2147483648
    %v9277 = vsel %vm9275, %v9276, %v9274
    %v9278 = vrsqrt.pop %v8598
    %v9279 = vmul.f32 %v8598, %v9278
    %vm9280 = vcmp.eq.f32.partialorder %v8598, inf
    %v9281 = vsel %vm9280, %v8598, %v9279
    %vm9282 = vcmp.eq.f32.partialorder %v8598, 0.0
    %v9283 = vand.u32 %v8598, 2147483648
    %v9284 = vsel %vm9282, %v9283, %v9281
    %v9285 = vrsqrt.pop %v8599
    %v9286 = vmul.f32 %v8599, %v9285
    %vm9287 = vcmp.eq.f32.partialorder %v8599, inf
    %v9288 = vsel %vm9287, %v8599, %v9286
    %vm9289 = vcmp.eq.f32.partialorder %v8599, 0.0
    %v9290 = vand.u32 %v8599, 2147483648
    %v9291 = vsel %vm9289, %v9290, %v9288
    %v9292 = vrsqrt.pop %v8600
    %v9293 = vmul.f32 %v8600, %v9292
    %vm9294 = vcmp.eq.f32.partialorder %v8600, inf
    %v9295 = vsel %vm9294, %v8600, %v9293
    %vm9296 = vcmp.eq.f32.partialorder %v8600, 0.0
    %v9297 = vand.u32 %v8600, 2147483648
    %v9298 = vsel %vm9296, %v9297, %v9295
    %v9299 = vrsqrt.pop %v8601
    %v9300 = vmul.f32 %v8601, %v9299
    %vm9301 = vcmp.eq.f32.partialorder %v8601, inf
    %v9302 = vsel %vm9301, %v8601, %v9300
    %vm9303 = vcmp.eq.f32.partialorder %v8601, 0.0
    %v9304 = vand.u32 %v8601, 2147483648
    %v9305 = vsel %vm9303, %v9304, %v9302
    %v9306 = vrsqrt.pop %v8602
    %v9307 = vmul.f32 %v8602, %v9306
    %vm9308 = vcmp.eq.f32.partialorder %v8602, inf
    %v9309 = vsel %vm9308, %v8602, %v9307
    %vm9310 = vcmp.eq.f32.partialorder %v8602, 0.0
    %v9311 = vand.u32 %v8602, 2147483648
    %v9312 = vsel %vm9310, %v9311, %v9309
    %v9313 = vrsqrt.pop %v8603
    %v9314 = vmul.f32 %v8603, %v9313
    %vm9315 = vcmp.eq.f32.partialorder %v8603, inf
    %v9316 = vsel %vm9315, %v8603, %v9314
    %vm9317 = vcmp.eq.f32.partialorder %v8603, 0.0
    %v9318 = vand.u32 %v8603, 2147483648
    %v9319 = vsel %vm9317, %v9318, %v9316
    %v9320 = vrsqrt.pop %v8604
    %v9321 = vmul.f32 %v8604, %v9320
    %vm9322 = vcmp.eq.f32.partialorder %v8604, inf
    %v9323 = vsel %vm9322, %v8604, %v9321
    %vm9324 = vcmp.eq.f32.partialorder %v8604, 0.0
    %v9325 = vand.u32 %v8604, 2147483648
    %v9326 = vsel %vm9324, %v9325, %v9323
    %v9327 = vrsqrt.pop %v8605
    %v9328 = vmul.f32 %v8605, %v9327
    %vm9329 = vcmp.eq.f32.partialorder %v8605, inf
    %v9330 = vsel %vm9329, %v8605, %v9328
    %vm9331 = vcmp.eq.f32.partialorder %v8605, 0.0
    %v9332 = vand.u32 %v8605, 2147483648
    %v9333 = vsel %vm9331, %v9332, %v9330
    %v9334 = vrsqrt.pop %v8606
    %v9335 = vmul.f32 %v8606, %v9334
    %vm9336 = vcmp.eq.f32.partialorder %v8606, inf
    %v9337 = vsel %vm9336, %v8606, %v9335
    %vm9338 = vcmp.eq.f32.partialorder %v8606, 0.0
    %v9339 = vand.u32 %v8606, 2147483648
    %v9340 = vsel %vm9338, %v9339, %v9337
    %v9341 = vrsqrt.pop %v8607
    %v9342 = vmul.f32 %v8607, %v9341
    %vm9343 = vcmp.eq.f32.partialorder %v8607, inf
    %v9344 = vsel %vm9343, %v8607, %v9342
    %vm9345 = vcmp.eq.f32.partialorder %v8607, 0.0
    %v9346 = vand.u32 %v8607, 2147483648
    %v9347 = vsel %vm9345, %v9346, %v9344
    %v9348 = vrsqrt.pop %v8608
    %v9349 = vmul.f32 %v8608, %v9348
    %vm9350 = vcmp.eq.f32.partialorder %v8608, inf
    %v9351 = vsel %vm9350, %v8608, %v9349
    %vm9352 = vcmp.eq.f32.partialorder %v8608, 0.0
    %v9353 = vand.u32 %v8608, 2147483648
    %v9354 = vsel %vm9352, %v9353, %v9351
    %v9355 = vrsqrt.pop %v8609
    %v9356 = vmul.f32 %v8609, %v9355
    %vm9357 = vcmp.eq.f32.partialorder %v8609, inf
    %v9358 = vsel %vm9357, %v8609, %v9356
    %vm9359 = vcmp.eq.f32.partialorder %v8609, 0.0
    %v9360 = vand.u32 %v8609, 2147483648
    %v9361 = vsel %vm9359, %v9360, %v9358
    %v9362 = vrsqrt.pop %v8610
    %v9363 = vmul.f32 %v8610, %v9362
    %vm9364 = vcmp.eq.f32.partialorder %v8610, inf
    %v9365 = vsel %vm9364, %v8610, %v9363
    %vm9366 = vcmp.eq.f32.partialorder %v8610, 0.0
    %v9367 = vand.u32 %v8610, 2147483648
    %v9368 = vsel %vm9366, %v9367, %v9365
    %v9369 = vrsqrt.pop %v8611
    %v9370 = vmul.f32 %v8611, %v9369
    %vm9371 = vcmp.eq.f32.partialorder %v8611, inf
    %v9372 = vsel %vm9371, %v8611, %v9370
    %vm9373 = vcmp.eq.f32.partialorder %v8611, 0.0
    %v9374 = vand.u32 %v8611, 2147483648
    %v9375 = vsel %vm9373, %v9374, %v9372
    %v9376 = vrsqrt.pop %v8612
    %v9377 = vmul.f32 %v8612, %v9376
    %vm9378 = vcmp.eq.f32.partialorder %v8612, inf
    %v9379 = vsel %vm9378, %v8612, %v9377
    %vm9380 = vcmp.eq.f32.partialorder %v8612, 0.0
    %v9381 = vand.u32 %v8612, 2147483648
    %v9382 = vsel %vm9380, %v9381, %v9379
    %v9383 = vrsqrt.pop %v8613
    %v9384 = vmul.f32 %v8613, %v9383
    %vm9385 = vcmp.eq.f32.partialorder %v8613, inf
    %v9386 = vsel %vm9385, %v8613, %v9384
    %vm9387 = vcmp.eq.f32.partialorder %v8613, 0.0
    %v9388 = vand.u32 %v8613, 2147483648
    %v9389 = vsel %vm9387, %v9388, %v9386
    %v9390 = vrsqrt.pop %v8614
    %v9391 = vmul.f32 %v8614, %v9390
    %vm9392 = vcmp.eq.f32.partialorder %v8614, inf
    %v9393 = vsel %vm9392, %v8614, %v9391
    %vm9394 = vcmp.eq.f32.partialorder %v8614, 0.0
    %v9395 = vand.u32 %v8614, 2147483648
    %v9396 = vsel %vm9394, %v9395, %v9393
    %v9397 = vrsqrt.pop %v8615
    %v9398 = vmul.f32 %v8615, %v9397
    %vm9399 = vcmp.eq.f32.partialorder %v8615, inf
    %v9400 = vsel %vm9399, %v8615, %v9398
    %vm9401 = vcmp.eq.f32.partialorder %v8615, 0.0
    %v9402 = vand.u32 %v8615, 2147483648
    %v9403 = vsel %vm9401, %v9402, %v9400
    %v9404 = vrsqrt.pop %v8616
    %v9405 = vmul.f32 %v8616, %v9404
    %vm9406 = vcmp.eq.f32.partialorder %v8616, inf
    %v9407 = vsel %vm9406, %v8616, %v9405
    %vm9408 = vcmp.eq.f32.partialorder %v8616, 0.0
    %v9409 = vand.u32 %v8616, 2147483648
    %v9410 = vsel %vm9408, %v9409, %v9407
    %v9411 = vrsqrt.pop %v8617
    %v9412 = vmul.f32 %v8617, %v9411
    %vm9413 = vcmp.eq.f32.partialorder %v8617, inf
    %v9414 = vsel %vm9413, %v8617, %v9412
    %vm9415 = vcmp.eq.f32.partialorder %v8617, 0.0
    %v9416 = vand.u32 %v8617, 2147483648
    %v9417 = vsel %vm9415, %v9416, %v9414
    %v9418 = vrsqrt.pop %v8618
    %v9419 = vmul.f32 %v8618, %v9418
    %vm9420 = vcmp.eq.f32.partialorder %v8618, inf
    %v9421 = vsel %vm9420, %v8618, %v9419
    %vm9422 = vcmp.eq.f32.partialorder %v8618, 0.0
    %v9423 = vand.u32 %v8618, 2147483648
    %v9424 = vsel %vm9422, %v9423, %v9421
    %v9425 = vrsqrt.pop %v8619
    %v9426 = vmul.f32 %v8619, %v9425
    %vm9427 = vcmp.eq.f32.partialorder %v8619, inf
    %v9428 = vsel %vm9427, %v8619, %v9426
    %vm9429 = vcmp.eq.f32.partialorder %v8619, 0.0
    %v9430 = vand.u32 %v8619, 2147483648
    %v9431 = vsel %vm9429, %v9430, %v9428
    %v9432 = vrsqrt.pop %v8620
    %v9433 = vmul.f32 %v8620, %v9432
    %vm9434 = vcmp.eq.f32.partialorder %v8620, inf
    %v9435 = vsel %vm9434, %v8620, %v9433
    %vm9436 = vcmp.eq.f32.partialorder %v8620, 0.0
    %v9437 = vand.u32 %v8620, 2147483648
    %v9438 = vsel %vm9436, %v9437, %v9435
    %v9439 = vrsqrt.pop %v8621
    %v9440 = vmul.f32 %v8621, %v9439
    %vm9441 = vcmp.eq.f32.partialorder %v8621, inf
    %v9442 = vsel %vm9441, %v8621, %v9440
    %vm9443 = vcmp.eq.f32.partialorder %v8621, 0.0
    %v9444 = vand.u32 %v8621, 2147483648
    %v9445 = vsel %vm9443, %v9444, %v9442
    %v9446 = vrsqrt.pop %v8622
    %v9447 = vmul.f32 %v8622, %v9446
    %vm9448 = vcmp.eq.f32.partialorder %v8622, inf
    %v9449 = vsel %vm9448, %v8622, %v9447
    %vm9450 = vcmp.eq.f32.partialorder %v8622, 0.0
    %v9451 = vand.u32 %v8622, 2147483648
    %v9452 = vsel %vm9450, %v9451, %v9449
    %v9453 = vrsqrt.pop %v8623
    %v9454 = vmul.f32 %v8623, %v9453
    %vm9455 = vcmp.eq.f32.partialorder %v8623, inf
    %v9456 = vsel %vm9455, %v8623, %v9454
    %vm9457 = vcmp.eq.f32.partialorder %v8623, 0.0
    %v9458 = vand.u32 %v8623, 2147483648
    %v9459 = vsel %vm9457, %v9458, %v9456
    %v9460 = vrsqrt.pop %v8624
    %v9461 = vmul.f32 %v8624, %v9460
    %vm9462 = vcmp.eq.f32.partialorder %v8624, inf
    %v9463 = vsel %vm9462, %v8624, %v9461
    %vm9464 = vcmp.eq.f32.partialorder %v8624, 0.0
    %v9465 = vand.u32 %v8624, 2147483648
    %v9466 = vsel %vm9464, %v9465, %v9463
    %v9467 = vrsqrt.pop %v8625
    %v9468 = vmul.f32 %v8625, %v9467
    %vm9469 = vcmp.eq.f32.partialorder %v8625, inf
    %v9470 = vsel %vm9469, %v8625, %v9468
    %vm9471 = vcmp.eq.f32.partialorder %v8625, 0.0
    %v9472 = vand.u32 %v8625, 2147483648
    %v9473 = vsel %vm9471, %v9472, %v9470
    %v9474 = vrsqrt.pop %v8626
    %v9475 = vmul.f32 %v8626, %v9474
    %vm9476 = vcmp.eq.f32.partialorder %v8626, inf
    %v9477 = vsel %vm9476, %v8626, %v9475
    %vm9478 = vcmp.eq.f32.partialorder %v8626, 0.0
    %v9479 = vand.u32 %v8626, 2147483648
    %v9480 = vsel %vm9478, %v9479, %v9477
    %v9481 = vrsqrt.pop %v8627
    %v9482 = vmul.f32 %v8627, %v9481
    %vm9483 = vcmp.eq.f32.partialorder %v8627, inf
    %v9484 = vsel %vm9483, %v8627, %v9482
    %vm9485 = vcmp.eq.f32.partialorder %v8627, 0.0
    %v9486 = vand.u32 %v8627, 2147483648
    %v9487 = vsel %vm9485, %v9486, %v9484
    %v9488 = vrsqrt.pop %v8628
    %v9489 = vmul.f32 %v8628, %v9488
    %vm9490 = vcmp.eq.f32.partialorder %v8628, inf
    %v9491 = vsel %vm9490, %v8628, %v9489
    %vm9492 = vcmp.eq.f32.partialorder %v8628, 0.0
    %v9493 = vand.u32 %v8628, 2147483648
    %v9494 = vsel %vm9492, %v9493, %v9491
    %v9495 = vrsqrt.pop %v8629
    %v9496 = vmul.f32 %v8629, %v9495
    %vm9497 = vcmp.eq.f32.partialorder %v8629, inf
    %v9498 = vsel %vm9497, %v8629, %v9496
    %vm9499 = vcmp.eq.f32.partialorder %v8629, 0.0
    %v9500 = vand.u32 %v8629, 2147483648
    %v9501 = vsel %vm9499, %v9500, %v9498
    %v9502 = vrsqrt.pop %v8630
    %v9503 = vmul.f32 %v8630, %v9502
    %vm9504 = vcmp.eq.f32.partialorder %v8630, inf
    %v9505 = vsel %vm9504, %v8630, %v9503
    %vm9506 = vcmp.eq.f32.partialorder %v8630, 0.0
    %v9507 = vand.u32 %v8630, 2147483648
    %v9508 = vsel %vm9506, %v9507, %v9505
    %v9509 = vrsqrt.pop %v8631
    %v9510 = vmul.f32 %v8631, %v9509
    %vm9511 = vcmp.eq.f32.partialorder %v8631, inf
    %v9512 = vsel %vm9511, %v8631, %v9510
    %vm9513 = vcmp.eq.f32.partialorder %v8631, 0.0
    %v9514 = vand.u32 %v8631, 2147483648
    %v9515 = vsel %vm9513, %v9514, %v9512
    %v9516 = vrsqrt.pop %v8632
    %v9517 = vmul.f32 %v8632, %v9516
    %vm9518 = vcmp.eq.f32.partialorder %v8632, inf
    %v9519 = vsel %vm9518, %v8632, %v9517
    %vm9520 = vcmp.eq.f32.partialorder %v8632, 0.0
    %v9521 = vand.u32 %v8632, 2147483648
    %v9522 = vsel %vm9520, %v9521, %v9519
    %v9523 = vrsqrt.pop %v8633
    %v9524 = vmul.f32 %v8633, %v9523
    %vm9525 = vcmp.eq.f32.partialorder %v8633, inf
    %v9526 = vsel %vm9525, %v8633, %v9524
    %vm9527 = vcmp.eq.f32.partialorder %v8633, 0.0
    %v9528 = vand.u32 %v8633, 2147483648
    %v9529 = vsel %vm9527, %v9528, %v9526
    %v9530 = vsub.f32 %v3933, %v8640
    %v9531 = vsub.f32 %v3940, %v8647
    %v9532 = vsub.f32 %v3947, %v8654
    %v9533 = vsub.f32 %v3954, %v8661
    %v9534 = vsub.f32 %v3961, %v8668
    %v9535 = vsub.f32 %v3968, %v8675
    %v9536 = vsub.f32 %v3975, %v8682
    %v9537 = vsub.f32 %v3982, %v8689
    %v9538 = vsub.f32 %v3989, %v8696
    %v9539 = vsub.f32 %v3996, %v8703
    %v9540 = vsub.f32 %v4003, %v8710
    %v9541 = vsub.f32 %v4010, %v8717
    %v9542 = vsub.f32 %v4017, %v8724
    %v9543 = vsub.f32 %v4024, %v8731
    %v9544 = vsub.f32 %v4031, %v8738
    %v9545 = vsub.f32 %v4038, %v8745
    %v9546 = vsub.f32 %v4045, %v8752
    %v9547 = vsub.f32 %v4052, %v8759
    %v9548 = vsub.f32 %v4059, %v8766
    %v9549 = vsub.f32 %v4066, %v8773
    %v9550 = vsub.f32 %v4073, %v8780
    %v9551 = vsub.f32 %v4080, %v8787
    %v9552 = vsub.f32 %v4087, %v8794
    %v9553 = vsub.f32 %v4094, %v8801
    %v9554 = vsub.f32 %v4101, %v8808
    %v9555 = vsub.f32 %v4108, %v8815
    %v9556 = vsub.f32 %v4115, %v8822
    %v9557 = vsub.f32 %v4122, %v8829
    %v9558 = vsub.f32 %v4129, %v8836
    %v9559 = vsub.f32 %v4136, %v8843
    %v9560 = vsub.f32 %v4143, %v8850
    %v9561 = vsub.f32 %v4150, %v8857
    %v9562 = vsub.f32 %v4157, %v8864
    %v9563 = vsub.f32 %v4164, %v8871
    %v9564 = vsub.f32 %v4171, %v8878
    %v9565 = vsub.f32 %v4178, %v8885
    %v9566 = vsub.f32 %v4185, %v8892
    %v9567 = vsub.f32 %v4192, %v8899
    %v9568 = vsub.f32 %v4199, %v8906
    %v9569 = vsub.f32 %v4206, %v8913
    %v9570 = vsub.f32 %v4213, %v8920
    %v9571 = vsub.f32 %v4220, %v8927
    %v9572 = vsub.f32 %v4227, %v8934
    %v9573 = vsub.f32 %v4234, %v8941
    %v9574 = vsub.f32 %v4241, %v8948
    %v9575 = vsub.f32 %v4248, %v8955
    %v9576 = vsub.f32 %v4255, %v8962
    %v9577 = vsub.f32 %v4262, %v8969
    %v9578 = vsub.f32 %v4269, %v8976
    %v9579 = vsub.f32 %v4276, %v8983
    %v9580 = vsub.f32 %v4283, %v8990
    %v9581 = vsub.f32 %v4290, %v8997
    %v9582 = vsub.f32 %v4297, %v9004
    %v9583 = vsub.f32 %v4304, %v9011
    %v9584 = vsub.f32 %v4311, %v9018
    %v9585 = vsub.f32 %v4318, %v9025
    %v9586 = vsub.f32 %v4325, %v9032
    %v9587 = vsub.f32 %v4332, %v9039
    %v9588 = vsub.f32 %v4339, %v9046
    %v9589 = vsub.f32 %v4346, %v9053
    %v9590 = vsub.f32 %v4353, %v9060
    %v9591 = vsub.f32 %v4360, %v9067
    %v9592 = vsub.f32 %v4367, %v9074
    %v9593 = vsub.f32 %v4374, %v9081
    %v9594 = vsub.f32 %v4381, %v9088
    %v9595 = vsub.f32 %v4388, %v9095
    %v9596 = vsub.f32 %v4395, %v9102
    %v9597 = vsub.f32 %v4402, %v9109
    %v9598 = vsub.f32 %v4409, %v9116
    %v9599 = vsub.f32 %v4416, %v9123
    %v9600 = vsub.f32 %v4423, %v9130
    %v9601 = vsub.f32 %v4430, %v9137
    %v9602 = vsub.f32 %v4437, %v9144
    %v9603 = vsub.f32 %v4444, %v9151
    %v9604 = vsub.f32 %v4451, %v9158
    %v9605 = vsub.f32 %v4458, %v9165
    %v9606 = vsub.f32 %v4465, %v9172
    %v9607 = vsub.f32 %v4472, %v9179
    %v9608 = vsub.f32 %v4479, %v9186
    %v9609 = vsub.f32 %v4486, %v9193
    %v9610 = vsub.f32 %v4493, %v9200
    %v9611 = vsub.f32 %v4500, %v9207
    %v9612 = vsub.f32 %v4507, %v9214
    %v9613 = vsub.f32 %v4514, %v9221
    %v9614 = vsub.f32 %v4521, %v9228
    %v9615 = vsub.f32 %v4528, %v9235
    %v9616 = vsub.f32 %v4535, %v9242
    %v9617 = vsub.f32 %v4542, %v9249
    %v9618 = vsub.f32 %v4549, %v9256
    %v9619 = vsub.f32 %v4556, %v9263
    %v9620 = vsub.f32 %v4563, %v9270
    %v9621 = vsub.f32 %v4570, %v9277
    %v9622 = vsub.f32 %v4577, %v9284
    %v9623 = vsub.f32 %v4584, %v9291
    %v9624 = vsub.f32 %v4591, %v9298
    %v9625 = vsub.f32 %v4598, %v9305
    %v9626 = vsub.f32 %v4605, %v9312
    %v9627 = vsub.f32 %v4612, %v9319
    %v9628 = vsub.f32 %v4619, %v9326
    %v9629 = vsub.f32 %v4626, %v9333
    %v9630 = vsub.f32 %v4633, %v9340
    %v9631 = vsub.f32 %v4640, %v9347
    %v9632 = vsub.f32 %v4647, %v9354
    %v9633 = vsub.f32 %v4654, %v9361
    %v9634 = vsub.f32 %v4661, %v9368
    %v9635 = vsub.f32 %v4668, %v9375
    %v9636 = vsub.f32 %v4675, %v9382
    %v9637 = vsub.f32 %v4682, %v9389
    %v9638 = vsub.f32 %v4689, %v9396
    %v9639 = vsub.f32 %v4696, %v9403
    %v9640 = vsub.f32 %v4703, %v9410
    %v9641 = vsub.f32 %v4710, %v9417
    %v9642 = vsub.f32 %v4717, %v9424
    %v9643 = vsub.f32 %v4724, %v9431
    %v9644 = vsub.f32 %v4731, %v9438
    %v9645 = vsub.f32 %v4738, %v9445
    %v9646 = vsub.f32 %v4745, %v9452
    %v9647 = vsub.f32 %v4752, %v9459
    %v9648 = vsub.f32 %v4759, %v9466
    %v9649 = vsub.f32 %v4766, %v9473
    %v9650 = vsub.f32 %v4773, %v9480
    %v9651 = vsub.f32 %v4780, %v9487
    %v9652 = vsub.f32 %v4787, %v9494
    %v9653 = vsub.f32 %v4794, %v9501
    %v9654 = vsub.f32 %v4801, %v9508
    %v9655 = vsub.f32 %v4808, %v9515
    %v9656 = vsub.f32 %v4815, %v9522
    %v9657 = vsub.f32 %v4822, %v9529
    %v9658 = vand.u32 2147483647, %v9530
    %v9659 = vand.u32 2147483647, %v9531
    %v9660 = vand.u32 2147483647, %v9532
    %v9661 = vand.u32 2147483647, %v9533
    %v9662 = vand.u32 2147483647, %v9534
    %v9663 = vand.u32 2147483647, %v9535
    %v9664 = vand.u32 2147483647, %v9536
    %v9665 = vand.u32 2147483647, %v9537
    %v9666 = vand.u32 2147483647, %v9538
    %v9667 = vand.u32 2147483647, %v9539
    %v9668 = vand.u32 2147483647, %v9540
    %v9669 = vand.u32 2147483647, %v9541
    %v9670 = vand.u32 2147483647, %v9542
    %v9671 = vand.u32 2147483647, %v9543
    %v9672 = vand.u32 2147483647, %v9544
    %v9673 = vand.u32 2147483647, %v9545
    %v9674 = vand.u32 2147483647, %v9546
    %v9675 = vand.u32 2147483647, %v9547
    %v9676 = vand.u32 2147483647, %v9548
    %v9677 = vand.u32 2147483647, %v9549
    %v9678 = vand.u32 2147483647, %v9550
    %v9679 = vand.u32 2147483647, %v9551
    %v9680 = vand.u32 2147483647, %v9552
    %v9681 = vand.u32 2147483647, %v9553
    %v9682 = vand.u32 2147483647, %v9554
    %v9683 = vand.u32 2147483647, %v9555
    %v9684 = vand.u32 2147483647, %v9556
    %v9685 = vand.u32 2147483647, %v9557
    %v9686 = vand.u32 2147483647, %v9558
    %v9687 = vand.u32 2147483647, %v9559
    %v9688 = vand.u32 2147483647, %v9560
    %v9689 = vand.u32 2147483647, %v9561
    %v9690 = vand.u32 2147483647, %v9562
    %v9691 = vand.u32 2147483647, %v9563
    %v9692 = vand.u32 2147483647, %v9564
    %v9693 = vand.u32 2147483647, %v9565
    %v9694 = vand.u32 2147483647, %v9566
    %v9695 = vand.u32 2147483647, %v9567
    %v9696 = vand.u32 2147483647, %v9568
    %v9697 = vand.u32 2147483647, %v9569
    %v9698 = vand.u32 2147483647, %v9570
    %v9699 = vand.u32 2147483647, %v9571
    %v9700 = vand.u32 2147483647, %v9572
    %v9701 = vand.u32 2147483647, %v9573
    %v9702 = vand.u32 2147483647, %v9574
    %v9703 = vand.u32 2147483647, %v9575
    %v9704 = vand.u32 2147483647, %v9576
    %v9705 = vand.u32 2147483647, %v9577
    %v9706 = vand.u32 2147483647, %v9578
    %v9707 = vand.u32 2147483647, %v9579
    %v9708 = vand.u32 2147483647, %v9580
    %v9709 = vand.u32 2147483647, %v9581
    %v9710 = vand.u32 2147483647, %v9582
    %v9711 = vand.u32 2147483647, %v9583
    %v9712 = vand.u32 2147483647, %v9584
    %v9713 = vand.u32 2147483647, %v9585
    %v9714 = vand.u32 2147483647, %v9586
    %v9715 = vand.u32 2147483647, %v9587
    %v9716 = vand.u32 2147483647, %v9588
    %v9717 = vand.u32 2147483647, %v9589
    %v9718 = vand.u32 2147483647, %v9590
    %v9719 = vand.u32 2147483647, %v9591
    %v9720 = vand.u32 2147483647, %v9592
    %v9721 = vand.u32 2147483647, %v9593
    %v9722 = vand.u32 2147483647, %v9594
    %v9723 = vand.u32 2147483647, %v9595
    %v9724 = vand.u32 2147483647, %v9596
    %v9725 = vand.u32 2147483647, %v9597
    %v9726 = vand.u32 2147483647, %v9598
    %v9727 = vand.u32 2147483647, %v9599
    %v9728 = vand.u32 2147483647, %v9600
    %v9729 = vand.u32 2147483647, %v9601
    %v9730 = vand.u32 2147483647, %v9602
    %v9731 = vand.u32 2147483647, %v9603
    %v9732 = vand.u32 2147483647, %v9604
    %v9733 = vand.u32 2147483647, %v9605
    %v9734 = vand.u32 2147483647, %v9606
    %v9735 = vand.u32 2147483647, %v9607
    %v9736 = vand.u32 2147483647, %v9608
    %v9737 = vand.u32 2147483647, %v9609
    %v9738 = vand.u32 2147483647, %v9610
    %v9739 = vand.u32 2147483647, %v9611
    %v9740 = vand.u32 2147483647, %v9612
    %v9741 = vand.u32 2147483647, %v9613
    %v9742 = vand.u32 2147483647, %v9614
    %v9743 = vand.u32 2147483647, %v9615
    %v9744 = vand.u32 2147483647, %v9616
    %v9745 = vand.u32 2147483647, %v9617
    %v9746 = vand.u32 2147483647, %v9618
    %v9747 = vand.u32 2147483647, %v9619
    %v9748 = vand.u32 2147483647, %v9620
    %v9749 = vand.u32 2147483647, %v9621
    %v9750 = vand.u32 2147483647, %v9622
    %v9751 = vand.u32 2147483647, %v9623
    %v9752 = vand.u32 2147483647, %v9624
    %v9753 = vand.u32 2147483647, %v9625
    %v9754 = vand.u32 2147483647, %v9626
    %v9755 = vand.u32 2147483647, %v9627
    %v9756 = vand.u32 2147483647, %v9628
    %v9757 = vand.u32 2147483647, %v9629
    %v9758 = vand.u32 2147483647, %v9630
    %v9759 = vand.u32 2147483647, %v9631
    %v9760 = vand.u32 2147483647, %v9632
    %v9761 = vand.u32 2147483647, %v9633
    %v9762 = vand.u32 2147483647, %v9634
    %v9763 = vand.u32 2147483647, %v9635
    %v9764 = vand.u32 2147483647, %v9636
    %v9765 = vand.u32 2147483647, %v9637
    %v9766 = vand.u32 2147483647, %v9638
    %v9767 = vand.u32 2147483647, %v9639
    %v9768 = vand.u32 2147483647, %v9640
    %v9769 = vand.u32 2147483647, %v9641
    %v9770 = vand.u32 2147483647, %v9642
    %v9771 = vand.u32 2147483647, %v9643
    %v9772 = vand.u32 2147483647, %v9644
    %v9773 = vand.u32 2147483647, %v9645
    %v9774 = vand.u32 2147483647, %v9646
    %v9775 = vand.u32 2147483647, %v9647
    %v9776 = vand.u32 2147483647, %v9648
    %v9777 = vand.u32 2147483647, %v9649
    %v9778 = vand.u32 2147483647, %v9650
    %v9779 = vand.u32 2147483647, %v9651
    %v9780 = vand.u32 2147483647, %v9652
    %v9781 = vand.u32 2147483647, %v9653
    %v9782 = vand.u32 2147483647, %v9654
    %v9783 = vand.u32 2147483647, %v9655
    %v9784 = vand.u32 2147483647, %v9656
    %v9785 = vand.u32 2147483647, %v9657
    %v9786 = vld [vmem:[#allocation10] sm:$0xff]
    %v9787 = vld [vmem:[#allocation10 + $0x8] sm:$0xff]
    %v9788 = vld [vmem:[#allocation10 + $0x10] sm:$0xff]
    %v9789 = vld [vmem:[#allocation10 + $0x18] sm:$0xff]
    %v9790 = vld [vmem:[#allocation10 + $0x20] sm:$0xff]
    %v9791 = vld [vmem:[#allocation10 + $0x28] sm:$0xff]
    %v9792 = vld [vmem:[#allocation10 + $0x30] sm:$0xff]
    %v9793 = vld [vmem:[#allocation10 + $0x38] sm:$0xff]
    %v9794 = vld [vmem:[#allocation10 + $0x40] sm:$0xff]
    %v9795 = vld [vmem:[#allocation10 + $0x48] sm:$0xff]
    %v9796 = vld [vmem:[#allocation10 + $0x50] sm:$0xff]
    %v9797 = vld [vmem:[#allocation10 + $0x58] sm:$0xff]
    %v9798 = vld [vmem:[#allocation10 + $0x60] sm:$0xff]
    %v9799 = vld [vmem:[#allocation10 + $0x68] sm:$0xff]
    %v9800 = vld [vmem:[#allocation10 + $0x70] sm:$0xff]
    %v9801 = vld [vmem:[#allocation10 + $0x78] sm:$0xff]
    %v9802 = vadd.f32 %v9658, %v9674
    %v9803 = vadd.f32 %v9802, %v9690
    %v9804 = vadd.f32 %v9803, %v9706
    %v9805 = vadd.f32 %v9804, %v9722
    %v9806 = vadd.f32 %v9805, %v9738
    %v9807 = vadd.f32 %v9806, %v9754
    %v9808 = vadd.f32 %v9807, %v9770
    %v9809 = vadd.f32 %v9659, %v9675
    %v9810 = vadd.f32 %v9809, %v9691
    %v9811 = vadd.f32 %v9810, %v9707
    %v9812 = vadd.f32 %v9811, %v9723
    %v9813 = vadd.f32 %v9812, %v9739
    %v9814 = vadd.f32 %v9813, %v9755
    %v9815 = vadd.f32 %v9814, %v9771
    %v9816 = vadd.f32 %v9660, %v9676
    %v9817 = vadd.f32 %v9816, %v9692
    %v9818 = vadd.f32 %v9817, %v9708
    %v9819 = vadd.f32 %v9818, %v9724
    %v9820 = vadd.f32 %v9819, %v9740
    %v9821 = vadd.f32 %v9820, %v9756
    %v9822 = vadd.f32 %v9821, %v9772
    %v9823 = vadd.f32 %v9661, %v9677
    %v9824 = vadd.f32 %v9823, %v9693
    %v9825 = vadd.f32 %v9824, %v9709
    %v9826 = vadd.f32 %v9825, %v9725
    %v9827 = vadd.f32 %v9826, %v9741
    %v9828 = vadd.f32 %v9827, %v9757
    %v9829 = vadd.f32 %v9828, %v9773
    %v9830 = vadd.f32 %v9662, %v9678
    %v9831 = vadd.f32 %v9830, %v9694
    %v9832 = vadd.f32 %v9831, %v9710
    %v9833 = vadd.f32 %v9832, %v9726
    %v9834 = vadd.f32 %v9833, %v9742
    %v9835 = vadd.f32 %v9834, %v9758
    %v9836 = vadd.f32 %v9835, %v9774
    %v9837 = vadd.f32 %v9663, %v9679
    %v9838 = vadd.f32 %v9837, %v9695
    %v9839 = vadd.f32 %v9838, %v9711
    %v9840 = vadd.f32 %v9839, %v9727
    %v9841 = vadd.f32 %v9840, %v9743
    %v9842 = vadd.f32 %v9841, %v9759
    %v9843 = vadd.f32 %v9842, %v9775
    %v9844 = vadd.f32 %v9664, %v9680
    %v9845 = vadd.f32 %v9844, %v9696
    %v9846 = vadd.f32 %v9845, %v9712
    %v9847 = vadd.f32 %v9846, %v9728
    %v9848 = vadd.f32 %v9847, %v9744
    %v9849 = vadd.f32 %v9848, %v9760
    %v9850 = vadd.f32 %v9849, %v9776
    %v9851 = vadd.f32 %v9665, %v9681
    %v9852 = vadd.f32 %v9851, %v9697
    %v9853 = vadd.f32 %v9852, %v9713
    %v9854 = vadd.f32 %v9853, %v9729
    %v9855 = vadd.f32 %v9854, %v9745
    %v9856 = vadd.f32 %v9855, %v9761
    %v9857 = vadd.f32 %v9856, %v9777
    %v9858 = vadd.f32 %v9666, %v9682
    %v9859 = vadd.f32 %v9858, %v9698
    %v9860 = vadd.f32 %v9859, %v9714
    %v9861 = vadd.f32 %v9860, %v9730
    %v9862 = vadd.f32 %v9861, %v9746
    %v9863 = vadd.f32 %v9862, %v9762
    %v9864 = vadd.f32 %v9863, %v9778
    %v9865 = vadd.f32 %v9667, %v9683
    %v9866 = vadd.f32 %v9865, %v9699
    %v9867 = vadd.f32 %v9866, %v9715
    %v9868 = vadd.f32 %v9867, %v9731
    %v9869 = vadd.f32 %v9868, %v9747
    %v9870 = vadd.f32 %v9869, %v9763
    %v9871 = vadd.f32 %v9870, %v9779
    %v9872 = vadd.f32 %v9668, %v9684
    %v9873 = vadd.f32 %v9872, %v9700
    %v9874 = vadd.f32 %v9873, %v9716
    %v9875 = vadd.f32 %v9874, %v9732
    %v9876 = vadd.f32 %v9875, %v9748
    %v9877 = vadd.f32 %v9876, %v9764
    %v9878 = vadd.f32 %v9877, %v9780
    %v9879 = vadd.f32 %v9669, %v9685
    %v9880 = vadd.f32 %v9879, %v9701
    %v9881 = vadd.f32 %v9880, %v9717
    %v9882 = vadd.f32 %v9881, %v9733
    %v9883 = vadd.f32 %v9882, %v9749
    %v9884 = vadd.f32 %v9883, %v9765
    %v9885 = vadd.f32 %v9884, %v9781
    %v9886 = vadd.f32 %v9670, %v9686
    %v9887 = vadd.f32 %v9886, %v9702
    %v9888 = vadd.f32 %v9887, %v9718
    %v9889 = vadd.f32 %v9888, %v9734
    %v9890 = vadd.f32 %v9889, %v9750
    %v9891 = vadd.f32 %v9890, %v9766
    %v9892 = vadd.f32 %v9891, %v9782
    %v9893 = vadd.f32 %v9671, %v9687
    %v9894 = vadd.f32 %v9893, %v9703
    %v9895 = vadd.f32 %v9894, %v9719
    %v9896 = vadd.f32 %v9895, %v9735
    %v9897 = vadd.f32 %v9896, %v9751
    %v9898 = vadd.f32 %v9897, %v9767
    %v9899 = vadd.f32 %v9898, %v9783
    %v9900 = vadd.f32 %v9672, %v9688
    %v9901 = vadd.f32 %v9900, %v9704
    %v9902 = vadd.f32 %v9901, %v9720
    %v9903 = vadd.f32 %v9902, %v9736
    %v9904 = vadd.f32 %v9903, %v9752
    %v9905 = vadd.f32 %v9904, %v9768
    %v9906 = vadd.f32 %v9905, %v9784
    %v9907 = vadd.f32 %v9673, %v9689
    %v9908 = vadd.f32 %v9907, %v9705
    %v9909 = vadd.f32 %v9908, %v9721
    %v9910 = vadd.f32 %v9909, %v9737
    %v9911 = vadd.f32 %v9910, %v9753
    %v9912 = vadd.f32 %v9911, %v9769
    %v9913 = vadd.f32 %v9912, %v9785
    %v9914 = vadd.f32 %v9786, %v9808
    %v9915 = vadd.f32 %v9787, %v9815
    %v9916 = vadd.f32 %v9788, %v9822
    %v9917 = vadd.f32 %v9789, %v9829
    %v9918 = vadd.f32 %v9790, %v9836
    %v9919 = vadd.f32 %v9791, %v9843
    %v9920 = vadd.f32 %v9792, %v9850
    %v9921 = vadd.f32 %v9793, %v9857
    %v9922 = vadd.f32 %v9794, %v9864
    %v9923 = vadd.f32 %v9795, %v9871
    %v9924 = vadd.f32 %v9796, %v9878
    %v9925 = vadd.f32 %v9797, %v9885
    %v9926 = vadd.f32 %v9798, %v9892
    %v9927 = vadd.f32 %v9799, %v9899
    %v9928 = vadd.f32 %v9800, %v9906
    %v9929 = vadd.f32 %v9801, %v9913
    %9930 = vst [vmem:[#allocation10] sm:$0xff] %v9914
    %9931 = vst [vmem:[#allocation10 + $0x8] sm:$0xff] %v9915
    %9932 = vst [vmem:[#allocation10 + $0x10] sm:$0xff] %v9916
    %9933 = vst [vmem:[#allocation10 + $0x18] sm:$0xff] %v9917
    %9934 = vst [vmem:[#allocation10 + $0x20] sm:$0xff] %v9918
    %9935 = vst [vmem:[#allocation10 + $0x28] sm:$0xff] %v9919
    %9936 = vst [vmem:[#allocation10 + $0x30] sm:$0xff] %v9920
    %9937 = vst [vmem:[#allocation10 + $0x38] sm:$0xff] %v9921
    %9938 = vst [vmem:[#allocation10 + $0x40] sm:$0xff] %v9922
    %9939 = vst [vmem:[#allocation10 + $0x48] sm:$0xff] %v9923
    %9940 = vst [vmem:[#allocation10 + $0x50] sm:$0xff] %v9924
    %9941 = vst [vmem:[#allocation10 + $0x58] sm:$0xff] %v9925
    %9942 = vst [vmem:[#allocation10 + $0x60] sm:$0xff] %v9926
    %9943 = vst [vmem:[#allocation10 + $0x68] sm:$0xff] %v9927
    %9944 = vst [vmem:[#allocation10 + $0x70] sm:$0xff] %v9928
    %9945 = vst [vmem:[#allocation10 + $0x78] sm:$0xff] %v9929
    // Predicated region
    $region38: #{tpu_custom_call.1} parent=1 // pred_check
      _
    $region39: #{tpu_custom_call.1} parent=1 // pred_check_branch
      %9947 = sbr.rel (0) target = $region41
    $region40: #{tpu_custom_call.1} parent=1 // pred_region
      %s9949 = ssub.s32 2048, 2048
      %9950 = vsyncadd [#allocation4], %s9949
      %s9951 = sshll.u32 [#allocation10], 4
      %s9952 = int_to_ptr.vmem [resolvable:$true] %s9951
      %9957 = dma.vmem_to_hbm [thread:$0]  %s9952, 2048, %s4, [#allocation4], 128, 128, 8
    $region41: #{tpu_custom_call.1} parent=1 // pred_fallthru
      _
    // Predicated region
    $region42: #{tpu_custom_call.1} parent=1 // pred_check
      _
    $region43: #{tpu_custom_call.1} parent=1 // pred_check_branch
      %9959 = sbr.rel (0) target = $region45
    $region44: #{tpu_custom_call.1} parent=1 // pred_region
      %9960 = dma.done [#allocation4], 2048
    $region45: #{tpu_custom_call.1} parent=1 // pred_fallthru
      _
    %9961 = vsyncpa [#allocation3], 1
    %9962 = vsyncpa [#allocation6], 1
    %9963 = vsyncpa [#allocation9], 1
    %9964 = vsyncpa [#allocation4], 1

</llo_original>
